<compile_context>
chip_gen: v7x
topology: tpu7x:2x2x1
jax: 0.10.0
libtpu: 0.0.40
codegen_flags: <defaults>
</compile_context>

<pallas_src>
import jax
import jax.numpy as jnp
from jax.experimental import pallas as pl
from jax.experimental.pallas import tpu as pltpu


# ---------------------------------------------------------------------------
# In-kernel helper: 3x3 "same" conv as a single (M, 9C) x (9C, O) MXU matmul.
# `pad_ref` is a (Nb, H+2, W+2, C) bf16 VMEM scratch whose border is zero;
# only its interior is (re)written, the 9 shifted taps are read back from it.
# ---------------------------------------------------------------------------
def _conv9(pad_ref, x_bf16, w_ref):
    nb, h, w, c = x_bf16.shape
    pad_ref[:, 1:h + 1, 1:w + 1, :] = x_bf16
    taps = [pad_ref[:, a:a + h, b:b + w, :].reshape(nb * h * w, c)
            for a in range(3) for b in range(3)]
    patch = jnp.concatenate(taps, axis=1)                    # (M, 9C) bf16
    return jnp.dot(patch, w_ref[...], preferred_element_type=jnp.float32)


# ---------------------------------------------------------------------------
# Single fused decoder kernel.
# ---------------------------------------------------------------------------
def _decoder_kernel(x_ref,
                    w3a_ref, w1a_ref, w3b_ref, w1b_ref,
                    wct1_ref, bct1_ref, wct2_ref, bct2_ref,
                    wct3_ref, bct3_ref,
                    o_ref,
                    pad1_ref, pad2_ref, v_ref):
    nb, H, W, C = x_ref.shape

    # Zero the pad scratches once per step; only interiors are rewritten below.
    pad1_ref[...] = jnp.zeros_like(pad1_ref)
    pad2_ref[...] = jnp.zeros_like(pad2_ref)

    x = x_ref[...].astype(jnp.float32)
    xf = x.reshape(nb * H * W, C)

    # --- ResidualStack(latent, latent, latent, 2) ----------------------------
    # TODO(synk): `ResidualStack` is not defined in the provided source; the
    # standard VQ-VAE semantics are assumed:
    #   2x: x = x + Conv1x1(ReLU(Conv3x3(ReLU(x))))   (bias-free convs)
    #   followed by a final ReLU.
    h1 = jnp.maximum(
        _conv9(pad1_ref, jnp.maximum(x, 0.0).astype(jnp.bfloat16), w3a_ref), 0.0)
    y = jnp.dot(h1.astype(jnp.bfloat16), w1a_ref[...],
                preferred_element_type=jnp.float32) + xf
    h2 = jnp.maximum(
        _conv9(pad1_ref,
               jnp.maximum(y, 0.0).astype(jnp.bfloat16).reshape(nb, H, W, C),
               w3b_ref), 0.0)
    y = jnp.dot(h2.astype(jnp.bfloat16), w1b_ref[...],
                preferred_element_type=jnp.float32) + y
    z = jnp.maximum(y, 0.0)

    # --- ConvTranspose(k=3, s=1, p=1) + ReLU (== flipped 3x3 'same' conv) ----
    t = _conv9(pad1_ref, z.astype(jnp.bfloat16).reshape(nb, H, W, C), wct1_ref)
    t = jnp.maximum(t + bct1_ref[...], 0.0)                  # (M, 64)

    # --- ConvTranspose(k=4, s=2, p=1) 64->32 + ReLU, kept PHASE-PACKED -------
    # One 9-tap matmul yields all four 2x-upsampling phases at once; the 128
    # output columns are ordered (r, s, c2) = (row-phase, col-phase, channel).
    u = _conv9(pad1_ref, t.astype(jnp.bfloat16).reshape(nb, H, W, C), wct2_ref)
    u = jnp.maximum(u + bct2_ref[...], 0.0)                  # (M, 128)

    # --- ConvTranspose(k=4, s=2, p=1) 32->1 + Sigmoid, in the phase domain ---
    # ct3 is evaluated directly on the phase-packed tensor with a pre-built
    # (9*128, 16) weight whose 16 columns are the final 4x4 sub-pixel phases
    # (qy, qx) of every 8x8 cell -> no 16x16 interleave is ever needed.
    c2 = u.shape[1]
    v = _conv9(pad2_ref, u.astype(jnp.bfloat16).reshape(nb, H, W, c2), wct3_ref)
    v = jax.nn.sigmoid(v + bct3_ref[...])                    # (M, 16) f32

    # --- final sub-pixel interleave -> lane-dense (nb, 8, 128) store ---------
    # image pixel (4y+qy, 4x+qx)  <->  row y, lane 32*qy + 4*x + qx
    v_ref[...] = v.reshape(nb, H, W, 16)
    blocks = [v_ref[:, :, xc, 4 * qy:4 * qy + 4]
              for qy in range(4) for xc in range(W)]
    o_ref[...] = jnp.concatenate(blocks, axis=-1).astype(o_ref.dtype)


# ---------------------------------------------------------------------------
# Grid choice: one sample per TensorCore on v7x, batch folded into M otherwise.
# ---------------------------------------------------------------------------
def _num_grid_steps(batch):
    try:
        kind = jax.devices()[0].device_kind.lower()
    except Exception:
        return 1
    if "v7" in kind and batch % 2 == 0:
        return 2          # 2 TensorCores/chip: one sample per core
    return 1              # v5e/v6e: single TC, fold batch into the matmul M dim


# ---------------------------------------------------------------------------
# pallas_call wrapper (one call for the whole decoder)
# ---------------------------------------------------------------------------
def decoder_forward(x_nchw, packed, grid_steps=None):
    N, Ci, H, W = x_nchw.shape
    if grid_steps is None:
        grid_steps = _num_grid_steps(N)
    assert N % grid_steps == 0
    nb = N // grid_steps

    x = jnp.transpose(x_nchw, (0, 2, 3, 1)).astype(jnp.bfloat16)   # NHWC bf16

    lanes = 16 * W                                     # 128 for W=8
    c2 = packed["wct2"].shape[1]                       # 4 * ct2-out-channels
    out_shape = jax.ShapeDtypeStruct((N, H, lanes), jnp.float32)

    args = (x, packed["w3a"], packed["w1a"], packed["w3b"], packed["w1b"],
            packed["wct1"], packed["bct1"], packed["wct2"], packed["bct2"],
            packed["wct3"], packed["bct3"])

    def full_spec(shape):
        return pl.BlockSpec(shape, lambda n: (0,) * len(shape))

    in_specs = [pl.BlockSpec((nb, H, W, Ci), lambda n: (n, 0, 0, 0))]
    in_specs += [full_spec(a.shape) for a in args[1:]]

    flops = 2 * N * H * W * (3 * 9 * Ci * Ci + 2 * Ci * Ci
                             + 9 * Ci * c2 + 9 * c2 * 16)
    nbytes = sum(int(a.size) * a.dtype.itemsize for a in args) + N * H * lanes * 4

    grid_spec = pltpu.PrefetchScalarGridSpec(
        num_scalar_prefetch=0,
        grid=(grid_steps,),
        in_specs=in_specs,
        out_specs=pl.BlockSpec((nb, H, lanes), lambda n: (n, 0, 0)),
        scratch_shapes=[
            pltpu.VMEM((nb, H + 2, W + 2, Ci), jnp.bfloat16),   # pad scratch 1
            pltpu.VMEM((nb, H + 2, W + 2, c2), jnp.bfloat16),   # pad scratch 2
            pltpu.VMEM((nb, H, W, 16), jnp.float32),            # phase output
        ],
    )

    y = pl.pallas_call(
        _decoder_kernel,
        out_shape=out_shape,
        grid_spec=grid_spec,
        compiler_params=pltpu.CompilerParams(dimension_semantics=("parallel",)),
        cost_estimate=pl.CostEstimate(flops=int(flops),
                                      transcendentals=int(N * H * W * 16),
                                      bytes_accessed=int(nbytes)),
    )(*args)

    # (N, H, 16W) -> (N, 1, 4H, 4W): contiguous, free reshape.
    return y.reshape(N, 1, 4 * H, 4 * W)


# ---------------------------------------------------------------------------
# One-time weight packing (hoisted out of the forward; runs eagerly at init)
# ---------------------------------------------------------------------------
def _conv3x3_matrix(w_oihw):
    """Conv2d weight (O,I,3,3) -> (9I, O), rows ordered (tap_a, tap_b, c)."""
    o, i, kh, kw = w_oihw.shape
    return jnp.transpose(w_oihw, (2, 3, 1, 0)).reshape(kh * kw * i, o) \
              .astype(jnp.bfloat16)


def _conv1x1_matrix(w_oihw):
    return jnp.transpose(w_oihw[:, :, 0, 0], (1, 0)).astype(jnp.bfloat16)


def _convT3x3_matrix(w_iohw):
    """ConvTranspose2d(k=3,s=1,p=1) == 3x3 'same' conv with flipped kernel."""
    i, o, kh, kw = w_iohw.shape
    wf = jnp.flip(w_iohw, axis=(2, 3))
    return jnp.transpose(wf, (2, 3, 0, 1)).reshape(kh * kw * i, o) \
              .astype(jnp.bfloat16)


def _convT4x4s2_9tap_matrix(w_iohw):
    """ConvTranspose2d(k=4,s=2,p=1) as a 9-tap matrix producing all 4 phases.

    Rows: (tap_a, tap_b, in_channel); cols: (r, s, out_channel)."""
    i, o = int(w_iohw.shape[0]), int(w_iohw.shape[1])
    zeros = jnp.zeros((i, o), w_iohw.dtype)
    rows = []
    for a in range(3):
        for b in range(3):
            cols = []
            for r in range(2):
                for s in range(2):
                    dr, ds = a - r, b - s
                    if 0 <= dr <= 1 and 0 <= ds <= 1:
                        cols.append(w_iohw[:, :, 3 - 2 * dr - r, 3 - 2 * ds - s])
                    else:
                        cols.append(zeros)
            rows.append(jnp.concatenate(cols, axis=1))          # (I, 4O)
    return jnp.concatenate(rows, axis=0).astype(jnp.bfloat16)   # (9I, 4O)


def _convT4x4s2_phase_domain_matrix(w_iohw):
    """ConvTranspose2d(k=4,s=2,p=1, out=1) applied to a PHASE-PACKED input.

    Input channels of the packed tensor are ordered (r, s, c); the matrix maps
    the 9-tap patch of that tensor to the 16 final sub-pixel phases (qy, qx).
    Rows: (dy, dx, r, s, c) -> 9*4*I; cols: (qy, qx) -> 16."""
    i = int(w_iohw.shape[0])
    assert int(w_iohw.shape[1]) == 1
    zcol = jnp.zeros((i,), w_iohw.dtype)
    rows = []
    for dy in range(3):
        for dx in range(3):
            for r in range(2):
                for s in range(2):
                    cols = []
                    for qy in range(4):
                        for qx in range(4):
                            ky = qy - 2 * r + 5 - 4 * dy
                            kx = qx - 2 * s + 5 - 4 * dx
                            if 0 <= ky <= 3 and 0 <= kx <= 3:
                                cols.append(w_iohw[:, 0, ky, kx])
                            else:
                                cols.append(zcol)
                    rows.append(jnp.stack(cols, axis=1))         # (I, 16)
    return jnp.concatenate(rows, axis=0).astype(jnp.bfloat16)    # (36I, 16)


def pack_decoder_params(params):
    """Repack PyTorch-layout weights into MXU-ready matrices (done ONCE)."""
    (w3a, w1a), (w3b, w1b) = params["res"]
    return dict(
        w3a=_conv3x3_matrix(w3a), w1a=_conv1x1_matrix(w1a),
        w3b=_conv3x3_matrix(w3b), w1b=_conv1x1_matrix(w1b),
        wct1=_convT3x3_matrix(params["ct1_w"]),
        bct1=params["ct1_b"].reshape(1, -1).astype(jnp.float32),
        wct2=_convT4x4s2_9tap_matrix(params["ct2_w"]),
        bct2=jnp.tile(params["ct2_b"], 4).reshape(1, -1).astype(jnp.float32),
        wct3=_convT4x4s2_phase_domain_matrix(params["ct3_w"]),
        bct3=jnp.tile(params["ct3_b"], 16).reshape(1, -1).astype(jnp.float32),
    )


# ---------------------------------------------------------------------------
# Parameter init (PyTorch-like uniform +-1/sqrt(fan_in))
# ---------------------------------------------------------------------------
def init_params(key, latent_dim=64):
    ks = jax.random.split(key, 10)

    def u(k, shape, fan_in):
        bound = 1.0 / float(fan_in) ** 0.5
        return jax.random.uniform(k, shape, jnp.float32, -bound, bound)

    res = []
    for i in range(2):
        w3 = u(ks[2 * i], (latent_dim, latent_dim, 3, 3), latent_dim * 9)
        w1 = u(ks[2 * i + 1], (latent_dim, latent_dim, 1, 1), latent_dim)
        res.append((w3, w1))
    return {
        "res": res,
        # ConvTranspose2d weights in PyTorch layout (in, out, kh, kw)
        "ct1_w": u(ks[4], (latent_dim, 64, 3, 3), latent_dim * 9),
        "ct1_b": u(ks[5], (64,), latent_dim * 9),
        "ct2_w": u(ks[6], (64, 32, 4, 4), 64 * 16),
        "ct2_b": u(ks[7], (32,), 64 * 16),
        "ct3_w": u(ks[8], (32, 1, 4, 4), 32 * 16),
        "ct3_b": u(ks[9], (1,), 32 * 16),
    }


# ---------------------------------------------------------------------------
# Pure-JAX reference (f32) for a sanity tolerance check
# ---------------------------------------------------------------------------
def _conv_ref(x, w_oihw, pad):
    return jax.lax.conv_general_dilated(
        x, w_oihw, (1, 1), [(pad, pad), (pad, pad)],
        dimension_numbers=("NCHW", "OIHW", "NCHW"),
        precision=jax.lax.Precision.HIGHEST)


def _convT_ref(x, w_iohw, b, stride, pad):
    k = int(w_iohw.shape[2])
    w = jnp.transpose(jnp.flip(w_iohw, (2, 3)), (1, 0, 2, 3))   # (O, I, k, k)
    y = jax.lax.conv_general_dilated(
        x, w, (1, 1), [(k - 1 - pad, k - 1 - pad)] * 2,
        lhs_dilation=(stride, stride),
        dimension_numbers=("NCHW", "OIHW", "NCHW"),
        precision=jax.lax.Precision.HIGHEST)
    return y + b.reshape(1, -1, 1, 1)


def decoder_reference(x, params):
    y = x
    for (w3, w1) in params["res"]:
        h = _conv_ref(jax.nn.relu(y), w3, 1)
        h = _conv_ref(jax.nn.relu(h), w1, 0)
        y = y + h
    y = jax.nn.relu(y)
    y = jax.nn.relu(_convT_ref(y, params["ct1_w"], params["ct1_b"], 1, 1))
    y = jax.nn.relu(_convT_ref(y, params["ct2_w"], params["ct2_b"], 2, 1))
    return jax.nn.sigmoid(_convT_ref(y, params["ct3_w"], params["ct3_b"], 2, 1))


if __name__ == "__main__":
    latent_dim = 64
    key = jax.random.PRNGKey(0)
    k_param, k_x = jax.random.split(key)
    params = init_params(k_param, latent_dim)
    packed = pack_decoder_params(params)        # one-time, outside the jit
    # latent map: batch=2, channels=latent_dim, 8x8 spatial (NCHW)
    x = jax.random.normal(k_x, (2, latent_dim, 8, 8), jnp.float32)

    fwd = jax.jit(lambda xx: decoder_forward(xx, packed))
    out = jax.block_until_ready(fwd(x))

    assert out.shape == (2, 1, 32, 32), out.shape
    assert bool(jnp.all(jnp.isfinite(out)))
    assert bool(jnp.all((out >= 0.0) & (out <= 1.0)))          # sigmoid range

    ref = decoder_reference(x, params)
    err = float(jnp.max(jnp.abs(out - ref)))
    assert err < 2e-2, f"max abs error vs f32 reference: {err}"

    print("KERNEL_OK")
</pallas_src>

<mosaic_0001>
module attributes {stable_mosaic.version = 11 : i64} {
  func.func @_decoder_kernel(%arg0: i32, %arg1: memref<2x8x8x64xbf16, #tpu.memory_space<vmem>>, %arg2: memref<576x64xbf16, #tpu.memory_space<vmem>>, %arg3: memref<64x64xbf16, #tpu.memory_space<vmem>>, %arg4: memref<576x64xbf16, #tpu.memory_space<vmem>>, %arg5: memref<64x64xbf16, #tpu.memory_space<vmem>>, %arg6: memref<576x64xbf16, #tpu.memory_space<vmem>>, %arg7: memref<1x64xf32, #tpu.memory_space<vmem>>, %arg8: memref<576x128xbf16, #tpu.memory_space<vmem>>, %arg9: memref<1x128xf32, #tpu.memory_space<vmem>>, %arg10: memref<1152x16xbf16, #tpu.memory_space<vmem>>, %arg11: memref<1x16xf32, #tpu.memory_space<vmem>>, %arg12: memref<2x8x128xf32, #tpu.memory_space<vmem>>, %arg13: memref<2x10x10x64xbf16, #tpu.memory_space<vmem>>, %arg14: memref<2x10x10x128xbf16, #tpu.memory_space<vmem>>, %arg15: memref<2x8x8x16xf32, #tpu.memory_space<vmem>>) attributes {dimension_semantics = [#tpu.dimension_semantics<parallel>], iteration_bounds = array<i64: 1>, scalar_prefetch = 0 : i64, scratch_operands = 3 : i64, tpu.core_type = #tpu.core_type<tc>, window_params = [{transform_indices = @transform_0, window_bounds = array<i64: 2, 8, 8, 64>}, {pipeline_mode = #tpu.pipeline_mode<synchronous>, transform_indices = @transform_1, window_bounds = array<i64: 576, 64>}, {pipeline_mode = #tpu.pipeline_mode<synchronous>, transform_indices = @transform_2, window_bounds = array<i64: 64, 64>}, {pipeline_mode = #tpu.pipeline_mode<synchronous>, transform_indices = @transform_3, window_bounds = array<i64: 576, 64>}, {pipeline_mode = #tpu.pipeline_mode<synchronous>, transform_indices = @transform_4, window_bounds = array<i64: 64, 64>}, {pipeline_mode = #tpu.pipeline_mode<synchronous>, transform_indices = @transform_5, window_bounds = array<i64: 576, 64>}, {pipeline_mode = #tpu.pipeline_mode<synchronous>, transform_indices = @transform_6, window_bounds = array<i64: 1, 64>}, {pipeline_mode = #tpu.pipeline_mode<synchronous>, transform_indices = @transform_7, window_bounds = array<i64: 576, 128>}, {pipeline_mode = #tpu.pipeline_mode<synchronous>, transform_indices = @transform_8, window_bounds = array<i64: 1, 128>}, {pipeline_mode = #tpu.pipeline_mode<synchronous>, transform_indices = @transform_9, window_bounds = array<i64: 1152, 16>}, {pipeline_mode = #tpu.pipeline_mode<synchronous>, transform_indices = @transform_10, window_bounds = array<i64: 1, 16>}, {transform_indices = @transform_11, window_bounds = array<i64: 2, 8, 128>}]} {
    %cst = arith.constant 0.000000e+00 : bf16
    %0 = vector.broadcast %cst : bf16 to vector<2x10x10x64xbf16>
    %c0 = arith.constant 0 : index
    %c0_0 = arith.constant 0 : index
    %c0_1 = arith.constant 0 : index
    %c0_2 = arith.constant 0 : index
    %1 = vector.load %arg13[%c0, %c0_0, %c0_1, %c0_2] : memref<2x10x10x64xbf16, #tpu.memory_space<vmem>>, vector<2x10x10x64xbf16>
    tpu.vector_store %arg13[%c0, %c0_0, %c0_1, %c0_2], %0 {strides = array<i32>} : memref<2x10x10x64xbf16, #tpu.memory_space<vmem>>, vector<2x10x10x64xbf16>,
    %cst_3 = arith.constant 0.000000e+00 : bf16
    %2 = vector.broadcast %cst_3 : bf16 to vector<2x10x10x128xbf16>
    %c0_4 = arith.constant 0 : index
    %c0_5 = arith.constant 0 : index
    %c0_6 = arith.constant 0 : index
    %c0_7 = arith.constant 0 : index
    %3 = vector.load %arg14[%c0_4, %c0_5, %c0_6, %c0_7] : memref<2x10x10x128xbf16, #tpu.memory_space<vmem>>, vector<2x10x10x128xbf16>
    tpu.vector_store %arg14[%c0_4, %c0_5, %c0_6, %c0_7], %2 {strides = array<i32>} : memref<2x10x10x128xbf16, #tpu.memory_space<vmem>>, vector<2x10x10x128xbf16>,
    %c0_8 = arith.constant 0 : index
    %c0_9 = arith.constant 0 : index
    %c0_10 = arith.constant 0 : index
    %c0_11 = arith.constant 0 : index
    %4 = vector.load %arg1[%c0_8, %c0_9, %c0_10, %c0_11] : memref<2x8x8x64xbf16, #tpu.memory_space<vmem>>, vector<2x8x8x64xbf16>
    %5 = arith.extf %4 : vector<2x8x8x64xbf16> to vector<2x8x8x64xf32>
    %6 = vector.shape_cast %5 : vector<2x8x8x64xf32> to vector<128x64xf32>
    %cst_12 = arith.constant 0.000000e+00 : f32
    %7 = vector.broadcast %cst_12 : f32 to vector<2x8x8x64xf32>
    %8 = arith.maximumf %5, %7 : vector<2x8x8x64xf32>
    %9 = arith.truncf %8 : vector<2x8x8x64xf32> to vector<2x8x8x64xbf16>
    %c0_13 = arith.constant 0 : index
    %c1 = arith.constant 1 : index
    %c1_14 = arith.constant 1 : index
    %c0_15 = arith.constant 0 : index
    %10 = vector.load %arg13[%c0_13, %c1, %c1_14, %c0_15] : memref<2x10x10x64xbf16, #tpu.memory_space<vmem>>, vector<2x8x8x64xbf16>
    tpu.vector_store %arg13[%c0_13, %c1, %c1_14, %c0_15], %9 {strides = array<i32>} : memref<2x10x10x64xbf16, #tpu.memory_space<vmem>>, vector<2x8x8x64xbf16>,
    %c0_16 = arith.constant 0 : index
    %c0_17 = arith.constant 0 : index
    %c0_18 = arith.constant 0 : index
    %c0_19 = arith.constant 0 : index
    %11 = vector.load %arg13[%c0_16, %c0_17, %c0_18, %c0_19] : memref<2x10x10x64xbf16, #tpu.memory_space<vmem>>, vector<2x8x8x64xbf16>
    %12 = vector.shape_cast %11 : vector<2x8x8x64xbf16> to vector<128x64xbf16>
    %c0_20 = arith.constant 0 : index
    %c0_21 = arith.constant 0 : index
    %c1_22 = arith.constant 1 : index
    %c0_23 = arith.constant 0 : index
    %13 = vector.load %arg13[%c0_20, %c0_21, %c1_22, %c0_23] : memref<2x10x10x64xbf16, #tpu.memory_space<vmem>>, vector<2x8x8x64xbf16>
    %14 = vector.shape_cast %13 : vector<2x8x8x64xbf16> to vector<128x64xbf16>
    %c0_24 = arith.constant 0 : index
    %c0_25 = arith.constant 0 : index
    %c2 = arith.constant 2 : index
    %c0_26 = arith.constant 0 : index
    %15 = vector.load %arg13[%c0_24, %c0_25, %c2, %c0_26] : memref<2x10x10x64xbf16, #tpu.memory_space<vmem>>, vector<2x8x8x64xbf16>
    %16 = vector.shape_cast %15 : vector<2x8x8x64xbf16> to vector<128x64xbf16>
    %c0_27 = arith.constant 0 : index
    %c1_28 = arith.constant 1 : index
    %c0_29 = arith.constant 0 : index
    %c0_30 = arith.constant 0 : index
    %17 = vector.load %arg13[%c0_27, %c1_28, %c0_29, %c0_30] : memref<2x10x10x64xbf16, #tpu.memory_space<vmem>>, vector<2x8x8x64xbf16>
    %18 = vector.shape_cast %17 : vector<2x8x8x64xbf16> to vector<128x64xbf16>
    %c0_31 = arith.constant 0 : index
    %c1_32 = arith.constant 1 : index
    %c1_33 = arith.constant 1 : index
    %c0_34 = arith.constant 0 : index
    %19 = vector.load %arg13[%c0_31, %c1_32, %c1_33, %c0_34] : memref<2x10x10x64xbf16, #tpu.memory_space<vmem>>, vector<2x8x8x64xbf16>
    %20 = vector.shape_cast %19 : vector<2x8x8x64xbf16> to vector<128x64xbf16>
    %c0_35 = arith.constant 0 : index
    %c1_36 = arith.constant 1 : index
    %c2_37 = arith.constant 2 : index
    %c0_38 = arith.constant 0 : index
    %21 = vector.load %arg13[%c0_35, %c1_36, %c2_37, %c0_38] : memref<2x10x10x64xbf16, #tpu.memory_space<vmem>>, vector<2x8x8x64xbf16>
    %22 = vector.shape_cast %21 : vector<2x8x8x64xbf16> to vector<128x64xbf16>
    %c0_39 = arith.constant 0 : index
    %c2_40 = arith.constant 2 : index
    %c0_41 = arith.constant 0 : index
    %c0_42 = arith.constant 0 : index
    %23 = vector.load %arg13[%c0_39, %c2_40, %c0_41, %c0_42] : memref<2x10x10x64xbf16, #tpu.memory_space<vmem>>, vector<2x8x8x64xbf16>
    %24 = vector.shape_cast %23 : vector<2x8x8x64xbf16> to vector<128x64xbf16>
    %c0_43 = arith.constant 0 : index
    %c2_44 = arith.constant 2 : index
    %c1_45 = arith.constant 1 : index
    %c0_46 = arith.constant 0 : index
    %25 = vector.load %arg13[%c0_43, %c2_44, %c1_45, %c0_46] : memref<2x10x10x64xbf16, #tpu.memory_space<vmem>>, vector<2x8x8x64xbf16>
    %26 = vector.shape_cast %25 : vector<2x8x8x64xbf16> to vector<128x64xbf16>
    %c0_47 = arith.constant 0 : index
    %c2_48 = arith.constant 2 : index
    %c2_49 = arith.constant 2 : index
    %c0_50 = arith.constant 0 : index
    %27 = vector.load %arg13[%c0_47, %c2_48, %c2_49, %c0_50] : memref<2x10x10x64xbf16, #tpu.memory_space<vmem>>, vector<2x8x8x64xbf16>
    %28 = vector.shape_cast %27 : vector<2x8x8x64xbf16> to vector<128x64xbf16>
    %29 = tpu.concatenate %12, %14, %16, %18, %20, %22, %24, %26, %28 in 1 : vector<128x64xbf16>, vector<128x64xbf16>, vector<128x64xbf16>, vector<128x64xbf16>, vector<128x64xbf16>, vector<128x64xbf16>, vector<128x64xbf16>, vector<128x64xbf16>, vector<128x64xbf16> -> vector<128x576xbf16>
    %c0_51 = arith.constant 0 : index
    %c0_52 = arith.constant 0 : index
    %30 = vector.load %arg2[%c0_51, %c0_52] : memref<576x64xbf16, #tpu.memory_space<vmem>>, vector<576x64xbf16>
    %cst_53 = arith.constant dense<0.000000e+00> : vector<128x64xf32>
    %31 = tpu.matmul %29, %30, %cst_53 {dimension_numbers = #tpu.dot_dimension_numbers<[1], [0], [0], [1], [0, 0, 1, 1], [], []>} : vector<128x576xbf16>, vector<576x64xbf16>, vector<128x64xf32> -> vector<128x64xf32>
    %cst_54 = arith.constant 0.000000e+00 : f32
    %32 = vector.broadcast %cst_54 : f32 to vector<128x64xf32>
    %33 = arith.maximumf %31, %32 : vector<128x64xf32>
    %34 = arith.truncf %33 : vector<128x64xf32> to vector<128x64xbf16>
    %c0_55 = arith.constant 0 : index
    %c0_56 = arith.constant 0 : index
    %35 = vector.load %arg3[%c0_55, %c0_56] : memref<64x64xbf16, #tpu.memory_space<vmem>>, vector<64x64xbf16>
    %cst_57 = arith.constant dense<0.000000e+00> : vector<128x64xf32>
    %36 = tpu.matmul %34, %35, %cst_57 {dimension_numbers = #tpu.dot_dimension_numbers<[1], [0], [0], [1], [0, 0, 1, 1], [], []>} : vector<128x64xbf16>, vector<64x64xbf16>, vector<128x64xf32> -> vector<128x64xf32>
    %37 = arith.addf %36, %6 : vector<128x64xf32>
    %cst_58 = arith.constant 0.000000e+00 : f32
    %38 = vector.broadcast %cst_58 : f32 to vector<128x64xf32>
    %39 = arith.maximumf %37, %38 : vector<128x64xf32>
    %40 = arith.truncf %39 : vector<128x64xf32> to vector<128x64xbf16>
    %41 = vector.shape_cast %40 : vector<128x64xbf16> to vector<2x8x8x64xbf16>
    %c0_59 = arith.constant 0 : index
    %c1_60 = arith.constant 1 : index
    %c1_61 = arith.constant 1 : index
    %c0_62 = arith.constant 0 : index
    %42 = vector.load %arg13[%c0_59, %c1_60, %c1_61, %c0_62] : memref<2x10x10x64xbf16, #tpu.memory_space<vmem>>, vector<2x8x8x64xbf16>
    tpu.vector_store %arg13[%c0_59, %c1_60, %c1_61, %c0_62], %41 {strides = array<i32>} : memref<2x10x10x64xbf16, #tpu.memory_space<vmem>>, vector<2x8x8x64xbf16>,
    %c0_63 = arith.constant 0 : index
    %c0_64 = arith.constant 0 : index
    %c0_65 = arith.constant 0 : index
    %c0_66 = arith.constant 0 : index
    %43 = vector.load %arg13[%c0_63, %c0_64, %c0_65, %c0_66] : memref<2x10x10x64xbf16, #tpu.memory_space<vmem>>, vector<2x8x8x64xbf16>
    %44 = vector.shape_cast %43 : vector<2x8x8x64xbf16> to vector<128x64xbf16>
    %c0_67 = arith.constant 0 : index
    %c0_68 = arith.constant 0 : index
    %c1_69 = arith.constant 1 : index
    %c0_70 = arith.constant 0 : index
    %45 = vector.load %arg13[%c0_67, %c0_68, %c1_69, %c0_70] : memref<2x10x10x64xbf16, #tpu.memory_space<vmem>>, vector<2x8x8x64xbf16>
    %46 = vector.shape_cast %45 : vector<2x8x8x64xbf16> to vector<128x64xbf16>
    %c0_71 = arith.constant 0 : index
    %c0_72 = arith.constant 0 : index
    %c2_73 = arith.constant 2 : index
    %c0_74 = arith.constant 0 : index
    %47 = vector.load %arg13[%c0_71, %c0_72, %c2_73, %c0_74] : memref<2x10x10x64xbf16, #tpu.memory_space<vmem>>, vector<2x8x8x64xbf16>
    %48 = vector.shape_cast %47 : vector<2x8x8x64xbf16> to vector<128x64xbf16>
    %c0_75 = arith.constant 0 : index
    %c1_76 = arith.constant 1 : index
    %c0_77 = arith.constant 0 : index
    %c0_78 = arith.constant 0 : index
    %49 = vector.load %arg13[%c0_75, %c1_76, %c0_77, %c0_78] : memref<2x10x10x64xbf16, #tpu.memory_space<vmem>>, vector<2x8x8x64xbf16>
    %50 = vector.shape_cast %49 : vector<2x8x8x64xbf16> to vector<128x64xbf16>
    %c0_79 = arith.constant 0 : index
    %c1_80 = arith.constant 1 : index
    %c1_81 = arith.constant 1 : index
    %c0_82 = arith.constant 0 : index
    %51 = vector.load %arg13[%c0_79, %c1_80, %c1_81, %c0_82] : memref<2x10x10x64xbf16, #tpu.memory_space<vmem>>, vector<2x8x8x64xbf16>
    %52 = vector.shape_cast %51 : vector<2x8x8x64xbf16> to vector<128x64xbf16>
    %c0_83 = arith.constant 0 : index
    %c1_84 = arith.constant 1 : index
    %c2_85 = arith.constant 2 : index
    %c0_86 = arith.constant 0 : index
    %53 = vector.load %arg13[%c0_83, %c1_84, %c2_85, %c0_86] : memref<2x10x10x64xbf16, #tpu.memory_space<vmem>>, vector<2x8x8x64xbf16>
    %54 = vector.shape_cast %53 : vector<2x8x8x64xbf16> to vector<128x64xbf16>
    %c0_87 = arith.constant 0 : index
    %c2_88 = arith.constant 2 : index
    %c0_89 = arith.constant 0 : index
    %c0_90 = arith.constant 0 : index
    %55 = vector.load %arg13[%c0_87, %c2_88, %c0_89, %c0_90] : memref<2x10x10x64xbf16, #tpu.memory_space<vmem>>, vector<2x8x8x64xbf16>
    %56 = vector.shape_cast %55 : vector<2x8x8x64xbf16> to vector<128x64xbf16>
    %c0_91 = arith.constant 0 : index
    %c2_92 = arith.constant 2 : index
    %c1_93 = arith.constant 1 : index
    %c0_94 = arith.constant 0 : index
    %57 = vector.load %arg13[%c0_91, %c2_92, %c1_93, %c0_94] : memref<2x10x10x64xbf16, #tpu.memory_space<vmem>>, vector<2x8x8x64xbf16>
    %58 = vector.shape_cast %57 : vector<2x8x8x64xbf16> to vector<128x64xbf16>
    %c0_95 = arith.constant 0 : index
    %c2_96 = arith.constant 2 : index
    %c2_97 = arith.constant 2 : index
    %c0_98 = arith.constant 0 : index
    %59 = vector.load %arg13[%c0_95, %c2_96, %c2_97, %c0_98] : memref<2x10x10x64xbf16, #tpu.memory_space<vmem>>, vector<2x8x8x64xbf16>
    %60 = vector.shape_cast %59 : vector<2x8x8x64xbf16> to vector<128x64xbf16>
    %61 = tpu.concatenate %44, %46, %48, %50, %52, %54, %56, %58, %60 in 1 : vector<128x64xbf16>, vector<128x64xbf16>, vector<128x64xbf16>, vector<128x64xbf16>, vector<128x64xbf16>, vector<128x64xbf16>, vector<128x64xbf16>, vector<128x64xbf16>, vector<128x64xbf16> -> vector<128x576xbf16>
    %c0_99 = arith.constant 0 : index
    %c0_100 = arith.constant 0 : index
    %62 = vector.load %arg4[%c0_99, %c0_100] : memref<576x64xbf16, #tpu.memory_space<vmem>>, vector<576x64xbf16>
    %cst_101 = arith.constant dense<0.000000e+00> : vector<128x64xf32>
    %63 = tpu.matmul %61, %62, %cst_101 {dimension_numbers = #tpu.dot_dimension_numbers<[1], [0], [0], [1], [0, 0, 1, 1], [], []>} : vector<128x576xbf16>, vector<576x64xbf16>, vector<128x64xf32> -> vector<128x64xf32>
    %cst_102 = arith.constant 0.000000e+00 : f32
    %64 = vector.broadcast %cst_102 : f32 to vector<128x64xf32>
    %65 = arith.maximumf %63, %64 : vector<128x64xf32>
    %66 = arith.truncf %65 : vector<128x64xf32> to vector<128x64xbf16>
    %c0_103 = arith.constant 0 : index
    %c0_104 = arith.constant 0 : index
    %67 = vector.load %arg5[%c0_103, %c0_104] : memref<64x64xbf16, #tpu.memory_space<vmem>>, vector<64x64xbf16>
    %cst_105 = arith.constant dense<0.000000e+00> : vector<128x64xf32>
    %68 = tpu.matmul %66, %67, %cst_105 {dimension_numbers = #tpu.dot_dimension_numbers<[1], [0], [0], [1], [0, 0, 1, 1], [], []>} : vector<128x64xbf16>, vector<64x64xbf16>, vector<128x64xf32> -> vector<128x64xf32>
    %69 = arith.addf %68, %37 : vector<128x64xf32>
    %cst_106 = arith.constant 0.000000e+00 : f32
    %70 = vector.broadcast %cst_106 : f32 to vector<128x64xf32>
    %71 = arith.maximumf %69, %70 : vector<128x64xf32>
    %72 = arith.truncf %71 : vector<128x64xf32> to vector<128x64xbf16>
    %73 = vector.shape_cast %72 : vector<128x64xbf16> to vector<2x8x8x64xbf16>
    %c0_107 = arith.constant 0 : index
    %c1_108 = arith.constant 1 : index
    %c1_109 = arith.constant 1 : index
    %c0_110 = arith.constant 0 : index
    %74 = vector.load %arg13[%c0_107, %c1_108, %c1_109, %c0_110] : memref<2x10x10x64xbf16, #tpu.memory_space<vmem>>, vector<2x8x8x64xbf16>
    tpu.vector_store %arg13[%c0_107, %c1_108, %c1_109, %c0_110], %73 {strides = array<i32>} : memref<2x10x10x64xbf16, #tpu.memory_space<vmem>>, vector<2x8x8x64xbf16>,
    %c0_111 = arith.constant 0 : index
    %c0_112 = arith.constant 0 : index
    %c0_113 = arith.constant 0 : index
    %c0_114 = arith.constant 0 : index
    %75 = vector.load %arg13[%c0_111, %c0_112, %c0_113, %c0_114] : memref<2x10x10x64xbf16, #tpu.memory_space<vmem>>, vector<2x8x8x64xbf16>
    %76 = vector.shape_cast %75 : vector<2x8x8x64xbf16> to vector<128x64xbf16>
    %c0_115 = arith.constant 0 : index
    %c0_116 = arith.constant 0 : index
    %c1_117 = arith.constant 1 : index
    %c0_118 = arith.constant 0 : index
    %77 = vector.load %arg13[%c0_115, %c0_116, %c1_117, %c0_118] : memref<2x10x10x64xbf16, #tpu.memory_space<vmem>>, vector<2x8x8x64xbf16>
    %78 = vector.shape_cast %77 : vector<2x8x8x64xbf16> to vector<128x64xbf16>
    %c0_119 = arith.constant 0 : index
    %c0_120 = arith.constant 0 : index
    %c2_121 = arith.constant 2 : index
    %c0_122 = arith.constant 0 : index
    %79 = vector.load %arg13[%c0_119, %c0_120, %c2_121, %c0_122] : memref<2x10x10x64xbf16, #tpu.memory_space<vmem>>, vector<2x8x8x64xbf16>
    %80 = vector.shape_cast %79 : vector<2x8x8x64xbf16> to vector<128x64xbf16>
    %c0_123 = arith.constant 0 : index
    %c1_124 = arith.constant 1 : index
    %c0_125 = arith.constant 0 : index
    %c0_126 = arith.constant 0 : index
    %81 = vector.load %arg13[%c0_123, %c1_124, %c0_125, %c0_126] : memref<2x10x10x64xbf16, #tpu.memory_space<vmem>>, vector<2x8x8x64xbf16>
    %82 = vector.shape_cast %81 : vector<2x8x8x64xbf16> to vector<128x64xbf16>
    %c0_127 = arith.constant 0 : index
    %c1_128 = arith.constant 1 : index
    %c1_129 = arith.constant 1 : index
    %c0_130 = arith.constant 0 : index
    %83 = vector.load %arg13[%c0_127, %c1_128, %c1_129, %c0_130] : memref<2x10x10x64xbf16, #tpu.memory_space<vmem>>, vector<2x8x8x64xbf16>
    %84 = vector.shape_cast %83 : vector<2x8x8x64xbf16> to vector<128x64xbf16>
    %c0_131 = arith.constant 0 : index
    %c1_132 = arith.constant 1 : index
    %c2_133 = arith.constant 2 : index
    %c0_134 = arith.constant 0 : index
    %85 = vector.load %arg13[%c0_131, %c1_132, %c2_133, %c0_134] : memref<2x10x10x64xbf16, #tpu.memory_space<vmem>>, vector<2x8x8x64xbf16>
    %86 = vector.shape_cast %85 : vector<2x8x8x64xbf16> to vector<128x64xbf16>
    %c0_135 = arith.constant 0 : index
    %c2_136 = arith.constant 2 : index
    %c0_137 = arith.constant 0 : index
    %c0_138 = arith.constant 0 : index
    %87 = vector.load %arg13[%c0_135, %c2_136, %c0_137, %c0_138] : memref<2x10x10x64xbf16, #tpu.memory_space<vmem>>, vector<2x8x8x64xbf16>
    %88 = vector.shape_cast %87 : vector<2x8x8x64xbf16> to vector<128x64xbf16>
    %c0_139 = arith.constant 0 : index
    %c2_140 = arith.constant 2 : index
    %c1_141 = arith.constant 1 : index
    %c0_142 = arith.constant 0 : index
    %89 = vector.load %arg13[%c0_139, %c2_140, %c1_141, %c0_142] : memref<2x10x10x64xbf16, #tpu.memory_space<vmem>>, vector<2x8x8x64xbf16>
    %90 = vector.shape_cast %89 : vector<2x8x8x64xbf16> to vector<128x64xbf16>
    %c0_143 = arith.constant 0 : index
    %c2_144 = arith.constant 2 : index
    %c2_145 = arith.constant 2 : index
    %c0_146 = arith.constant 0 : index
    %91 = vector.load %arg13[%c0_143, %c2_144, %c2_145, %c0_146] : memref<2x10x10x64xbf16, #tpu.memory_space<vmem>>, vector<2x8x8x64xbf16>
    %92 = vector.shape_cast %91 : vector<2x8x8x64xbf16> to vector<128x64xbf16>
    %93 = tpu.concatenate %76, %78, %80, %82, %84, %86, %88, %90, %92 in 1 : vector<128x64xbf16>, vector<128x64xbf16>, vector<128x64xbf16>, vector<128x64xbf16>, vector<128x64xbf16>, vector<128x64xbf16>, vector<128x64xbf16>, vector<128x64xbf16>, vector<128x64xbf16> -> vector<128x576xbf16>
    %c0_147 = arith.constant 0 : index
    %c0_148 = arith.constant 0 : index
    %94 = vector.load %arg6[%c0_147, %c0_148] : memref<576x64xbf16, #tpu.memory_space<vmem>>, vector<576x64xbf16>
    %cst_149 = arith.constant dense<0.000000e+00> : vector<128x64xf32>
    %95 = tpu.matmul %93, %94, %cst_149 {dimension_numbers = #tpu.dot_dimension_numbers<[1], [0], [0], [1], [0, 0, 1, 1], [], []>} : vector<128x576xbf16>, vector<576x64xbf16>, vector<128x64xf32> -> vector<128x64xf32>
    %c0_150 = arith.constant 0 : index
    %c0_151 = arith.constant 0 : index
    %96 = vector.load %arg7[%c0_150, %c0_151] : memref<1x64xf32, #tpu.memory_space<vmem>>, vector<1x64xf32>
    %97 = vector.broadcast %96 : vector<1x64xf32> to vector<128x64xf32>
    %98 = arith.addf %95, %97 : vector<128x64xf32>
    %cst_152 = arith.constant 0.000000e+00 : f32
    %99 = vector.broadcast %cst_152 : f32 to vector<128x64xf32>
    %100 = arith.maximumf %98, %99 : vector<128x64xf32>
    %101 = arith.truncf %100 : vector<128x64xf32> to vector<128x64xbf16>
    %102 = vector.shape_cast %101 : vector<128x64xbf16> to vector<2x8x8x64xbf16>
    %c0_153 = arith.constant 0 : index
    %c1_154 = arith.constant 1 : index
    %c1_155 = arith.constant 1 : index
    %c0_156 = arith.constant 0 : index
    %103 = vector.load %arg13[%c0_153, %c1_154, %c1_155, %c0_156] : memref<2x10x10x64xbf16, #tpu.memory_space<vmem>>, vector<2x8x8x64xbf16>
    tpu.vector_store %arg13[%c0_153, %c1_154, %c1_155, %c0_156], %102 {strides = array<i32>} : memref<2x10x10x64xbf16, #tpu.memory_space<vmem>>, vector<2x8x8x64xbf16>,
    %c0_157 = arith.constant 0 : index
    %c0_158 = arith.constant 0 : index
    %c0_159 = arith.constant 0 : index
    %c0_160 = arith.constant 0 : index
    %104 = vector.load %arg13[%c0_157, %c0_158, %c0_159, %c0_160] : memref<2x10x10x64xbf16, #tpu.memory_space<vmem>>, vector<2x8x8x64xbf16>
    %105 = vector.shape_cast %104 : vector<2x8x8x64xbf16> to vector<128x64xbf16>
    %c0_161 = arith.constant 0 : index
    %c0_162 = arith.constant 0 : index
    %c1_163 = arith.constant 1 : index
    %c0_164 = arith.constant 0 : index
    %106 = vector.load %arg13[%c0_161, %c0_162, %c1_163, %c0_164] : memref<2x10x10x64xbf16, #tpu.memory_space<vmem>>, vector<2x8x8x64xbf16>
    %107 = vector.shape_cast %106 : vector<2x8x8x64xbf16> to vector<128x64xbf16>
    %c0_165 = arith.constant 0 : index
    %c0_166 = arith.constant 0 : index
    %c2_167 = arith.constant 2 : index
    %c0_168 = arith.constant 0 : index
    %108 = vector.load %arg13[%c0_165, %c0_166, %c2_167, %c0_168] : memref<2x10x10x64xbf16, #tpu.memory_space<vmem>>, vector<2x8x8x64xbf16>
    %109 = vector.shape_cast %108 : vector<2x8x8x64xbf16> to vector<128x64xbf16>
    %c0_169 = arith.constant 0 : index
    %c1_170 = arith.constant 1 : index
    %c0_171 = arith.constant 0 : index
    %c0_172 = arith.constant 0 : index
    %110 = vector.load %arg13[%c0_169, %c1_170, %c0_171, %c0_172] : memref<2x10x10x64xbf16, #tpu.memory_space<vmem>>, vector<2x8x8x64xbf16>
    %111 = vector.shape_cast %110 : vector<2x8x8x64xbf16> to vector<128x64xbf16>
    %c0_173 = arith.constant 0 : index
    %c1_174 = arith.constant 1 : index
    %c1_175 = arith.constant 1 : index
    %c0_176 = arith.constant 0 : index
    %112 = vector.load %arg13[%c0_173, %c1_174, %c1_175, %c0_176] : memref<2x10x10x64xbf16, #tpu.memory_space<vmem>>, vector<2x8x8x64xbf16>
    %113 = vector.shape_cast %112 : vector<2x8x8x64xbf16> to vector<128x64xbf16>
    %c0_177 = arith.constant 0 : index
    %c1_178 = arith.constant 1 : index
    %c2_179 = arith.constant 2 : index
    %c0_180 = arith.constant 0 : index
    %114 = vector.load %arg13[%c0_177, %c1_178, %c2_179, %c0_180] : memref<2x10x10x64xbf16, #tpu.memory_space<vmem>>, vector<2x8x8x64xbf16>
    %115 = vector.shape_cast %114 : vector<2x8x8x64xbf16> to vector<128x64xbf16>
    %c0_181 = arith.constant 0 : index
    %c2_182 = arith.constant 2 : index
    %c0_183 = arith.constant 0 : index
    %c0_184 = arith.constant 0 : index
    %116 = vector.load %arg13[%c0_181, %c2_182, %c0_183, %c0_184] : memref<2x10x10x64xbf16, #tpu.memory_space<vmem>>, vector<2x8x8x64xbf16>
    %117 = vector.shape_cast %116 : vector<2x8x8x64xbf16> to vector<128x64xbf16>
    %c0_185 = arith.constant 0 : index
    %c2_186 = arith.constant 2 : index
    %c1_187 = arith.constant 1 : index
    %c0_188 = arith.constant 0 : index
    %118 = vector.load %arg13[%c0_185, %c2_186, %c1_187, %c0_188] : memref<2x10x10x64xbf16, #tpu.memory_space<vmem>>, vector<2x8x8x64xbf16>
    %119 = vector.shape_cast %118 : vector<2x8x8x64xbf16> to vector<128x64xbf16>
    %c0_189 = arith.constant 0 : index
    %c2_190 = arith.constant 2 : index
    %c2_191 = arith.constant 2 : index
    %c0_192 = arith.constant 0 : index
    %120 = vector.load %arg13[%c0_189, %c2_190, %c2_191, %c0_192] : memref<2x10x10x64xbf16, #tpu.memory_space<vmem>>, vector<2x8x8x64xbf16>
    %121 = vector.shape_cast %120 : vector<2x8x8x64xbf16> to vector<128x64xbf16>
    %122 = tpu.concatenate %105, %107, %109, %111, %113, %115, %117, %119, %121 in 1 : vector<128x64xbf16>, vector<128x64xbf16>, vector<128x64xbf16>, vector<128x64xbf16>, vector<128x64xbf16>, vector<128x64xbf16>, vector<128x64xbf16>, vector<128x64xbf16>, vector<128x64xbf16> -> vector<128x576xbf16>
    %c0_193 = arith.constant 0 : index
    %c0_194 = arith.constant 0 : index
    %123 = vector.load %arg8[%c0_193, %c0_194] : memref<576x128xbf16, #tpu.memory_space<vmem>>, vector<576x128xbf16>
    %cst_195 = arith.constant dense<0.000000e+00> : vector<128x128xf32>
    %124 = tpu.matmul %122, %123, %cst_195 {dimension_numbers = #tpu.dot_dimension_numbers<[1], [0], [0], [1], [0, 0, 1, 1], [], []>} : vector<128x576xbf16>, vector<576x128xbf16>, vector<128x128xf32> -> vector<128x128xf32>
    %c0_196 = arith.constant 0 : index
    %c0_197 = arith.constant 0 : index
    %125 = vector.load %arg9[%c0_196, %c0_197] : memref<1x128xf32, #tpu.memory_space<vmem>>, vector<1x128xf32>
    %126 = vector.broadcast %125 : vector<1x128xf32> to vector<128x128xf32>
    %127 = arith.addf %124, %126 : vector<128x128xf32>
    %cst_198 = arith.constant 0.000000e+00 : f32
    %128 = vector.broadcast %cst_198 : f32 to vector<128x128xf32>
    %129 = arith.maximumf %127, %128 : vector<128x128xf32>
    %130 = arith.truncf %129 : vector<128x128xf32> to vector<128x128xbf16>
    %131 = vector.shape_cast %130 : vector<128x128xbf16> to vector<2x8x8x128xbf16>
    %c0_199 = arith.constant 0 : index
    %c1_200 = arith.constant 1 : index
    %c1_201 = arith.constant 1 : index
    %c0_202 = arith.constant 0 : index
    %132 = vector.load %arg14[%c0_199, %c1_200, %c1_201, %c0_202] : memref<2x10x10x128xbf16, #tpu.memory_space<vmem>>, vector<2x8x8x128xbf16>
    tpu.vector_store %arg14[%c0_199, %c1_200, %c1_201, %c0_202], %131 {strides = array<i32>} : memref<2x10x10x128xbf16, #tpu.memory_space<vmem>>, vector<2x8x8x128xbf16>,
    %c0_203 = arith.constant 0 : index
    %c0_204 = arith.constant 0 : index
    %c0_205 = arith.constant 0 : index
    %c0_206 = arith.constant 0 : index
    %133 = vector.load %arg14[%c0_203, %c0_204, %c0_205, %c0_206] : memref<2x10x10x128xbf16, #tpu.memory_space<vmem>>, vector<2x8x8x128xbf16>
    %134 = vector.shape_cast %133 : vector<2x8x8x128xbf16> to vector<128x128xbf16>
    %c0_207 = arith.constant 0 : index
    %c0_208 = arith.constant 0 : index
    %c1_209 = arith.constant 1 : index
    %c0_210 = arith.constant 0 : index
    %135 = vector.load %arg14[%c0_207, %c0_208, %c1_209, %c0_210] : memref<2x10x10x128xbf16, #tpu.memory_space<vmem>>, vector<2x8x8x128xbf16>
    %136 = vector.shape_cast %135 : vector<2x8x8x128xbf16> to vector<128x128xbf16>
    %c0_211 = arith.constant 0 : index
    %c0_212 = arith.constant 0 : index
    %c2_213 = arith.constant 2 : index
    %c0_214 = arith.constant 0 : index
    %137 = vector.load %arg14[%c0_211, %c0_212, %c2_213, %c0_214] : memref<2x10x10x128xbf16, #tpu.memory_space<vmem>>, vector<2x8x8x128xbf16>
    %138 = vector.shape_cast %137 : vector<2x8x8x128xbf16> to vector<128x128xbf16>
    %c0_215 = arith.constant 0 : index
    %c1_216 = arith.constant 1 : index
    %c0_217 = arith.constant 0 : index
    %c0_218 = arith.constant 0 : index
    %139 = vector.load %arg14[%c0_215, %c1_216, %c0_217, %c0_218] : memref<2x10x10x128xbf16, #tpu.memory_space<vmem>>, vector<2x8x8x128xbf16>
    %140 = vector.shape_cast %139 : vector<2x8x8x128xbf16> to vector<128x128xbf16>
    %c0_219 = arith.constant 0 : index
    %c1_220 = arith.constant 1 : index
    %c1_221 = arith.constant 1 : index
    %c0_222 = arith.constant 0 : index
    %141 = vector.load %arg14[%c0_219, %c1_220, %c1_221, %c0_222] : memref<2x10x10x128xbf16, #tpu.memory_space<vmem>>, vector<2x8x8x128xbf16>
    %142 = vector.shape_cast %141 : vector<2x8x8x128xbf16> to vector<128x128xbf16>
    %c0_223 = arith.constant 0 : index
    %c1_224 = arith.constant 1 : index
    %c2_225 = arith.constant 2 : index
    %c0_226 = arith.constant 0 : index
    %143 = vector.load %arg14[%c0_223, %c1_224, %c2_225, %c0_226] : memref<2x10x10x128xbf16, #tpu.memory_space<vmem>>, vector<2x8x8x128xbf16>
    %144 = vector.shape_cast %143 : vector<2x8x8x128xbf16> to vector<128x128xbf16>
    %c0_227 = arith.constant 0 : index
    %c2_228 = arith.constant 2 : index
    %c0_229 = arith.constant 0 : index
    %c0_230 = arith.constant 0 : index
    %145 = vector.load %arg14[%c0_227, %c2_228, %c0_229, %c0_230] : memref<2x10x10x128xbf16, #tpu.memory_space<vmem>>, vector<2x8x8x128xbf16>
    %146 = vector.shape_cast %145 : vector<2x8x8x128xbf16> to vector<128x128xbf16>
    %c0_231 = arith.constant 0 : index
    %c2_232 = arith.constant 2 : index
    %c1_233 = arith.constant 1 : index
    %c0_234 = arith.constant 0 : index
    %147 = vector.load %arg14[%c0_231, %c2_232, %c1_233, %c0_234] : memref<2x10x10x128xbf16, #tpu.memory_space<vmem>>, vector<2x8x8x128xbf16>
    %148 = vector.shape_cast %147 : vector<2x8x8x128xbf16> to vector<128x128xbf16>
    %c0_235 = arith.constant 0 : index
    %c2_236 = arith.constant 2 : index
    %c2_237 = arith.constant 2 : index
    %c0_238 = arith.constant 0 : index
    %149 = vector.load %arg14[%c0_235, %c2_236, %c2_237, %c0_238] : memref<2x10x10x128xbf16, #tpu.memory_space<vmem>>, vector<2x8x8x128xbf16>
    %150 = vector.shape_cast %149 : vector<2x8x8x128xbf16> to vector<128x128xbf16>
    %151 = tpu.concatenate %134, %136, %138, %140, %142, %144, %146, %148, %150 in 1 : vector<128x128xbf16>, vector<128x128xbf16>, vector<128x128xbf16>, vector<128x128xbf16>, vector<128x128xbf16>, vector<128x128xbf16>, vector<128x128xbf16>, vector<128x128xbf16>, vector<128x128xbf16> -> vector<128x1152xbf16>
    %c0_239 = arith.constant 0 : index
    %c0_240 = arith.constant 0 : index
    %152 = vector.load %arg10[%c0_239, %c0_240] : memref<1152x16xbf16, #tpu.memory_space<vmem>>, vector<1152x16xbf16>
    %cst_241 = arith.constant dense<0.000000e+00> : vector<128x16xf32>
    %153 = tpu.matmul %151, %152, %cst_241 {dimension_numbers = #tpu.dot_dimension_numbers<[1], [0], [0], [1], [0, 0, 1, 1], [], []>} : vector<128x1152xbf16>, vector<1152x16xbf16>, vector<128x16xf32> -> vector<128x16xf32>
    %c0_242 = arith.constant 0 : index
    %c0_243 = arith.constant 0 : index
    %154 = vector.load %arg11[%c0_242, %c0_243] : memref<1x16xf32, #tpu.memory_space<vmem>>, vector<1x16xf32>
    %155 = vector.broadcast %154 : vector<1x16xf32> to vector<128x16xf32>
    %156 = arith.addf %153, %155 : vector<128x16xf32>
    %157 = arith.negf %156 : vector<128x16xf32>
    %158 = math.exp %157 : vector<128x16xf32>
    %cst_244 = arith.constant 1.000000e+00 : f32
    %159 = vector.broadcast %cst_244 : f32 to vector<128x16xf32>
    %160 = arith.addf %159, %158 : vector<128x16xf32>
    %161 = arith.divf %159, %160 : vector<128x16xf32>
    %162 = vector.shape_cast %161 : vector<128x16xf32> to vector<2x8x8x16xf32>
    %c0_245 = arith.constant 0 : index
    %c0_246 = arith.constant 0 : index
    %c0_247 = arith.constant 0 : index
    %c0_248 = arith.constant 0 : index
    %163 = vector.load %arg15[%c0_245, %c0_246, %c0_247, %c0_248] : memref<2x8x8x16xf32, #tpu.memory_space<vmem>>, vector<2x8x8x16xf32>
    tpu.vector_store %arg15[%c0_245, %c0_246, %c0_247, %c0_248], %162 {strides = array<i32>} : memref<2x8x8x16xf32, #tpu.memory_space<vmem>>, vector<2x8x8x16xf32>,
    %c0_249 = arith.constant 0 : index
    %c0_250 = arith.constant 0 : index
    %c0_251 = arith.constant 0 : index
    %c0_252 = arith.constant 0 : index
    %164 = vector.load %arg15[%c0_249, %c0_250, %c0_251, %c0_252] : memref<2x8x8x16xf32, #tpu.memory_space<vmem>>, vector<2x8x1x4xf32>
    %165 = vector.shape_cast %164 : vector<2x8x1x4xf32> to vector<2x8x4xf32>
    %c0_253 = arith.constant 0 : index
    %c0_254 = arith.constant 0 : index
    %c1_255 = arith.constant 1 : index
    %c0_256 = arith.constant 0 : index
    %166 = vector.load %arg15[%c0_253, %c0_254, %c1_255, %c0_256] : memref<2x8x8x16xf32, #tpu.memory_space<vmem>>, vector<2x8x1x4xf32>
    %167 = vector.shape_cast %166 : vector<2x8x1x4xf32> to vector<2x8x4xf32>
    %c0_257 = arith.constant 0 : index
    %c0_258 = arith.constant 0 : index
    %c2_259 = arith.constant 2 : index
    %c0_260 = arith.constant 0 : index
    %168 = vector.load %arg15[%c0_257, %c0_258, %c2_259, %c0_260] : memref<2x8x8x16xf32, #tpu.memory_space<vmem>>, vector<2x8x1x4xf32>
    %169 = vector.shape_cast %168 : vector<2x8x1x4xf32> to vector<2x8x4xf32>
    %c0_261 = arith.constant 0 : index
    %c0_262 = arith.constant 0 : index
    %c3 = arith.constant 3 : index
    %c0_263 = arith.constant 0 : index
    %170 = vector.load %arg15[%c0_261, %c0_262, %c3, %c0_263] : memref<2x8x8x16xf32, #tpu.memory_space<vmem>>, vector<2x8x1x4xf32>
    %171 = vector.shape_cast %170 : vector<2x8x1x4xf32> to vector<2x8x4xf32>
    %c0_264 = arith.constant 0 : index
    %c0_265 = arith.constant 0 : index
    %c4 = arith.constant 4 : index
    %c0_266 = arith.constant 0 : index
    %172 = vector.load %arg15[%c0_264, %c0_265, %c4, %c0_266] : memref<2x8x8x16xf32, #tpu.memory_space<vmem>>, vector<2x8x1x4xf32>
    %173 = vector.shape_cast %172 : vector<2x8x1x4xf32> to vector<2x8x4xf32>
    %c0_267 = arith.constant 0 : index
    %c0_268 = arith.constant 0 : index
    %c5 = arith.constant 5 : index
    %c0_269 = arith.constant 0 : index
    %174 = vector.load %arg15[%c0_267, %c0_268, %c5, %c0_269] : memref<2x8x8x16xf32, #tpu.memory_space<vmem>>, vector<2x8x1x4xf32>
    %175 = vector.shape_cast %174 : vector<2x8x1x4xf32> to vector<2x8x4xf32>
    %c0_270 = arith.constant 0 : index
    %c0_271 = arith.constant 0 : index
    %c6 = arith.constant 6 : index
    %c0_272 = arith.constant 0 : index
    %176 = vector.load %arg15[%c0_270, %c0_271, %c6, %c0_272] : memref<2x8x8x16xf32, #tpu.memory_space<vmem>>, vector<2x8x1x4xf32>
    %177 = vector.shape_cast %176 : vector<2x8x1x4xf32> to vector<2x8x4xf32>
    %c0_273 = arith.constant 0 : index
    %c0_274 = arith.constant 0 : index
    %c7 = arith.constant 7 : index
    %c0_275 = arith.constant 0 : index
    %178 = vector.load %arg15[%c0_273, %c0_274, %c7, %c0_275] : memref<2x8x8x16xf32, #tpu.memory_space<vmem>>, vector<2x8x1x4xf32>
    %179 = vector.shape_cast %178 : vector<2x8x1x4xf32> to vector<2x8x4xf32>
    %c0_276 = arith.constant 0 : index
    %c0_277 = arith.constant 0 : index
    %c0_278 = arith.constant 0 : index
    %c4_279 = arith.constant 4 : index
    %180 = vector.load %arg15[%c0_276, %c0_277, %c0_278, %c4_279] : memref<2x8x8x16xf32, #tpu.memory_space<vmem>>, vector<2x8x1x4xf32>
    %181 = vector.shape_cast %180 : vector<2x8x1x4xf32> to vector<2x8x4xf32>
    %c0_280 = arith.constant 0 : index
    %c0_281 = arith.constant 0 : index
    %c1_282 = arith.constant 1 : index
    %c4_283 = arith.constant 4 : index
    %182 = vector.load %arg15[%c0_280, %c0_281, %c1_282, %c4_283] : memref<2x8x8x16xf32, #tpu.memory_space<vmem>>, vector<2x8x1x4xf32>
    %183 = vector.shape_cast %182 : vector<2x8x1x4xf32> to vector<2x8x4xf32>
    %c0_284 = arith.constant 0 : index
    %c0_285 = arith.constant 0 : index
    %c2_286 = arith.constant 2 : index
    %c4_287 = arith.constant 4 : index
    %184 = vector.load %arg15[%c0_284, %c0_285, %c2_286, %c4_287] : memref<2x8x8x16xf32, #tpu.memory_space<vmem>>, vector<2x8x1x4xf32>
    %185 = vector.shape_cast %184 : vector<2x8x1x4xf32> to vector<2x8x4xf32>
    %c0_288 = arith.constant 0 : index
    %c0_289 = arith.constant 0 : index
    %c3_290 = arith.constant 3 : index
    %c4_291 = arith.constant 4 : index
    %186 = vector.load %arg15[%c0_288, %c0_289, %c3_290, %c4_291] : memref<2x8x8x16xf32, #tpu.memory_space<vmem>>, vector<2x8x1x4xf32>
    %187 = vector.shape_cast %186 : vector<2x8x1x4xf32> to vector<2x8x4xf32>
    %c0_292 = arith.constant 0 : index
    %c0_293 = arith.constant 0 : index
    %c4_294 = arith.constant 4 : index
    %c4_295 = arith.constant 4 : index
    %188 = vector.load %arg15[%c0_292, %c0_293, %c4_294, %c4_295] : memref<2x8x8x16xf32, #tpu.memory_space<vmem>>, vector<2x8x1x4xf32>
    %189 = vector.shape_cast %188 : vector<2x8x1x4xf32> to vector<2x8x4xf32>
    %c0_296 = arith.constant 0 : index
    %c0_297 = arith.constant 0 : index
    %c5_298 = arith.constant 5 : index
    %c4_299 = arith.constant 4 : index
    %190 = vector.load %arg15[%c0_296, %c0_297, %c5_298, %c4_299] : memref<2x8x8x16xf32, #tpu.memory_space<vmem>>, vector<2x8x1x4xf32>
    %191 = vector.shape_cast %190 : vector<2x8x1x4xf32> to vector<2x8x4xf32>
    %c0_300 = arith.constant 0 : index
    %c0_301 = arith.constant 0 : index
    %c6_302 = arith.constant 6 : index
    %c4_303 = arith.constant 4 : index
    %192 = vector.load %arg15[%c0_300, %c0_301, %c6_302, %c4_303] : memref<2x8x8x16xf32, #tpu.memory_space<vmem>>, vector<2x8x1x4xf32>
    %193 = vector.shape_cast %192 : vector<2x8x1x4xf32> to vector<2x8x4xf32>
    %c0_304 = arith.constant 0 : index
    %c0_305 = arith.constant 0 : index
    %c7_306 = arith.constant 7 : index
    %c4_307 = arith.constant 4 : index
    %194 = vector.load %arg15[%c0_304, %c0_305, %c7_306, %c4_307] : memref<2x8x8x16xf32, #tpu.memory_space<vmem>>, vector<2x8x1x4xf32>
    %195 = vector.shape_cast %194 : vector<2x8x1x4xf32> to vector<2x8x4xf32>
    %c0_308 = arith.constant 0 : index
    %c0_309 = arith.constant 0 : index
    %c0_310 = arith.constant 0 : index
    %c8 = arith.constant 8 : index
    %196 = vector.load %arg15[%c0_308, %c0_309, %c0_310, %c8] : memref<2x8x8x16xf32, #tpu.memory_space<vmem>>, vector<2x8x1x4xf32>
    %197 = vector.shape_cast %196 : vector<2x8x1x4xf32> to vector<2x8x4xf32>
    %c0_311 = arith.constant 0 : index
    %c0_312 = arith.constant 0 : index
    %c1_313 = arith.constant 1 : index
    %c8_314 = arith.constant 8 : index
    %198 = vector.load %arg15[%c0_311, %c0_312, %c1_313, %c8_314] : memref<2x8x8x16xf32, #tpu.memory_space<vmem>>, vector<2x8x1x4xf32>
    %199 = vector.shape_cast %198 : vector<2x8x1x4xf32> to vector<2x8x4xf32>
    %c0_315 = arith.constant 0 : index
    %c0_316 = arith.constant 0 : index
    %c2_317 = arith.constant 2 : index
    %c8_318 = arith.constant 8 : index
    %200 = vector.load %arg15[%c0_315, %c0_316, %c2_317, %c8_318] : memref<2x8x8x16xf32, #tpu.memory_space<vmem>>, vector<2x8x1x4xf32>
    %201 = vector.shape_cast %200 : vector<2x8x1x4xf32> to vector<2x8x4xf32>
    %c0_319 = arith.constant 0 : index
    %c0_320 = arith.constant 0 : index
    %c3_321 = arith.constant 3 : index
    %c8_322 = arith.constant 8 : index
    %202 = vector.load %arg15[%c0_319, %c0_320, %c3_321, %c8_322] : memref<2x8x8x16xf32, #tpu.memory_space<vmem>>, vector<2x8x1x4xf32>
    %203 = vector.shape_cast %202 : vector<2x8x1x4xf32> to vector<2x8x4xf32>
    %c0_323 = arith.constant 0 : index
    %c0_324 = arith.constant 0 : index
    %c4_325 = arith.constant 4 : index
    %c8_326 = arith.constant 8 : index
    %204 = vector.load %arg15[%c0_323, %c0_324, %c4_325, %c8_326] : memref<2x8x8x16xf32, #tpu.memory_space<vmem>>, vector<2x8x1x4xf32>
    %205 = vector.shape_cast %204 : vector<2x8x1x4xf32> to vector<2x8x4xf32>
    %c0_327 = arith.constant 0 : index
    %c0_328 = arith.constant 0 : index
    %c5_329 = arith.constant 5 : index
    %c8_330 = arith.constant 8 : index
    %206 = vector.load %arg15[%c0_327, %c0_328, %c5_329, %c8_330] : memref<2x8x8x16xf32, #tpu.memory_space<vmem>>, vector<2x8x1x4xf32>
    %207 = vector.shape_cast %206 : vector<2x8x1x4xf32> to vector<2x8x4xf32>
    %c0_331 = arith.constant 0 : index
    %c0_332 = arith.constant 0 : index
    %c6_333 = arith.constant 6 : index
    %c8_334 = arith.constant 8 : index
    %208 = vector.load %arg15[%c0_331, %c0_332, %c6_333, %c8_334] : memref<2x8x8x16xf32, #tpu.memory_space<vmem>>, vector<2x8x1x4xf32>
    %209 = vector.shape_cast %208 : vector<2x8x1x4xf32> to vector<2x8x4xf32>
    %c0_335 = arith.constant 0 : index
    %c0_336 = arith.constant 0 : index
    %c7_337 = arith.constant 7 : index
    %c8_338 = arith.constant 8 : index
    %210 = vector.load %arg15[%c0_335, %c0_336, %c7_337, %c8_338] : memref<2x8x8x16xf32, #tpu.memory_space<vmem>>, vector<2x8x1x4xf32>
    %211 = vector.shape_cast %210 : vector<2x8x1x4xf32> to vector<2x8x4xf32>
    %c0_339 = arith.constant 0 : index
    %c0_340 = arith.constant 0 : index
    %c0_341 = arith.constant 0 : index
    %c12 = arith.constant 12 : index
    %212 = vector.load %arg15[%c0_339, %c0_340, %c0_341, %c12] : memref<2x8x8x16xf32, #tpu.memory_space<vmem>>, vector<2x8x1x4xf32>
    %213 = vector.shape_cast %212 : vector<2x8x1x4xf32> to vector<2x8x4xf32>
    %c0_342 = arith.constant 0 : index
    %c0_343 = arith.constant 0 : index
    %c1_344 = arith.constant 1 : index
    %c12_345 = arith.constant 12 : index
    %214 = vector.load %arg15[%c0_342, %c0_343, %c1_344, %c12_345] : memref<2x8x8x16xf32, #tpu.memory_space<vmem>>, vector<2x8x1x4xf32>
    %215 = vector.shape_cast %214 : vector<2x8x1x4xf32> to vector<2x8x4xf32>
    %c0_346 = arith.constant 0 : index
    %c0_347 = arith.constant 0 : index
    %c2_348 = arith.constant 2 : index
    %c12_349 = arith.constant 12 : index
    %216 = vector.load %arg15[%c0_346, %c0_347, %c2_348, %c12_349] : memref<2x8x8x16xf32, #tpu.memory_space<vmem>>, vector<2x8x1x4xf32>
    %217 = vector.shape_cast %216 : vector<2x8x1x4xf32> to vector<2x8x4xf32>
    %c0_350 = arith.constant 0 : index
    %c0_351 = arith.constant 0 : index
    %c3_352 = arith.constant 3 : index
    %c12_353 = arith.constant 12 : index
    %218 = vector.load %arg15[%c0_350, %c0_351, %c3_352, %c12_353] : memref<2x8x8x16xf32, #tpu.memory_space<vmem>>, vector<2x8x1x4xf32>
    %219 = vector.shape_cast %218 : vector<2x8x1x4xf32> to vector<2x8x4xf32>
    %c0_354 = arith.constant 0 : index
    %c0_355 = arith.constant 0 : index
    %c4_356 = arith.constant 4 : index
    %c12_357 = arith.constant 12 : index
    %220 = vector.load %arg15[%c0_354, %c0_355, %c4_356, %c12_357] : memref<2x8x8x16xf32, #tpu.memory_space<vmem>>, vector<2x8x1x4xf32>
    %221 = vector.shape_cast %220 : vector<2x8x1x4xf32> to vector<2x8x4xf32>
    %c0_358 = arith.constant 0 : index
    %c0_359 = arith.constant 0 : index
    %c5_360 = arith.constant 5 : index
    %c12_361 = arith.constant 12 : index
    %222 = vector.load %arg15[%c0_358, %c0_359, %c5_360, %c12_361] : memref<2x8x8x16xf32, #tpu.memory_space<vmem>>, vector<2x8x1x4xf32>
    %223 = vector.shape_cast %222 : vector<2x8x1x4xf32> to vector<2x8x4xf32>
    %c0_362 = arith.constant 0 : index
    %c0_363 = arith.constant 0 : index
    %c6_364 = arith.constant 6 : index
    %c12_365 = arith.constant 12 : index
    %224 = vector.load %arg15[%c0_362, %c0_363, %c6_364, %c12_365] : memref<2x8x8x16xf32, #tpu.memory_space<vmem>>, vector<2x8x1x4xf32>
    %225 = vector.shape_cast %224 : vector<2x8x1x4xf32> to vector<2x8x4xf32>
    %c0_366 = arith.constant 0 : index
    %c0_367 = arith.constant 0 : index
    %c7_368 = arith.constant 7 : index
    %c12_369 = arith.constant 12 : index
    %226 = vector.load %arg15[%c0_366, %c0_367, %c7_368, %c12_369] : memref<2x8x8x16xf32, #tpu.memory_space<vmem>>, vector<2x8x1x4xf32>
    %227 = vector.shape_cast %226 : vector<2x8x1x4xf32> to vector<2x8x4xf32>
    %228 = tpu.concatenate %165, %167, %169, %171, %173, %175, %177, %179, %181, %183, %185, %187, %189, %191, %193, %195 in 2 : vector<2x8x4xf32>, vector<2x8x4xf32>, vector<2x8x4xf32>, vector<2x8x4xf32>, vector<2x8x4xf32>, vector<2x8x4xf32>, vector<2x8x4xf32>, vector<2x8x4xf32>, vector<2x8x4xf32>, vector<2x8x4xf32>, vector<2x8x4xf32>, vector<2x8x4xf32>, vector<2x8x4xf32>, vector<2x8x4xf32>, vector<2x8x4xf32>, vector<2x8x4xf32> -> vector<2x8x64xf32>
    %229 = tpu.concatenate %197, %199, %201, %203, %205, %207, %209, %211, %213, %215, %217, %219, %221, %223, %225, %227 in 2 : vector<2x8x4xf32>, vector<2x8x4xf32>, vector<2x8x4xf32>, vector<2x8x4xf32>, vector<2x8x4xf32>, vector<2x8x4xf32>, vector<2x8x4xf32>, vector<2x8x4xf32>, vector<2x8x4xf32>, vector<2x8x4xf32>, vector<2x8x4xf32>, vector<2x8x4xf32>, vector<2x8x4xf32>, vector<2x8x4xf32>, vector<2x8x4xf32>, vector<2x8x4xf32> -> vector<2x8x64xf32>
    %230 = tpu.concatenate %228, %229 in 2 : vector<2x8x64xf32>, vector<2x8x64xf32> -> vector<2x8x128xf32>
    %c0_370 = arith.constant 0 : index
    %c0_371 = arith.constant 0 : index
    %c0_372 = arith.constant 0 : index
    %231 = vector.load %arg12[%c0_370, %c0_371, %c0_372] : memref<2x8x128xf32, #tpu.memory_space<vmem>>, vector<2x8x128xf32>
    tpu.vector_store %arg12[%c0_370, %c0_371, %c0_372], %230 {strides = array<i32>} : memref<2x8x128xf32, #tpu.memory_space<vmem>>, vector<2x8x128xf32>,
    return
  }
  func.func @transform_0(%arg0: i32) -> (i32, i32, i32, i32) {
    %c0_i32 = arith.constant 0 : i32
    %c0_i32_0 = arith.constant 0 : i32
    %c0_i32_1 = arith.constant 0 : i32
    %c0_i32_2 = arith.constant 0 : i32
    return %arg0, %c0_i32, %c0_i32_0, %c0_i32_1 : i32, i32, i32, i32
  }
  func.func @transform_1(%arg0: i32) -> (i32, i32) {
    %c0_i32 = arith.constant 0 : i32
    %c0_i32_0 = arith.constant 0 : i32
    %c0_i32_1 = arith.constant 0 : i32
    return %c0_i32, %c0_i32_0 : i32, i32
  }
  func.func @transform_2(%arg0: i32) -> (i32, i32) {
    %c0_i32 = arith.constant 0 : i32
    %c0_i32_0 = arith.constant 0 : i32
    %c0_i32_1 = arith.constant 0 : i32
    return %c0_i32, %c0_i32_0 : i32, i32
  }
  func.func @transform_3(%arg0: i32) -> (i32, i32) {
    %c0_i32 = arith.constant 0 : i32
    %c0_i32_0 = arith.constant 0 : i32
    %c0_i32_1 = arith.constant 0 : i32
    return %c0_i32, %c0_i32_0 : i32, i32
  }
  func.func @transform_4(%arg0: i32) -> (i32, i32) {
    %c0_i32 = arith.constant 0 : i32
    %c0_i32_0 = arith.constant 0 : i32
    %c0_i32_1 = arith.constant 0 : i32
    return %c0_i32, %c0_i32_0 : i32, i32
  }
  func.func @transform_5(%arg0: i32) -> (i32, i32) {
    %c0_i32 = arith.constant 0 : i32
    %c0_i32_0 = arith.constant 0 : i32
    %c0_i32_1 = arith.constant 0 : i32
    return %c0_i32, %c0_i32_0 : i32, i32
  }
  func.func @transform_6(%arg0: i32) -> (i32, i32) {
    %c0_i32 = arith.constant 0 : i32
    %c0_i32_0 = arith.constant 0 : i32
    %c0_i32_1 = arith.constant 0 : i32
    return %c0_i32, %c0_i32_0 : i32, i32
  }
  func.func @transform_7(%arg0: i32) -> (i32, i32) {
    %c0_i32 = arith.constant 0 : i32
    %c0_i32_0 = arith.constant 0 : i32
    %c0_i32_1 = arith.constant 0 : i32
    return %c0_i32, %c0_i32_0 : i32, i32
  }
  func.func @transform_8(%arg0: i32) -> (i32, i32) {
    %c0_i32 = arith.constant 0 : i32
    %c0_i32_0 = arith.constant 0 : i32
    %c0_i32_1 = arith.constant 0 : i32
    return %c0_i32, %c0_i32_0 : i32, i32
  }
  func.func @transform_9(%arg0: i32) -> (i32, i32) {
    %c0_i32 = arith.constant 0 : i32
    %c0_i32_0 = arith.constant 0 : i32
    %c0_i32_1 = arith.constant 0 : i32
    return %c0_i32, %c0_i32_0 : i32, i32
  }
  func.func @transform_10(%arg0: i32) -> (i32, i32) {
    %c0_i32 = arith.constant 0 : i32
    %c0_i32_0 = arith.constant 0 : i32
    %c0_i32_1 = arith.constant 0 : i32
    return %c0_i32, %c0_i32_0 : i32, i32
  }
  func.func @transform_11(%arg0: i32) -> (i32, i32, i32) {
    %c0_i32 = arith.constant 0 : i32
    %c0_i32_0 = arith.constant 0 : i32
    %c0_i32_1 = arith.constant 0 : i32
    return %arg0, %c0_i32, %c0_i32_0 : i32, i32, i32
  }
}

</mosaic_0001>

<llo_original>
// kernel: _lambda_.1
$region0: #{_lambda_.1}
  #allocation0 [shape = 'u32[]', space=smem, size = 0x4, offset = 0x4, fixed_abs, tag = 'smem constant byte address 0x4 - core index']
  #allocation1 [shape = 'u32[144,128]{1,0:T(1,128)}', space=vmem, size = 0x12000, scoped, tag = 'internal scratch']
  #allocation2 [shape = 'bf16[2,10,10,64]{3,2,1,0:T(8,128)(2,1)}', space=vmem, size = 0x14000, scoped, tag = 'scratch operand']
  #allocation3 [shape = 'bf16[2,10,10,128]{3,2,1,0:T(8,128)(2,1)}', space=vmem, size = 0x14000, scoped, tag = 'scratch operand']
  #allocation4 [shape = 'f32[2,8,8,16]{3,2,1,0:T(8,128)}', space=vmem, size = 0x10000, scoped, tag = 'scratch operand']
  %s0 = inlined_call_operand.vmem [shape: bf16[2,8,8,64], index: 0, kind: input, shape index: {}]
  %s1 = inlined_call_operand.hbm [shape: bf16[576,64], index: 1, kind: input, shape index: {}]
  %s2 = inlined_call_operand.vmem [shape: bf16[64,64], index: 2, kind: input, shape index: {}]
  %s3 = inlined_call_operand.hbm [shape: bf16[576,64], index: 3, kind: input, shape index: {}]
  %s4 = inlined_call_operand.vmem [shape: bf16[64,64], index: 4, kind: input, shape index: {}]
  %s5 = inlined_call_operand.hbm [shape: bf16[576,64], index: 5, kind: input, shape index: {}]
  %s6 = inlined_call_operand.vmem [shape: f32[1,64], index: 6, kind: input, shape index: {}]
  %s7 = inlined_call_operand.hbm [shape: bf16[576,128], index: 7, kind: input, shape index: {}]
  %s8 = inlined_call_operand.vmem [shape: f32[1,128], index: 8, kind: input, shape index: {}]
  %s9 = inlined_call_operand.hbm [shape: bf16[1152,16], index: 9, kind: input, shape index: {}]
  %s10 = inlined_call_operand.vmem [shape: f32[1,16], index: 10, kind: input, shape index: {}]
  %s11 = inlined_call_operand.vmem [shape: f32[2,8,128], index: 11, kind: output, shape index: {}]
  %s12 = sld [smem:[#allocation0]]
  $region74: #{_lambda_.1} parent=0
    _
  %s14 = ssub.s32 1, %s12
  %s15 = scalar_select 0, %s14, %s12
  $region1: #{_lambda_.1} parent=0
    #allocation5 [shape = 'u8[147456]{0}', space=vmem, size = 0x24000, scoped, tag = 'input window, operand 1, single buffered']
    #allocation6 [shape = 's32[1]{0}', space=sflag, size = 0x4, scoped, tag = 'scoped memory for _lambda_.1']
    #allocation7 [shape = 'u8[147456]{0}', space=vmem, size = 0x24000, scoped, tag = 'input window, operand 3, single buffered']
    #allocation8 [shape = 's32[1]{0}', space=sflag, size = 0x4, scoped, tag = 'scoped memory for _lambda_.1']
    #allocation9 [shape = 'u8[147456]{0}', space=vmem, size = 0x24000, scoped, tag = 'input window, operand 5, single buffered']
    #allocation10 [shape = 'u8[147456]{0}', space=vmem, size = 0x24000, scoped, tag = 'input window, operand 7, single buffered']
    #allocation11 [shape = 's32[1]{0}', space=sflag, size = 0x4, scoped, tag = 'scoped memory for _lambda_.1']
    #allocation12 [shape = 'u8[294912]{0}', space=vmem, size = 0x48000, scoped, tag = 'input window, operand 9, single buffered']
    %16 = vsyncpa [#allocation6], 0
    %17 = vsyncpa [#allocation8], 0
    %18 = vsyncpa [#allocation11], 0
    // Predicated region
    $region2: #{_lambda_.1} parent=1 // pred_check
      _
    $region3: #{_lambda_.1} parent=1 // pred_check_branch
      %20 = sbr.rel (0) target = $region5
    $region4: #{_lambda_.1} parent=1 // pred_region
      _
    $region5: #{_lambda_.1} parent=1 // pred_fallthru
      _
    // Predicated region
    $region6: #{_lambda_.1} parent=1 // pred_check
      _
    $region7: #{_lambda_.1} parent=1 // pred_check_branch
      %22 = sbr.rel (0) target = $region9
    $region8: #{_lambda_.1} parent=1 // pred_region
      %s24 = ssub.s32 4608, 4608
      %25 = vsyncadd [#allocation6], %s24
      %s26 = sshll.u32 [#allocation5], 4
      %s27 = int_to_ptr.vmem [resolvable:$true] %s26
      %32 = dma.hbm_to_vmem [thread:$0]  %s1, 4608, %s27, [#allocation6], 64, 64, 4
    $region9: #{_lambda_.1} parent=1 // pred_fallthru
      _
    // Predicated region
    $region10: #{_lambda_.1} parent=1 // pred_check
      _
    $region11: #{_lambda_.1} parent=1 // pred_check_branch
      %34 = sbr.rel (0) target = $region13
    $region12: #{_lambda_.1} parent=1 // pred_region
      _
    $region13: #{_lambda_.1} parent=1 // pred_fallthru
      _
    // Predicated region
    $region14: #{_lambda_.1} parent=1 // pred_check
      _
    $region15: #{_lambda_.1} parent=1 // pred_check_branch
      %36 = sbr.rel (0) target = $region17
    $region16: #{_lambda_.1} parent=1 // pred_region
      %s38 = ssub.s32 4608, 4608
      %39 = vsyncadd [#allocation8], %s38
      %s40 = sshll.u32 [#allocation7], 4
      %s41 = int_to_ptr.vmem [resolvable:$true] %s40
      %46 = dma.hbm_to_vmem [thread:$0]  %s3, 4608, %s41, [#allocation8], 64, 64, 4
    $region17: #{_lambda_.1} parent=1 // pred_fallthru
      _
    // Predicated region
    $region18: #{_lambda_.1} parent=1 // pred_check
      _
    $region19: #{_lambda_.1} parent=1 // pred_check_branch
      %48 = sbr.rel (0) target = $region21
    $region20: #{_lambda_.1} parent=1 // pred_region
      _
    $region21: #{_lambda_.1} parent=1 // pred_fallthru
      _
    // Predicated region
    $region22: #{_lambda_.1} parent=1 // pred_check
      _
    $region23: #{_lambda_.1} parent=1 // pred_check_branch
      %50 = sbr.rel (0) target = $region25
    $region24: #{_lambda_.1} parent=1 // pred_region
      %s52 = ssub.s32 4608, 4608
      %53 = vsyncadd [#allocation8], %s52
      %s54 = sshll.u32 [#allocation9], 4
      %s55 = int_to_ptr.vmem [resolvable:$true] %s54
      %60 = dma.hbm_to_vmem [thread:$0]  %s5, 4608, %s55, [#allocation8], 64, 64, 4
    $region25: #{_lambda_.1} parent=1 // pred_fallthru
      _
    // Predicated region
    $region26: #{_lambda_.1} parent=1 // pred_check
      _
    $region27: #{_lambda_.1} parent=1 // pred_check_branch
      %62 = sbr.rel (0) target = $region29
    $region28: #{_lambda_.1} parent=1 // pred_region
      _
    $region29: #{_lambda_.1} parent=1 // pred_fallthru
      _
    // Predicated region
    $region30: #{_lambda_.1} parent=1 // pred_check
      _
    $region31: #{_lambda_.1} parent=1 // pred_check_branch
      %64 = sbr.rel (0) target = $region33
    $region32: #{_lambda_.1} parent=1 // pred_region
      %s66 = ssub.s32 4608, 4608
      %67 = vsyncadd [#allocation11], %s66
      %s68 = sshll.u32 [#allocation10], 4
      %s69 = int_to_ptr.vmem [resolvable:$true] %s68
      %74 = dma.hbm_to_vmem [thread:$0]  %s7, 4608, %s69, [#allocation11], 64, 64, 4
    $region33: #{_lambda_.1} parent=1 // pred_fallthru
      _
    // Predicated region
    $region34: #{_lambda_.1} parent=1 // pred_check
      _
    $region35: #{_lambda_.1} parent=1 // pred_check_branch
      %76 = sbr.rel (0) target = $region37
    $region36: #{_lambda_.1} parent=1 // pred_region
      _
    $region37: #{_lambda_.1} parent=1 // pred_fallthru
      _
    // Predicated region
    $region38: #{_lambda_.1} parent=1 // pred_check
      _
    $region39: #{_lambda_.1} parent=1 // pred_check_branch
      %78 = sbr.rel (0) target = $region41
    $region40: #{_lambda_.1} parent=1 // pred_region
      %s80 = ssub.s32 9216, 9216
      %81 = vsyncadd [#allocation11], %s80
      %s82 = sshll.u32 [#allocation12], 4
      %s83 = int_to_ptr.vmem [resolvable:$true] %s82
      %88 = dma.hbm_to_vmem [thread:$0]  %s9, 9216, %s83, [#allocation11], 64, 64, 4
    $region41: #{_lambda_.1} parent=1 // pred_fallthru
      _
    // Predicated region
    $region42: #{_lambda_.1} parent=1 // pred_check
      _
    $region43: #{_lambda_.1} parent=1 // pred_check_branch
      %90 = sbr.rel (0) target = $region45
    $region44: #{_lambda_.1} parent=1 // pred_region
      _
    $region45: #{_lambda_.1} parent=1 // pred_fallthru
      _
    // Predicated region
    $region46: #{_lambda_.1} parent=1 // pred_check
      _
    $region47: #{_lambda_.1} parent=1 // pred_check_branch
      %92 = sbr.rel (0) target = $region49
    $region48: #{_lambda_.1} parent=1 // pred_region
      %93 = dma.done [#allocation6], 4608
    $region49: #{_lambda_.1} parent=1 // pred_fallthru
      _
    // Predicated region
    $region50: #{_lambda_.1} parent=1 // pred_check
      _
    $region51: #{_lambda_.1} parent=1 // pred_check_branch
      %95 = sbr.rel (0) target = $region53
    $region52: #{_lambda_.1} parent=1 // pred_region
      %96 = dma.done [#allocation8], 4608
    $region53: #{_lambda_.1} parent=1 // pred_fallthru
      _
    // Predicated region
    $region54: #{_lambda_.1} parent=1 // pred_check
      _
    $region55: #{_lambda_.1} parent=1 // pred_check_branch
      %98 = sbr.rel (0) target = $region57
    $region56: #{_lambda_.1} parent=1 // pred_region
      %99 = dma.done [#allocation8], 4608
    $region57: #{_lambda_.1} parent=1 // pred_fallthru
      _
    // Predicated region
    $region58: #{_lambda_.1} parent=1 // pred_check
      _
    $region59: #{_lambda_.1} parent=1 // pred_check_branch
      %101 = sbr.rel (0) target = $region61
    $region60: #{_lambda_.1} parent=1 // pred_region
      %102 = dma.done [#allocation11], 4608
    $region61: #{_lambda_.1} parent=1 // pred_fallthru
      _
    // Predicated region
    $region62: #{_lambda_.1} parent=1 // pred_check
      _
    $region63: #{_lambda_.1} parent=1 // pred_check_branch
      %104 = sbr.rel (0) target = $region65
    $region64: #{_lambda_.1} parent=1 // pred_region
      %105 = dma.done [#allocation11], 9216
    $region65: #{_lambda_.1} parent=1 // pred_fallthru
      _
    %vm107 = vcmask 519168
    %108 = vst.msk [vmem:[#allocation2] sm:$0xf] %vm107, 0
    %vm109 = vcmask 516096
    %110 = vst.msk [vmem:[#allocation2 + $0x4] sm:$0x1] %vm109, 0
    %111 = vst.msk [vmem:[#allocation2 + $0x8] sm:$0xf] %vm107, 0
    %112 = vst.msk [vmem:[#allocation2 + $0xc] sm:$0x1] %vm109, 0
    %113 = vst.msk [vmem:[#allocation2 + $0x10] sm:$0xf] %vm107, 0
    %114 = vst.msk [vmem:[#allocation2 + $0x14] sm:$0x1] %vm109, 0
    %115 = vst.msk [vmem:[#allocation2 + $0x18] sm:$0xf] %vm107, 0
    %116 = vst.msk [vmem:[#allocation2 + $0x1c] sm:$0x1] %vm109, 0
    %117 = vst.msk [vmem:[#allocation2 + $0x20] sm:$0xf] %vm107, 0
    %118 = vst.msk [vmem:[#allocation2 + $0x24] sm:$0x1] %vm109, 0
    %119 = vst.msk [vmem:[#allocation2 + $0x28] sm:$0xf] %vm107, 0
    %120 = vst.msk [vmem:[#allocation2 + $0x2c] sm:$0x1] %vm109, 0
    %121 = vst.msk [vmem:[#allocation2 + $0x30] sm:$0xf] %vm107, 0
    %122 = vst.msk [vmem:[#allocation2 + $0x34] sm:$0x1] %vm109, 0
    %123 = vst.msk [vmem:[#allocation2 + $0x38] sm:$0xf] %vm107, 0
    %124 = vst.msk [vmem:[#allocation2 + $0x3c] sm:$0x1] %vm109, 0
    %125 = vst.msk [vmem:[#allocation2 + $0x40] sm:$0xf] %vm107, 0
    %126 = vst.msk [vmem:[#allocation2 + $0x44] sm:$0x1] %vm109, 0
    %127 = vst.msk [vmem:[#allocation2 + $0x48] sm:$0xf] %vm107, 0
    %128 = vst.msk [vmem:[#allocation2 + $0x4c] sm:$0x1] %vm109, 0
    %129 = vst.msk [vmem:[#allocation2 + $0x50] sm:$0xf] %vm107, 0
    %130 = vst.msk [vmem:[#allocation2 + $0x54] sm:$0x1] %vm109, 0
    %131 = vst.msk [vmem:[#allocation2 + $0x58] sm:$0xf] %vm107, 0
    %132 = vst.msk [vmem:[#allocation2 + $0x5c] sm:$0x1] %vm109, 0
    %133 = vst.msk [vmem:[#allocation2 + $0x60] sm:$0xf] %vm107, 0
    %134 = vst.msk [vmem:[#allocation2 + $0x64] sm:$0x1] %vm109, 0
    %135 = vst.msk [vmem:[#allocation2 + $0x68] sm:$0xf] %vm107, 0
    %136 = vst.msk [vmem:[#allocation2 + $0x6c] sm:$0x1] %vm109, 0
    %137 = vst.msk [vmem:[#allocation2 + $0x70] sm:$0xf] %vm107, 0
    %138 = vst.msk [vmem:[#allocation2 + $0x74] sm:$0x1] %vm109, 0
    %139 = vst.msk [vmem:[#allocation2 + $0x78] sm:$0xf] %vm107, 0
    %140 = vst.msk [vmem:[#allocation2 + $0x7c] sm:$0x1] %vm109, 0
    %141 = vst.msk [vmem:[#allocation2 + $0x80] sm:$0xf] %vm107, 0
    %142 = vst.msk [vmem:[#allocation2 + $0x84] sm:$0x1] %vm109, 0
    %143 = vst.msk [vmem:[#allocation2 + $0x88] sm:$0xf] %vm107, 0
    %144 = vst.msk [vmem:[#allocation2 + $0x8c] sm:$0x1] %vm109, 0
    %145 = vst.msk [vmem:[#allocation2 + $0x90] sm:$0xf] %vm107, 0
    %146 = vst.msk [vmem:[#allocation2 + $0x94] sm:$0x1] %vm109, 0
    %147 = vst.msk [vmem:[#allocation2 + $0x98] sm:$0xf] %vm107, 0
    %148 = vst.msk [vmem:[#allocation2 + $0x9c] sm:$0x1] %vm109, 0
    %149 = vst [vmem:[#allocation3] sm:$0xf] 0
    %150 = vst [vmem:[#allocation3 + $0x4] sm:$0x1] 0
    %151 = vst [vmem:[#allocation3 + $0x8] sm:$0xf] 0
    %152 = vst [vmem:[#allocation3 + $0xc] sm:$0x1] 0
    %153 = vst [vmem:[#allocation3 + $0x10] sm:$0xf] 0
    %154 = vst [vmem:[#allocation3 + $0x14] sm:$0x1] 0
    %155 = vst [vmem:[#allocation3 + $0x18] sm:$0xf] 0
    %156 = vst [vmem:[#allocation3 + $0x1c] sm:$0x1] 0
    %157 = vst [vmem:[#allocation3 + $0x20] sm:$0xf] 0
    %158 = vst [vmem:[#allocation3 + $0x24] sm:$0x1] 0
    %159 = vst [vmem:[#allocation3 + $0x28] sm:$0xf] 0
    %160 = vst [vmem:[#allocation3 + $0x2c] sm:$0x1] 0
    %161 = vst [vmem:[#allocation3 + $0x30] sm:$0xf] 0
    %162 = vst [vmem:[#allocation3 + $0x34] sm:$0x1] 0
    %163 = vst [vmem:[#allocation3 + $0x38] sm:$0xf] 0
    %164 = vst [vmem:[#allocation3 + $0x3c] sm:$0x1] 0
    %165 = vst [vmem:[#allocation3 + $0x40] sm:$0xf] 0
    %166 = vst [vmem:[#allocation3 + $0x44] sm:$0x1] 0
    %167 = vst [vmem:[#allocation3 + $0x48] sm:$0xf] 0
    %168 = vst [vmem:[#allocation3 + $0x4c] sm:$0x1] 0
    %169 = vst [vmem:[#allocation3 + $0x50] sm:$0xf] 0
    %170 = vst [vmem:[#allocation3 + $0x54] sm:$0x1] 0
    %171 = vst [vmem:[#allocation3 + $0x58] sm:$0xf] 0
    %172 = vst [vmem:[#allocation3 + $0x5c] sm:$0x1] 0
    %173 = vst [vmem:[#allocation3 + $0x60] sm:$0xf] 0
    %174 = vst [vmem:[#allocation3 + $0x64] sm:$0x1] 0
    %175 = vst [vmem:[#allocation3 + $0x68] sm:$0xf] 0
    %176 = vst [vmem:[#allocation3 + $0x6c] sm:$0x1] 0
    %177 = vst [vmem:[#allocation3 + $0x70] sm:$0xf] 0
    %178 = vst [vmem:[#allocation3 + $0x74] sm:$0x1] 0
    %179 = vst [vmem:[#allocation3 + $0x78] sm:$0xf] 0
    %180 = vst [vmem:[#allocation3 + $0x7c] sm:$0x1] 0
    %181 = vst [vmem:[#allocation3 + $0x80] sm:$0xf] 0
    %182 = vst [vmem:[#allocation3 + $0x84] sm:$0x1] 0
    %183 = vst [vmem:[#allocation3 + $0x88] sm:$0xf] 0
    %184 = vst [vmem:[#allocation3 + $0x8c] sm:$0x1] 0
    %185 = vst [vmem:[#allocation3 + $0x90] sm:$0xf] 0
    %186 = vst [vmem:[#allocation3 + $0x94] sm:$0x1] 0
    %187 = vst [vmem:[#allocation3 + $0x98] sm:$0xf] 0
    %188 = vst [vmem:[#allocation3 + $0x9c] sm:$0x1] 0
    %v189 = vld [vmem:[%s0] sm:$0xf]
    %v190 = vld [vmem:[%s0 + $0x4] sm:$0xf]
    %v191 = vld [vmem:[%s0 + $0x8] sm:$0xf]
    %v192 = vld [vmem:[%s0 + $0xc] sm:$0xf]
    %v193 = vld [vmem:[%s0 + $0x10] sm:$0xf]
    %v194 = vld [vmem:[%s0 + $0x14] sm:$0xf]
    %v195 = vld [vmem:[%s0 + $0x18] sm:$0xf]
    %v196 = vld [vmem:[%s0 + $0x1c] sm:$0xf]
    %v197 = vld [vmem:[%s0 + $0x20] sm:$0xf]
    %v198 = vld [vmem:[%s0 + $0x24] sm:$0xf]
    %v199 = vld [vmem:[%s0 + $0x28] sm:$0xf]
    %v200 = vld [vmem:[%s0 + $0x2c] sm:$0xf]
    %v201 = vld [vmem:[%s0 + $0x30] sm:$0xf]
    %v202 = vld [vmem:[%s0 + $0x34] sm:$0xf]
    %v203 = vld [vmem:[%s0 + $0x38] sm:$0xf]
    %v204 = vld [vmem:[%s0 + $0x3c] sm:$0xf]
    %v205 = vunpack.c.l.bf16 %v189
    %v206 = vunpack.c.l.bf16 %v190
    %v207 = vunpack.c.l.bf16 %v191
    %v208 = vunpack.c.l.bf16 %v192
    %v209 = vunpack.c.l.bf16 %v193
    %v210 = vunpack.c.l.bf16 %v194
    %v211 = vunpack.c.l.bf16 %v195
    %v212 = vunpack.c.l.bf16 %v196
    %v213 = vunpack.c.l.bf16 %v197
    %v214 = vunpack.c.l.bf16 %v198
    %v215 = vunpack.c.l.bf16 %v199
    %v216 = vunpack.c.l.bf16 %v200
    %v217 = vunpack.c.l.bf16 %v201
    %v218 = vunpack.c.l.bf16 %v202
    %v219 = vunpack.c.l.bf16 %v203
    %v220 = vunpack.c.l.bf16 %v204
    %v221 = vmax.f32 %v205, 0.0
    %v222 = vmax.f32 %v206, 0.0
    %v223 = vmax.f32 %v207, 0.0
    %v224 = vmax.f32 %v208, 0.0
    %v225 = vmax.f32 %v209, 0.0
    %v226 = vmax.f32 %v210, 0.0
    %v227 = vmax.f32 %v211, 0.0
    %v228 = vmax.f32 %v212, 0.0
    %v229 = vmax.f32 %v213, 0.0
    %v230 = vmax.f32 %v214, 0.0
    %v231 = vmax.f32 %v215, 0.0
    %v232 = vmax.f32 %v216, 0.0
    %v233 = vmax.f32 %v217, 0.0
    %v234 = vmax.f32 %v218, 0.0
    %v235 = vmax.f32 %v219, 0.0
    %v236 = vmax.f32 %v220, 0.0
    %v237 = vpack.c.bf16 %v221, %v221
    %v238 = vpack.c.bf16 %v222, %v222
    %v239 = vpack.c.bf16 %v223, %v223
    %v240 = vpack.c.bf16 %v224, %v224
    %v241 = vpack.c.bf16 %v225, %v225
    %v242 = vpack.c.bf16 %v226, %v226
    %v243 = vpack.c.bf16 %v227, %v227
    %v244 = vpack.c.bf16 %v228, %v228
    %v245 = vpack.c.bf16 %v229, %v229
    %v246 = vpack.c.bf16 %v230, %v230
    %v247 = vpack.c.bf16 %v231, %v231
    %v248 = vpack.c.bf16 %v232, %v232
    %v249 = vpack.c.bf16 %v233, %v233
    %v250 = vpack.c.bf16 %v234, %v234
    %v251 = vpack.c.bf16 %v235, %v235
    %v252 = vpack.c.bf16 %v236, %v236
    %v269 = vunpack.c.l.b16 %v237
    %v270 = vunpack.c.l.b16 %v238
    %v271 = vunpack.c.l.b16 %v239
    %v272 = vunpack.c.l.b16 %v240
    %v273 = vunpack.c.l.b16 %v241
    %v274 = vunpack.c.l.b16 %v242
    %v275 = vunpack.c.l.b16 %v243
    %v276 = vunpack.c.l.b16 %v244
    %v277 = vunpack.c.l.b16 %v245
    %v278 = vunpack.c.l.b16 %v246
    %v279 = vunpack.c.l.b16 %v247
    %v280 = vunpack.c.l.b16 %v248
    %v281 = vunpack.c.l.b16 %v249
    %v282 = vunpack.c.l.b16 %v250
    %v283 = vunpack.c.l.b16 %v251
    %v284 = vunpack.c.l.b16 %v252
    %v285 = vpack.c.b16 %v269, %v269
    %v286 = vpack.c.b16 %v270, %v270
    %v287 = vpack.c.b16 %v271, %v271
    %v288 = vpack.c.b16 %v272, %v272
    %v289 = vpack.c.b16 %v273, %v273
    %v290 = vpack.c.b16 %v274, %v274
    %v291 = vpack.c.b16 %v275, %v275
    %v292 = vpack.c.b16 %v276, %v276
    %v293 = vpack.c.b16 %v277, %v277
    %v294 = vpack.c.b16 %v278, %v278
    %v295 = vpack.c.b16 %v279, %v279
    %v296 = vpack.c.b16 %v280, %v280
    %v297 = vpack.c.b16 %v281, %v281
    %v298 = vpack.c.b16 %v282, %v282
    %v299 = vpack.c.b16 %v283, %v283
    %v300 = vpack.c.b16 %v284, %v284
    %v302 = vshrl.u32 %v285, 16
    %v304 = vrot.slane %v302, 7
    %v305 = vshll.u32 %v285, 16
    %v307 = vor.u32 %v304, %v305
    %v308 = vrot.slane %v304, 4
    %v310 = vshrl.u32 %v286, 16
    %v312 = vrot.slane %v310, 7
    %v313 = vshll.u32 %v286, 16
    %v315 = vor.u32 %v312, %v313
    %v316 = vrot.slane %v312, 4
    %v318 = vshrl.u32 %v287, 16
    %v320 = vrot.slane %v318, 7
    %v321 = vshll.u32 %v287, 16
    %v323 = vor.u32 %v320, %v321
    %v324 = vrot.slane %v320, 4
    %v326 = vshrl.u32 %v288, 16
    %v328 = vrot.slane %v326, 7
    %v329 = vshll.u32 %v288, 16
    %v331 = vor.u32 %v328, %v329
    %v332 = vrot.slane %v328, 4
    %v334 = vshrl.u32 %v289, 16
    %v336 = vrot.slane %v334, 7
    %v337 = vshll.u32 %v289, 16
    %v339 = vor.u32 %v336, %v337
    %v340 = vrot.slane %v336, 4
    %v342 = vshrl.u32 %v290, 16
    %v344 = vrot.slane %v342, 7
    %v345 = vshll.u32 %v290, 16
    %v347 = vor.u32 %v344, %v345
    %v348 = vrot.slane %v344, 4
    %v350 = vshrl.u32 %v291, 16
    %v352 = vrot.slane %v350, 7
    %v353 = vshll.u32 %v291, 16
    %v355 = vor.u32 %v352, %v353
    %v356 = vrot.slane %v352, 4
    %v358 = vshrl.u32 %v292, 16
    %v360 = vrot.slane %v358, 7
    %v361 = vshll.u32 %v292, 16
    %v363 = vor.u32 %v360, %v361
    %v364 = vrot.slane %v360, 4
    %v366 = vshrl.u32 %v293, 16
    %v368 = vrot.slane %v366, 7
    %v369 = vshll.u32 %v293, 16
    %v371 = vor.u32 %v368, %v369
    %v372 = vrot.slane %v368, 4
    %v374 = vshrl.u32 %v294, 16
    %v376 = vrot.slane %v374, 7
    %v377 = vshll.u32 %v294, 16
    %v379 = vor.u32 %v376, %v377
    %v380 = vrot.slane %v376, 4
    %v382 = vshrl.u32 %v295, 16
    %v384 = vrot.slane %v382, 7
    %v385 = vshll.u32 %v295, 16
    %v387 = vor.u32 %v384, %v385
    %v388 = vrot.slane %v384, 4
    %v390 = vshrl.u32 %v296, 16
    %v392 = vrot.slane %v390, 7
    %v393 = vshll.u32 %v296, 16
    %v395 = vor.u32 %v392, %v393
    %v396 = vrot.slane %v392, 4
    %v398 = vshrl.u32 %v297, 16
    %v400 = vrot.slane %v398, 7
    %v401 = vshll.u32 %v297, 16
    %v403 = vor.u32 %v400, %v401
    %v404 = vrot.slane %v400, 4
    %v406 = vshrl.u32 %v298, 16
    %v408 = vrot.slane %v406, 7
    %v409 = vshll.u32 %v298, 16
    %v411 = vor.u32 %v408, %v409
    %v412 = vrot.slane %v408, 4
    %v414 = vshrl.u32 %v299, 16
    %v416 = vrot.slane %v414, 7
    %v417 = vshll.u32 %v299, 16
    %v419 = vor.u32 %v416, %v417
    %v420 = vrot.slane %v416, 4
    %v422 = vshrl.u32 %v300, 16
    %v424 = vrot.slane %v422, 7
    %v425 = vshll.u32 %v300, 16
    %v427 = vor.u32 %v424, %v425
    %v428 = vrot.slane %v424, 4
    %s461 = scalar_lea.vmem [#allocation2], 8
    %vm462 = vcmask 519168
    %vm463 = vsmask.f32 7938
    %vm464 = vmand %vm462, %vm463
    %v465 = vld [vmem:[%s461] sm:$0xf]
    %v466 = vsel %vm464, %v307, %v465
    %467 = vst [vmem:[%s461] sm:$0xf] %v466
    %vm468 = vcmask 516096
    %vm469 = vsmask.f32 256
    %vm470 = vmand %vm468, %vm469
    %v471 = vld [vmem:[%s461 + $0x4] sm:$0x1]
    %v472 = vsel %vm470, %v308, %v471
    %473 = vst [vmem:[%s461 + $0x4] sm:$0x1] %v472
    %v474 = vld [vmem:[%s461 + $0x8] sm:$0xf]
    %v475 = vsel %vm464, %v315, %v474
    %476 = vst [vmem:[%s461 + $0x8] sm:$0xf] %v475
    %v477 = vld [vmem:[%s461 + $0xc] sm:$0x1]
    %v478 = vsel %vm470, %v316, %v477
    %479 = vst [vmem:[%s461 + $0xc] sm:$0x1] %v478
    %v480 = vld [vmem:[%s461 + $0x10] sm:$0xf]
    %v481 = vsel %vm464, %v323, %v480
    %482 = vst [vmem:[%s461 + $0x10] sm:$0xf] %v481
    %v483 = vld [vmem:[%s461 + $0x14] sm:$0x1]
    %v484 = vsel %vm470, %v324, %v483
    %485 = vst [vmem:[%s461 + $0x14] sm:$0x1] %v484
    %v486 = vld [vmem:[%s461 + $0x18] sm:$0xf]
    %v487 = vsel %vm464, %v331, %v486
    %488 = vst [vmem:[%s461 + $0x18] sm:$0xf] %v487
    %v489 = vld [vmem:[%s461 + $0x1c] sm:$0x1]
    %v490 = vsel %vm470, %v332, %v489
    %491 = vst [vmem:[%s461 + $0x1c] sm:$0x1] %v490
    %v492 = vld [vmem:[%s461 + $0x20] sm:$0xf]
    %v493 = vsel %vm464, %v339, %v492
    %494 = vst [vmem:[%s461 + $0x20] sm:$0xf] %v493
    %v495 = vld [vmem:[%s461 + $0x24] sm:$0x1]
    %v496 = vsel %vm470, %v340, %v495
    %497 = vst [vmem:[%s461 + $0x24] sm:$0x1] %v496
    %v498 = vld [vmem:[%s461 + $0x28] sm:$0xf]
    %v499 = vsel %vm464, %v347, %v498
    %500 = vst [vmem:[%s461 + $0x28] sm:$0xf] %v499
    %v501 = vld [vmem:[%s461 + $0x2c] sm:$0x1]
    %v502 = vsel %vm470, %v348, %v501
    %503 = vst [vmem:[%s461 + $0x2c] sm:$0x1] %v502
    %v504 = vld [vmem:[%s461 + $0x30] sm:$0xf]
    %v505 = vsel %vm464, %v355, %v504
    %506 = vst [vmem:[%s461 + $0x30] sm:$0xf] %v505
    %v507 = vld [vmem:[%s461 + $0x34] sm:$0x1]
    %v508 = vsel %vm470, %v356, %v507
    %509 = vst [vmem:[%s461 + $0x34] sm:$0x1] %v508
    %v510 = vld [vmem:[%s461 + $0x38] sm:$0xf]
    %v511 = vsel %vm464, %v363, %v510
    %512 = vst [vmem:[%s461 + $0x38] sm:$0xf] %v511
    %v513 = vld [vmem:[%s461 + $0x3c] sm:$0x1]
    %v514 = vsel %vm470, %v364, %v513
    %515 = vst [vmem:[%s461 + $0x3c] sm:$0x1] %v514
    %v516 = vld [vmem:[%s461 + $0x50] sm:$0xf]
    %v517 = vsel %vm464, %v371, %v516
    %518 = vst [vmem:[%s461 + $0x50] sm:$0xf] %v517
    %v519 = vld [vmem:[%s461 + $0x54] sm:$0x1]
    %v520 = vsel %vm470, %v372, %v519
    %521 = vst [vmem:[%s461 + $0x54] sm:$0x1] %v520
    %v522 = vld [vmem:[%s461 + $0x58] sm:$0xf]
    %v523 = vsel %vm464, %v379, %v522
    %524 = vst [vmem:[%s461 + $0x58] sm:$0xf] %v523
    %v525 = vld [vmem:[%s461 + $0x5c] sm:$0x1]
    %v526 = vsel %vm470, %v380, %v525
    %527 = vst [vmem:[%s461 + $0x5c] sm:$0x1] %v526
    %v528 = vld [vmem:[%s461 + $0x60] sm:$0xf]
    %v529 = vsel %vm464, %v387, %v528
    %530 = vst [vmem:[%s461 + $0x60] sm:$0xf] %v529
    %v531 = vld [vmem:[%s461 + $0x64] sm:$0x1]
    %v532 = vsel %vm470, %v388, %v531
    %533 = vst [vmem:[%s461 + $0x64] sm:$0x1] %v532
    %v534 = vld [vmem:[%s461 + $0x68] sm:$0xf]
    %v535 = vsel %vm464, %v395, %v534
    %536 = vst [vmem:[%s461 + $0x68] sm:$0xf] %v535
    %v537 = vld [vmem:[%s461 + $0x6c] sm:$0x1]
    %v538 = vsel %vm470, %v396, %v537
    %539 = vst [vmem:[%s461 + $0x6c] sm:$0x1] %v538
    %v540 = vld [vmem:[%s461 + $0x70] sm:$0xf]
    %v541 = vsel %vm464, %v403, %v540
    %542 = vst [vmem:[%s461 + $0x70] sm:$0xf] %v541
    %v543 = vld [vmem:[%s461 + $0x74] sm:$0x1]
    %v544 = vsel %vm470, %v404, %v543
    %545 = vst [vmem:[%s461 + $0x74] sm:$0x1] %v544
    %v546 = vld [vmem:[%s461 + $0x78] sm:$0xf]
    %v547 = vsel %vm464, %v411, %v546
    %548 = vst [vmem:[%s461 + $0x78] sm:$0xf] %v547
    %v549 = vld [vmem:[%s461 + $0x7c] sm:$0x1]
    %v550 = vsel %vm470, %v412, %v549
    %551 = vst [vmem:[%s461 + $0x7c] sm:$0x1] %v550
    %v552 = vld [vmem:[%s461 + $0x80] sm:$0xf]
    %v553 = vsel %vm464, %v419, %v552
    %554 = vst [vmem:[%s461 + $0x80] sm:$0xf] %v553
    %v555 = vld [vmem:[%s461 + $0x84] sm:$0x1]
    %v556 = vsel %vm470, %v420, %v555
    %557 = vst [vmem:[%s461 + $0x84] sm:$0x1] %v556
    %v558 = vld [vmem:[%s461 + $0x88] sm:$0xf]
    %v559 = vsel %vm464, %v427, %v558
    %560 = vst [vmem:[%s461 + $0x88] sm:$0xf] %v559
    %v561 = vld [vmem:[%s461 + $0x8c] sm:$0x1]
    %v562 = vsel %vm470, %v428, %v561
    %563 = vst [vmem:[%s461 + $0x8c] sm:$0x1] %v562
    %v564 = vld [vmem:[#allocation2] sm:$0xf]
    %v565 = vld [vmem:[#allocation2 + $0x8] sm:$0xf]
    %v566 = vld [vmem:[#allocation2 + $0x10] sm:$0xf]
    %v567 = vld [vmem:[#allocation2 + $0x18] sm:$0xf]
    %v568 = vld [vmem:[#allocation2 + $0x20] sm:$0xf]
    %v569 = vld [vmem:[#allocation2 + $0x28] sm:$0xf]
    %v570 = vld [vmem:[#allocation2 + $0x30] sm:$0xf]
    %v571 = vld [vmem:[#allocation2 + $0x38] sm:$0xf]
    %v572 = vld [vmem:[#allocation2 + $0x50] sm:$0xf]
    %v573 = vld [vmem:[#allocation2 + $0x58] sm:$0xf]
    %v574 = vld [vmem:[#allocation2 + $0x60] sm:$0xf]
    %v575 = vld [vmem:[#allocation2 + $0x68] sm:$0xf]
    %v576 = vld [vmem:[#allocation2 + $0x70] sm:$0xf]
    %v577 = vld [vmem:[#allocation2 + $0x78] sm:$0xf]
    %v578 = vld [vmem:[#allocation2 + $0x80] sm:$0xf]
    %v579 = vld [vmem:[#allocation2 + $0x88] sm:$0xf]
    %v580 = vld [vmem:[#allocation2 + $0x4] sm:$0x1]
    %v581 = vld [vmem:[#allocation2 + $0xc] sm:$0x1]
    %v582 = vld [vmem:[#allocation2 + $0x14] sm:$0x1]
    %v583 = vld [vmem:[#allocation2 + $0x1c] sm:$0x1]
    %v584 = vld [vmem:[#allocation2 + $0x24] sm:$0x1]
    %v585 = vld [vmem:[#allocation2 + $0x2c] sm:$0x1]
    %v586 = vld [vmem:[#allocation2 + $0x34] sm:$0x1]
    %v587 = vld [vmem:[#allocation2 + $0x3c] sm:$0x1]
    %v588 = vld [vmem:[#allocation2 + $0x54] sm:$0x1]
    %v589 = vld [vmem:[#allocation2 + $0x5c] sm:$0x1]
    %v590 = vld [vmem:[#allocation2 + $0x64] sm:$0x1]
    %v591 = vld [vmem:[#allocation2 + $0x6c] sm:$0x1]
    %v592 = vld [vmem:[#allocation2 + $0x74] sm:$0x1]
    %v593 = vld [vmem:[#allocation2 + $0x7c] sm:$0x1]
    %v594 = vld [vmem:[#allocation2 + $0x84] sm:$0x1]
    %v595 = vld [vmem:[#allocation2 + $0x8c] sm:$0x1]
    %vm596 = vsmask.f32 3328
    %vm597 = vsmask.f32 7440
    %vm598 = vmor %vm596, %vm597
    %v600 = vshrl.u32 %v564, 16
    %v602 = vrot.slane %v600, 4
    %v603 = vshll.u32 %v564, 16
    %v605 = vrot.slane %v603, 5
    %v606 = vor.u32 %v602, %v605
    %v607 = vrot.slane %v606, 4
    %v609 = vshll.u32 %v580, 16
    %v611 = vrot.slane %v609, 5
    %v612 = vsel %vm598, %v607, %v611
    %v614 = vshrl.u32 %v565, 16
    %v616 = vrot.slane %v614, 4
    %v617 = vshll.u32 %v565, 16
    %v619 = vrot.slane %v617, 5
    %v620 = vor.u32 %v616, %v619
    %v621 = vrot.slane %v620, 4
    %v623 = vshll.u32 %v581, 16
    %v625 = vrot.slane %v623, 5
    %v626 = vsel %vm598, %v621, %v625
    %v628 = vshrl.u32 %v566, 16
    %v630 = vrot.slane %v628, 4
    %v631 = vshll.u32 %v566, 16
    %v633 = vrot.slane %v631, 5
    %v634 = vor.u32 %v630, %v633
    %v635 = vrot.slane %v634, 4
    %v637 = vshll.u32 %v582, 16
    %v639 = vrot.slane %v637, 5
    %v640 = vsel %vm598, %v635, %v639
    %v642 = vshrl.u32 %v567, 16
    %v644 = vrot.slane %v642, 4
    %v645 = vshll.u32 %v567, 16
    %v647 = vrot.slane %v645, 5
    %v648 = vor.u32 %v644, %v647
    %v649 = vrot.slane %v648, 4
    %v651 = vshll.u32 %v583, 16
    %v653 = vrot.slane %v651, 5
    %v654 = vsel %vm598, %v649, %v653
    %v656 = vshrl.u32 %v568, 16
    %v658 = vrot.slane %v656, 4
    %v659 = vshll.u32 %v568, 16
    %v661 = vrot.slane %v659, 5
    %v662 = vor.u32 %v658, %v661
    %v663 = vrot.slane %v662, 4
    %v665 = vshll.u32 %v584, 16
    %v667 = vrot.slane %v665, 5
    %v668 = vsel %vm598, %v663, %v667
    %v670 = vshrl.u32 %v569, 16
    %v672 = vrot.slane %v670, 4
    %v673 = vshll.u32 %v569, 16
    %v675 = vrot.slane %v673, 5
    %v676 = vor.u32 %v672, %v675
    %v677 = vrot.slane %v676, 4
    %v679 = vshll.u32 %v585, 16
    %v681 = vrot.slane %v679, 5
    %v682 = vsel %vm598, %v677, %v681
    %v684 = vshrl.u32 %v570, 16
    %v686 = vrot.slane %v684, 4
    %v687 = vshll.u32 %v570, 16
    %v689 = vrot.slane %v687, 5
    %v690 = vor.u32 %v686, %v689
    %v691 = vrot.slane %v690, 4
    %v693 = vshll.u32 %v586, 16
    %v695 = vrot.slane %v693, 5
    %v696 = vsel %vm598, %v691, %v695
    %v698 = vshrl.u32 %v571, 16
    %v700 = vrot.slane %v698, 4
    %v701 = vshll.u32 %v571, 16
    %v703 = vrot.slane %v701, 5
    %v704 = vor.u32 %v700, %v703
    %v705 = vrot.slane %v704, 4
    %v707 = vshll.u32 %v587, 16
    %v709 = vrot.slane %v707, 5
    %v710 = vsel %vm598, %v705, %v709
    %v712 = vshrl.u32 %v572, 16
    %v714 = vrot.slane %v712, 4
    %v715 = vshll.u32 %v572, 16
    %v717 = vrot.slane %v715, 5
    %v718 = vor.u32 %v714, %v717
    %v719 = vrot.slane %v718, 4
    %v721 = vshll.u32 %v588, 16
    %v723 = vrot.slane %v721, 5
    %v724 = vsel %vm598, %v719, %v723
    %v726 = vshrl.u32 %v573, 16
    %v728 = vrot.slane %v726, 4
    %v729 = vshll.u32 %v573, 16
    %v731 = vrot.slane %v729, 5
    %v732 = vor.u32 %v728, %v731
    %v733 = vrot.slane %v732, 4
    %v735 = vshll.u32 %v589, 16
    %v737 = vrot.slane %v735, 5
    %v738 = vsel %vm598, %v733, %v737
    %v740 = vshrl.u32 %v574, 16
    %v742 = vrot.slane %v740, 4
    %v743 = vshll.u32 %v574, 16
    %v745 = vrot.slane %v743, 5
    %v746 = vor.u32 %v742, %v745
    %v747 = vrot.slane %v746, 4
    %v749 = vshll.u32 %v590, 16
    %v751 = vrot.slane %v749, 5
    %v752 = vsel %vm598, %v747, %v751
    %v754 = vshrl.u32 %v575, 16
    %v756 = vrot.slane %v754, 4
    %v757 = vshll.u32 %v575, 16
    %v759 = vrot.slane %v757, 5
    %v760 = vor.u32 %v756, %v759
    %v761 = vrot.slane %v760, 4
    %v763 = vshll.u32 %v591, 16
    %v765 = vrot.slane %v763, 5
    %v766 = vsel %vm598, %v761, %v765
    %v768 = vshrl.u32 %v576, 16
    %v770 = vrot.slane %v768, 4
    %v771 = vshll.u32 %v576, 16
    %v773 = vrot.slane %v771, 5
    %v774 = vor.u32 %v770, %v773
    %v775 = vrot.slane %v774, 4
    %v777 = vshll.u32 %v592, 16
    %v779 = vrot.slane %v777, 5
    %v780 = vsel %vm598, %v775, %v779
    %v782 = vshrl.u32 %v577, 16
    %v784 = vrot.slane %v782, 4
    %v785 = vshll.u32 %v577, 16
    %v787 = vrot.slane %v785, 5
    %v788 = vor.u32 %v784, %v787
    %v789 = vrot.slane %v788, 4
    %v791 = vshll.u32 %v593, 16
    %v793 = vrot.slane %v791, 5
    %v794 = vsel %vm598, %v789, %v793
    %v796 = vshrl.u32 %v578, 16
    %v798 = vrot.slane %v796, 4
    %v799 = vshll.u32 %v578, 16
    %v801 = vrot.slane %v799, 5
    %v802 = vor.u32 %v798, %v801
    %v803 = vrot.slane %v802, 4
    %v805 = vshll.u32 %v594, 16
    %v807 = vrot.slane %v805, 5
    %v808 = vsel %vm598, %v803, %v807
    %v810 = vshrl.u32 %v579, 16
    %v812 = vrot.slane %v810, 4
    %v813 = vshll.u32 %v579, 16
    %v815 = vrot.slane %v813, 5
    %v816 = vor.u32 %v812, %v815
    %v817 = vrot.slane %v816, 4
    %v819 = vshll.u32 %v595, 16
    %v821 = vrot.slane %v819, 5
    %v822 = vsel %vm598, %v817, %v821
    %v823 = vld [vmem:[#allocation2] sm:$0xe]
    %v824 = vld [vmem:[#allocation2 + $0x8] sm:$0xe]
    %v825 = vld [vmem:[#allocation2 + $0x10] sm:$0xe]
    %v826 = vld [vmem:[#allocation2 + $0x18] sm:$0xe]
    %v827 = vld [vmem:[#allocation2 + $0x20] sm:$0xe]
    %v828 = vld [vmem:[#allocation2 + $0x28] sm:$0xe]
    %v829 = vld [vmem:[#allocation2 + $0x30] sm:$0xe]
    %v830 = vld [vmem:[#allocation2 + $0x38] sm:$0xe]
    %v831 = vld [vmem:[#allocation2 + $0x50] sm:$0xe]
    %v832 = vld [vmem:[#allocation2 + $0x58] sm:$0xe]
    %v833 = vld [vmem:[#allocation2 + $0x60] sm:$0xe]
    %v834 = vld [vmem:[#allocation2 + $0x68] sm:$0xe]
    %v835 = vld [vmem:[#allocation2 + $0x70] sm:$0xe]
    %v836 = vld [vmem:[#allocation2 + $0x78] sm:$0xe]
    %v837 = vld [vmem:[#allocation2 + $0x80] sm:$0xe]
    %v838 = vld [vmem:[#allocation2 + $0x88] sm:$0xe]
    %vm871 = vcmask 1042432
    %vm872 = vcmask 1046532
    %vm873 = vmor %vm871, %vm872
    %v874 = vrot.slane %v823, 5
    %v875 = vrot.slane %v874, 4
    %v876 = vrot.slane %v580, 5
    %v877 = vsel %vm873, %v875, %v876
    %v878 = vrot.slane %v824, 5
    %v879 = vrot.slane %v878, 4
    %v880 = vrot.slane %v581, 5
    %v881 = vsel %vm873, %v879, %v880
    %v882 = vrot.slane %v825, 5
    %v883 = vrot.slane %v882, 4
    %v884 = vrot.slane %v582, 5
    %v885 = vsel %vm873, %v883, %v884
    %v886 = vrot.slane %v826, 5
    %v887 = vrot.slane %v886, 4
    %v888 = vrot.slane %v583, 5
    %v889 = vsel %vm873, %v887, %v888
    %v890 = vrot.slane %v827, 5
    %v891 = vrot.slane %v890, 4
    %v892 = vrot.slane %v584, 5
    %v893 = vsel %vm873, %v891, %v892
    %v894 = vrot.slane %v828, 5
    %v895 = vrot.slane %v894, 4
    %v896 = vrot.slane %v585, 5
    %v897 = vsel %vm873, %v895, %v896
    %v898 = vrot.slane %v829, 5
    %v899 = vrot.slane %v898, 4
    %v900 = vrot.slane %v586, 5
    %v901 = vsel %vm873, %v899, %v900
    %v902 = vrot.slane %v830, 5
    %v903 = vrot.slane %v902, 4
    %v904 = vrot.slane %v587, 5
    %v905 = vsel %vm873, %v903, %v904
    %v906 = vrot.slane %v831, 5
    %v907 = vrot.slane %v906, 4
    %v908 = vrot.slane %v588, 5
    %v909 = vsel %vm873, %v907, %v908
    %v910 = vrot.slane %v832, 5
    %v911 = vrot.slane %v910, 4
    %v912 = vrot.slane %v589, 5
    %v913 = vsel %vm873, %v911, %v912
    %v914 = vrot.slane %v833, 5
    %v915 = vrot.slane %v914, 4
    %v916 = vrot.slane %v590, 5
    %v917 = vsel %vm873, %v915, %v916
    %v918 = vrot.slane %v834, 5
    %v919 = vrot.slane %v918, 4
    %v920 = vrot.slane %v591, 5
    %v921 = vsel %vm873, %v919, %v920
    %v922 = vrot.slane %v835, 5
    %v923 = vrot.slane %v922, 4
    %v924 = vrot.slane %v592, 5
    %v925 = vsel %vm873, %v923, %v924
    %v926 = vrot.slane %v836, 5
    %v927 = vrot.slane %v926, 4
    %v928 = vrot.slane %v593, 5
    %v929 = vsel %vm873, %v927, %v928
    %v930 = vrot.slane %v837, 5
    %v931 = vrot.slane %v930, 4
    %v932 = vrot.slane %v594, 5
    %v933 = vsel %vm873, %v931, %v932
    %v934 = vrot.slane %v838, 5
    %v935 = vrot.slane %v934, 4
    %v936 = vrot.slane %v595, 5
    %v937 = vsel %vm873, %v935, %v936
    %v938 = vld [vmem:[%s461] sm:$0xf]
    %v939 = vld [vmem:[%s461 + $0x8] sm:$0xf]
    %v940 = vld [vmem:[%s461 + $0x10] sm:$0xf]
    %v941 = vld [vmem:[%s461 + $0x18] sm:$0xf]
    %v942 = vld [vmem:[%s461 + $0x20] sm:$0xf]
    %v943 = vld [vmem:[%s461 + $0x28] sm:$0xf]
    %v944 = vld [vmem:[%s461 + $0x30] sm:$0xf]
    %v945 = vld [vmem:[%s461 + $0x38] sm:$0xf]
    %v946 = vld [vmem:[%s461 + $0x50] sm:$0xf]
    %v947 = vld [vmem:[%s461 + $0x58] sm:$0xf]
    %v948 = vld [vmem:[%s461 + $0x60] sm:$0xf]
    %v949 = vld [vmem:[%s461 + $0x68] sm:$0xf]
    %v950 = vld [vmem:[%s461 + $0x70] sm:$0xf]
    %v951 = vld [vmem:[%s461 + $0x78] sm:$0xf]
    %v952 = vld [vmem:[%s461 + $0x80] sm:$0xf]
    %v953 = vld [vmem:[%s461 + $0x88] sm:$0xf]
    %v954 = vld [vmem:[%s461 + $0x4] sm:$0x1]
    %v955 = vld [vmem:[%s461 + $0xc] sm:$0x1]
    %v956 = vld [vmem:[%s461 + $0x14] sm:$0x1]
    %v957 = vld [vmem:[%s461 + $0x1c] sm:$0x1]
    %v958 = vld [vmem:[%s461 + $0x24] sm:$0x1]
    %v959 = vld [vmem:[%s461 + $0x2c] sm:$0x1]
    %v960 = vld [vmem:[%s461 + $0x34] sm:$0x1]
    %v961 = vld [vmem:[%s461 + $0x3c] sm:$0x1]
    %v962 = vld [vmem:[%s461 + $0x54] sm:$0x1]
    %v963 = vld [vmem:[%s461 + $0x5c] sm:$0x1]
    %v964 = vld [vmem:[%s461 + $0x64] sm:$0x1]
    %v965 = vld [vmem:[%s461 + $0x6c] sm:$0x1]
    %v966 = vld [vmem:[%s461 + $0x74] sm:$0x1]
    %v967 = vld [vmem:[%s461 + $0x7c] sm:$0x1]
    %v968 = vld [vmem:[%s461 + $0x84] sm:$0x1]
    %v969 = vld [vmem:[%s461 + $0x8c] sm:$0x1]
    %v971 = vshrl.u32 %v938, 16
    %v973 = vrot.slane %v971, 4
    %v974 = vshll.u32 %v938, 16
    %v976 = vrot.slane %v974, 5
    %v977 = vor.u32 %v973, %v976
    %v978 = vrot.slane %v977, 4
    %v980 = vshll.u32 %v954, 16
    %v982 = vrot.slane %v980, 5
    %v983 = vsel %vm598, %v978, %v982
    %v985 = vshrl.u32 %v939, 16
    %v987 = vrot.slane %v985, 4
    %v988 = vshll.u32 %v939, 16
    %v990 = vrot.slane %v988, 5
    %v991 = vor.u32 %v987, %v990
    %v992 = vrot.slane %v991, 4
    %v994 = vshll.u32 %v955, 16
    %v996 = vrot.slane %v994, 5
    %v997 = vsel %vm598, %v992, %v996
    %v999 = vshrl.u32 %v940, 16
    %v1001 = vrot.slane %v999, 4
    %v1002 = vshll.u32 %v940, 16
    %v1004 = vrot.slane %v1002, 5
    %v1005 = vor.u32 %v1001, %v1004
    %v1006 = vrot.slane %v1005, 4
    %v1008 = vshll.u32 %v956, 16
    %v1010 = vrot.slane %v1008, 5
    %v1011 = vsel %vm598, %v1006, %v1010
    %v1013 = vshrl.u32 %v941, 16
    %v1015 = vrot.slane %v1013, 4
    %v1016 = vshll.u32 %v941, 16
    %v1018 = vrot.slane %v1016, 5
    %v1019 = vor.u32 %v1015, %v1018
    %v1020 = vrot.slane %v1019, 4
    %v1022 = vshll.u32 %v957, 16
    %v1024 = vrot.slane %v1022, 5
    %v1025 = vsel %vm598, %v1020, %v1024
    %v1027 = vshrl.u32 %v942, 16
    %v1029 = vrot.slane %v1027, 4
    %v1030 = vshll.u32 %v942, 16
    %v1032 = vrot.slane %v1030, 5
    %v1033 = vor.u32 %v1029, %v1032
    %v1034 = vrot.slane %v1033, 4
    %v1036 = vshll.u32 %v958, 16
    %v1038 = vrot.slane %v1036, 5
    %v1039 = vsel %vm598, %v1034, %v1038
    %v1041 = vshrl.u32 %v943, 16
    %v1043 = vrot.slane %v1041, 4
    %v1044 = vshll.u32 %v943, 16
    %v1046 = vrot.slane %v1044, 5
    %v1047 = vor.u32 %v1043, %v1046
    %v1048 = vrot.slane %v1047, 4
    %v1050 = vshll.u32 %v959, 16
    %v1052 = vrot.slane %v1050, 5
    %v1053 = vsel %vm598, %v1048, %v1052
    %v1055 = vshrl.u32 %v944, 16
    %v1057 = vrot.slane %v1055, 4
    %v1058 = vshll.u32 %v944, 16
    %v1060 = vrot.slane %v1058, 5
    %v1061 = vor.u32 %v1057, %v1060
    %v1062 = vrot.slane %v1061, 4
    %v1064 = vshll.u32 %v960, 16
    %v1066 = vrot.slane %v1064, 5
    %v1067 = vsel %vm598, %v1062, %v1066
    %v1069 = vshrl.u32 %v945, 16
    %v1071 = vrot.slane %v1069, 4
    %v1072 = vshll.u32 %v945, 16
    %v1074 = vrot.slane %v1072, 5
    %v1075 = vor.u32 %v1071, %v1074
    %v1076 = vrot.slane %v1075, 4
    %v1078 = vshll.u32 %v961, 16
    %v1080 = vrot.slane %v1078, 5
    %v1081 = vsel %vm598, %v1076, %v1080
    %v1083 = vshrl.u32 %v946, 16
    %v1085 = vrot.slane %v1083, 4
    %v1086 = vshll.u32 %v946, 16
    %v1088 = vrot.slane %v1086, 5
    %v1089 = vor.u32 %v1085, %v1088
    %v1090 = vrot.slane %v1089, 4
    %v1092 = vshll.u32 %v962, 16
    %v1094 = vrot.slane %v1092, 5
    %v1095 = vsel %vm598, %v1090, %v1094
    %v1097 = vshrl.u32 %v947, 16
    %v1099 = vrot.slane %v1097, 4
    %v1100 = vshll.u32 %v947, 16
    %v1102 = vrot.slane %v1100, 5
    %v1103 = vor.u32 %v1099, %v1102
    %v1104 = vrot.slane %v1103, 4
    %v1106 = vshll.u32 %v963, 16
    %v1108 = vrot.slane %v1106, 5
    %v1109 = vsel %vm598, %v1104, %v1108
    %v1111 = vshrl.u32 %v948, 16
    %v1113 = vrot.slane %v1111, 4
    %v1114 = vshll.u32 %v948, 16
    %v1116 = vrot.slane %v1114, 5
    %v1117 = vor.u32 %v1113, %v1116
    %v1118 = vrot.slane %v1117, 4
    %v1120 = vshll.u32 %v964, 16
    %v1122 = vrot.slane %v1120, 5
    %v1123 = vsel %vm598, %v1118, %v1122
    %v1125 = vshrl.u32 %v949, 16
    %v1127 = vrot.slane %v1125, 4
    %v1128 = vshll.u32 %v949, 16
    %v1130 = vrot.slane %v1128, 5
    %v1131 = vor.u32 %v1127, %v1130
    %v1132 = vrot.slane %v1131, 4
    %v1134 = vshll.u32 %v965, 16
    %v1136 = vrot.slane %v1134, 5
    %v1137 = vsel %vm598, %v1132, %v1136
    %v1139 = vshrl.u32 %v950, 16
    %v1141 = vrot.slane %v1139, 4
    %v1142 = vshll.u32 %v950, 16
    %v1144 = vrot.slane %v1142, 5
    %v1145 = vor.u32 %v1141, %v1144
    %v1146 = vrot.slane %v1145, 4
    %v1148 = vshll.u32 %v966, 16
    %v1150 = vrot.slane %v1148, 5
    %v1151 = vsel %vm598, %v1146, %v1150
    %v1153 = vshrl.u32 %v951, 16
    %v1155 = vrot.slane %v1153, 4
    %v1156 = vshll.u32 %v951, 16
    %v1158 = vrot.slane %v1156, 5
    %v1159 = vor.u32 %v1155, %v1158
    %v1160 = vrot.slane %v1159, 4
    %v1162 = vshll.u32 %v967, 16
    %v1164 = vrot.slane %v1162, 5
    %v1165 = vsel %vm598, %v1160, %v1164
    %v1167 = vshrl.u32 %v952, 16
    %v1169 = vrot.slane %v1167, 4
    %v1170 = vshll.u32 %v952, 16
    %v1172 = vrot.slane %v1170, 5
    %v1173 = vor.u32 %v1169, %v1172
    %v1174 = vrot.slane %v1173, 4
    %v1176 = vshll.u32 %v968, 16
    %v1178 = vrot.slane %v1176, 5
    %v1179 = vsel %vm598, %v1174, %v1178
    %v1181 = vshrl.u32 %v953, 16
    %v1183 = vrot.slane %v1181, 4
    %v1184 = vshll.u32 %v953, 16
    %v1186 = vrot.slane %v1184, 5
    %v1187 = vor.u32 %v1183, %v1186
    %v1188 = vrot.slane %v1187, 4
    %v1190 = vshll.u32 %v969, 16
    %v1192 = vrot.slane %v1190, 5
    %v1193 = vsel %vm598, %v1188, %v1192
    %v1194 = vld [vmem:[%s461] sm:$0xe]
    %v1195 = vld [vmem:[%s461 + $0x8] sm:$0xe]
    %v1196 = vld [vmem:[%s461 + $0x10] sm:$0xe]
    %v1197 = vld [vmem:[%s461 + $0x18] sm:$0xe]
    %v1198 = vld [vmem:[%s461 + $0x20] sm:$0xe]
    %v1199 = vld [vmem:[%s461 + $0x28] sm:$0xe]
    %v1200 = vld [vmem:[%s461 + $0x30] sm:$0xe]
    %v1201 = vld [vmem:[%s461 + $0x38] sm:$0xe]
    %v1202 = vld [vmem:[%s461 + $0x50] sm:$0xe]
    %v1203 = vld [vmem:[%s461 + $0x58] sm:$0xe]
    %v1204 = vld [vmem:[%s461 + $0x60] sm:$0xe]
    %v1205 = vld [vmem:[%s461 + $0x68] sm:$0xe]
    %v1206 = vld [vmem:[%s461 + $0x70] sm:$0xe]
    %v1207 = vld [vmem:[%s461 + $0x78] sm:$0xe]
    %v1208 = vld [vmem:[%s461 + $0x80] sm:$0xe]
    %v1209 = vld [vmem:[%s461 + $0x88] sm:$0xe]
    %v1242 = vrot.slane %v1194, 5
    %v1243 = vrot.slane %v1242, 4
    %v1244 = vrot.slane %v954, 5
    %v1245 = vsel %vm873, %v1243, %v1244
    %v1246 = vrot.slane %v1195, 5
    %v1247 = vrot.slane %v1246, 4
    %v1248 = vrot.slane %v955, 5
    %v1249 = vsel %vm873, %v1247, %v1248
    %v1250 = vrot.slane %v1196, 5
    %v1251 = vrot.slane %v1250, 4
    %v1252 = vrot.slane %v956, 5
    %v1253 = vsel %vm873, %v1251, %v1252
    %v1254 = vrot.slane %v1197, 5
    %v1255 = vrot.slane %v1254, 4
    %v1256 = vrot.slane %v957, 5
    %v1257 = vsel %vm873, %v1255, %v1256
    %v1258 = vrot.slane %v1198, 5
    %v1259 = vrot.slane %v1258, 4
    %v1260 = vrot.slane %v958, 5
    %v1261 = vsel %vm873, %v1259, %v1260
    %v1262 = vrot.slane %v1199, 5
    %v1263 = vrot.slane %v1262, 4
    %v1264 = vrot.slane %v959, 5
    %v1265 = vsel %vm873, %v1263, %v1264
    %v1266 = vrot.slane %v1200, 5
    %v1267 = vrot.slane %v1266, 4
    %v1268 = vrot.slane %v960, 5
    %v1269 = vsel %vm873, %v1267, %v1268
    %v1270 = vrot.slane %v1201, 5
    %v1271 = vrot.slane %v1270, 4
    %v1272 = vrot.slane %v961, 5
    %v1273 = vsel %vm873, %v1271, %v1272
    %v1274 = vrot.slane %v1202, 5
    %v1275 = vrot.slane %v1274, 4
    %v1276 = vrot.slane %v962, 5
    %v1277 = vsel %vm873, %v1275, %v1276
    %v1278 = vrot.slane %v1203, 5
    %v1279 = vrot.slane %v1278, 4
    %v1280 = vrot.slane %v963, 5
    %v1281 = vsel %vm873, %v1279, %v1280
    %v1282 = vrot.slane %v1204, 5
    %v1283 = vrot.slane %v1282, 4
    %v1284 = vrot.slane %v964, 5
    %v1285 = vsel %vm873, %v1283, %v1284
    %v1286 = vrot.slane %v1205, 5
    %v1287 = vrot.slane %v1286, 4
    %v1288 = vrot.slane %v965, 5
    %v1289 = vsel %vm873, %v1287, %v1288
    %v1290 = vrot.slane %v1206, 5
    %v1291 = vrot.slane %v1290, 4
    %v1292 = vrot.slane %v966, 5
    %v1293 = vsel %vm873, %v1291, %v1292
    %v1294 = vrot.slane %v1207, 5
    %v1295 = vrot.slane %v1294, 4
    %v1296 = vrot.slane %v967, 5
    %v1297 = vsel %vm873, %v1295, %v1296
    %v1298 = vrot.slane %v1208, 5
    %v1299 = vrot.slane %v1298, 4
    %v1300 = vrot.slane %v968, 5
    %v1301 = vsel %vm873, %v1299, %v1300
    %v1302 = vrot.slane %v1209, 5
    %v1303 = vrot.slane %v1302, 4
    %v1304 = vrot.slane %v969, 5
    %v1305 = vsel %vm873, %v1303, %v1304
    %s1306 = scalar_lea.vmem [#allocation2], 16
    %v1307 = vld [vmem:[%s1306] sm:$0xf]
    %v1308 = vld [vmem:[%s1306 + $0x8] sm:$0xf]
    %v1309 = vld [vmem:[%s1306 + $0x10] sm:$0xf]
    %v1310 = vld [vmem:[%s1306 + $0x18] sm:$0xf]
    %v1311 = vld [vmem:[%s1306 + $0x20] sm:$0xf]
    %v1312 = vld [vmem:[%s1306 + $0x28] sm:$0xf]
    %v1313 = vld [vmem:[%s1306 + $0x30] sm:$0xf]
    %v1314 = vld [vmem:[%s1306 + $0x38] sm:$0xf]
    %v1315 = vld [vmem:[%s1306 + $0x50] sm:$0xf]
    %v1316 = vld [vmem:[%s1306 + $0x58] sm:$0xf]
    %v1317 = vld [vmem:[%s1306 + $0x60] sm:$0xf]
    %v1318 = vld [vmem:[%s1306 + $0x68] sm:$0xf]
    %v1319 = vld [vmem:[%s1306 + $0x70] sm:$0xf]
    %v1320 = vld [vmem:[%s1306 + $0x78] sm:$0xf]
    %v1321 = vld [vmem:[%s1306 + $0x80] sm:$0xf]
    %v1322 = vld [vmem:[%s1306 + $0x88] sm:$0xf]
    %v1323 = vld [vmem:[%s1306 + $0x4] sm:$0x1]
    %v1324 = vld [vmem:[%s1306 + $0xc] sm:$0x1]
    %v1325 = vld [vmem:[%s1306 + $0x14] sm:$0x1]
    %v1326 = vld [vmem:[%s1306 + $0x1c] sm:$0x1]
    %v1327 = vld [vmem:[%s1306 + $0x24] sm:$0x1]
    %v1328 = vld [vmem:[%s1306 + $0x2c] sm:$0x1]
    %v1329 = vld [vmem:[%s1306 + $0x34] sm:$0x1]
    %v1330 = vld [vmem:[%s1306 + $0x3c] sm:$0x1]
    %v1331 = vld [vmem:[%s1306 + $0x54] sm:$0x1]
    %v1332 = vld [vmem:[%s1306 + $0x5c] sm:$0x1]
    %v1333 = vld [vmem:[%s1306 + $0x64] sm:$0x1]
    %v1334 = vld [vmem:[%s1306 + $0x6c] sm:$0x1]
    %v1335 = vld [vmem:[%s1306 + $0x74] sm:$0x1]
    %v1336 = vld [vmem:[%s1306 + $0x7c] sm:$0x1]
    %v1337 = vld [vmem:[%s1306 + $0x84] sm:$0x1]
    %v1338 = vld [vmem:[%s1306 + $0x8c] sm:$0x1]
    %v1340 = vshrl.u32 %v1307, 16
    %v1342 = vrot.slane %v1340, 4
    %v1343 = vshll.u32 %v1307, 16
    %v1345 = vrot.slane %v1343, 5
    %v1346 = vor.u32 %v1342, %v1345
    %v1347 = vrot.slane %v1346, 4
    %v1349 = vshll.u32 %v1323, 16
    %v1351 = vrot.slane %v1349, 5
    %v1352 = vsel %vm598, %v1347, %v1351
    %v1354 = vshrl.u32 %v1308, 16
    %v1356 = vrot.slane %v1354, 4
    %v1357 = vshll.u32 %v1308, 16
    %v1359 = vrot.slane %v1357, 5
    %v1360 = vor.u32 %v1356, %v1359
    %v1361 = vrot.slane %v1360, 4
    %v1363 = vshll.u32 %v1324, 16
    %v1365 = vrot.slane %v1363, 5
    %v1366 = vsel %vm598, %v1361, %v1365
    %v1368 = vshrl.u32 %v1309, 16
    %v1370 = vrot.slane %v1368, 4
    %v1371 = vshll.u32 %v1309, 16
    %v1373 = vrot.slane %v1371, 5
    %v1374 = vor.u32 %v1370, %v1373
    %v1375 = vrot.slane %v1374, 4
    %v1377 = vshll.u32 %v1325, 16
    %v1379 = vrot.slane %v1377, 5
    %v1380 = vsel %vm598, %v1375, %v1379
    %v1382 = vshrl.u32 %v1310, 16
    %v1384 = vrot.slane %v1382, 4
    %v1385 = vshll.u32 %v1310, 16
    %v1387 = vrot.slane %v1385, 5
    %v1388 = vor.u32 %v1384, %v1387
    %v1389 = vrot.slane %v1388, 4
    %v1391 = vshll.u32 %v1326, 16
    %v1393 = vrot.slane %v1391, 5
    %v1394 = vsel %vm598, %v1389, %v1393
    %v1396 = vshrl.u32 %v1311, 16
    %v1398 = vrot.slane %v1396, 4
    %v1399 = vshll.u32 %v1311, 16
    %v1401 = vrot.slane %v1399, 5
    %v1402 = vor.u32 %v1398, %v1401
    %v1403 = vrot.slane %v1402, 4
    %v1405 = vshll.u32 %v1327, 16
    %v1407 = vrot.slane %v1405, 5
    %v1408 = vsel %vm598, %v1403, %v1407
    %v1410 = vshrl.u32 %v1312, 16
    %v1412 = vrot.slane %v1410, 4
    %v1413 = vshll.u32 %v1312, 16
    %v1415 = vrot.slane %v1413, 5
    %v1416 = vor.u32 %v1412, %v1415
    %v1417 = vrot.slane %v1416, 4
    %v1419 = vshll.u32 %v1328, 16
    %v1421 = vrot.slane %v1419, 5
    %v1422 = vsel %vm598, %v1417, %v1421
    %v1424 = vshrl.u32 %v1313, 16
    %v1426 = vrot.slane %v1424, 4
    %v1427 = vshll.u32 %v1313, 16
    %v1429 = vrot.slane %v1427, 5
    %v1430 = vor.u32 %v1426, %v1429
    %v1431 = vrot.slane %v1430, 4
    %v1433 = vshll.u32 %v1329, 16
    %v1435 = vrot.slane %v1433, 5
    %v1436 = vsel %vm598, %v1431, %v1435
    %v1438 = vshrl.u32 %v1314, 16
    %v1440 = vrot.slane %v1438, 4
    %v1441 = vshll.u32 %v1314, 16
    %v1443 = vrot.slane %v1441, 5
    %v1444 = vor.u32 %v1440, %v1443
    %v1445 = vrot.slane %v1444, 4
    %v1447 = vshll.u32 %v1330, 16
    %v1449 = vrot.slane %v1447, 5
    %v1450 = vsel %vm598, %v1445, %v1449
    %v1452 = vshrl.u32 %v1315, 16
    %v1454 = vrot.slane %v1452, 4
    %v1455 = vshll.u32 %v1315, 16
    %v1457 = vrot.slane %v1455, 5
    %v1458 = vor.u32 %v1454, %v1457
    %v1459 = vrot.slane %v1458, 4
    %v1461 = vshll.u32 %v1331, 16
    %v1463 = vrot.slane %v1461, 5
    %v1464 = vsel %vm598, %v1459, %v1463
    %v1466 = vshrl.u32 %v1316, 16
    %v1468 = vrot.slane %v1466, 4
    %v1469 = vshll.u32 %v1316, 16
    %v1471 = vrot.slane %v1469, 5
    %v1472 = vor.u32 %v1468, %v1471
    %v1473 = vrot.slane %v1472, 4
    %v1475 = vshll.u32 %v1332, 16
    %v1477 = vrot.slane %v1475, 5
    %v1478 = vsel %vm598, %v1473, %v1477
    %v1480 = vshrl.u32 %v1317, 16
    %v1482 = vrot.slane %v1480, 4
    %v1483 = vshll.u32 %v1317, 16
    %v1485 = vrot.slane %v1483, 5
    %v1486 = vor.u32 %v1482, %v1485
    %v1487 = vrot.slane %v1486, 4
    %v1489 = vshll.u32 %v1333, 16
    %v1491 = vrot.slane %v1489, 5
    %v1492 = vsel %vm598, %v1487, %v1491
    %v1494 = vshrl.u32 %v1318, 16
    %v1496 = vrot.slane %v1494, 4
    %v1497 = vshll.u32 %v1318, 16
    %v1499 = vrot.slane %v1497, 5
    %v1500 = vor.u32 %v1496, %v1499
    %v1501 = vrot.slane %v1500, 4
    %v1503 = vshll.u32 %v1334, 16
    %v1505 = vrot.slane %v1503, 5
    %v1506 = vsel %vm598, %v1501, %v1505
    %v1508 = vshrl.u32 %v1319, 16
    %v1510 = vrot.slane %v1508, 4
    %v1511 = vshll.u32 %v1319, 16
    %v1513 = vrot.slane %v1511, 5
    %v1514 = vor.u32 %v1510, %v1513
    %v1515 = vrot.slane %v1514, 4
    %v1517 = vshll.u32 %v1335, 16
    %v1519 = vrot.slane %v1517, 5
    %v1520 = vsel %vm598, %v1515, %v1519
    %v1522 = vshrl.u32 %v1320, 16
    %v1524 = vrot.slane %v1522, 4
    %v1525 = vshll.u32 %v1320, 16
    %v1527 = vrot.slane %v1525, 5
    %v1528 = vor.u32 %v1524, %v1527
    %v1529 = vrot.slane %v1528, 4
    %v1531 = vshll.u32 %v1336, 16
    %v1533 = vrot.slane %v1531, 5
    %v1534 = vsel %vm598, %v1529, %v1533
    %v1536 = vshrl.u32 %v1321, 16
    %v1538 = vrot.slane %v1536, 4
    %v1539 = vshll.u32 %v1321, 16
    %v1541 = vrot.slane %v1539, 5
    %v1542 = vor.u32 %v1538, %v1541
    %v1543 = vrot.slane %v1542, 4
    %v1545 = vshll.u32 %v1337, 16
    %v1547 = vrot.slane %v1545, 5
    %v1548 = vsel %vm598, %v1543, %v1547
    %v1550 = vshrl.u32 %v1322, 16
    %v1552 = vrot.slane %v1550, 4
    %v1553 = vshll.u32 %v1322, 16
    %v1555 = vrot.slane %v1553, 5
    %v1556 = vor.u32 %v1552, %v1555
    %v1557 = vrot.slane %v1556, 4
    %v1559 = vshll.u32 %v1338, 16
    %v1561 = vrot.slane %v1559, 5
    %v1562 = vsel %vm598, %v1557, %v1561
    %v1563 = vld [vmem:[%s1306] sm:$0xe]
    %v1564 = vld [vmem:[%s1306 + $0x8] sm:$0xe]
    %v1565 = vld [vmem:[%s1306 + $0x10] sm:$0xe]
    %v1566 = vld [vmem:[%s1306 + $0x18] sm:$0xe]
    %v1567 = vld [vmem:[%s1306 + $0x20] sm:$0xe]
    %v1568 = vld [vmem:[%s1306 + $0x28] sm:$0xe]
    %v1569 = vld [vmem:[%s1306 + $0x30] sm:$0xe]
    %v1570 = vld [vmem:[%s1306 + $0x38] sm:$0xe]
    %v1571 = vld [vmem:[%s1306 + $0x50] sm:$0xe]
    %v1572 = vld [vmem:[%s1306 + $0x58] sm:$0xe]
    %v1573 = vld [vmem:[%s1306 + $0x60] sm:$0xe]
    %v1574 = vld [vmem:[%s1306 + $0x68] sm:$0xe]
    %v1575 = vld [vmem:[%s1306 + $0x70] sm:$0xe]
    %v1576 = vld [vmem:[%s1306 + $0x78] sm:$0xe]
    %v1577 = vld [vmem:[%s1306 + $0x80] sm:$0xe]
    %v1578 = vld [vmem:[%s1306 + $0x88] sm:$0xe]
    %v1611 = vrot.slane %v1563, 5
    %v1612 = vrot.slane %v1611, 4
    %v1613 = vrot.slane %v1323, 5
    %v1614 = vsel %vm873, %v1612, %v1613
    %v1615 = vrot.slane %v1564, 5
    %v1616 = vrot.slane %v1615, 4
    %v1617 = vrot.slane %v1324, 5
    %v1618 = vsel %vm873, %v1616, %v1617
    %v1619 = vrot.slane %v1565, 5
    %v1620 = vrot.slane %v1619, 4
    %v1621 = vrot.slane %v1325, 5
    %v1622 = vsel %vm873, %v1620, %v1621
    %v1623 = vrot.slane %v1566, 5
    %v1624 = vrot.slane %v1623, 4
    %v1625 = vrot.slane %v1326, 5
    %v1626 = vsel %vm873, %v1624, %v1625
    %v1627 = vrot.slane %v1567, 5
    %v1628 = vrot.slane %v1627, 4
    %v1629 = vrot.slane %v1327, 5
    %v1630 = vsel %vm873, %v1628, %v1629
    %v1631 = vrot.slane %v1568, 5
    %v1632 = vrot.slane %v1631, 4
    %v1633 = vrot.slane %v1328, 5
    %v1634 = vsel %vm873, %v1632, %v1633
    %v1635 = vrot.slane %v1569, 5
    %v1636 = vrot.slane %v1635, 4
    %v1637 = vrot.slane %v1329, 5
    %v1638 = vsel %vm873, %v1636, %v1637
    %v1639 = vrot.slane %v1570, 5
    %v1640 = vrot.slane %v1639, 4
    %v1641 = vrot.slane %v1330, 5
    %v1642 = vsel %vm873, %v1640, %v1641
    %v1643 = vrot.slane %v1571, 5
    %v1644 = vrot.slane %v1643, 4
    %v1645 = vrot.slane %v1331, 5
    %v1646 = vsel %vm873, %v1644, %v1645
    %v1647 = vrot.slane %v1572, 5
    %v1648 = vrot.slane %v1647, 4
    %v1649 = vrot.slane %v1332, 5
    %v1650 = vsel %vm873, %v1648, %v1649
    %v1651 = vrot.slane %v1573, 5
    %v1652 = vrot.slane %v1651, 4
    %v1653 = vrot.slane %v1333, 5
    %v1654 = vsel %vm873, %v1652, %v1653
    %v1655 = vrot.slane %v1574, 5
    %v1656 = vrot.slane %v1655, 4
    %v1657 = vrot.slane %v1334, 5
    %v1658 = vsel %vm873, %v1656, %v1657
    %v1659 = vrot.slane %v1575, 5
    %v1660 = vrot.slane %v1659, 4
    %v1661 = vrot.slane %v1335, 5
    %v1662 = vsel %vm873, %v1660, %v1661
    %v1663 = vrot.slane %v1576, 5
    %v1664 = vrot.slane %v1663, 4
    %v1665 = vrot.slane %v1336, 5
    %v1666 = vsel %vm873, %v1664, %v1665
    %v1667 = vrot.slane %v1577, 5
    %v1668 = vrot.slane %v1667, 4
    %v1669 = vrot.slane %v1337, 5
    %v1670 = vsel %vm873, %v1668, %v1669
    %v1671 = vrot.slane %v1578, 5
    %v1672 = vrot.slane %v1671, 4
    %v1673 = vrot.slane %v1338, 5
    %v1674 = vsel %vm873, %v1672, %v1673
    %v1691 = vunpack.c.l.b16 %v564
    %v1692 = vunpack.c.l.b16 %v565
    %v1693 = vunpack.c.l.b16 %v566
    %v1694 = vunpack.c.l.b16 %v567
    %v1695 = vunpack.c.l.b16 %v568
    %v1696 = vunpack.c.l.b16 %v569
    %v1697 = vunpack.c.l.b16 %v570
    %v1698 = vunpack.c.l.b16 %v571
    %v1699 = vunpack.c.l.b16 %v572
    %v1700 = vunpack.c.l.b16 %v573
    %v1701 = vunpack.c.l.b16 %v574
    %v1702 = vunpack.c.l.b16 %v575
    %v1703 = vunpack.c.l.b16 %v576
    %v1704 = vunpack.c.l.b16 %v577
    %v1705 = vunpack.c.l.b16 %v578
    %v1706 = vunpack.c.l.b16 %v579
    %v1707 = vpack.c.b16 %v1692, %v1691
    %v1708 = vpack.c.b16 %v1694, %v1693
    %v1709 = vpack.c.b16 %v1696, %v1695
    %v1710 = vpack.c.b16 %v1698, %v1697
    %v1711 = vpack.c.b16 %v1700, %v1699
    %v1712 = vpack.c.b16 %v1702, %v1701
    %v1713 = vpack.c.b16 %v1704, %v1703
    %v1714 = vpack.c.b16 %v1706, %v1705
    %v1715 = vunpack.c.l.b16 %v612
    %v1716 = vunpack.c.l.b16 %v626
    %v1717 = vunpack.c.l.b16 %v640
    %v1718 = vunpack.c.l.b16 %v654
    %v1719 = vunpack.c.l.b16 %v668
    %v1720 = vunpack.c.l.b16 %v682
    %v1721 = vunpack.c.l.b16 %v696
    %v1722 = vunpack.c.l.b16 %v710
    %v1723 = vunpack.c.l.b16 %v724
    %v1724 = vunpack.c.l.b16 %v738
    %v1725 = vunpack.c.l.b16 %v752
    %v1726 = vunpack.c.l.b16 %v766
    %v1727 = vunpack.c.l.b16 %v780
    %v1728 = vunpack.c.l.b16 %v794
    %v1729 = vunpack.c.l.b16 %v808
    %v1730 = vunpack.c.l.b16 %v822
    %v1731 = vpack.c.b16 %v1716, %v1715
    %v1732 = vpack.c.b16 %v1718, %v1717
    %v1733 = vpack.c.b16 %v1720, %v1719
    %v1734 = vpack.c.b16 %v1722, %v1721
    %v1735 = vpack.c.b16 %v1724, %v1723
    %v1736 = vpack.c.b16 %v1726, %v1725
    %v1737 = vpack.c.b16 %v1728, %v1727
    %v1738 = vpack.c.b16 %v1730, %v1729
    %1739 = vrot.lane.b32.xlu0 %v1731, 64
    %v1740 = vpop.permute.xlu0 %1739
    %1741 = vrot.lane.b32.xlu0 %v1732, 64
    %v1742 = vpop.permute.xlu0 %1741
    %1743 = vrot.lane.b32.xlu0 %v1733, 64
    %v1744 = vpop.permute.xlu0 %1743
    %1745 = vrot.lane.b32.xlu0 %v1734, 64
    %v1746 = vpop.permute.xlu0 %1745
    %1747 = vrot.lane.b32.xlu0 %v1735, 64
    %v1748 = vpop.permute.xlu0 %1747
    %1749 = vrot.lane.b32.xlu0 %v1736, 64
    %v1750 = vpop.permute.xlu0 %1749
    %1751 = vrot.lane.b32.xlu0 %v1737, 64
    %v1752 = vpop.permute.xlu0 %1751
    %1753 = vrot.lane.b32.xlu0 %v1738, 64
    %v1754 = vpop.permute.xlu0 %1753
    %v1755 = vunpack.c.l.b16 %v877
    %v1756 = vunpack.c.l.b16 %v881
    %v1757 = vunpack.c.l.b16 %v885
    %v1758 = vunpack.c.l.b16 %v889
    %v1759 = vunpack.c.l.b16 %v893
    %v1760 = vunpack.c.l.b16 %v897
    %v1761 = vunpack.c.l.b16 %v901
    %v1762 = vunpack.c.l.b16 %v905
    %v1763 = vunpack.c.l.b16 %v909
    %v1764 = vunpack.c.l.b16 %v913
    %v1765 = vunpack.c.l.b16 %v917
    %v1766 = vunpack.c.l.b16 %v921
    %v1767 = vunpack.c.l.b16 %v925
    %v1768 = vunpack.c.l.b16 %v929
    %v1769 = vunpack.c.l.b16 %v933
    %v1770 = vunpack.c.l.b16 %v937
    %v1771 = vpack.c.b16 %v1756, %v1755
    %v1772 = vpack.c.b16 %v1758, %v1757
    %v1773 = vpack.c.b16 %v1760, %v1759
    %v1774 = vpack.c.b16 %v1762, %v1761
    %v1775 = vpack.c.b16 %v1764, %v1763
    %v1776 = vpack.c.b16 %v1766, %v1765
    %v1777 = vpack.c.b16 %v1768, %v1767
    %v1778 = vpack.c.b16 %v1770, %v1769
    %v1795 = vunpack.c.l.b16 %v938
    %v1796 = vunpack.c.l.b16 %v939
    %v1797 = vunpack.c.l.b16 %v940
    %v1798 = vunpack.c.l.b16 %v941
    %v1799 = vunpack.c.l.b16 %v942
    %v1800 = vunpack.c.l.b16 %v943
    %v1801 = vunpack.c.l.b16 %v944
    %v1802 = vunpack.c.l.b16 %v945
    %v1803 = vunpack.c.l.b16 %v946
    %v1804 = vunpack.c.l.b16 %v947
    %v1805 = vunpack.c.l.b16 %v948
    %v1806 = vunpack.c.l.b16 %v949
    %v1807 = vunpack.c.l.b16 %v950
    %v1808 = vunpack.c.l.b16 %v951
    %v1809 = vunpack.c.l.b16 %v952
    %v1810 = vunpack.c.l.b16 %v953
    %v1811 = vpack.c.b16 %v1796, %v1795
    %v1812 = vpack.c.b16 %v1798, %v1797
    %v1813 = vpack.c.b16 %v1800, %v1799
    %v1814 = vpack.c.b16 %v1802, %v1801
    %v1815 = vpack.c.b16 %v1804, %v1803
    %v1816 = vpack.c.b16 %v1806, %v1805
    %v1817 = vpack.c.b16 %v1808, %v1807
    %v1818 = vpack.c.b16 %v1810, %v1809
    %1819 = vrot.lane.b32.xlu0 %v1811, 64
    %v1820 = vpop.permute.xlu0 %1819
    %1821 = vrot.lane.b32.xlu0 %v1812, 64
    %v1822 = vpop.permute.xlu0 %1821
    %1823 = vrot.lane.b32.xlu0 %v1813, 64
    %v1824 = vpop.permute.xlu0 %1823
    %1825 = vrot.lane.b32.xlu0 %v1814, 64
    %v1826 = vpop.permute.xlu0 %1825
    %1827 = vrot.lane.b32.xlu0 %v1815, 64
    %v1828 = vpop.permute.xlu0 %1827
    %1829 = vrot.lane.b32.xlu0 %v1816, 64
    %v1830 = vpop.permute.xlu0 %1829
    %1831 = vrot.lane.b32.xlu0 %v1817, 64
    %v1832 = vpop.permute.xlu0 %1831
    %1833 = vrot.lane.b32.xlu0 %v1818, 64
    %v1834 = vpop.permute.xlu0 %1833
    %v1835 = vunpack.c.l.b16 %v983
    %v1836 = vunpack.c.l.b16 %v997
    %v1837 = vunpack.c.l.b16 %v1011
    %v1838 = vunpack.c.l.b16 %v1025
    %v1839 = vunpack.c.l.b16 %v1039
    %v1840 = vunpack.c.l.b16 %v1053
    %v1841 = vunpack.c.l.b16 %v1067
    %v1842 = vunpack.c.l.b16 %v1081
    %v1843 = vunpack.c.l.b16 %v1095
    %v1844 = vunpack.c.l.b16 %v1109
    %v1845 = vunpack.c.l.b16 %v1123
    %v1846 = vunpack.c.l.b16 %v1137
    %v1847 = vunpack.c.l.b16 %v1151
    %v1848 = vunpack.c.l.b16 %v1165
    %v1849 = vunpack.c.l.b16 %v1179
    %v1850 = vunpack.c.l.b16 %v1193
    %v1851 = vpack.c.b16 %v1836, %v1835
    %v1852 = vpack.c.b16 %v1838, %v1837
    %v1853 = vpack.c.b16 %v1840, %v1839
    %v1854 = vpack.c.b16 %v1842, %v1841
    %v1855 = vpack.c.b16 %v1844, %v1843
    %v1856 = vpack.c.b16 %v1846, %v1845
    %v1857 = vpack.c.b16 %v1848, %v1847
    %v1858 = vpack.c.b16 %v1850, %v1849
    %v1859 = vunpack.c.l.b16 %v1245
    %v1860 = vunpack.c.l.b16 %v1249
    %v1861 = vunpack.c.l.b16 %v1253
    %v1862 = vunpack.c.l.b16 %v1257
    %v1863 = vunpack.c.l.b16 %v1261
    %v1864 = vunpack.c.l.b16 %v1265
    %v1865 = vunpack.c.l.b16 %v1269
    %v1866 = vunpack.c.l.b16 %v1273
    %v1867 = vunpack.c.l.b16 %v1277
    %v1868 = vunpack.c.l.b16 %v1281
    %v1869 = vunpack.c.l.b16 %v1285
    %v1870 = vunpack.c.l.b16 %v1289
    %v1871 = vunpack.c.l.b16 %v1293
    %v1872 = vunpack.c.l.b16 %v1297
    %v1873 = vunpack.c.l.b16 %v1301
    %v1874 = vunpack.c.l.b16 %v1305
    %v1875 = vpack.c.b16 %v1860, %v1859
    %v1876 = vpack.c.b16 %v1862, %v1861
    %v1877 = vpack.c.b16 %v1864, %v1863
    %v1878 = vpack.c.b16 %v1866, %v1865
    %v1879 = vpack.c.b16 %v1868, %v1867
    %v1880 = vpack.c.b16 %v1870, %v1869
    %v1881 = vpack.c.b16 %v1872, %v1871
    %v1882 = vpack.c.b16 %v1874, %v1873
    %1883 = vrot.lane.b32.xlu0 %v1875, 64
    %v1884 = vpop.permute.xlu0 %1883
    %1885 = vrot.lane.b32.xlu0 %v1876, 64
    %v1886 = vpop.permute.xlu0 %1885
    %1887 = vrot.lane.b32.xlu0 %v1877, 64
    %v1888 = vpop.permute.xlu0 %1887
    %1889 = vrot.lane.b32.xlu0 %v1878, 64
    %v1890 = vpop.permute.xlu0 %1889
    %1891 = vrot.lane.b32.xlu0 %v1879, 64
    %v1892 = vpop.permute.xlu0 %1891
    %1893 = vrot.lane.b32.xlu0 %v1880, 64
    %v1894 = vpop.permute.xlu0 %1893
    %1895 = vrot.lane.b32.xlu0 %v1881, 64
    %v1896 = vpop.permute.xlu0 %1895
    %1897 = vrot.lane.b32.xlu0 %v1882, 64
    %v1898 = vpop.permute.xlu0 %1897
    %v1915 = vunpack.c.l.b16 %v1307
    %v1916 = vunpack.c.l.b16 %v1308
    %v1917 = vunpack.c.l.b16 %v1309
    %v1918 = vunpack.c.l.b16 %v1310
    %v1919 = vunpack.c.l.b16 %v1311
    %v1920 = vunpack.c.l.b16 %v1312
    %v1921 = vunpack.c.l.b16 %v1313
    %v1922 = vunpack.c.l.b16 %v1314
    %v1923 = vunpack.c.l.b16 %v1315
    %v1924 = vunpack.c.l.b16 %v1316
    %v1925 = vunpack.c.l.b16 %v1317
    %v1926 = vunpack.c.l.b16 %v1318
    %v1927 = vunpack.c.l.b16 %v1319
    %v1928 = vunpack.c.l.b16 %v1320
    %v1929 = vunpack.c.l.b16 %v1321
    %v1930 = vunpack.c.l.b16 %v1322
    %v1931 = vpack.c.b16 %v1916, %v1915
    %v1932 = vpack.c.b16 %v1918, %v1917
    %v1933 = vpack.c.b16 %v1920, %v1919
    %v1934 = vpack.c.b16 %v1922, %v1921
    %v1935 = vpack.c.b16 %v1924, %v1923
    %v1936 = vpack.c.b16 %v1926, %v1925
    %v1937 = vpack.c.b16 %v1928, %v1927
    %v1938 = vpack.c.b16 %v1930, %v1929
    %v1939 = vunpack.c.l.b16 %v1352
    %v1940 = vunpack.c.l.b16 %v1366
    %v1941 = vunpack.c.l.b16 %v1380
    %v1942 = vunpack.c.l.b16 %v1394
    %v1943 = vunpack.c.l.b16 %v1408
    %v1944 = vunpack.c.l.b16 %v1422
    %v1945 = vunpack.c.l.b16 %v1436
    %v1946 = vunpack.c.l.b16 %v1450
    %v1947 = vunpack.c.l.b16 %v1464
    %v1948 = vunpack.c.l.b16 %v1478
    %v1949 = vunpack.c.l.b16 %v1492
    %v1950 = vunpack.c.l.b16 %v1506
    %v1951 = vunpack.c.l.b16 %v1520
    %v1952 = vunpack.c.l.b16 %v1534
    %v1953 = vunpack.c.l.b16 %v1548
    %v1954 = vunpack.c.l.b16 %v1562
    %v1955 = vpack.c.b16 %v1940, %v1939
    %v1956 = vpack.c.b16 %v1942, %v1941
    %v1957 = vpack.c.b16 %v1944, %v1943
    %v1958 = vpack.c.b16 %v1946, %v1945
    %v1959 = vpack.c.b16 %v1948, %v1947
    %v1960 = vpack.c.b16 %v1950, %v1949
    %v1961 = vpack.c.b16 %v1952, %v1951
    %v1962 = vpack.c.b16 %v1954, %v1953
    %1963 = vrot.lane.b32.xlu0 %v1955, 64
    %v1964 = vpop.permute.xlu0 %1963
    %1965 = vrot.lane.b32.xlu0 %v1956, 64
    %v1966 = vpop.permute.xlu0 %1965
    %1967 = vrot.lane.b32.xlu0 %v1957, 64
    %v1968 = vpop.permute.xlu0 %1967
    %1969 = vrot.lane.b32.xlu0 %v1958, 64
    %v1970 = vpop.permute.xlu0 %1969
    %1971 = vrot.lane.b32.xlu0 %v1959, 64
    %v1972 = vpop.permute.xlu0 %1971
    %1973 = vrot.lane.b32.xlu0 %v1960, 64
    %v1974 = vpop.permute.xlu0 %1973
    %1975 = vrot.lane.b32.xlu0 %v1961, 64
    %v1976 = vpop.permute.xlu0 %1975
    %1977 = vrot.lane.b32.xlu0 %v1962, 64
    %v1978 = vpop.permute.xlu0 %1977
    %v1979 = vunpack.c.l.b16 %v1614
    %v1980 = vunpack.c.l.b16 %v1618
    %v1981 = vunpack.c.l.b16 %v1622
    %v1982 = vunpack.c.l.b16 %v1626
    %v1983 = vunpack.c.l.b16 %v1630
    %v1984 = vunpack.c.l.b16 %v1634
    %v1985 = vunpack.c.l.b16 %v1638
    %v1986 = vunpack.c.l.b16 %v1642
    %v1987 = vunpack.c.l.b16 %v1646
    %v1988 = vunpack.c.l.b16 %v1650
    %v1989 = vunpack.c.l.b16 %v1654
    %v1990 = vunpack.c.l.b16 %v1658
    %v1991 = vunpack.c.l.b16 %v1662
    %v1992 = vunpack.c.l.b16 %v1666
    %v1993 = vunpack.c.l.b16 %v1670
    %v1994 = vunpack.c.l.b16 %v1674
    %v1995 = vpack.c.b16 %v1980, %v1979
    %v1996 = vpack.c.b16 %v1982, %v1981
    %v1997 = vpack.c.b16 %v1984, %v1983
    %v1998 = vpack.c.b16 %v1986, %v1985
    %v1999 = vpack.c.b16 %v1988, %v1987
    %v2000 = vpack.c.b16 %v1990, %v1989
    %v2001 = vpack.c.b16 %v1992, %v1991
    %v2002 = vpack.c.b16 %v1994, %v1993
    %vm2003 = vcmask 523264
    %v2006 = vsel %vm2003, %v1707, %v1740
    %v2010 = vsel %vm2003, %v1708, %v1742
    %v2014 = vsel %vm2003, %v1709, %v1744
    %v2018 = vsel %vm2003, %v1710, %v1746
    %v2022 = vsel %vm2003, %v1711, %v1748
    %v2026 = vsel %vm2003, %v1712, %v1750
    %v2030 = vsel %vm2003, %v1713, %v1752
    %v2034 = vsel %vm2003, %v1714, %v1754
    %v2038 = vsel %vm2003, %v1771, %v1820
    %v2042 = vsel %vm2003, %v1772, %v1822
    %v2046 = vsel %vm2003, %v1773, %v1824
    %v2050 = vsel %vm2003, %v1774, %v1826
    %v2054 = vsel %vm2003, %v1775, %v1828
    %v2058 = vsel %vm2003, %v1776, %v1830
    %v2062 = vsel %vm2003, %v1777, %v1832
    %v2066 = vsel %vm2003, %v1778, %v1834
    %v2070 = vsel %vm2003, %v1851, %v1884
    %v2074 = vsel %vm2003, %v1852, %v1886
    %v2078 = vsel %vm2003, %v1853, %v1888
    %v2082 = vsel %vm2003, %v1854, %v1890
    %v2086 = vsel %vm2003, %v1855, %v1892
    %v2090 = vsel %vm2003, %v1856, %v1894
    %v2094 = vsel %vm2003, %v1857, %v1896
    %v2098 = vsel %vm2003, %v1858, %v1898
    %v2102 = vsel %vm2003, %v1931, %v1964
    %v2106 = vsel %vm2003, %v1932, %v1966
    %v2110 = vsel %vm2003, %v1933, %v1968
    %v2114 = vsel %vm2003, %v1934, %v1970
    %v2118 = vsel %vm2003, %v1935, %v1972
    %v2122 = vsel %vm2003, %v1936, %v1974
    %v2126 = vsel %vm2003, %v1937, %v1976
    %v2130 = vsel %vm2003, %v1938, %v1978
    %v2132 = vld [vmem:[#allocation5] sm:$0xf]
    %v2133 = vld [vmem:[#allocation5 + $0x4] sm:$0xf]
    %v2134 = vld [vmem:[#allocation5 + $0x8] sm:$0xf]
    %v2135 = vld [vmem:[#allocation5 + $0xc] sm:$0xf]
    %v2136 = vld [vmem:[#allocation5 + $0x10] sm:$0xf]
    %v2137 = vld [vmem:[#allocation5 + $0x14] sm:$0xf]
    %v2138 = vld [vmem:[#allocation5 + $0x18] sm:$0xf]
    %v2139 = vld [vmem:[#allocation5 + $0x1c] sm:$0xf]
    %v2140 = vld [vmem:[#allocation5 + $0x20] sm:$0xf]
    %v2141 = vld [vmem:[#allocation5 + $0x24] sm:$0xf]
    %v2142 = vld [vmem:[#allocation5 + $0x28] sm:$0xf]
    %v2143 = vld [vmem:[#allocation5 + $0x2c] sm:$0xf]
    %v2144 = vld [vmem:[#allocation5 + $0x30] sm:$0xf]
    %v2145 = vld [vmem:[#allocation5 + $0x34] sm:$0xf]
    %v2146 = vld [vmem:[#allocation5 + $0x38] sm:$0xf]
    %v2147 = vld [vmem:[#allocation5 + $0x3c] sm:$0xf]
    %v2148 = vld [vmem:[#allocation5 + $0x40] sm:$0xf]
    %v2149 = vld [vmem:[#allocation5 + $0x44] sm:$0xf]
    %v2150 = vld [vmem:[#allocation5 + $0x48] sm:$0xf]
    %v2151 = vld [vmem:[#allocation5 + $0x4c] sm:$0xf]
    %v2152 = vld [vmem:[#allocation5 + $0x50] sm:$0xf]
    %v2153 = vld [vmem:[#allocation5 + $0x54] sm:$0xf]
    %v2154 = vld [vmem:[#allocation5 + $0x58] sm:$0xf]
    %v2155 = vld [vmem:[#allocation5 + $0x5c] sm:$0xf]
    %v2156 = vld [vmem:[#allocation5 + $0x60] sm:$0xf]
    %v2157 = vld [vmem:[#allocation5 + $0x64] sm:$0xf]
    %v2158 = vld [vmem:[#allocation5 + $0x68] sm:$0xf]
    %v2159 = vld [vmem:[#allocation5 + $0x6c] sm:$0xf]
    %v2160 = vld [vmem:[#allocation5 + $0x70] sm:$0xf]
    %v2161 = vld [vmem:[#allocation5 + $0x74] sm:$0xf]
    %v2162 = vld [vmem:[#allocation5 + $0x78] sm:$0xf]
    %v2163 = vld [vmem:[#allocation5 + $0x7c] sm:$0xf]
    %v2164 = vld [vmem:[#allocation5 + $0x80] sm:$0xf]
    %v2165 = vld [vmem:[#allocation5 + $0x84] sm:$0xf]
    %v2166 = vld [vmem:[#allocation5 + $0x88] sm:$0xf]
    %v2167 = vld [vmem:[#allocation5 + $0x8c] sm:$0xf]
    %v2168 = vld [vmem:[#allocation5 + $0x90] sm:$0xf]
    %v2169 = vld [vmem:[#allocation5 + $0x94] sm:$0xf]
    %v2170 = vld [vmem:[#allocation5 + $0x98] sm:$0xf]
    %v2171 = vld [vmem:[#allocation5 + $0x9c] sm:$0xf]
    %v2172 = vld [vmem:[#allocation5 + $0xa0] sm:$0xf]
    %v2173 = vld [vmem:[#allocation5 + $0xa4] sm:$0xf]
    %v2174 = vld [vmem:[#allocation5 + $0xa8] sm:$0xf]
    %v2175 = vld [vmem:[#allocation5 + $0xac] sm:$0xf]
    %v2176 = vld [vmem:[#allocation5 + $0xb0] sm:$0xf]
    %v2177 = vld [vmem:[#allocation5 + $0xb4] sm:$0xf]
    %v2178 = vld [vmem:[#allocation5 + $0xb8] sm:$0xf]
    %v2179 = vld [vmem:[#allocation5 + $0xbc] sm:$0xf]
    %v2180 = vld [vmem:[#allocation5 + $0xc0] sm:$0xf]
    %v2181 = vld [vmem:[#allocation5 + $0xc4] sm:$0xf]
    %v2182 = vld [vmem:[#allocation5 + $0xc8] sm:$0xf]
    %v2183 = vld [vmem:[#allocation5 + $0xcc] sm:$0xf]
    %v2184 = vld [vmem:[#allocation5 + $0xd0] sm:$0xf]
    %v2185 = vld [vmem:[#allocation5 + $0xd4] sm:$0xf]
    %v2186 = vld [vmem:[#allocation5 + $0xd8] sm:$0xf]
    %v2187 = vld [vmem:[#allocation5 + $0xdc] sm:$0xf]
    %v2188 = vld [vmem:[#allocation5 + $0xe0] sm:$0xf]
    %v2189 = vld [vmem:[#allocation5 + $0xe4] sm:$0xf]
    %v2190 = vld [vmem:[#allocation5 + $0xe8] sm:$0xf]
    %v2191 = vld [vmem:[#allocation5 + $0xec] sm:$0xf]
    %v2192 = vld [vmem:[#allocation5 + $0xf0] sm:$0xf]
    %v2193 = vld [vmem:[#allocation5 + $0xf4] sm:$0xf]
    %v2194 = vld [vmem:[#allocation5 + $0xf8] sm:$0xf]
    %v2195 = vld [vmem:[#allocation5 + $0xfc] sm:$0xf]
    %v2196 = vld [vmem:[#allocation5 + $0x100] sm:$0xf]
    %v2197 = vld [vmem:[#allocation5 + $0x104] sm:$0xf]
    %v2198 = vld [vmem:[#allocation5 + $0x108] sm:$0xf]
    %v2199 = vld [vmem:[#allocation5 + $0x10c] sm:$0xf]
    %v2200 = vld [vmem:[#allocation5 + $0x110] sm:$0xf]
    %v2201 = vld [vmem:[#allocation5 + $0x114] sm:$0xf]
    %v2202 = vld [vmem:[#allocation5 + $0x118] sm:$0xf]
    %v2203 = vld [vmem:[#allocation5 + $0x11c] sm:$0xf]
    %v2276 = vunpack.c.l.b16 %v2132
    %v2277 = vunpack.c.l.b16 %v2133
    %v2278 = vunpack.c.l.b16 %v2134
    %v2279 = vunpack.c.l.b16 %v2135
    %v2280 = vunpack.c.l.b16 %v2136
    %v2281 = vunpack.c.l.b16 %v2137
    %v2282 = vunpack.c.l.b16 %v2138
    %v2283 = vunpack.c.l.b16 %v2139
    %v2284 = vunpack.c.l.b16 %v2140
    %v2285 = vunpack.c.l.b16 %v2141
    %v2286 = vunpack.c.l.b16 %v2142
    %v2287 = vunpack.c.l.b16 %v2143
    %v2288 = vunpack.c.l.b16 %v2144
    %v2289 = vunpack.c.l.b16 %v2145
    %v2290 = vunpack.c.l.b16 %v2146
    %v2291 = vunpack.c.l.b16 %v2147
    %v2292 = vunpack.c.l.b16 %v2148
    %v2293 = vunpack.c.l.b16 %v2149
    %v2294 = vunpack.c.l.b16 %v2150
    %v2295 = vunpack.c.l.b16 %v2151
    %v2296 = vunpack.c.l.b16 %v2152
    %v2297 = vunpack.c.l.b16 %v2153
    %v2298 = vunpack.c.l.b16 %v2154
    %v2299 = vunpack.c.l.b16 %v2155
    %v2300 = vunpack.c.l.b16 %v2156
    %v2301 = vunpack.c.l.b16 %v2157
    %v2302 = vunpack.c.l.b16 %v2158
    %v2303 = vunpack.c.l.b16 %v2159
    %v2304 = vunpack.c.l.b16 %v2160
    %v2305 = vunpack.c.l.b16 %v2161
    %v2306 = vunpack.c.l.b16 %v2162
    %v2307 = vunpack.c.l.b16 %v2163
    %v2308 = vunpack.c.l.b16 %v2164
    %v2309 = vunpack.c.l.b16 %v2165
    %v2310 = vunpack.c.l.b16 %v2166
    %v2311 = vunpack.c.l.b16 %v2167
    %v2312 = vunpack.c.l.b16 %v2168
    %v2313 = vunpack.c.l.b16 %v2169
    %v2314 = vunpack.c.l.b16 %v2170
    %v2315 = vunpack.c.l.b16 %v2171
    %v2316 = vunpack.c.l.b16 %v2172
    %v2317 = vunpack.c.l.b16 %v2173
    %v2318 = vunpack.c.l.b16 %v2174
    %v2319 = vunpack.c.l.b16 %v2175
    %v2320 = vunpack.c.l.b16 %v2176
    %v2321 = vunpack.c.l.b16 %v2177
    %v2322 = vunpack.c.l.b16 %v2178
    %v2323 = vunpack.c.l.b16 %v2179
    %v2324 = vunpack.c.l.b16 %v2180
    %v2325 = vunpack.c.l.b16 %v2181
    %v2326 = vunpack.c.l.b16 %v2182
    %v2327 = vunpack.c.l.b16 %v2183
    %v2328 = vunpack.c.l.b16 %v2184
    %v2329 = vunpack.c.l.b16 %v2185
    %v2330 = vunpack.c.l.b16 %v2186
    %v2331 = vunpack.c.l.b16 %v2187
    %v2332 = vunpack.c.l.b16 %v2188
    %v2333 = vunpack.c.l.b16 %v2189
    %v2334 = vunpack.c.l.b16 %v2190
    %v2335 = vunpack.c.l.b16 %v2191
    %v2336 = vunpack.c.l.b16 %v2192
    %v2337 = vunpack.c.l.b16 %v2193
    %v2338 = vunpack.c.l.b16 %v2194
    %v2339 = vunpack.c.l.b16 %v2195
    %v2340 = vunpack.c.l.b16 %v2196
    %v2341 = vunpack.c.l.b16 %v2197
    %v2342 = vunpack.c.l.b16 %v2198
    %v2343 = vunpack.c.l.b16 %v2199
    %v2344 = vunpack.c.l.b16 %v2200
    %v2345 = vunpack.c.l.b16 %v2201
    %v2346 = vunpack.c.l.b16 %v2202
    %v2347 = vunpack.c.l.b16 %v2203
    %v2348 = vpack.c.b16 %v2277, %v2276
    %v2349 = vpack.c.b16 %v2279, %v2278
    %v2350 = vpack.c.b16 %v2281, %v2280
    %v2351 = vpack.c.b16 %v2283, %v2282
    %v2352 = vpack.c.b16 %v2285, %v2284
    %v2353 = vpack.c.b16 %v2287, %v2286
    %v2354 = vpack.c.b16 %v2289, %v2288
    %v2355 = vpack.c.b16 %v2291, %v2290
    %v2356 = vpack.c.b16 %v2293, %v2292
    %v2357 = vpack.c.b16 %v2295, %v2294
    %v2358 = vpack.c.b16 %v2297, %v2296
    %v2359 = vpack.c.b16 %v2299, %v2298
    %v2360 = vpack.c.b16 %v2301, %v2300
    %v2361 = vpack.c.b16 %v2303, %v2302
    %v2362 = vpack.c.b16 %v2305, %v2304
    %v2363 = vpack.c.b16 %v2307, %v2306
    %v2364 = vpack.c.b16 %v2309, %v2308
    %v2365 = vpack.c.b16 %v2311, %v2310
    %v2366 = vpack.c.b16 %v2313, %v2312
    %v2367 = vpack.c.b16 %v2315, %v2314
    %v2368 = vpack.c.b16 %v2317, %v2316
    %v2369 = vpack.c.b16 %v2319, %v2318
    %v2370 = vpack.c.b16 %v2321, %v2320
    %v2371 = vpack.c.b16 %v2323, %v2322
    %v2372 = vpack.c.b16 %v2325, %v2324
    %v2373 = vpack.c.b16 %v2327, %v2326
    %v2374 = vpack.c.b16 %v2329, %v2328
    %v2375 = vpack.c.b16 %v2331, %v2330
    %v2376 = vpack.c.b16 %v2333, %v2332
    %v2377 = vpack.c.b16 %v2335, %v2334
    %v2378 = vpack.c.b16 %v2337, %v2336
    %v2379 = vpack.c.b16 %v2339, %v2338
    %v2380 = vpack.c.b16 %v2341, %v2340
    %v2381 = vpack.c.b16 %v2343, %v2342
    %v2382 = vpack.c.b16 %v2345, %v2344
    %v2383 = vpack.c.b16 %v2347, %v2346
    %v2421 = vsel %vm2003, %v1995, 0
    %v2424 = vsel %vm2003, %v1996, 0
    %v2427 = vsel %vm2003, %v1997, 0
    %v2430 = vsel %vm2003, %v1998, 0
    %v2433 = vsel %vm2003, %v1999, 0
    %v2436 = vsel %vm2003, %v2000, 0
    %v2439 = vsel %vm2003, %v2001, 0
    %v2442 = vsel %vm2003, %v2002, 0
    %2444 = vmatprep.subr.bf16.mxu0 0
    %2445 = vmatpush1.bf16.msra.mxu0 %v2348
    %2446 = vmatprep.subr.bf16.mxu0 0
    %2447 = vmatpush1.bf16.msra.mxu0 %v2349
    %2448 = vmatprep.subr.bf16.mxu0 0
    %2449 = vmatpush1.bf16.msra.mxu0 %v2350
    %2450 = vmatprep.subr.bf16.mxu0 0
    %2451 = vmatpush1.bf16.msra.mxu0 %v2351
    %2452 = vmatprep.subr.bf16.mxu0 0
    %2453 = vmatpush1.bf16.msra.mxu0 %v2352
    %2454 = vmatprep.subr.bf16.mxu0 0
    %2455 = vmatpush1.bf16.msra.mxu0 %v2353
    %2456 = vmatprep.subr.bf16.mxu0 0
    %2457 = vmatpush1.bf16.msra.mxu0 %v2354
    %2458 = vmatprep.subr.bf16.mxu0 0
    %2459 = vmatpush1.bf16.msra.mxu0 %v2355
    %2460 = vmatprep.subr.bf16.mxu0 0
    %2461 = vmatpush1.bf16.msra.mxu0 %v2356
    %2462 = vmatprep.subr.bf16.mxu0 0
    %2463 = vmatpush1.bf16.msra.mxu0 %v2357
    %2464 = vmatprep.subr.bf16.mxu0 0
    %2465 = vmatpush1.bf16.msra.mxu0 %v2358
    %2466 = vmatprep.subr.bf16.mxu0 0
    %2467 = vmatpush1.bf16.msra.mxu0 %v2359
    %2468 = vmatprep.subr.bf16.mxu0 0
    %2469 = vmatpush1.bf16.msra.mxu0 %v2360
    %2470 = vmatprep.subr.bf16.mxu0 0
    %2471 = vmatpush1.bf16.msra.mxu0 %v2361
    %2472 = vmatprep.subr.bf16.mxu0 0
    %2473 = vmatpush1.bf16.msra.mxu0 %v2362
    %2474 = vmatprep.subr.bf16.mxu0 0
    %2475 = vmatpush1.bf16.msra.mxu0 %v2363
    %2476 = vmatprep.mubr.bf16.mxu0 %v2038
    %2477 = vmatmul.mubr.bf16.gmra.mrb[0].mxu0 %v2006
    %v2478 = vpop.f32.mrb[0].mxu0
    %v2479 = vadd.f32 0.0, %v2478
    %v2480 = vpop.f32.mrb[0].mxu0
    %v2481 = vpop.f32.mrb[0].mxu0
    %v2482 = vadd.f32 0.0, %v2481
    %v2483 = vpop.f32.mrb[0].mxu0
    %2484 = vmatprep.mubr.bf16.mxu0 %v2042
    %2485 = vmatmul.mubr.bf16.gmra.mrb[0].mxu0 %v2010
    %v2486 = vpop.f32.mrb[0].mxu0
    %v2487 = vadd.f32 0.0, %v2486
    %v2488 = vpop.f32.mrb[0].mxu0
    %v2489 = vpop.f32.mrb[0].mxu0
    %v2490 = vadd.f32 0.0, %v2489
    %v2491 = vpop.f32.mrb[0].mxu0
    %2492 = vmatprep.mubr.bf16.mxu0 %v2046
    %2493 = vmatmul.mubr.bf16.gmra.mrb[0].mxu0 %v2014
    %v2494 = vpop.f32.mrb[0].mxu0
    %v2495 = vadd.f32 0.0, %v2494
    %v2496 = vpop.f32.mrb[0].mxu0
    %v2497 = vpop.f32.mrb[0].mxu0
    %v2498 = vadd.f32 0.0, %v2497
    %v2499 = vpop.f32.mrb[0].mxu0
    %2500 = vmatprep.mubr.bf16.mxu0 %v2050
    %2501 = vmatmul.mubr.bf16.gmra.mrb[0].mxu0 %v2018
    %v2502 = vpop.f32.mrb[0].mxu0
    %v2503 = vadd.f32 0.0, %v2502
    %v2504 = vpop.f32.mrb[0].mxu0
    %v2505 = vpop.f32.mrb[0].mxu0
    %v2506 = vadd.f32 0.0, %v2505
    %v2507 = vpop.f32.mrb[0].mxu0
    %2508 = vmatprep.mubr.bf16.mxu0 %v2054
    %2509 = vmatmul.mubr.bf16.gmra.mrb[0].mxu0 %v2022
    %v2510 = vpop.f32.mrb[0].mxu0
    %v2511 = vadd.f32 0.0, %v2510
    %v2512 = vpop.f32.mrb[0].mxu0
    %v2513 = vpop.f32.mrb[0].mxu0
    %v2514 = vadd.f32 0.0, %v2513
    %v2515 = vpop.f32.mrb[0].mxu0
    %2516 = vmatprep.mubr.bf16.mxu0 %v2058
    %2517 = vmatmul.mubr.bf16.gmra.mrb[0].mxu0 %v2026
    %v2518 = vpop.f32.mrb[0].mxu0
    %v2519 = vadd.f32 0.0, %v2518
    %v2520 = vpop.f32.mrb[0].mxu0
    %v2521 = vpop.f32.mrb[0].mxu0
    %v2522 = vadd.f32 0.0, %v2521
    %v2523 = vpop.f32.mrb[0].mxu0
    %2524 = vmatprep.mubr.bf16.mxu0 %v2062
    %2525 = vmatmul.mubr.bf16.gmra.mrb[0].mxu0 %v2030
    %v2526 = vpop.f32.mrb[0].mxu0
    %v2527 = vadd.f32 0.0, %v2526
    %v2528 = vpop.f32.mrb[0].mxu0
    %v2529 = vpop.f32.mrb[0].mxu0
    %v2530 = vadd.f32 0.0, %v2529
    %v2531 = vpop.f32.mrb[0].mxu0
    %2532 = vmatprep.mubr.bf16.mxu0 %v2066
    %2533 = vmatmul.mubr.bf16.gmra.mrb[0].mxu0 %v2034
    %v2534 = vpop.f32.mrb[0].mxu0
    %v2535 = vadd.f32 0.0, %v2534
    %v2536 = vpop.f32.mrb[0].mxu0
    %v2537 = vpop.f32.mrb[0].mxu0
    %v2538 = vadd.f32 0.0, %v2537
    %v2539 = vpop.f32.mrb[0].mxu0
    %2540 = vdwg.mxu0
    %2541 = vmatprep.subr.bf16.mxu0 0
    %2542 = vmatpush1.bf16.msra.mxu0 %v2364
    %2543 = vmatprep.subr.bf16.mxu0 0
    %2544 = vmatpush1.bf16.msra.mxu0 %v2365
    %2545 = vmatprep.subr.bf16.mxu0 0
    %2546 = vmatpush1.bf16.msra.mxu0 %v2366
    %2547 = vmatprep.subr.bf16.mxu0 0
    %2548 = vmatpush1.bf16.msra.mxu0 %v2367
    %2549 = vmatprep.subr.bf16.mxu0 0
    %2550 = vmatpush1.bf16.msra.mxu0 %v2368
    %2551 = vmatprep.subr.bf16.mxu0 0
    %2552 = vmatpush1.bf16.msra.mxu0 %v2369
    %2553 = vmatprep.subr.bf16.mxu0 0
    %2554 = vmatpush1.bf16.msra.mxu0 %v2370
    %2555 = vmatprep.subr.bf16.mxu0 0
    %2556 = vmatpush1.bf16.msra.mxu0 %v2371
    %2557 = vmatprep.subr.bf16.mxu0 0
    %2558 = vmatpush1.bf16.msra.mxu0 %v2372
    %2559 = vmatprep.subr.bf16.mxu0 0
    %2560 = vmatpush1.bf16.msra.mxu0 %v2373
    %2561 = vmatprep.subr.bf16.mxu0 0
    %2562 = vmatpush1.bf16.msra.mxu0 %v2374
    %2563 = vmatprep.subr.bf16.mxu0 0
    %2564 = vmatpush1.bf16.msra.mxu0 %v2375
    %2565 = vmatprep.subr.bf16.mxu0 0
    %2566 = vmatpush1.bf16.msra.mxu0 %v2376
    %2567 = vmatprep.subr.bf16.mxu0 0
    %2568 = vmatpush1.bf16.msra.mxu0 %v2377
    %2569 = vmatprep.subr.bf16.mxu0 0
    %2570 = vmatpush1.bf16.msra.mxu0 %v2378
    %2571 = vmatprep.subr.bf16.mxu0 0
    %2572 = vmatpush1.bf16.msra.mxu0 %v2379
    %2573 = vmatprep.mubr.bf16.mxu0 %v2102
    %2574 = vmatmul.mubr.bf16.gmra.mrb[0].mxu0 %v2070
    %v2575 = vpop.f32.mrb[0].mxu0
    %v2576 = vadd.f32 %v2479, %v2575
    %v2577 = vpop.f32.mrb[0].mxu0
    %v2578 = vpop.f32.mrb[0].mxu0
    %v2579 = vadd.f32 %v2482, %v2578
    %v2580 = vpop.f32.mrb[0].mxu0
    %2581 = vmatprep.mubr.bf16.mxu0 %v2106
    %2582 = vmatmul.mubr.bf16.gmra.mrb[0].mxu0 %v2074
    %v2583 = vpop.f32.mrb[0].mxu0
    %v2584 = vadd.f32 %v2487, %v2583
    %v2585 = vpop.f32.mrb[0].mxu0
    %v2586 = vpop.f32.mrb[0].mxu0
    %v2587 = vadd.f32 %v2490, %v2586
    %v2588 = vpop.f32.mrb[0].mxu0
    %2589 = vmatprep.mubr.bf16.mxu0 %v2110
    %2590 = vmatmul.mubr.bf16.gmra.mrb[0].mxu0 %v2078
    %v2591 = vpop.f32.mrb[0].mxu0
    %v2592 = vadd.f32 %v2495, %v2591
    %v2593 = vpop.f32.mrb[0].mxu0
    %v2594 = vpop.f32.mrb[0].mxu0
    %v2595 = vadd.f32 %v2498, %v2594
    %v2596 = vpop.f32.mrb[0].mxu0
    %2597 = vmatprep.mubr.bf16.mxu0 %v2114
    %2598 = vmatmul.mubr.bf16.gmra.mrb[0].mxu0 %v2082
    %v2599 = vpop.f32.mrb[0].mxu0
    %v2600 = vadd.f32 %v2503, %v2599
    %v2601 = vpop.f32.mrb[0].mxu0
    %v2602 = vpop.f32.mrb[0].mxu0
    %v2603 = vadd.f32 %v2506, %v2602
    %v2604 = vpop.f32.mrb[0].mxu0
    %2605 = vmatprep.mubr.bf16.mxu0 %v2118
    %2606 = vmatmul.mubr.bf16.gmra.mrb[0].mxu0 %v2086
    %v2607 = vpop.f32.mrb[0].mxu0
    %v2608 = vadd.f32 %v2511, %v2607
    %v2609 = vpop.f32.mrb[0].mxu0
    %v2610 = vpop.f32.mrb[0].mxu0
    %v2611 = vadd.f32 %v2514, %v2610
    %v2612 = vpop.f32.mrb[0].mxu0
    %2613 = vmatprep.mubr.bf16.mxu0 %v2122
    %2614 = vmatmul.mubr.bf16.gmra.mrb[0].mxu0 %v2090
    %v2615 = vpop.f32.mrb[0].mxu0
    %v2616 = vadd.f32 %v2519, %v2615
    %v2617 = vpop.f32.mrb[0].mxu0
    %v2618 = vpop.f32.mrb[0].mxu0
    %v2619 = vadd.f32 %v2522, %v2618
    %v2620 = vpop.f32.mrb[0].mxu0
    %2621 = vmatprep.mubr.bf16.mxu0 %v2126
    %2622 = vmatmul.mubr.bf16.gmra.mrb[0].mxu0 %v2094
    %v2623 = vpop.f32.mrb[0].mxu0
    %v2624 = vadd.f32 %v2527, %v2623
    %v2625 = vpop.f32.mrb[0].mxu0
    %v2626 = vpop.f32.mrb[0].mxu0
    %v2627 = vadd.f32 %v2530, %v2626
    %v2628 = vpop.f32.mrb[0].mxu0
    %2629 = vmatprep.mubr.bf16.mxu0 %v2130
    %2630 = vmatmul.mubr.bf16.gmra.mrb[0].mxu0 %v2098
    %v2631 = vpop.f32.mrb[0].mxu0
    %v2632 = vadd.f32 %v2535, %v2631
    %v2633 = vpop.f32.mrb[0].mxu0
    %v2634 = vpop.f32.mrb[0].mxu0
    %v2635 = vadd.f32 %v2538, %v2634
    %v2636 = vpop.f32.mrb[0].mxu0
    %2637 = vdwg.mxu0
    %2638 = vmatprep.subr.bf16.mxu0 0
    %2639 = vmatpush1.bf16.msra.mxu0 %v2380
    %2640 = vmatprep.subr.bf16.mxu0 0
    %2641 = vmatpush1.bf16.msra.mxu0 %v2381
    %2642 = vmatprep.subr.bf16.mxu0 0
    %2643 = vmatpush1.bf16.msra.mxu0 %v2382
    %2644 = vmatprep.subr.bf16.mxu0 0
    %2645 = vmatpush1.bf16.msra.mxu0 %v2383
    %2646 = vmatprep.subr.bf16.mxu0 0
    %2647 = vmatpush1.bf16.msra.mxu0 0
    %2648 = vmatprep.subr.bf16.mxu0 0
    %2649 = vmatpush1.bf16.msra.mxu0 0
    %2650 = vmatprep.subr.bf16.mxu0 0
    %2651 = vmatpush1.bf16.msra.mxu0 0
    %2652 = vmatprep.subr.bf16.mxu0 0
    %2653 = vmatpush1.bf16.msra.mxu0 0
    %2654 = vmatprep.subr.bf16.mxu0 0
    %2655 = vmatpush1.bf16.msra.mxu0 0
    %2656 = vmatprep.subr.bf16.mxu0 0
    %2657 = vmatpush1.bf16.msra.mxu0 0
    %2658 = vmatprep.subr.bf16.mxu0 0
    %2659 = vmatpush1.bf16.msra.mxu0 0
    %2660 = vmatprep.subr.bf16.mxu0 0
    %2661 = vmatpush1.bf16.msra.mxu0 0
    %2662 = vmatprep.subr.bf16.mxu0 0
    %2663 = vmatpush1.bf16.msra.mxu0 0
    %2664 = vmatprep.subr.bf16.mxu0 0
    %2665 = vmatpush1.bf16.msra.mxu0 0
    %2666 = vmatprep.subr.bf16.mxu0 0
    %2667 = vmatpush1.bf16.msra.mxu0 0
    %2668 = vmatprep.subr.bf16.mxu0 0
    %2669 = vmatpush1.bf16.msra.mxu0 0
    %2670 = vmatprep.mubr.bf16.mxu0 0
    %2671 = vmatmul.mubr.bf16.gmra.mrb[0].mxu0 %v2421
    %v2672 = vpop.f32.mrb[0].mxu0
    %v2673 = vadd.f32 %v2576, %v2672
    %v2674 = vpop.f32.mrb[0].mxu0
    %v2675 = vpop.f32.mrb[0].mxu0
    %v2676 = vadd.f32 %v2579, %v2675
    %v2677 = vpop.f32.mrb[0].mxu0
    %2678 = vmatprep.mubr.bf16.mxu0 0
    %2679 = vmatmul.mubr.bf16.gmra.mrb[0].mxu0 %v2424
    %v2680 = vpop.f32.mrb[0].mxu0
    %v2681 = vadd.f32 %v2584, %v2680
    %v2682 = vpop.f32.mrb[0].mxu0
    %v2683 = vpop.f32.mrb[0].mxu0
    %v2684 = vadd.f32 %v2587, %v2683
    %v2685 = vpop.f32.mrb[0].mxu0
    %2686 = vmatprep.mubr.bf16.mxu0 0
    %2687 = vmatmul.mubr.bf16.gmra.mrb[0].mxu0 %v2427
    %v2688 = vpop.f32.mrb[0].mxu0
    %v2689 = vadd.f32 %v2592, %v2688
    %v2690 = vpop.f32.mrb[0].mxu0
    %v2691 = vpop.f32.mrb[0].mxu0
    %v2692 = vadd.f32 %v2595, %v2691
    %v2693 = vpop.f32.mrb[0].mxu0
    %2694 = vmatprep.mubr.bf16.mxu0 0
    %2695 = vmatmul.mubr.bf16.gmra.mrb[0].mxu0 %v2430
    %v2696 = vpop.f32.mrb[0].mxu0
    %v2697 = vadd.f32 %v2600, %v2696
    %v2698 = vpop.f32.mrb[0].mxu0
    %v2699 = vpop.f32.mrb[0].mxu0
    %v2700 = vadd.f32 %v2603, %v2699
    %v2701 = vpop.f32.mrb[0].mxu0
    %2702 = vmatprep.mubr.bf16.mxu0 0
    %2703 = vmatmul.mubr.bf16.gmra.mrb[0].mxu0 %v2433
    %v2704 = vpop.f32.mrb[0].mxu0
    %v2705 = vadd.f32 %v2608, %v2704
    %v2706 = vpop.f32.mrb[0].mxu0
    %v2707 = vpop.f32.mrb[0].mxu0
    %v2708 = vadd.f32 %v2611, %v2707
    %v2709 = vpop.f32.mrb[0].mxu0
    %2710 = vmatprep.mubr.bf16.mxu0 0
    %2711 = vmatmul.mubr.bf16.gmra.mrb[0].mxu0 %v2436
    %v2712 = vpop.f32.mrb[0].mxu0
    %v2713 = vadd.f32 %v2616, %v2712
    %v2714 = vpop.f32.mrb[0].mxu0
    %v2715 = vpop.f32.mrb[0].mxu0
    %v2716 = vadd.f32 %v2619, %v2715
    %v2717 = vpop.f32.mrb[0].mxu0
    %2718 = vmatprep.mubr.bf16.mxu0 0
    %2719 = vmatmul.mubr.bf16.gmra.mrb[0].mxu0 %v2439
    %v2720 = vpop.f32.mrb[0].mxu0
    %v2721 = vadd.f32 %v2624, %v2720
    %v2722 = vpop.f32.mrb[0].mxu0
    %v2723 = vpop.f32.mrb[0].mxu0
    %v2724 = vadd.f32 %v2627, %v2723
    %v2725 = vpop.f32.mrb[0].mxu0
    %2726 = vmatprep.mubr.bf16.mxu0 0
    %2727 = vmatmul.mubr.bf16.gmra.mrb[0].mxu0 %v2442
    %v2728 = vpop.f32.mrb[0].mxu0
    %v2729 = vadd.f32 %v2632, %v2728
    %v2730 = vpop.f32.mrb[0].mxu0
    %v2731 = vpop.f32.mrb[0].mxu0
    %v2732 = vadd.f32 %v2635, %v2731
    %v2733 = vpop.f32.mrb[0].mxu0
    %2734 = vdwg.mxu0
    %v2735 = vmax.f32 %v2673, 0.0
    %v2736 = vmax.f32 %v2676, 0.0
    %v2737 = vmax.f32 %v2681, 0.0
    %v2738 = vmax.f32 %v2684, 0.0
    %v2739 = vmax.f32 %v2689, 0.0
    %v2740 = vmax.f32 %v2692, 0.0
    %v2741 = vmax.f32 %v2697, 0.0
    %v2742 = vmax.f32 %v2700, 0.0
    %v2743 = vmax.f32 %v2705, 0.0
    %v2744 = vmax.f32 %v2708, 0.0
    %v2745 = vmax.f32 %v2713, 0.0
    %v2746 = vmax.f32 %v2716, 0.0
    %v2747 = vmax.f32 %v2721, 0.0
    %v2748 = vmax.f32 %v2724, 0.0
    %v2749 = vmax.f32 %v2729, 0.0
    %v2750 = vmax.f32 %v2732, 0.0
    %v2751 = vpack.c.bf16 %v2736, %v2735
    %v2752 = vpack.c.bf16 %v2738, %v2737
    %v2753 = vpack.c.bf16 %v2740, %v2739
    %v2754 = vpack.c.bf16 %v2742, %v2741
    %v2755 = vpack.c.bf16 %v2744, %v2743
    %v2756 = vpack.c.bf16 %v2746, %v2745
    %v2757 = vpack.c.bf16 %v2748, %v2747
    %v2758 = vpack.c.bf16 %v2750, %v2749
    %v2759 = vld [vmem:[%s2] sm:$0xf]
    %v2760 = vld [vmem:[%s2 + $0x4] sm:$0xf]
    %v2761 = vld [vmem:[%s2 + $0x8] sm:$0xf]
    %v2762 = vld [vmem:[%s2 + $0xc] sm:$0xf]
    %v2763 = vld [vmem:[%s2 + $0x10] sm:$0xf]
    %v2764 = vld [vmem:[%s2 + $0x14] sm:$0xf]
    %v2765 = vld [vmem:[%s2 + $0x18] sm:$0xf]
    %v2766 = vld [vmem:[%s2 + $0x1c] sm:$0xf]
    %v2775 = vunpack.c.l.b16 %v2759
    %v2776 = vunpack.c.l.b16 %v2760
    %v2777 = vunpack.c.l.b16 %v2761
    %v2778 = vunpack.c.l.b16 %v2762
    %v2779 = vunpack.c.l.b16 %v2763
    %v2780 = vunpack.c.l.b16 %v2764
    %v2781 = vunpack.c.l.b16 %v2765
    %v2782 = vunpack.c.l.b16 %v2766
    %v2783 = vpack.c.b16 %v2776, %v2775
    %v2784 = vpack.c.b16 %v2778, %v2777
    %v2785 = vpack.c.b16 %v2780, %v2779
    %v2786 = vpack.c.b16 %v2782, %v2781
    %v2792 = vsel %vm2003, %v2751, 0
    %v2795 = vsel %vm2003, %v2752, 0
    %v2798 = vsel %vm2003, %v2753, 0
    %v2801 = vsel %vm2003, %v2754, 0
    %v2804 = vsel %vm2003, %v2755, 0
    %v2807 = vsel %vm2003, %v2756, 0
    %v2810 = vsel %vm2003, %v2757, 0
    %v2813 = vsel %vm2003, %v2758, 0
    %2815 = vmatprep.subr.bf16.mxu0 0
    %2816 = vmatpush1.bf16.msra.mxu0 %v2783
    %2817 = vmatprep.subr.bf16.mxu0 0
    %2818 = vmatpush1.bf16.msra.mxu0 %v2784
    %2819 = vmatprep.subr.bf16.mxu0 0
    %2820 = vmatpush1.bf16.msra.mxu0 %v2785
    %2821 = vmatprep.subr.bf16.mxu0 0
    %2822 = vmatpush1.bf16.msra.mxu0 %v2786
    %2823 = vmatprep.subr.bf16.mxu0 0
    %2824 = vmatpush1.bf16.msra.mxu0 0
    %2825 = vmatprep.subr.bf16.mxu0 0
    %2826 = vmatpush1.bf16.msra.mxu0 0
    %2827 = vmatprep.subr.bf16.mxu0 0
    %2828 = vmatpush1.bf16.msra.mxu0 0
    %2829 = vmatprep.subr.bf16.mxu0 0
    %2830 = vmatpush1.bf16.msra.mxu0 0
    %2831 = vmatprep.subr.bf16.mxu0 0
    %2832 = vmatpush1.bf16.msra.mxu0 0
    %2833 = vmatprep.subr.bf16.mxu0 0
    %2834 = vmatpush1.bf16.msra.mxu0 0
    %2835 = vmatprep.subr.bf16.mxu0 0
    %2836 = vmatpush1.bf16.msra.mxu0 0
    %2837 = vmatprep.subr.bf16.mxu0 0
    %2838 = vmatpush1.bf16.msra.mxu0 0
    %2839 = vmatprep.subr.bf16.mxu0 0
    %2840 = vmatpush1.bf16.msra.mxu0 0
    %2841 = vmatprep.subr.bf16.mxu0 0
    %2842 = vmatpush1.bf16.msra.mxu0 0
    %2843 = vmatprep.subr.bf16.mxu0 0
    %2844 = vmatpush1.bf16.msra.mxu0 0
    %2845 = vmatprep.subr.bf16.mxu0 0
    %2846 = vmatpush1.bf16.msra.mxu0 0
    %2847 = vmatprep.mubr.bf16.mxu0 0
    %2848 = vmatmul.mubr.bf16.gmra.mrb[0].mxu0 %v2792
    %v2849 = vpop.f32.mrb[0].mxu0
    %v2850 = vadd.f32 %v205, %v2849
    %v2851 = vpop.f32.mrb[0].mxu0
    %v2852 = vpop.f32.mrb[0].mxu0
    %v2853 = vadd.f32 %v206, %v2852
    %v2854 = vpop.f32.mrb[0].mxu0
    %2855 = vmatprep.mubr.bf16.mxu0 0
    %2856 = vmatmul.mubr.bf16.gmra.mrb[0].mxu0 %v2795
    %v2857 = vpop.f32.mrb[0].mxu0
    %v2858 = vadd.f32 %v207, %v2857
    %v2859 = vpop.f32.mrb[0].mxu0
    %v2860 = vpop.f32.mrb[0].mxu0
    %v2861 = vadd.f32 %v208, %v2860
    %v2862 = vpop.f32.mrb[0].mxu0
    %2863 = vmatprep.mubr.bf16.mxu0 0
    %2864 = vmatmul.mubr.bf16.gmra.mrb[0].mxu0 %v2798
    %v2865 = vpop.f32.mrb[0].mxu0
    %v2866 = vadd.f32 %v209, %v2865
    %v2867 = vpop.f32.mrb[0].mxu0
    %v2868 = vpop.f32.mrb[0].mxu0
    %v2869 = vadd.f32 %v210, %v2868
    %v2870 = vpop.f32.mrb[0].mxu0
    %2871 = vmatprep.mubr.bf16.mxu0 0
    %2872 = vmatmul.mubr.bf16.gmra.mrb[0].mxu0 %v2801
    %v2873 = vpop.f32.mrb[0].mxu0
    %v2874 = vadd.f32 %v211, %v2873
    %v2875 = vpop.f32.mrb[0].mxu0
    %v2876 = vpop.f32.mrb[0].mxu0
    %v2877 = vadd.f32 %v212, %v2876
    %v2878 = vpop.f32.mrb[0].mxu0
    %2879 = vmatprep.mubr.bf16.mxu0 0
    %2880 = vmatmul.mubr.bf16.gmra.mrb[0].mxu0 %v2804
    %v2881 = vpop.f32.mrb[0].mxu0
    %v2882 = vadd.f32 %v213, %v2881
    %v2883 = vpop.f32.mrb[0].mxu0
    %v2884 = vpop.f32.mrb[0].mxu0
    %v2885 = vadd.f32 %v214, %v2884
    %v2886 = vpop.f32.mrb[0].mxu0
    %2887 = vmatprep.mubr.bf16.mxu0 0
    %2888 = vmatmul.mubr.bf16.gmra.mrb[0].mxu0 %v2807
    %v2889 = vpop.f32.mrb[0].mxu0
    %v2890 = vadd.f32 %v215, %v2889
    %v2891 = vpop.f32.mrb[0].mxu0
    %v2892 = vpop.f32.mrb[0].mxu0
    %v2893 = vadd.f32 %v216, %v2892
    %v2894 = vpop.f32.mrb[0].mxu0
    %2895 = vmatprep.mubr.bf16.mxu0 0
    %2896 = vmatmul.mubr.bf16.gmra.mrb[0].mxu0 %v2810
    %v2897 = vpop.f32.mrb[0].mxu0
    %v2898 = vadd.f32 %v217, %v2897
    %v2899 = vpop.f32.mrb[0].mxu0
    %v2900 = vpop.f32.mrb[0].mxu0
    %v2901 = vadd.f32 %v218, %v2900
    %v2902 = vpop.f32.mrb[0].mxu0
    %2903 = vmatprep.mubr.bf16.mxu0 0
    %2904 = vmatmul.mubr.bf16.gmra.mrb[0].mxu0 %v2813
    %v2905 = vpop.f32.mrb[0].mxu0
    %v2906 = vadd.f32 %v219, %v2905
    %v2907 = vpop.f32.mrb[0].mxu0
    %v2908 = vpop.f32.mrb[0].mxu0
    %v2909 = vadd.f32 %v220, %v2908
    %v2910 = vpop.f32.mrb[0].mxu0
    %2911 = vdwg.mxu0
    %v2912 = vmax.f32 %v2850, 0.0
    %v2913 = vmax.f32 %v2853, 0.0
    %v2914 = vmax.f32 %v2858, 0.0
    %v2915 = vmax.f32 %v2861, 0.0
    %v2916 = vmax.f32 %v2866, 0.0
    %v2917 = vmax.f32 %v2869, 0.0
    %v2918 = vmax.f32 %v2874, 0.0
    %v2919 = vmax.f32 %v2877, 0.0
    %v2920 = vmax.f32 %v2882, 0.0
    %v2921 = vmax.f32 %v2885, 0.0
    %v2922 = vmax.f32 %v2890, 0.0
    %v2923 = vmax.f32 %v2893, 0.0
    %v2924 = vmax.f32 %v2898, 0.0
    %v2925 = vmax.f32 %v2901, 0.0
    %v2926 = vmax.f32 %v2906, 0.0
    %v2927 = vmax.f32 %v2909, 0.0
    %v2928 = vpack.c.bf16 %v2913, %v2912
    %v2929 = vpack.c.bf16 %v2915, %v2914
    %v2930 = vpack.c.bf16 %v2917, %v2916
    %v2931 = vpack.c.bf16 %v2919, %v2918
    %v2932 = vpack.c.bf16 %v2921, %v2920
    %v2933 = vpack.c.bf16 %v2923, %v2922
    %v2934 = vpack.c.bf16 %v2925, %v2924
    %v2935 = vpack.c.bf16 %v2927, %v2926
    %v2944 = vunpack.c.l.b16 %v2928
    %v2945 = vunpack.c.h.b16 %v2928
    %v2946 = vunpack.c.l.b16 %v2929
    %v2947 = vunpack.c.h.b16 %v2929
    %v2948 = vunpack.c.l.b16 %v2930
    %v2949 = vunpack.c.h.b16 %v2930
    %v2950 = vunpack.c.l.b16 %v2931
    %v2951 = vunpack.c.h.b16 %v2931
    %v2952 = vunpack.c.l.b16 %v2932
    %v2953 = vunpack.c.h.b16 %v2932
    %v2954 = vunpack.c.l.b16 %v2933
    %v2955 = vunpack.c.h.b16 %v2933
    %v2956 = vunpack.c.l.b16 %v2934
    %v2957 = vunpack.c.h.b16 %v2934
    %v2958 = vunpack.c.l.b16 %v2935
    %v2959 = vunpack.c.h.b16 %v2935
    %v2960 = vpack.c.b16 %v2944, %v2944
    %v2961 = vpack.c.b16 %v2945, %v2945
    %v2962 = vpack.c.b16 %v2946, %v2946
    %v2963 = vpack.c.b16 %v2947, %v2947
    %v2964 = vpack.c.b16 %v2948, %v2948
    %v2965 = vpack.c.b16 %v2949, %v2949
    %v2966 = vpack.c.b16 %v2950, %v2950
    %v2967 = vpack.c.b16 %v2951, %v2951
    %v2968 = vpack.c.b16 %v2952, %v2952
    %v2969 = vpack.c.b16 %v2953, %v2953
    %v2970 = vpack.c.b16 %v2954, %v2954
    %v2971 = vpack.c.b16 %v2955, %v2955
    %v2972 = vpack.c.b16 %v2956, %v2956
    %v2973 = vpack.c.b16 %v2957, %v2957
    %v2974 = vpack.c.b16 %v2958, %v2958
    %v2975 = vpack.c.b16 %v2959, %v2959
    %v2977 = vshrl.u32 %v2960, 16
    %v2979 = vrot.slane %v2977, 7
    %v2980 = vshll.u32 %v2960, 16
    %v2982 = vor.u32 %v2979, %v2980
    %v2983 = vrot.slane %v2979, 4
    %v2985 = vshrl.u32 %v2961, 16
    %v2987 = vrot.slane %v2985, 7
    %v2988 = vshll.u32 %v2961, 16
    %v2990 = vor.u32 %v2987, %v2988
    %v2991 = vrot.slane %v2987, 4
    %v2993 = vshrl.u32 %v2962, 16
    %v2995 = vrot.slane %v2993, 7
    %v2996 = vshll.u32 %v2962, 16
    %v2998 = vor.u32 %v2995, %v2996
    %v2999 = vrot.slane %v2995, 4
    %v3001 = vshrl.u32 %v2963, 16
    %v3003 = vrot.slane %v3001, 7
    %v3004 = vshll.u32 %v2963, 16
    %v3006 = vor.u32 %v3003, %v3004
    %v3007 = vrot.slane %v3003, 4
    %v3009 = vshrl.u32 %v2964, 16
    %v3011 = vrot.slane %v3009, 7
    %v3012 = vshll.u32 %v2964, 16
    %v3014 = vor.u32 %v3011, %v3012
    %v3015 = vrot.slane %v3011, 4
    %v3017 = vshrl.u32 %v2965, 16
    %v3019 = vrot.slane %v3017, 7
    %v3020 = vshll.u32 %v2965, 16
    %v3022 = vor.u32 %v3019, %v3020
    %v3023 = vrot.slane %v3019, 4
    %v3025 = vshrl.u32 %v2966, 16
    %v3027 = vrot.slane %v3025, 7
    %v3028 = vshll.u32 %v2966, 16
    %v3030 = vor.u32 %v3027, %v3028
    %v3031 = vrot.slane %v3027, 4
    %v3033 = vshrl.u32 %v2967, 16
    %v3035 = vrot.slane %v3033, 7
    %v3036 = vshll.u32 %v2967, 16
    %v3038 = vor.u32 %v3035, %v3036
    %v3039 = vrot.slane %v3035, 4
    %v3041 = vshrl.u32 %v2968, 16
    %v3043 = vrot.slane %v3041, 7
    %v3044 = vshll.u32 %v2968, 16
    %v3046 = vor.u32 %v3043, %v3044
    %v3047 = vrot.slane %v3043, 4
    %v3049 = vshrl.u32 %v2969, 16
    %v3051 = vrot.slane %v3049, 7
    %v3052 = vshll.u32 %v2969, 16
    %v3054 = vor.u32 %v3051, %v3052
    %v3055 = vrot.slane %v3051, 4
    %v3057 = vshrl.u32 %v2970, 16
    %v3059 = vrot.slane %v3057, 7
    %v3060 = vshll.u32 %v2970, 16
    %v3062 = vor.u32 %v3059, %v3060
    %v3063 = vrot.slane %v3059, 4
    %v3065 = vshrl.u32 %v2971, 16
    %v3067 = vrot.slane %v3065, 7
    %v3068 = vshll.u32 %v2971, 16
    %v3070 = vor.u32 %v3067, %v3068
    %v3071 = vrot.slane %v3067, 4
    %v3073 = vshrl.u32 %v2972, 16
    %v3075 = vrot.slane %v3073, 7
    %v3076 = vshll.u32 %v2972, 16
    %v3078 = vor.u32 %v3075, %v3076
    %v3079 = vrot.slane %v3075, 4
    %v3081 = vshrl.u32 %v2973, 16
    %v3083 = vrot.slane %v3081, 7
    %v3084 = vshll.u32 %v2973, 16
    %v3086 = vor.u32 %v3083, %v3084
    %v3087 = vrot.slane %v3083, 4
    %v3089 = vshrl.u32 %v2974, 16
    %v3091 = vrot.slane %v3089, 7
    %v3092 = vshll.u32 %v2974, 16
    %v3094 = vor.u32 %v3091, %v3092
    %v3095 = vrot.slane %v3091, 4
    %v3097 = vshrl.u32 %v2975, 16
    %v3099 = vrot.slane %v3097, 7
    %v3100 = vshll.u32 %v2975, 16
    %v3102 = vor.u32 %v3099, %v3100
    %v3103 = vrot.slane %v3099, 4
    %v3136 = vsel %vm464, %v2982, %v938
    %3137 = vst [vmem:[%s461] sm:$0xf] %v3136
    %v3138 = vld [vmem:[%s461 + $0x4] sm:$0x1]
    %v3139 = vsel %vm470, %v2983, %v3138
    %3140 = vst [vmem:[%s461 + $0x4] sm:$0x1] %v3139
    %v3141 = vld [vmem:[%s461 + $0x8] sm:$0xf]
    %v3142 = vsel %vm464, %v2990, %v3141
    %3143 = vst [vmem:[%s461 + $0x8] sm:$0xf] %v3142
    %v3144 = vld [vmem:[%s461 + $0xc] sm:$0x1]
    %v3145 = vsel %vm470, %v2991, %v3144
    %3146 = vst [vmem:[%s461 + $0xc] sm:$0x1] %v3145
    %v3147 = vld [vmem:[%s461 + $0x10] sm:$0xf]
    %v3148 = vsel %vm464, %v2998, %v3147
    %3149 = vst [vmem:[%s461 + $0x10] sm:$0xf] %v3148
    %v3150 = vld [vmem:[%s461 + $0x14] sm:$0x1]
    %v3151 = vsel %vm470, %v2999, %v3150
    %3152 = vst [vmem:[%s461 + $0x14] sm:$0x1] %v3151
    %v3153 = vld [vmem:[%s461 + $0x18] sm:$0xf]
    %v3154 = vsel %vm464, %v3006, %v3153
    %3155 = vst [vmem:[%s461 + $0x18] sm:$0xf] %v3154
    %v3156 = vld [vmem:[%s461 + $0x1c] sm:$0x1]
    %v3157 = vsel %vm470, %v3007, %v3156
    %3158 = vst [vmem:[%s461 + $0x1c] sm:$0x1] %v3157
    %v3159 = vld [vmem:[%s461 + $0x20] sm:$0xf]
    %v3160 = vsel %vm464, %v3014, %v3159
    %3161 = vst [vmem:[%s461 + $0x20] sm:$0xf] %v3160
    %v3162 = vld [vmem:[%s461 + $0x24] sm:$0x1]
    %v3163 = vsel %vm470, %v3015, %v3162
    %3164 = vst [vmem:[%s461 + $0x24] sm:$0x1] %v3163
    %v3165 = vld [vmem:[%s461 + $0x28] sm:$0xf]
    %v3166 = vsel %vm464, %v3022, %v3165
    %3167 = vst [vmem:[%s461 + $0x28] sm:$0xf] %v3166
    %v3168 = vld [vmem:[%s461 + $0x2c] sm:$0x1]
    %v3169 = vsel %vm470, %v3023, %v3168
    %3170 = vst [vmem:[%s461 + $0x2c] sm:$0x1] %v3169
    %v3171 = vld [vmem:[%s461 + $0x30] sm:$0xf]
    %v3172 = vsel %vm464, %v3030, %v3171
    %3173 = vst [vmem:[%s461 + $0x30] sm:$0xf] %v3172
    %v3174 = vld [vmem:[%s461 + $0x34] sm:$0x1]
    %v3175 = vsel %vm470, %v3031, %v3174
    %3176 = vst [vmem:[%s461 + $0x34] sm:$0x1] %v3175
    %v3177 = vld [vmem:[%s461 + $0x38] sm:$0xf]
    %v3178 = vsel %vm464, %v3038, %v3177
    %3179 = vst [vmem:[%s461 + $0x38] sm:$0xf] %v3178
    %v3180 = vld [vmem:[%s461 + $0x3c] sm:$0x1]
    %v3181 = vsel %vm470, %v3039, %v3180
    %3182 = vst [vmem:[%s461 + $0x3c] sm:$0x1] %v3181
    %v3183 = vld [vmem:[%s461 + $0x50] sm:$0xf]
    %v3184 = vsel %vm464, %v3046, %v3183
    %3185 = vst [vmem:[%s461 + $0x50] sm:$0xf] %v3184
    %v3186 = vld [vmem:[%s461 + $0x54] sm:$0x1]
    %v3187 = vsel %vm470, %v3047, %v3186
    %3188 = vst [vmem:[%s461 + $0x54] sm:$0x1] %v3187
    %v3189 = vld [vmem:[%s461 + $0x58] sm:$0xf]
    %v3190 = vsel %vm464, %v3054, %v3189
    %3191 = vst [vmem:[%s461 + $0x58] sm:$0xf] %v3190
    %v3192 = vld [vmem:[%s461 + $0x5c] sm:$0x1]
    %v3193 = vsel %vm470, %v3055, %v3192
    %3194 = vst [vmem:[%s461 + $0x5c] sm:$0x1] %v3193
    %v3195 = vld [vmem:[%s461 + $0x60] sm:$0xf]
    %v3196 = vsel %vm464, %v3062, %v3195
    %3197 = vst [vmem:[%s461 + $0x60] sm:$0xf] %v3196
    %v3198 = vld [vmem:[%s461 + $0x64] sm:$0x1]
    %v3199 = vsel %vm470, %v3063, %v3198
    %3200 = vst [vmem:[%s461 + $0x64] sm:$0x1] %v3199
    %v3201 = vld [vmem:[%s461 + $0x68] sm:$0xf]
    %v3202 = vsel %vm464, %v3070, %v3201
    %3203 = vst [vmem:[%s461 + $0x68] sm:$0xf] %v3202
    %v3204 = vld [vmem:[%s461 + $0x6c] sm:$0x1]
    %v3205 = vsel %vm470, %v3071, %v3204
    %3206 = vst [vmem:[%s461 + $0x6c] sm:$0x1] %v3205
    %v3207 = vld [vmem:[%s461 + $0x70] sm:$0xf]
    %v3208 = vsel %vm464, %v3078, %v3207
    %3209 = vst [vmem:[%s461 + $0x70] sm:$0xf] %v3208
    %v3210 = vld [vmem:[%s461 + $0x74] sm:$0x1]
    %v3211 = vsel %vm470, %v3079, %v3210
    %3212 = vst [vmem:[%s461 + $0x74] sm:$0x1] %v3211
    %v3213 = vld [vmem:[%s461 + $0x78] sm:$0xf]
    %v3214 = vsel %vm464, %v3086, %v3213
    %3215 = vst [vmem:[%s461 + $0x78] sm:$0xf] %v3214
    %v3216 = vld [vmem:[%s461 + $0x7c] sm:$0x1]
    %v3217 = vsel %vm470, %v3087, %v3216
    %3218 = vst [vmem:[%s461 + $0x7c] sm:$0x1] %v3217
    %v3219 = vld [vmem:[%s461 + $0x80] sm:$0xf]
    %v3220 = vsel %vm464, %v3094, %v3219
    %3221 = vst [vmem:[%s461 + $0x80] sm:$0xf] %v3220
    %v3222 = vld [vmem:[%s461 + $0x84] sm:$0x1]
    %v3223 = vsel %vm470, %v3095, %v3222
    %3224 = vst [vmem:[%s461 + $0x84] sm:$0x1] %v3223
    %v3225 = vld [vmem:[%s461 + $0x88] sm:$0xf]
    %v3226 = vsel %vm464, %v3102, %v3225
    %3227 = vst [vmem:[%s461 + $0x88] sm:$0xf] %v3226
    %v3228 = vld [vmem:[%s461 + $0x8c] sm:$0x1]
    %v3229 = vsel %vm470, %v3103, %v3228
    %3230 = vst [vmem:[%s461 + $0x8c] sm:$0x1] %v3229
    %v3231 = vld [vmem:[#allocation2] sm:$0xf]
    %v3232 = vld [vmem:[#allocation2 + $0x8] sm:$0xf]
    %v3233 = vld [vmem:[#allocation2 + $0x10] sm:$0xf]
    %v3234 = vld [vmem:[#allocation2 + $0x18] sm:$0xf]
    %v3235 = vld [vmem:[#allocation2 + $0x20] sm:$0xf]
    %v3236 = vld [vmem:[#allocation2 + $0x28] sm:$0xf]
    %v3237 = vld [vmem:[#allocation2 + $0x30] sm:$0xf]
    %v3238 = vld [vmem:[#allocation2 + $0x38] sm:$0xf]
    %v3239 = vld [vmem:[#allocation2 + $0x50] sm:$0xf]
    %v3240 = vld [vmem:[#allocation2 + $0x58] sm:$0xf]
    %v3241 = vld [vmem:[#allocation2 + $0x60] sm:$0xf]
    %v3242 = vld [vmem:[#allocation2 + $0x68] sm:$0xf]
    %v3243 = vld [vmem:[#allocation2 + $0x70] sm:$0xf]
    %v3244 = vld [vmem:[#allocation2 + $0x78] sm:$0xf]
    %v3245 = vld [vmem:[#allocation2 + $0x80] sm:$0xf]
    %v3246 = vld [vmem:[#allocation2 + $0x88] sm:$0xf]
    %v3247 = vld [vmem:[#allocation2 + $0x4] sm:$0x1]
    %v3248 = vld [vmem:[#allocation2 + $0xc] sm:$0x1]
    %v3249 = vld [vmem:[#allocation2 + $0x14] sm:$0x1]
    %v3250 = vld [vmem:[#allocation2 + $0x1c] sm:$0x1]
    %v3251 = vld [vmem:[#allocation2 + $0x24] sm:$0x1]
    %v3252 = vld [vmem:[#allocation2 + $0x2c] sm:$0x1]
    %v3253 = vld [vmem:[#allocation2 + $0x34] sm:$0x1]
    %v3254 = vld [vmem:[#allocation2 + $0x3c] sm:$0x1]
    %v3255 = vld [vmem:[#allocation2 + $0x54] sm:$0x1]
    %v3256 = vld [vmem:[#allocation2 + $0x5c] sm:$0x1]
    %v3257 = vld [vmem:[#allocation2 + $0x64] sm:$0x1]
    %v3258 = vld [vmem:[#allocation2 + $0x6c] sm:$0x1]
    %v3259 = vld [vmem:[#allocation2 + $0x74] sm:$0x1]
    %v3260 = vld [vmem:[#allocation2 + $0x7c] sm:$0x1]
    %v3261 = vld [vmem:[#allocation2 + $0x84] sm:$0x1]
    %v3262 = vld [vmem:[#allocation2 + $0x8c] sm:$0x1]
    %v3264 = vshrl.u32 %v3231, 16
    %v3266 = vrot.slane %v3264, 4
    %v3267 = vshll.u32 %v3231, 16
    %v3269 = vrot.slane %v3267, 5
    %v3270 = vor.u32 %v3266, %v3269
    %v3271 = vrot.slane %v3270, 4
    %v3273 = vshll.u32 %v3247, 16
    %v3275 = vrot.slane %v3273, 5
    %v3276 = vsel %vm598, %v3271, %v3275
    %v3278 = vshrl.u32 %v3232, 16
    %v3280 = vrot.slane %v3278, 4
    %v3281 = vshll.u32 %v3232, 16
    %v3283 = vrot.slane %v3281, 5
    %v3284 = vor.u32 %v3280, %v3283
    %v3285 = vrot.slane %v3284, 4
    %v3287 = vshll.u32 %v3248, 16
    %v3289 = vrot.slane %v3287, 5
    %v3290 = vsel %vm598, %v3285, %v3289
    %v3292 = vshrl.u32 %v3233, 16
    %v3294 = vrot.slane %v3292, 4
    %v3295 = vshll.u32 %v3233, 16
    %v3297 = vrot.slane %v3295, 5
    %v3298 = vor.u32 %v3294, %v3297
    %v3299 = vrot.slane %v3298, 4
    %v3301 = vshll.u32 %v3249, 16
    %v3303 = vrot.slane %v3301, 5
    %v3304 = vsel %vm598, %v3299, %v3303
    %v3306 = vshrl.u32 %v3234, 16
    %v3308 = vrot.slane %v3306, 4
    %v3309 = vshll.u32 %v3234, 16
    %v3311 = vrot.slane %v3309, 5
    %v3312 = vor.u32 %v3308, %v3311
    %v3313 = vrot.slane %v3312, 4
    %v3315 = vshll.u32 %v3250, 16
    %v3317 = vrot.slane %v3315, 5
    %v3318 = vsel %vm598, %v3313, %v3317
    %v3320 = vshrl.u32 %v3235, 16
    %v3322 = vrot.slane %v3320, 4
    %v3323 = vshll.u32 %v3235, 16
    %v3325 = vrot.slane %v3323, 5
    %v3326 = vor.u32 %v3322, %v3325
    %v3327 = vrot.slane %v3326, 4
    %v3329 = vshll.u32 %v3251, 16
    %v3331 = vrot.slane %v3329, 5
    %v3332 = vsel %vm598, %v3327, %v3331
    %v3334 = vshrl.u32 %v3236, 16
    %v3336 = vrot.slane %v3334, 4
    %v3337 = vshll.u32 %v3236, 16
    %v3339 = vrot.slane %v3337, 5
    %v3340 = vor.u32 %v3336, %v3339
    %v3341 = vrot.slane %v3340, 4
    %v3343 = vshll.u32 %v3252, 16
    %v3345 = vrot.slane %v3343, 5
    %v3346 = vsel %vm598, %v3341, %v3345
    %v3348 = vshrl.u32 %v3237, 16
    %v3350 = vrot.slane %v3348, 4
    %v3351 = vshll.u32 %v3237, 16
    %v3353 = vrot.slane %v3351, 5
    %v3354 = vor.u32 %v3350, %v3353
    %v3355 = vrot.slane %v3354, 4
    %v3357 = vshll.u32 %v3253, 16
    %v3359 = vrot.slane %v3357, 5
    %v3360 = vsel %vm598, %v3355, %v3359
    %v3362 = vshrl.u32 %v3238, 16
    %v3364 = vrot.slane %v3362, 4
    %v3365 = vshll.u32 %v3238, 16
    %v3367 = vrot.slane %v3365, 5
    %v3368 = vor.u32 %v3364, %v3367
    %v3369 = vrot.slane %v3368, 4
    %v3371 = vshll.u32 %v3254, 16
    %v3373 = vrot.slane %v3371, 5
    %v3374 = vsel %vm598, %v3369, %v3373
    %v3376 = vshrl.u32 %v3239, 16
    %v3378 = vrot.slane %v3376, 4
    %v3379 = vshll.u32 %v3239, 16
    %v3381 = vrot.slane %v3379, 5
    %v3382 = vor.u32 %v3378, %v3381
    %v3383 = vrot.slane %v3382, 4
    %v3385 = vshll.u32 %v3255, 16
    %v3387 = vrot.slane %v3385, 5
    %v3388 = vsel %vm598, %v3383, %v3387
    %v3390 = vshrl.u32 %v3240, 16
    %v3392 = vrot.slane %v3390, 4
    %v3393 = vshll.u32 %v3240, 16
    %v3395 = vrot.slane %v3393, 5
    %v3396 = vor.u32 %v3392, %v3395
    %v3397 = vrot.slane %v3396, 4
    %v3399 = vshll.u32 %v3256, 16
    %v3401 = vrot.slane %v3399, 5
    %v3402 = vsel %vm598, %v3397, %v3401
    %v3404 = vshrl.u32 %v3241, 16
    %v3406 = vrot.slane %v3404, 4
    %v3407 = vshll.u32 %v3241, 16
    %v3409 = vrot.slane %v3407, 5
    %v3410 = vor.u32 %v3406, %v3409
    %v3411 = vrot.slane %v3410, 4
    %v3413 = vshll.u32 %v3257, 16
    %v3415 = vrot.slane %v3413, 5
    %v3416 = vsel %vm598, %v3411, %v3415
    %v3418 = vshrl.u32 %v3242, 16
    %v3420 = vrot.slane %v3418, 4
    %v3421 = vshll.u32 %v3242, 16
    %v3423 = vrot.slane %v3421, 5
    %v3424 = vor.u32 %v3420, %v3423
    %v3425 = vrot.slane %v3424, 4
    %v3427 = vshll.u32 %v3258, 16
    %v3429 = vrot.slane %v3427, 5
    %v3430 = vsel %vm598, %v3425, %v3429
    %v3432 = vshrl.u32 %v3243, 16
    %v3434 = vrot.slane %v3432, 4
    %v3435 = vshll.u32 %v3243, 16
    %v3437 = vrot.slane %v3435, 5
    %v3438 = vor.u32 %v3434, %v3437
    %v3439 = vrot.slane %v3438, 4
    %v3441 = vshll.u32 %v3259, 16
    %v3443 = vrot.slane %v3441, 5
    %v3444 = vsel %vm598, %v3439, %v3443
    %v3446 = vshrl.u32 %v3244, 16
    %v3448 = vrot.slane %v3446, 4
    %v3449 = vshll.u32 %v3244, 16
    %v3451 = vrot.slane %v3449, 5
    %v3452 = vor.u32 %v3448, %v3451
    %v3453 = vrot.slane %v3452, 4
    %v3455 = vshll.u32 %v3260, 16
    %v3457 = vrot.slane %v3455, 5
    %v3458 = vsel %vm598, %v3453, %v3457
    %v3460 = vshrl.u32 %v3245, 16
    %v3462 = vrot.slane %v3460, 4
    %v3463 = vshll.u32 %v3245, 16
    %v3465 = vrot.slane %v3463, 5
    %v3466 = vor.u32 %v3462, %v3465
    %v3467 = vrot.slane %v3466, 4
    %v3469 = vshll.u32 %v3261, 16
    %v3471 = vrot.slane %v3469, 5
    %v3472 = vsel %vm598, %v3467, %v3471
    %v3474 = vshrl.u32 %v3246, 16
    %v3476 = vrot.slane %v3474, 4
    %v3477 = vshll.u32 %v3246, 16
    %v3479 = vrot.slane %v3477, 5
    %v3480 = vor.u32 %v3476, %v3479
    %v3481 = vrot.slane %v3480, 4
    %v3483 = vshll.u32 %v3262, 16
    %v3485 = vrot.slane %v3483, 5
    %v3486 = vsel %vm598, %v3481, %v3485
    %v3487 = vld [vmem:[#allocation2] sm:$0xe]
    %v3488 = vld [vmem:[#allocation2 + $0x8] sm:$0xe]
    %v3489 = vld [vmem:[#allocation2 + $0x10] sm:$0xe]
    %v3490 = vld [vmem:[#allocation2 + $0x18] sm:$0xe]
    %v3491 = vld [vmem:[#allocation2 + $0x20] sm:$0xe]
    %v3492 = vld [vmem:[#allocation2 + $0x28] sm:$0xe]
    %v3493 = vld [vmem:[#allocation2 + $0x30] sm:$0xe]
    %v3494 = vld [vmem:[#allocation2 + $0x38] sm:$0xe]
    %v3495 = vld [vmem:[#allocation2 + $0x50] sm:$0xe]
    %v3496 = vld [vmem:[#allocation2 + $0x58] sm:$0xe]
    %v3497 = vld [vmem:[#allocation2 + $0x60] sm:$0xe]
    %v3498 = vld [vmem:[#allocation2 + $0x68] sm:$0xe]
    %v3499 = vld [vmem:[#allocation2 + $0x70] sm:$0xe]
    %v3500 = vld [vmem:[#allocation2 + $0x78] sm:$0xe]
    %v3501 = vld [vmem:[#allocation2 + $0x80] sm:$0xe]
    %v3502 = vld [vmem:[#allocation2 + $0x88] sm:$0xe]
    %v3535 = vrot.slane %v3487, 5
    %v3536 = vrot.slane %v3535, 4
    %v3537 = vrot.slane %v3247, 5
    %v3538 = vsel %vm873, %v3536, %v3537
    %v3539 = vrot.slane %v3488, 5
    %v3540 = vrot.slane %v3539, 4
    %v3541 = vrot.slane %v3248, 5
    %v3542 = vsel %vm873, %v3540, %v3541
    %v3543 = vrot.slane %v3489, 5
    %v3544 = vrot.slane %v3543, 4
    %v3545 = vrot.slane %v3249, 5
    %v3546 = vsel %vm873, %v3544, %v3545
    %v3547 = vrot.slane %v3490, 5
    %v3548 = vrot.slane %v3547, 4
    %v3549 = vrot.slane %v3250, 5
    %v3550 = vsel %vm873, %v3548, %v3549
    %v3551 = vrot.slane %v3491, 5
    %v3552 = vrot.slane %v3551, 4
    %v3553 = vrot.slane %v3251, 5
    %v3554 = vsel %vm873, %v3552, %v3553
    %v3555 = vrot.slane %v3492, 5
    %v3556 = vrot.slane %v3555, 4
    %v3557 = vrot.slane %v3252, 5
    %v3558 = vsel %vm873, %v3556, %v3557
    %v3559 = vrot.slane %v3493, 5
    %v3560 = vrot.slane %v3559, 4
    %v3561 = vrot.slane %v3253, 5
    %v3562 = vsel %vm873, %v3560, %v3561
    %v3563 = vrot.slane %v3494, 5
    %v3564 = vrot.slane %v3563, 4
    %v3565 = vrot.slane %v3254, 5
    %v3566 = vsel %vm873, %v3564, %v3565
    %v3567 = vrot.slane %v3495, 5
    %v3568 = vrot.slane %v3567, 4
    %v3569 = vrot.slane %v3255, 5
    %v3570 = vsel %vm873, %v3568, %v3569
    %v3571 = vrot.slane %v3496, 5
    %v3572 = vrot.slane %v3571, 4
    %v3573 = vrot.slane %v3256, 5
    %v3574 = vsel %vm873, %v3572, %v3573
    %v3575 = vrot.slane %v3497, 5
    %v3576 = vrot.slane %v3575, 4
    %v3577 = vrot.slane %v3257, 5
    %v3578 = vsel %vm873, %v3576, %v3577
    %v3579 = vrot.slane %v3498, 5
    %v3580 = vrot.slane %v3579, 4
    %v3581 = vrot.slane %v3258, 5
    %v3582 = vsel %vm873, %v3580, %v3581
    %v3583 = vrot.slane %v3499, 5
    %v3584 = vrot.slane %v3583, 4
    %v3585 = vrot.slane %v3259, 5
    %v3586 = vsel %vm873, %v3584, %v3585
    %v3587 = vrot.slane %v3500, 5
    %v3588 = vrot.slane %v3587, 4
    %v3589 = vrot.slane %v3260, 5
    %v3590 = vsel %vm873, %v3588, %v3589
    %v3591 = vrot.slane %v3501, 5
    %v3592 = vrot.slane %v3591, 4
    %v3593 = vrot.slane %v3261, 5
    %v3594 = vsel %vm873, %v3592, %v3593
    %v3595 = vrot.slane %v3502, 5
    %v3596 = vrot.slane %v3595, 4
    %v3597 = vrot.slane %v3262, 5
    %v3598 = vsel %vm873, %v3596, %v3597
    %v3599 = vld [vmem:[%s461] sm:$0xf]
    %v3600 = vld [vmem:[%s461 + $0x8] sm:$0xf]
    %v3601 = vld [vmem:[%s461 + $0x10] sm:$0xf]
    %v3602 = vld [vmem:[%s461 + $0x18] sm:$0xf]
    %v3603 = vld [vmem:[%s461 + $0x20] sm:$0xf]
    %v3604 = vld [vmem:[%s461 + $0x28] sm:$0xf]
    %v3605 = vld [vmem:[%s461 + $0x30] sm:$0xf]
    %v3606 = vld [vmem:[%s461 + $0x38] sm:$0xf]
    %v3607 = vld [vmem:[%s461 + $0x50] sm:$0xf]
    %v3608 = vld [vmem:[%s461 + $0x58] sm:$0xf]
    %v3609 = vld [vmem:[%s461 + $0x60] sm:$0xf]
    %v3610 = vld [vmem:[%s461 + $0x68] sm:$0xf]
    %v3611 = vld [vmem:[%s461 + $0x70] sm:$0xf]
    %v3612 = vld [vmem:[%s461 + $0x78] sm:$0xf]
    %v3613 = vld [vmem:[%s461 + $0x80] sm:$0xf]
    %v3614 = vld [vmem:[%s461 + $0x88] sm:$0xf]
    %v3615 = vld [vmem:[%s461 + $0x4] sm:$0x1]
    %v3616 = vld [vmem:[%s461 + $0xc] sm:$0x1]
    %v3617 = vld [vmem:[%s461 + $0x14] sm:$0x1]
    %v3618 = vld [vmem:[%s461 + $0x1c] sm:$0x1]
    %v3619 = vld [vmem:[%s461 + $0x24] sm:$0x1]
    %v3620 = vld [vmem:[%s461 + $0x2c] sm:$0x1]
    %v3621 = vld [vmem:[%s461 + $0x34] sm:$0x1]
    %v3622 = vld [vmem:[%s461 + $0x3c] sm:$0x1]
    %v3623 = vld [vmem:[%s461 + $0x54] sm:$0x1]
    %v3624 = vld [vmem:[%s461 + $0x5c] sm:$0x1]
    %v3625 = vld [vmem:[%s461 + $0x64] sm:$0x1]
    %v3626 = vld [vmem:[%s461 + $0x6c] sm:$0x1]
    %v3627 = vld [vmem:[%s461 + $0x74] sm:$0x1]
    %v3628 = vld [vmem:[%s461 + $0x7c] sm:$0x1]
    %v3629 = vld [vmem:[%s461 + $0x84] sm:$0x1]
    %v3630 = vld [vmem:[%s461 + $0x8c] sm:$0x1]
    %v3632 = vshrl.u32 %v3599, 16
    %v3634 = vrot.slane %v3632, 4
    %v3635 = vshll.u32 %v3599, 16
    %v3637 = vrot.slane %v3635, 5
    %v3638 = vor.u32 %v3634, %v3637
    %v3639 = vrot.slane %v3638, 4
    %v3641 = vshll.u32 %v3615, 16
    %v3643 = vrot.slane %v3641, 5
    %v3644 = vsel %vm598, %v3639, %v3643
    %v3646 = vshrl.u32 %v3600, 16
    %v3648 = vrot.slane %v3646, 4
    %v3649 = vshll.u32 %v3600, 16
    %v3651 = vrot.slane %v3649, 5
    %v3652 = vor.u32 %v3648, %v3651
    %v3653 = vrot.slane %v3652, 4
    %v3655 = vshll.u32 %v3616, 16
    %v3657 = vrot.slane %v3655, 5
    %v3658 = vsel %vm598, %v3653, %v3657
    %v3660 = vshrl.u32 %v3601, 16
    %v3662 = vrot.slane %v3660, 4
    %v3663 = vshll.u32 %v3601, 16
    %v3665 = vrot.slane %v3663, 5
    %v3666 = vor.u32 %v3662, %v3665
    %v3667 = vrot.slane %v3666, 4
    %v3669 = vshll.u32 %v3617, 16
    %v3671 = vrot.slane %v3669, 5
    %v3672 = vsel %vm598, %v3667, %v3671
    %v3674 = vshrl.u32 %v3602, 16
    %v3676 = vrot.slane %v3674, 4
    %v3677 = vshll.u32 %v3602, 16
    %v3679 = vrot.slane %v3677, 5
    %v3680 = vor.u32 %v3676, %v3679
    %v3681 = vrot.slane %v3680, 4
    %v3683 = vshll.u32 %v3618, 16
    %v3685 = vrot.slane %v3683, 5
    %v3686 = vsel %vm598, %v3681, %v3685
    %v3688 = vshrl.u32 %v3603, 16
    %v3690 = vrot.slane %v3688, 4
    %v3691 = vshll.u32 %v3603, 16
    %v3693 = vrot.slane %v3691, 5
    %v3694 = vor.u32 %v3690, %v3693
    %v3695 = vrot.slane %v3694, 4
    %v3697 = vshll.u32 %v3619, 16
    %v3699 = vrot.slane %v3697, 5
    %v3700 = vsel %vm598, %v3695, %v3699
    %v3702 = vshrl.u32 %v3604, 16
    %v3704 = vrot.slane %v3702, 4
    %v3705 = vshll.u32 %v3604, 16
    %v3707 = vrot.slane %v3705, 5
    %v3708 = vor.u32 %v3704, %v3707
    %v3709 = vrot.slane %v3708, 4
    %v3711 = vshll.u32 %v3620, 16
    %v3713 = vrot.slane %v3711, 5
    %v3714 = vsel %vm598, %v3709, %v3713
    %v3716 = vshrl.u32 %v3605, 16
    %v3718 = vrot.slane %v3716, 4
    %v3719 = vshll.u32 %v3605, 16
    %v3721 = vrot.slane %v3719, 5
    %v3722 = vor.u32 %v3718, %v3721
    %v3723 = vrot.slane %v3722, 4
    %v3725 = vshll.u32 %v3621, 16
    %v3727 = vrot.slane %v3725, 5
    %v3728 = vsel %vm598, %v3723, %v3727
    %v3730 = vshrl.u32 %v3606, 16
    %v3732 = vrot.slane %v3730, 4
    %v3733 = vshll.u32 %v3606, 16
    %v3735 = vrot.slane %v3733, 5
    %v3736 = vor.u32 %v3732, %v3735
    %v3737 = vrot.slane %v3736, 4
    %v3739 = vshll.u32 %v3622, 16
    %v3741 = vrot.slane %v3739, 5
    %v3742 = vsel %vm598, %v3737, %v3741
    %v3744 = vshrl.u32 %v3607, 16
    %v3746 = vrot.slane %v3744, 4
    %v3747 = vshll.u32 %v3607, 16
    %v3749 = vrot.slane %v3747, 5
    %v3750 = vor.u32 %v3746, %v3749
    %v3751 = vrot.slane %v3750, 4
    %v3753 = vshll.u32 %v3623, 16
    %v3755 = vrot.slane %v3753, 5
    %v3756 = vsel %vm598, %v3751, %v3755
    %v3758 = vshrl.u32 %v3608, 16
    %v3760 = vrot.slane %v3758, 4
    %v3761 = vshll.u32 %v3608, 16
    %v3763 = vrot.slane %v3761, 5
    %v3764 = vor.u32 %v3760, %v3763
    %v3765 = vrot.slane %v3764, 4
    %v3767 = vshll.u32 %v3624, 16
    %v3769 = vrot.slane %v3767, 5
    %v3770 = vsel %vm598, %v3765, %v3769
    %v3772 = vshrl.u32 %v3609, 16
    %v3774 = vrot.slane %v3772, 4
    %v3775 = vshll.u32 %v3609, 16
    %v3777 = vrot.slane %v3775, 5
    %v3778 = vor.u32 %v3774, %v3777
    %v3779 = vrot.slane %v3778, 4
    %v3781 = vshll.u32 %v3625, 16
    %v3783 = vrot.slane %v3781, 5
    %v3784 = vsel %vm598, %v3779, %v3783
    %v3786 = vshrl.u32 %v3610, 16
    %v3788 = vrot.slane %v3786, 4
    %v3789 = vshll.u32 %v3610, 16
    %v3791 = vrot.slane %v3789, 5
    %v3792 = vor.u32 %v3788, %v3791
    %v3793 = vrot.slane %v3792, 4
    %v3795 = vshll.u32 %v3626, 16
    %v3797 = vrot.slane %v3795, 5
    %v3798 = vsel %vm598, %v3793, %v3797
    %v3800 = vshrl.u32 %v3611, 16
    %v3802 = vrot.slane %v3800, 4
    %v3803 = vshll.u32 %v3611, 16
    %v3805 = vrot.slane %v3803, 5
    %v3806 = vor.u32 %v3802, %v3805
    %v3807 = vrot.slane %v3806, 4
    %v3809 = vshll.u32 %v3627, 16
    %v3811 = vrot.slane %v3809, 5
    %v3812 = vsel %vm598, %v3807, %v3811
    %v3814 = vshrl.u32 %v3612, 16
    %v3816 = vrot.slane %v3814, 4
    %v3817 = vshll.u32 %v3612, 16
    %v3819 = vrot.slane %v3817, 5
    %v3820 = vor.u32 %v3816, %v3819
    %v3821 = vrot.slane %v3820, 4
    %v3823 = vshll.u32 %v3628, 16
    %v3825 = vrot.slane %v3823, 5
    %v3826 = vsel %vm598, %v3821, %v3825
    %v3828 = vshrl.u32 %v3613, 16
    %v3830 = vrot.slane %v3828, 4
    %v3831 = vshll.u32 %v3613, 16
    %v3833 = vrot.slane %v3831, 5
    %v3834 = vor.u32 %v3830, %v3833
    %v3835 = vrot.slane %v3834, 4
    %v3837 = vshll.u32 %v3629, 16
    %v3839 = vrot.slane %v3837, 5
    %v3840 = vsel %vm598, %v3835, %v3839
    %v3842 = vshrl.u32 %v3614, 16
    %v3844 = vrot.slane %v3842, 4
    %v3845 = vshll.u32 %v3614, 16
    %v3847 = vrot.slane %v3845, 5
    %v3848 = vor.u32 %v3844, %v3847
    %v3849 = vrot.slane %v3848, 4
    %v3851 = vshll.u32 %v3630, 16
    %v3853 = vrot.slane %v3851, 5
    %v3854 = vsel %vm598, %v3849, %v3853
    %v3855 = vld [vmem:[%s461] sm:$0xe]
    %v3856 = vld [vmem:[%s461 + $0x8] sm:$0xe]
    %v3857 = vld [vmem:[%s461 + $0x10] sm:$0xe]
    %v3858 = vld [vmem:[%s461 + $0x18] sm:$0xe]
    %v3859 = vld [vmem:[%s461 + $0x20] sm:$0xe]
    %v3860 = vld [vmem:[%s461 + $0x28] sm:$0xe]
    %v3861 = vld [vmem:[%s461 + $0x30] sm:$0xe]
    %v3862 = vld [vmem:[%s461 + $0x38] sm:$0xe]
    %v3863 = vld [vmem:[%s461 + $0x50] sm:$0xe]
    %v3864 = vld [vmem:[%s461 + $0x58] sm:$0xe]
    %v3865 = vld [vmem:[%s461 + $0x60] sm:$0xe]
    %v3866 = vld [vmem:[%s461 + $0x68] sm:$0xe]
    %v3867 = vld [vmem:[%s461 + $0x70] sm:$0xe]
    %v3868 = vld [vmem:[%s461 + $0x78] sm:$0xe]
    %v3869 = vld [vmem:[%s461 + $0x80] sm:$0xe]
    %v3870 = vld [vmem:[%s461 + $0x88] sm:$0xe]
    %v3903 = vrot.slane %v3855, 5
    %v3904 = vrot.slane %v3903, 4
    %v3905 = vrot.slane %v3615, 5
    %v3906 = vsel %vm873, %v3904, %v3905
    %v3907 = vrot.slane %v3856, 5
    %v3908 = vrot.slane %v3907, 4
    %v3909 = vrot.slane %v3616, 5
    %v3910 = vsel %vm873, %v3908, %v3909
    %v3911 = vrot.slane %v3857, 5
    %v3912 = vrot.slane %v3911, 4
    %v3913 = vrot.slane %v3617, 5
    %v3914 = vsel %vm873, %v3912, %v3913
    %v3915 = vrot.slane %v3858, 5
    %v3916 = vrot.slane %v3915, 4
    %v3917 = vrot.slane %v3618, 5
    %v3918 = vsel %vm873, %v3916, %v3917
    %v3919 = vrot.slane %v3859, 5
    %v3920 = vrot.slane %v3919, 4
    %v3921 = vrot.slane %v3619, 5
    %v3922 = vsel %vm873, %v3920, %v3921
    %v3923 = vrot.slane %v3860, 5
    %v3924 = vrot.slane %v3923, 4
    %v3925 = vrot.slane %v3620, 5
    %v3926 = vsel %vm873, %v3924, %v3925
    %v3927 = vrot.slane %v3861, 5
    %v3928 = vrot.slane %v3927, 4
    %v3929 = vrot.slane %v3621, 5
    %v3930 = vsel %vm873, %v3928, %v3929
    %v3931 = vrot.slane %v3862, 5
    %v3932 = vrot.slane %v3931, 4
    %v3933 = vrot.slane %v3622, 5
    %v3934 = vsel %vm873, %v3932, %v3933
    %v3935 = vrot.slane %v3863, 5
    %v3936 = vrot.slane %v3935, 4
    %v3937 = vrot.slane %v3623, 5
    %v3938 = vsel %vm873, %v3936, %v3937
    %v3939 = vrot.slane %v3864, 5
    %v3940 = vrot.slane %v3939, 4
    %v3941 = vrot.slane %v3624, 5
    %v3942 = vsel %vm873, %v3940, %v3941
    %v3943 = vrot.slane %v3865, 5
    %v3944 = vrot.slane %v3943, 4
    %v3945 = vrot.slane %v3625, 5
    %v3946 = vsel %vm873, %v3944, %v3945
    %v3947 = vrot.slane %v3866, 5
    %v3948 = vrot.slane %v3947, 4
    %v3949 = vrot.slane %v3626, 5
    %v3950 = vsel %vm873, %v3948, %v3949
    %v3951 = vrot.slane %v3867, 5
    %v3952 = vrot.slane %v3951, 4
    %v3953 = vrot.slane %v3627, 5
    %v3954 = vsel %vm873, %v3952, %v3953
    %v3955 = vrot.slane %v3868, 5
    %v3956 = vrot.slane %v3955, 4
    %v3957 = vrot.slane %v3628, 5
    %v3958 = vsel %vm873, %v3956, %v3957
    %v3959 = vrot.slane %v3869, 5
    %v3960 = vrot.slane %v3959, 4
    %v3961 = vrot.slane %v3629, 5
    %v3962 = vsel %vm873, %v3960, %v3961
    %v3963 = vrot.slane %v3870, 5
    %v3964 = vrot.slane %v3963, 4
    %v3965 = vrot.slane %v3630, 5
    %v3966 = vsel %vm873, %v3964, %v3965
    %v3967 = vld [vmem:[%s1306] sm:$0xf]
    %v3968 = vld [vmem:[%s1306 + $0x8] sm:$0xf]
    %v3969 = vld [vmem:[%s1306 + $0x10] sm:$0xf]
    %v3970 = vld [vmem:[%s1306 + $0x18] sm:$0xf]
    %v3971 = vld [vmem:[%s1306 + $0x20] sm:$0xf]
    %v3972 = vld [vmem:[%s1306 + $0x28] sm:$0xf]
    %v3973 = vld [vmem:[%s1306 + $0x30] sm:$0xf]
    %v3974 = vld [vmem:[%s1306 + $0x38] sm:$0xf]
    %v3975 = vld [vmem:[%s1306 + $0x50] sm:$0xf]
    %v3976 = vld [vmem:[%s1306 + $0x58] sm:$0xf]
    %v3977 = vld [vmem:[%s1306 + $0x60] sm:$0xf]
    %v3978 = vld [vmem:[%s1306 + $0x68] sm:$0xf]
    %v3979 = vld [vmem:[%s1306 + $0x70] sm:$0xf]
    %v3980 = vld [vmem:[%s1306 + $0x78] sm:$0xf]
    %v3981 = vld [vmem:[%s1306 + $0x80] sm:$0xf]
    %v3982 = vld [vmem:[%s1306 + $0x88] sm:$0xf]
    %v3983 = vld [vmem:[%s1306 + $0x4] sm:$0x1]
    %v3984 = vld [vmem:[%s1306 + $0xc] sm:$0x1]
    %v3985 = vld [vmem:[%s1306 + $0x14] sm:$0x1]
    %v3986 = vld [vmem:[%s1306 + $0x1c] sm:$0x1]
    %v3987 = vld [vmem:[%s1306 + $0x24] sm:$0x1]
    %v3988 = vld [vmem:[%s1306 + $0x2c] sm:$0x1]
    %v3989 = vld [vmem:[%s1306 + $0x34] sm:$0x1]
    %v3990 = vld [vmem:[%s1306 + $0x3c] sm:$0x1]
    %v3991 = vld [vmem:[%s1306 + $0x54] sm:$0x1]
    %v3992 = vld [vmem:[%s1306 + $0x5c] sm:$0x1]
    %v3993 = vld [vmem:[%s1306 + $0x64] sm:$0x1]
    %v3994 = vld [vmem:[%s1306 + $0x6c] sm:$0x1]
    %v3995 = vld [vmem:[%s1306 + $0x74] sm:$0x1]
    %v3996 = vld [vmem:[%s1306 + $0x7c] sm:$0x1]
    %v3997 = vld [vmem:[%s1306 + $0x84] sm:$0x1]
    %v3998 = vld [vmem:[%s1306 + $0x8c] sm:$0x1]
    %v4000 = vshrl.u32 %v3967, 16
    %v4002 = vrot.slane %v4000, 4
    %v4003 = vshll.u32 %v3967, 16
    %v4005 = vrot.slane %v4003, 5
    %v4006 = vor.u32 %v4002, %v4005
    %v4007 = vrot.slane %v4006, 4
    %v4009 = vshll.u32 %v3983, 16
    %v4011 = vrot.slane %v4009, 5
    %v4012 = vsel %vm598, %v4007, %v4011
    %v4014 = vshrl.u32 %v3968, 16
    %v4016 = vrot.slane %v4014, 4
    %v4017 = vshll.u32 %v3968, 16
    %v4019 = vrot.slane %v4017, 5
    %v4020 = vor.u32 %v4016, %v4019
    %v4021 = vrot.slane %v4020, 4
    %v4023 = vshll.u32 %v3984, 16
    %v4025 = vrot.slane %v4023, 5
    %v4026 = vsel %vm598, %v4021, %v4025
    %v4028 = vshrl.u32 %v3969, 16
    %v4030 = vrot.slane %v4028, 4
    %v4031 = vshll.u32 %v3969, 16
    %v4033 = vrot.slane %v4031, 5
    %v4034 = vor.u32 %v4030, %v4033
    %v4035 = vrot.slane %v4034, 4
    %v4037 = vshll.u32 %v3985, 16
    %v4039 = vrot.slane %v4037, 5
    %v4040 = vsel %vm598, %v4035, %v4039
    %v4042 = vshrl.u32 %v3970, 16
    %v4044 = vrot.slane %v4042, 4
    %v4045 = vshll.u32 %v3970, 16
    %v4047 = vrot.slane %v4045, 5
    %v4048 = vor.u32 %v4044, %v4047
    %v4049 = vrot.slane %v4048, 4
    %v4051 = vshll.u32 %v3986, 16
    %v4053 = vrot.slane %v4051, 5
    %v4054 = vsel %vm598, %v4049, %v4053
    %v4056 = vshrl.u32 %v3971, 16
    %v4058 = vrot.slane %v4056, 4
    %v4059 = vshll.u32 %v3971, 16
    %v4061 = vrot.slane %v4059, 5
    %v4062 = vor.u32 %v4058, %v4061
    %v4063 = vrot.slane %v4062, 4
    %v4065 = vshll.u32 %v3987, 16
    %v4067 = vrot.slane %v4065, 5
    %v4068 = vsel %vm598, %v4063, %v4067
    %v4070 = vshrl.u32 %v3972, 16
    %v4072 = vrot.slane %v4070, 4
    %v4073 = vshll.u32 %v3972, 16
    %v4075 = vrot.slane %v4073, 5
    %v4076 = vor.u32 %v4072, %v4075
    %v4077 = vrot.slane %v4076, 4
    %v4079 = vshll.u32 %v3988, 16
    %v4081 = vrot.slane %v4079, 5
    %v4082 = vsel %vm598, %v4077, %v4081
    %v4084 = vshrl.u32 %v3973, 16
    %v4086 = vrot.slane %v4084, 4
    %v4087 = vshll.u32 %v3973, 16
    %v4089 = vrot.slane %v4087, 5
    %v4090 = vor.u32 %v4086, %v4089
    %v4091 = vrot.slane %v4090, 4
    %v4093 = vshll.u32 %v3989, 16
    %v4095 = vrot.slane %v4093, 5
    %v4096 = vsel %vm598, %v4091, %v4095
    %v4098 = vshrl.u32 %v3974, 16
    %v4100 = vrot.slane %v4098, 4
    %v4101 = vshll.u32 %v3974, 16
    %v4103 = vrot.slane %v4101, 5
    %v4104 = vor.u32 %v4100, %v4103
    %v4105 = vrot.slane %v4104, 4
    %v4107 = vshll.u32 %v3990, 16
    %v4109 = vrot.slane %v4107, 5
    %v4110 = vsel %vm598, %v4105, %v4109
    %v4112 = vshrl.u32 %v3975, 16
    %v4114 = vrot.slane %v4112, 4
    %v4115 = vshll.u32 %v3975, 16
    %v4117 = vrot.slane %v4115, 5
    %v4118 = vor.u32 %v4114, %v4117
    %v4119 = vrot.slane %v4118, 4
    %v4121 = vshll.u32 %v3991, 16
    %v4123 = vrot.slane %v4121, 5
    %v4124 = vsel %vm598, %v4119, %v4123
    %v4126 = vshrl.u32 %v3976, 16
    %v4128 = vrot.slane %v4126, 4
    %v4129 = vshll.u32 %v3976, 16
    %v4131 = vrot.slane %v4129, 5
    %v4132 = vor.u32 %v4128, %v4131
    %v4133 = vrot.slane %v4132, 4
    %v4135 = vshll.u32 %v3992, 16
    %v4137 = vrot.slane %v4135, 5
    %v4138 = vsel %vm598, %v4133, %v4137
    %v4140 = vshrl.u32 %v3977, 16
    %v4142 = vrot.slane %v4140, 4
    %v4143 = vshll.u32 %v3977, 16
    %v4145 = vrot.slane %v4143, 5
    %v4146 = vor.u32 %v4142, %v4145
    %v4147 = vrot.slane %v4146, 4
    %v4149 = vshll.u32 %v3993, 16
    %v4151 = vrot.slane %v4149, 5
    %v4152 = vsel %vm598, %v4147, %v4151
    %v4154 = vshrl.u32 %v3978, 16
    %v4156 = vrot.slane %v4154, 4
    %v4157 = vshll.u32 %v3978, 16
    %v4159 = vrot.slane %v4157, 5
    %v4160 = vor.u32 %v4156, %v4159
    %v4161 = vrot.slane %v4160, 4
    %v4163 = vshll.u32 %v3994, 16
    %v4165 = vrot.slane %v4163, 5
    %v4166 = vsel %vm598, %v4161, %v4165
    %v4168 = vshrl.u32 %v3979, 16
    %v4170 = vrot.slane %v4168, 4
    %v4171 = vshll.u32 %v3979, 16
    %v4173 = vrot.slane %v4171, 5
    %v4174 = vor.u32 %v4170, %v4173
    %v4175 = vrot.slane %v4174, 4
    %v4177 = vshll.u32 %v3995, 16
    %v4179 = vrot.slane %v4177, 5
    %v4180 = vsel %vm598, %v4175, %v4179
    %v4182 = vshrl.u32 %v3980, 16
    %v4184 = vrot.slane %v4182, 4
    %v4185 = vshll.u32 %v3980, 16
    %v4187 = vrot.slane %v4185, 5
    %v4188 = vor.u32 %v4184, %v4187
    %v4189 = vrot.slane %v4188, 4
    %v4191 = vshll.u32 %v3996, 16
    %v4193 = vrot.slane %v4191, 5
    %v4194 = vsel %vm598, %v4189, %v4193
    %v4196 = vshrl.u32 %v3981, 16
    %v4198 = vrot.slane %v4196, 4
    %v4199 = vshll.u32 %v3981, 16
    %v4201 = vrot.slane %v4199, 5
    %v4202 = vor.u32 %v4198, %v4201
    %v4203 = vrot.slane %v4202, 4
    %v4205 = vshll.u32 %v3997, 16
    %v4207 = vrot.slane %v4205, 5
    %v4208 = vsel %vm598, %v4203, %v4207
    %v4210 = vshrl.u32 %v3982, 16
    %v4212 = vrot.slane %v4210, 4
    %v4213 = vshll.u32 %v3982, 16
    %v4215 = vrot.slane %v4213, 5
    %v4216 = vor.u32 %v4212, %v4215
    %v4217 = vrot.slane %v4216, 4
    %v4219 = vshll.u32 %v3998, 16
    %v4221 = vrot.slane %v4219, 5
    %v4222 = vsel %vm598, %v4217, %v4221
    %v4223 = vld [vmem:[%s1306] sm:$0xe]
    %v4224 = vld [vmem:[%s1306 + $0x8] sm:$0xe]
    %v4225 = vld [vmem:[%s1306 + $0x10] sm:$0xe]
    %v4226 = vld [vmem:[%s1306 + $0x18] sm:$0xe]
    %v4227 = vld [vmem:[%s1306 + $0x20] sm:$0xe]
    %v4228 = vld [vmem:[%s1306 + $0x28] sm:$0xe]
    %v4229 = vld [vmem:[%s1306 + $0x30] sm:$0xe]
    %v4230 = vld [vmem:[%s1306 + $0x38] sm:$0xe]
    %v4231 = vld [vmem:[%s1306 + $0x50] sm:$0xe]
    %v4232 = vld [vmem:[%s1306 + $0x58] sm:$0xe]
    %v4233 = vld [vmem:[%s1306 + $0x60] sm:$0xe]
    %v4234 = vld [vmem:[%s1306 + $0x68] sm:$0xe]
    %v4235 = vld [vmem:[%s1306 + $0x70] sm:$0xe]
    %v4236 = vld [vmem:[%s1306 + $0x78] sm:$0xe]
    %v4237 = vld [vmem:[%s1306 + $0x80] sm:$0xe]
    %v4238 = vld [vmem:[%s1306 + $0x88] sm:$0xe]
    %v4271 = vrot.slane %v4223, 5
    %v4272 = vrot.slane %v4271, 4
    %v4273 = vrot.slane %v3983, 5
    %v4274 = vsel %vm873, %v4272, %v4273
    %v4275 = vrot.slane %v4224, 5
    %v4276 = vrot.slane %v4275, 4
    %v4277 = vrot.slane %v3984, 5
    %v4278 = vsel %vm873, %v4276, %v4277
    %v4279 = vrot.slane %v4225, 5
    %v4280 = vrot.slane %v4279, 4
    %v4281 = vrot.slane %v3985, 5
    %v4282 = vsel %vm873, %v4280, %v4281
    %v4283 = vrot.slane %v4226, 5
    %v4284 = vrot.slane %v4283, 4
    %v4285 = vrot.slane %v3986, 5
    %v4286 = vsel %vm873, %v4284, %v4285
    %v4287 = vrot.slane %v4227, 5
    %v4288 = vrot.slane %v4287, 4
    %v4289 = vrot.slane %v3987, 5
    %v4290 = vsel %vm873, %v4288, %v4289
    %v4291 = vrot.slane %v4228, 5
    %v4292 = vrot.slane %v4291, 4
    %v4293 = vrot.slane %v3988, 5
    %v4294 = vsel %vm873, %v4292, %v4293
    %v4295 = vrot.slane %v4229, 5
    %v4296 = vrot.slane %v4295, 4
    %v4297 = vrot.slane %v3989, 5
    %v4298 = vsel %vm873, %v4296, %v4297
    %v4299 = vrot.slane %v4230, 5
    %v4300 = vrot.slane %v4299, 4
    %v4301 = vrot.slane %v3990, 5
    %v4302 = vsel %vm873, %v4300, %v4301
    %v4303 = vrot.slane %v4231, 5
    %v4304 = vrot.slane %v4303, 4
    %v4305 = vrot.slane %v3991, 5
    %v4306 = vsel %vm873, %v4304, %v4305
    %v4307 = vrot.slane %v4232, 5
    %v4308 = vrot.slane %v4307, 4
    %v4309 = vrot.slane %v3992, 5
    %v4310 = vsel %vm873, %v4308, %v4309
    %v4311 = vrot.slane %v4233, 5
    %v4312 = vrot.slane %v4311, 4
    %v4313 = vrot.slane %v3993, 5
    %v4314 = vsel %vm873, %v4312, %v4313
    %v4315 = vrot.slane %v4234, 5
    %v4316 = vrot.slane %v4315, 4
    %v4317 = vrot.slane %v3994, 5
    %v4318 = vsel %vm873, %v4316, %v4317
    %v4319 = vrot.slane %v4235, 5
    %v4320 = vrot.slane %v4319, 4
    %v4321 = vrot.slane %v3995, 5
    %v4322 = vsel %vm873, %v4320, %v4321
    %v4323 = vrot.slane %v4236, 5
    %v4324 = vrot.slane %v4323, 4
    %v4325 = vrot.slane %v3996, 5
    %v4326 = vsel %vm873, %v4324, %v4325
    %v4327 = vrot.slane %v4237, 5
    %v4328 = vrot.slane %v4327, 4
    %v4329 = vrot.slane %v3997, 5
    %v4330 = vsel %vm873, %v4328, %v4329
    %v4331 = vrot.slane %v4238, 5
    %v4332 = vrot.slane %v4331, 4
    %v4333 = vrot.slane %v3998, 5
    %v4334 = vsel %vm873, %v4332, %v4333
    %v4351 = vunpack.c.l.b16 %v3231
    %v4352 = vunpack.c.l.b16 %v3232
    %v4353 = vunpack.c.l.b16 %v3233
    %v4354 = vunpack.c.l.b16 %v3234
    %v4355 = vunpack.c.l.b16 %v3235
    %v4356 = vunpack.c.l.b16 %v3236
    %v4357 = vunpack.c.l.b16 %v3237
    %v4358 = vunpack.c.l.b16 %v3238
    %v4359 = vunpack.c.l.b16 %v3239
    %v4360 = vunpack.c.l.b16 %v3240
    %v4361 = vunpack.c.l.b16 %v3241
    %v4362 = vunpack.c.l.b16 %v3242
    %v4363 = vunpack.c.l.b16 %v3243
    %v4364 = vunpack.c.l.b16 %v3244
    %v4365 = vunpack.c.l.b16 %v3245
    %v4366 = vunpack.c.l.b16 %v3246
    %v4367 = vpack.c.b16 %v4352, %v4351
    %v4368 = vpack.c.b16 %v4354, %v4353
    %v4369 = vpack.c.b16 %v4356, %v4355
    %v4370 = vpack.c.b16 %v4358, %v4357
    %v4371 = vpack.c.b16 %v4360, %v4359
    %v4372 = vpack.c.b16 %v4362, %v4361
    %v4373 = vpack.c.b16 %v4364, %v4363
    %v4374 = vpack.c.b16 %v4366, %v4365
    %v4375 = vunpack.c.l.b16 %v3276
    %v4376 = vunpack.c.l.b16 %v3290
    %v4377 = vunpack.c.l.b16 %v3304
    %v4378 = vunpack.c.l.b16 %v3318
    %v4379 = vunpack.c.l.b16 %v3332
    %v4380 = vunpack.c.l.b16 %v3346
    %v4381 = vunpack.c.l.b16 %v3360
    %v4382 = vunpack.c.l.b16 %v3374
    %v4383 = vunpack.c.l.b16 %v3388
    %v4384 = vunpack.c.l.b16 %v3402
    %v4385 = vunpack.c.l.b16 %v3416
    %v4386 = vunpack.c.l.b16 %v3430
    %v4387 = vunpack.c.l.b16 %v3444
    %v4388 = vunpack.c.l.b16 %v3458
    %v4389 = vunpack.c.l.b16 %v3472
    %v4390 = vunpack.c.l.b16 %v3486
    %v4391 = vpack.c.b16 %v4376, %v4375
    %v4392 = vpack.c.b16 %v4378, %v4377
    %v4393 = vpack.c.b16 %v4380, %v4379
    %v4394 = vpack.c.b16 %v4382, %v4381
    %v4395 = vpack.c.b16 %v4384, %v4383
    %v4396 = vpack.c.b16 %v4386, %v4385
    %v4397 = vpack.c.b16 %v4388, %v4387
    %v4398 = vpack.c.b16 %v4390, %v4389
    %4399 = vrot.lane.b32.xlu0 %v4391, 64
    %v4400 = vpop.permute.xlu0 %4399
    %4401 = vrot.lane.b32.xlu0 %v4392, 64
    %v4402 = vpop.permute.xlu0 %4401
    %4403 = vrot.lane.b32.xlu0 %v4393, 64
    %v4404 = vpop.permute.xlu0 %4403
    %4405 = vrot.lane.b32.xlu0 %v4394, 64
    %v4406 = vpop.permute.xlu0 %4405
    %4407 = vrot.lane.b32.xlu0 %v4395, 64
    %v4408 = vpop.permute.xlu0 %4407
    %4409 = vrot.lane.b32.xlu0 %v4396, 64
    %v4410 = vpop.permute.xlu0 %4409
    %4411 = vrot.lane.b32.xlu0 %v4397, 64
    %v4412 = vpop.permute.xlu0 %4411
    %4413 = vrot.lane.b32.xlu0 %v4398, 64
    %v4414 = vpop.permute.xlu0 %4413
    %v4415 = vunpack.c.l.b16 %v3538
    %v4416 = vunpack.c.l.b16 %v3542
    %v4417 = vunpack.c.l.b16 %v3546
    %v4418 = vunpack.c.l.b16 %v3550
    %v4419 = vunpack.c.l.b16 %v3554
    %v4420 = vunpack.c.l.b16 %v3558
    %v4421 = vunpack.c.l.b16 %v3562
    %v4422 = vunpack.c.l.b16 %v3566
    %v4423 = vunpack.c.l.b16 %v3570
    %v4424 = vunpack.c.l.b16 %v3574
    %v4425 = vunpack.c.l.b16 %v3578
    %v4426 = vunpack.c.l.b16 %v3582
    %v4427 = vunpack.c.l.b16 %v3586
    %v4428 = vunpack.c.l.b16 %v3590
    %v4429 = vunpack.c.l.b16 %v3594
    %v4430 = vunpack.c.l.b16 %v3598
    %v4431 = vpack.c.b16 %v4416, %v4415
    %v4432 = vpack.c.b16 %v4418, %v4417
    %v4433 = vpack.c.b16 %v4420, %v4419
    %v4434 = vpack.c.b16 %v4422, %v4421
    %v4435 = vpack.c.b16 %v4424, %v4423
    %v4436 = vpack.c.b16 %v4426, %v4425
    %v4437 = vpack.c.b16 %v4428, %v4427
    %v4438 = vpack.c.b16 %v4430, %v4429
    %v4455 = vunpack.c.l.b16 %v3599
    %v4456 = vunpack.c.l.b16 %v3600
    %v4457 = vunpack.c.l.b16 %v3601
    %v4458 = vunpack.c.l.b16 %v3602
    %v4459 = vunpack.c.l.b16 %v3603
    %v4460 = vunpack.c.l.b16 %v3604
    %v4461 = vunpack.c.l.b16 %v3605
    %v4462 = vunpack.c.l.b16 %v3606
    %v4463 = vunpack.c.l.b16 %v3607
    %v4464 = vunpack.c.l.b16 %v3608
    %v4465 = vunpack.c.l.b16 %v3609
    %v4466 = vunpack.c.l.b16 %v3610
    %v4467 = vunpack.c.l.b16 %v3611
    %v4468 = vunpack.c.l.b16 %v3612
    %v4469 = vunpack.c.l.b16 %v3613
    %v4470 = vunpack.c.l.b16 %v3614
    %v4471 = vpack.c.b16 %v4456, %v4455
    %v4472 = vpack.c.b16 %v4458, %v4457
    %v4473 = vpack.c.b16 %v4460, %v4459
    %v4474 = vpack.c.b16 %v4462, %v4461
    %v4475 = vpack.c.b16 %v4464, %v4463
    %v4476 = vpack.c.b16 %v4466, %v4465
    %v4477 = vpack.c.b16 %v4468, %v4467
    %v4478 = vpack.c.b16 %v4470, %v4469
    %4479 = vrot.lane.b32.xlu0 %v4471, 64
    %v4480 = vpop.permute.xlu0 %4479
    %4481 = vrot.lane.b32.xlu0 %v4472, 64
    %v4482 = vpop.permute.xlu0 %4481
    %4483 = vrot.lane.b32.xlu0 %v4473, 64
    %v4484 = vpop.permute.xlu0 %4483
    %4485 = vrot.lane.b32.xlu0 %v4474, 64
    %v4486 = vpop.permute.xlu0 %4485
    %4487 = vrot.lane.b32.xlu0 %v4475, 64
    %v4488 = vpop.permute.xlu0 %4487
    %4489 = vrot.lane.b32.xlu0 %v4476, 64
    %v4490 = vpop.permute.xlu0 %4489
    %4491 = vrot.lane.b32.xlu0 %v4477, 64
    %v4492 = vpop.permute.xlu0 %4491
    %4493 = vrot.lane.b32.xlu0 %v4478, 64
    %v4494 = vpop.permute.xlu0 %4493
    %v4495 = vunpack.c.l.b16 %v3644
    %v4496 = vunpack.c.l.b16 %v3658
    %v4497 = vunpack.c.l.b16 %v3672
    %v4498 = vunpack.c.l.b16 %v3686
    %v4499 = vunpack.c.l.b16 %v3700
    %v4500 = vunpack.c.l.b16 %v3714
    %v4501 = vunpack.c.l.b16 %v3728
    %v4502 = vunpack.c.l.b16 %v3742
    %v4503 = vunpack.c.l.b16 %v3756
    %v4504 = vunpack.c.l.b16 %v3770
    %v4505 = vunpack.c.l.b16 %v3784
    %v4506 = vunpack.c.l.b16 %v3798
    %v4507 = vunpack.c.l.b16 %v3812
    %v4508 = vunpack.c.l.b16 %v3826
    %v4509 = vunpack.c.l.b16 %v3840
    %v4510 = vunpack.c.l.b16 %v3854
    %v4511 = vpack.c.b16 %v4496, %v4495
    %v4512 = vpack.c.b16 %v4498, %v4497
    %v4513 = vpack.c.b16 %v4500, %v4499
    %v4514 = vpack.c.b16 %v4502, %v4501
    %v4515 = vpack.c.b16 %v4504, %v4503
    %v4516 = vpack.c.b16 %v4506, %v4505
    %v4517 = vpack.c.b16 %v4508, %v4507
    %v4518 = vpack.c.b16 %v4510, %v4509
    %v4519 = vunpack.c.l.b16 %v3906
    %v4520 = vunpack.c.l.b16 %v3910
    %v4521 = vunpack.c.l.b16 %v3914
    %v4522 = vunpack.c.l.b16 %v3918
    %v4523 = vunpack.c.l.b16 %v3922
    %v4524 = vunpack.c.l.b16 %v3926
    %v4525 = vunpack.c.l.b16 %v3930
    %v4526 = vunpack.c.l.b16 %v3934
    %v4527 = vunpack.c.l.b16 %v3938
    %v4528 = vunpack.c.l.b16 %v3942
    %v4529 = vunpack.c.l.b16 %v3946
    %v4530 = vunpack.c.l.b16 %v3950
    %v4531 = vunpack.c.l.b16 %v3954
    %v4532 = vunpack.c.l.b16 %v3958
    %v4533 = vunpack.c.l.b16 %v3962
    %v4534 = vunpack.c.l.b16 %v3966
    %v4535 = vpack.c.b16 %v4520, %v4519
    %v4536 = vpack.c.b16 %v4522, %v4521
    %v4537 = vpack.c.b16 %v4524, %v4523
    %v4538 = vpack.c.b16 %v4526, %v4525
    %v4539 = vpack.c.b16 %v4528, %v4527
    %v4540 = vpack.c.b16 %v4530, %v4529
    %v4541 = vpack.c.b16 %v4532, %v4531
    %v4542 = vpack.c.b16 %v4534, %v4533
    %4543 = vrot.lane.b32.xlu0 %v4535, 64
    %v4544 = vpop.permute.xlu0 %4543
    %4545 = vrot.lane.b32.xlu0 %v4536, 64
    %v4546 = vpop.permute.xlu0 %4545
    %4547 = vrot.lane.b32.xlu0 %v4537, 64
    %v4548 = vpop.permute.xlu0 %4547
    %4549 = vrot.lane.b32.xlu0 %v4538, 64
    %v4550 = vpop.permute.xlu0 %4549
    %4551 = vrot.lane.b32.xlu0 %v4539, 64
    %v4552 = vpop.permute.xlu0 %4551
    %4553 = vrot.lane.b32.xlu0 %v4540, 64
    %v4554 = vpop.permute.xlu0 %4553
    %4555 = vrot.lane.b32.xlu0 %v4541, 64
    %v4556 = vpop.permute.xlu0 %4555
    %4557 = vrot.lane.b32.xlu0 %v4542, 64
    %v4558 = vpop.permute.xlu0 %4557
    %v4575 = vunpack.c.l.b16 %v3967
    %v4576 = vunpack.c.l.b16 %v3968
    %v4577 = vunpack.c.l.b16 %v3969
    %v4578 = vunpack.c.l.b16 %v3970
    %v4579 = vunpack.c.l.b16 %v3971
    %v4580 = vunpack.c.l.b16 %v3972
    %v4581 = vunpack.c.l.b16 %v3973
    %v4582 = vunpack.c.l.b16 %v3974
    %v4583 = vunpack.c.l.b16 %v3975
    %v4584 = vunpack.c.l.b16 %v3976
    %v4585 = vunpack.c.l.b16 %v3977
    %v4586 = vunpack.c.l.b16 %v3978
    %v4587 = vunpack.c.l.b16 %v3979
    %v4588 = vunpack.c.l.b16 %v3980
    %v4589 = vunpack.c.l.b16 %v3981
    %v4590 = vunpack.c.l.b16 %v3982
    %v4591 = vpack.c.b16 %v4576, %v4575
    %v4592 = vpack.c.b16 %v4578, %v4577
    %v4593 = vpack.c.b16 %v4580, %v4579
    %v4594 = vpack.c.b16 %v4582, %v4581
    %v4595 = vpack.c.b16 %v4584, %v4583
    %v4596 = vpack.c.b16 %v4586, %v4585
    %v4597 = vpack.c.b16 %v4588, %v4587
    %v4598 = vpack.c.b16 %v4590, %v4589
    %v4599 = vunpack.c.l.b16 %v4012
    %v4600 = vunpack.c.l.b16 %v4026
    %v4601 = vunpack.c.l.b16 %v4040
    %v4602 = vunpack.c.l.b16 %v4054
    %v4603 = vunpack.c.l.b16 %v4068
    %v4604 = vunpack.c.l.b16 %v4082
    %v4605 = vunpack.c.l.b16 %v4096
    %v4606 = vunpack.c.l.b16 %v4110
    %v4607 = vunpack.c.l.b16 %v4124
    %v4608 = vunpack.c.l.b16 %v4138
    %v4609 = vunpack.c.l.b16 %v4152
    %v4610 = vunpack.c.l.b16 %v4166
    %v4611 = vunpack.c.l.b16 %v4180
    %v4612 = vunpack.c.l.b16 %v4194
    %v4613 = vunpack.c.l.b16 %v4208
    %v4614 = vunpack.c.l.b16 %v4222
    %v4615 = vpack.c.b16 %v4600, %v4599
    %v4616 = vpack.c.b16 %v4602, %v4601
    %v4617 = vpack.c.b16 %v4604, %v4603
    %v4618 = vpack.c.b16 %v4606, %v4605
    %v4619 = vpack.c.b16 %v4608, %v4607
    %v4620 = vpack.c.b16 %v4610, %v4609
    %v4621 = vpack.c.b16 %v4612, %v4611
    %v4622 = vpack.c.b16 %v4614, %v4613
    %4623 = vrot.lane.b32.xlu0 %v4615, 64
    %v4624 = vpop.permute.xlu0 %4623
    %4625 = vrot.lane.b32.xlu0 %v4616, 64
    %v4626 = vpop.permute.xlu0 %4625
    %4627 = vrot.lane.b32.xlu0 %v4617, 64
    %v4628 = vpop.permute.xlu0 %4627
    %4629 = vrot.lane.b32.xlu0 %v4618, 64
    %v4630 = vpop.permute.xlu0 %4629
    %4631 = vrot.lane.b32.xlu0 %v4619, 64
    %v4632 = vpop.permute.xlu0 %4631
    %4633 = vrot.lane.b32.xlu0 %v4620, 64
    %v4634 = vpop.permute.xlu0 %4633
    %4635 = vrot.lane.b32.xlu0 %v4621, 64
    %v4636 = vpop.permute.xlu0 %4635
    %4637 = vrot.lane.b32.xlu0 %v4622, 64
    %v4638 = vpop.permute.xlu0 %4637
    %v4639 = vunpack.c.l.b16 %v4274
    %v4640 = vunpack.c.l.b16 %v4278
    %v4641 = vunpack.c.l.b16 %v4282
    %v4642 = vunpack.c.l.b16 %v4286
    %v4643 = vunpack.c.l.b16 %v4290
    %v4644 = vunpack.c.l.b16 %v4294
    %v4645 = vunpack.c.l.b16 %v4298
    %v4646 = vunpack.c.l.b16 %v4302
    %v4647 = vunpack.c.l.b16 %v4306
    %v4648 = vunpack.c.l.b16 %v4310
    %v4649 = vunpack.c.l.b16 %v4314
    %v4650 = vunpack.c.l.b16 %v4318
    %v4651 = vunpack.c.l.b16 %v4322
    %v4652 = vunpack.c.l.b16 %v4326
    %v4653 = vunpack.c.l.b16 %v4330
    %v4654 = vunpack.c.l.b16 %v4334
    %v4655 = vpack.c.b16 %v4640, %v4639
    %v4656 = vpack.c.b16 %v4642, %v4641
    %v4657 = vpack.c.b16 %v4644, %v4643
    %v4658 = vpack.c.b16 %v4646, %v4645
    %v4659 = vpack.c.b16 %v4648, %v4647
    %v4660 = vpack.c.b16 %v4650, %v4649
    %v4661 = vpack.c.b16 %v4652, %v4651
    %v4662 = vpack.c.b16 %v4654, %v4653
    %v4665 = vsel %vm2003, %v4367, %v4400
    %v4669 = vsel %vm2003, %v4368, %v4402
    %v4673 = vsel %vm2003, %v4369, %v4404
    %v4677 = vsel %vm2003, %v4370, %v4406
    %v4681 = vsel %vm2003, %v4371, %v4408
    %v4685 = vsel %vm2003, %v4372, %v4410
    %v4689 = vsel %vm2003, %v4373, %v4412
    %v4693 = vsel %vm2003, %v4374, %v4414
    %v4697 = vsel %vm2003, %v4431, %v4480
    %v4701 = vsel %vm2003, %v4432, %v4482
    %v4705 = vsel %vm2003, %v4433, %v4484
    %v4709 = vsel %vm2003, %v4434, %v4486
    %v4713 = vsel %vm2003, %v4435, %v4488
    %v4717 = vsel %vm2003, %v4436, %v4490
    %v4721 = vsel %vm2003, %v4437, %v4492
    %v4725 = vsel %vm2003, %v4438, %v4494
    %v4729 = vsel %vm2003, %v4511, %v4544
    %v4733 = vsel %vm2003, %v4512, %v4546
    %v4737 = vsel %vm2003, %v4513, %v4548
    %v4741 = vsel %vm2003, %v4514, %v4550
    %v4745 = vsel %vm2003, %v4515, %v4552
    %v4749 = vsel %vm2003, %v4516, %v4554
    %v4753 = vsel %vm2003, %v4517, %v4556
    %v4757 = vsel %vm2003, %v4518, %v4558
    %v4761 = vsel %vm2003, %v4591, %v4624
    %v4765 = vsel %vm2003, %v4592, %v4626
    %v4769 = vsel %vm2003, %v4593, %v4628
    %v4773 = vsel %vm2003, %v4594, %v4630
    %v4777 = vsel %vm2003, %v4595, %v4632
    %v4781 = vsel %vm2003, %v4596, %v4634
    %v4785 = vsel %vm2003, %v4597, %v4636
    %v4789 = vsel %vm2003, %v4598, %v4638
    %v4791 = vld [vmem:[#allocation7] sm:$0xf]
    %v4792 = vld [vmem:[#allocation7 + $0x4] sm:$0xf]
    %v4793 = vld [vmem:[#allocation7 + $0x8] sm:$0xf]
    %v4794 = vld [vmem:[#allocation7 + $0xc] sm:$0xf]
    %v4795 = vld [vmem:[#allocation7 + $0x10] sm:$0xf]
    %v4796 = vld [vmem:[#allocation7 + $0x14] sm:$0xf]
    %v4797 = vld [vmem:[#allocation7 + $0x18] sm:$0xf]
    %v4798 = vld [vmem:[#allocation7 + $0x1c] sm:$0xf]
    %v4799 = vld [vmem:[#allocation7 + $0x20] sm:$0xf]
    %v4800 = vld [vmem:[#allocation7 + $0x24] sm:$0xf]
    %v4801 = vld [vmem:[#allocation7 + $0x28] sm:$0xf]
    %v4802 = vld [vmem:[#allocation7 + $0x2c] sm:$0xf]
    %v4803 = vld [vmem:[#allocation7 + $0x30] sm:$0xf]
    %v4804 = vld [vmem:[#allocation7 + $0x34] sm:$0xf]
    %v4805 = vld [vmem:[#allocation7 + $0x38] sm:$0xf]
    %v4806 = vld [vmem:[#allocation7 + $0x3c] sm:$0xf]
    %v4807 = vld [vmem:[#allocation7 + $0x40] sm:$0xf]
    %v4808 = vld [vmem:[#allocation7 + $0x44] sm:$0xf]
    %v4809 = vld [vmem:[#allocation7 + $0x48] sm:$0xf]
    %v4810 = vld [vmem:[#allocation7 + $0x4c] sm:$0xf]
    %v4811 = vld [vmem:[#allocation7 + $0x50] sm:$0xf]
    %v4812 = vld [vmem:[#allocation7 + $0x54] sm:$0xf]
    %v4813 = vld [vmem:[#allocation7 + $0x58] sm:$0xf]
    %v4814 = vld [vmem:[#allocation7 + $0x5c] sm:$0xf]
    %v4815 = vld [vmem:[#allocation7 + $0x60] sm:$0xf]
    %v4816 = vld [vmem:[#allocation7 + $0x64] sm:$0xf]
    %v4817 = vld [vmem:[#allocation7 + $0x68] sm:$0xf]
    %v4818 = vld [vmem:[#allocation7 + $0x6c] sm:$0xf]
    %v4819 = vld [vmem:[#allocation7 + $0x70] sm:$0xf]
    %v4820 = vld [vmem:[#allocation7 + $0x74] sm:$0xf]
    %v4821 = vld [vmem:[#allocation7 + $0x78] sm:$0xf]
    %v4822 = vld [vmem:[#allocation7 + $0x7c] sm:$0xf]
    %v4823 = vld [vmem:[#allocation7 + $0x80] sm:$0xf]
    %v4824 = vld [vmem:[#allocation7 + $0x84] sm:$0xf]
    %v4825 = vld [vmem:[#allocation7 + $0x88] sm:$0xf]
    %v4826 = vld [vmem:[#allocation7 + $0x8c] sm:$0xf]
    %v4827 = vld [vmem:[#allocation7 + $0x90] sm:$0xf]
    %v4828 = vld [vmem:[#allocation7 + $0x94] sm:$0xf]
    %v4829 = vld [vmem:[#allocation7 + $0x98] sm:$0xf]
    %v4830 = vld [vmem:[#allocation7 + $0x9c] sm:$0xf]
    %v4831 = vld [vmem:[#allocation7 + $0xa0] sm:$0xf]
    %v4832 = vld [vmem:[#allocation7 + $0xa4] sm:$0xf]
    %v4833 = vld [vmem:[#allocation7 + $0xa8] sm:$0xf]
    %v4834 = vld [vmem:[#allocation7 + $0xac] sm:$0xf]
    %v4835 = vld [vmem:[#allocation7 + $0xb0] sm:$0xf]
    %v4836 = vld [vmem:[#allocation7 + $0xb4] sm:$0xf]
    %v4837 = vld [vmem:[#allocation7 + $0xb8] sm:$0xf]
    %v4838 = vld [vmem:[#allocation7 + $0xbc] sm:$0xf]
    %v4839 = vld [vmem:[#allocation7 + $0xc0] sm:$0xf]
    %v4840 = vld [vmem:[#allocation7 + $0xc4] sm:$0xf]
    %v4841 = vld [vmem:[#allocation7 + $0xc8] sm:$0xf]
    %v4842 = vld [vmem:[#allocation7 + $0xcc] sm:$0xf]
    %v4843 = vld [vmem:[#allocation7 + $0xd0] sm:$0xf]
    %v4844 = vld [vmem:[#allocation7 + $0xd4] sm:$0xf]
    %v4845 = vld [vmem:[#allocation7 + $0xd8] sm:$0xf]
    %v4846 = vld [vmem:[#allocation7 + $0xdc] sm:$0xf]
    %v4847 = vld [vmem:[#allocation7 + $0xe0] sm:$0xf]
    %v4848 = vld [vmem:[#allocation7 + $0xe4] sm:$0xf]
    %v4849 = vld [vmem:[#allocation7 + $0xe8] sm:$0xf]
    %v4850 = vld [vmem:[#allocation7 + $0xec] sm:$0xf]
    %v4851 = vld [vmem:[#allocation7 + $0xf0] sm:$0xf]
    %v4852 = vld [vmem:[#allocation7 + $0xf4] sm:$0xf]
    %v4853 = vld [vmem:[#allocation7 + $0xf8] sm:$0xf]
    %v4854 = vld [vmem:[#allocation7 + $0xfc] sm:$0xf]
    %v4855 = vld [vmem:[#allocation7 + $0x100] sm:$0xf]
    %v4856 = vld [vmem:[#allocation7 + $0x104] sm:$0xf]
    %v4857 = vld [vmem:[#allocation7 + $0x108] sm:$0xf]
    %v4858 = vld [vmem:[#allocation7 + $0x10c] sm:$0xf]
    %v4859 = vld [vmem:[#allocation7 + $0x110] sm:$0xf]
    %v4860 = vld [vmem:[#allocation7 + $0x114] sm:$0xf]
    %v4861 = vld [vmem:[#allocation7 + $0x118] sm:$0xf]
    %v4862 = vld [vmem:[#allocation7 + $0x11c] sm:$0xf]
    %v4935 = vunpack.c.l.b16 %v4791
    %v4936 = vunpack.c.l.b16 %v4792
    %v4937 = vunpack.c.l.b16 %v4793
    %v4938 = vunpack.c.l.b16 %v4794
    %v4939 = vunpack.c.l.b16 %v4795
    %v4940 = vunpack.c.l.b16 %v4796
    %v4941 = vunpack.c.l.b16 %v4797
    %v4942 = vunpack.c.l.b16 %v4798
    %v4943 = vunpack.c.l.b16 %v4799
    %v4944 = vunpack.c.l.b16 %v4800
    %v4945 = vunpack.c.l.b16 %v4801
    %v4946 = vunpack.c.l.b16 %v4802
    %v4947 = vunpack.c.l.b16 %v4803
    %v4948 = vunpack.c.l.b16 %v4804
    %v4949 = vunpack.c.l.b16 %v4805
    %v4950 = vunpack.c.l.b16 %v4806
    %v4951 = vunpack.c.l.b16 %v4807
    %v4952 = vunpack.c.l.b16 %v4808
    %v4953 = vunpack.c.l.b16 %v4809
    %v4954 = vunpack.c.l.b16 %v4810
    %v4955 = vunpack.c.l.b16 %v4811
    %v4956 = vunpack.c.l.b16 %v4812
    %v4957 = vunpack.c.l.b16 %v4813
    %v4958 = vunpack.c.l.b16 %v4814
    %v4959 = vunpack.c.l.b16 %v4815
    %v4960 = vunpack.c.l.b16 %v4816
    %v4961 = vunpack.c.l.b16 %v4817
    %v4962 = vunpack.c.l.b16 %v4818
    %v4963 = vunpack.c.l.b16 %v4819
    %v4964 = vunpack.c.l.b16 %v4820
    %v4965 = vunpack.c.l.b16 %v4821
    %v4966 = vunpack.c.l.b16 %v4822
    %v4967 = vunpack.c.l.b16 %v4823
    %v4968 = vunpack.c.l.b16 %v4824
    %v4969 = vunpack.c.l.b16 %v4825
    %v4970 = vunpack.c.l.b16 %v4826
    %v4971 = vunpack.c.l.b16 %v4827
    %v4972 = vunpack.c.l.b16 %v4828
    %v4973 = vunpack.c.l.b16 %v4829
    %v4974 = vunpack.c.l.b16 %v4830
    %v4975 = vunpack.c.l.b16 %v4831
    %v4976 = vunpack.c.l.b16 %v4832
    %v4977 = vunpack.c.l.b16 %v4833
    %v4978 = vunpack.c.l.b16 %v4834
    %v4979 = vunpack.c.l.b16 %v4835
    %v4980 = vunpack.c.l.b16 %v4836
    %v4981 = vunpack.c.l.b16 %v4837
    %v4982 = vunpack.c.l.b16 %v4838
    %v4983 = vunpack.c.l.b16 %v4839
    %v4984 = vunpack.c.l.b16 %v4840
    %v4985 = vunpack.c.l.b16 %v4841
    %v4986 = vunpack.c.l.b16 %v4842
    %v4987 = vunpack.c.l.b16 %v4843
    %v4988 = vunpack.c.l.b16 %v4844
    %v4989 = vunpack.c.l.b16 %v4845
    %v4990 = vunpack.c.l.b16 %v4846
    %v4991 = vunpack.c.l.b16 %v4847
    %v4992 = vunpack.c.l.b16 %v4848
    %v4993 = vunpack.c.l.b16 %v4849
    %v4994 = vunpack.c.l.b16 %v4850
    %v4995 = vunpack.c.l.b16 %v4851
    %v4996 = vunpack.c.l.b16 %v4852
    %v4997 = vunpack.c.l.b16 %v4853
    %v4998 = vunpack.c.l.b16 %v4854
    %v4999 = vunpack.c.l.b16 %v4855
    %v5000 = vunpack.c.l.b16 %v4856
    %v5001 = vunpack.c.l.b16 %v4857
    %v5002 = vunpack.c.l.b16 %v4858
    %v5003 = vunpack.c.l.b16 %v4859
    %v5004 = vunpack.c.l.b16 %v4860
    %v5005 = vunpack.c.l.b16 %v4861
    %v5006 = vunpack.c.l.b16 %v4862
    %v5007 = vpack.c.b16 %v4936, %v4935
    %v5008 = vpack.c.b16 %v4938, %v4937
    %v5009 = vpack.c.b16 %v4940, %v4939
    %v5010 = vpack.c.b16 %v4942, %v4941
    %v5011 = vpack.c.b16 %v4944, %v4943
    %v5012 = vpack.c.b16 %v4946, %v4945
    %v5013 = vpack.c.b16 %v4948, %v4947
    %v5014 = vpack.c.b16 %v4950, %v4949
    %v5015 = vpack.c.b16 %v4952, %v4951
    %v5016 = vpack.c.b16 %v4954, %v4953
    %v5017 = vpack.c.b16 %v4956, %v4955
    %v5018 = vpack.c.b16 %v4958, %v4957
    %v5019 = vpack.c.b16 %v4960, %v4959
    %v5020 = vpack.c.b16 %v4962, %v4961
    %v5021 = vpack.c.b16 %v4964, %v4963
    %v5022 = vpack.c.b16 %v4966, %v4965
    %v5023 = vpack.c.b16 %v4968, %v4967
    %v5024 = vpack.c.b16 %v4970, %v4969
    %v5025 = vpack.c.b16 %v4972, %v4971
    %v5026 = vpack.c.b16 %v4974, %v4973
    %v5027 = vpack.c.b16 %v4976, %v4975
    %v5028 = vpack.c.b16 %v4978, %v4977
    %v5029 = vpack.c.b16 %v4980, %v4979
    %v5030 = vpack.c.b16 %v4982, %v4981
    %v5031 = vpack.c.b16 %v4984, %v4983
    %v5032 = vpack.c.b16 %v4986, %v4985
    %v5033 = vpack.c.b16 %v4988, %v4987
    %v5034 = vpack.c.b16 %v4990, %v4989
    %v5035 = vpack.c.b16 %v4992, %v4991
    %v5036 = vpack.c.b16 %v4994, %v4993
    %v5037 = vpack.c.b16 %v4996, %v4995
    %v5038 = vpack.c.b16 %v4998, %v4997
    %v5039 = vpack.c.b16 %v5000, %v4999
    %v5040 = vpack.c.b16 %v5002, %v5001
    %v5041 = vpack.c.b16 %v5004, %v5003
    %v5042 = vpack.c.b16 %v5006, %v5005
    %v5080 = vsel %vm2003, %v4655, 0
    %v5083 = vsel %vm2003, %v4656, 0
    %v5086 = vsel %vm2003, %v4657, 0
    %v5089 = vsel %vm2003, %v4658, 0
    %v5092 = vsel %vm2003, %v4659, 0
    %v5095 = vsel %vm2003, %v4660, 0
    %v5098 = vsel %vm2003, %v4661, 0
    %v5101 = vsel %vm2003, %v4662, 0
    %5103 = vmatprep.subr.bf16.mxu0 0
    %5104 = vmatpush1.bf16.msra.mxu0 %v5007
    %5105 = vmatprep.subr.bf16.mxu0 0
    %5106 = vmatpush1.bf16.msra.mxu0 %v5008
    %5107 = vmatprep.subr.bf16.mxu0 0
    %5108 = vmatpush1.bf16.msra.mxu0 %v5009
    %5109 = vmatprep.subr.bf16.mxu0 0
    %5110 = vmatpush1.bf16.msra.mxu0 %v5010
    %5111 = vmatprep.subr.bf16.mxu0 0
    %5112 = vmatpush1.bf16.msra.mxu0 %v5011
    %5113 = vmatprep.subr.bf16.mxu0 0
    %5114 = vmatpush1.bf16.msra.mxu0 %v5012
    %5115 = vmatprep.subr.bf16.mxu0 0
    %5116 = vmatpush1.bf16.msra.mxu0 %v5013
    %5117 = vmatprep.subr.bf16.mxu0 0
    %5118 = vmatpush1.bf16.msra.mxu0 %v5014
    %5119 = vmatprep.subr.bf16.mxu0 0
    %5120 = vmatpush1.bf16.msra.mxu0 %v5015
    %5121 = vmatprep.subr.bf16.mxu0 0
    %5122 = vmatpush1.bf16.msra.mxu0 %v5016
    %5123 = vmatprep.subr.bf16.mxu0 0
    %5124 = vmatpush1.bf16.msra.mxu0 %v5017
    %5125 = vmatprep.subr.bf16.mxu0 0
    %5126 = vmatpush1.bf16.msra.mxu0 %v5018
    %5127 = vmatprep.subr.bf16.mxu0 0
    %5128 = vmatpush1.bf16.msra.mxu0 %v5019
    %5129 = vmatprep.subr.bf16.mxu0 0
    %5130 = vmatpush1.bf16.msra.mxu0 %v5020
    %5131 = vmatprep.subr.bf16.mxu0 0
    %5132 = vmatpush1.bf16.msra.mxu0 %v5021
    %5133 = vmatprep.subr.bf16.mxu0 0
    %5134 = vmatpush1.bf16.msra.mxu0 %v5022
    %5135 = vmatprep.mubr.bf16.mxu0 %v4697
    %5136 = vmatmul.mubr.bf16.gmra.mrb[0].mxu0 %v4665
    %v5137 = vpop.f32.mrb[0].mxu0
    %v5138 = vadd.f32 0.0, %v5137
    %v5139 = vpop.f32.mrb[0].mxu0
    %v5140 = vpop.f32.mrb[0].mxu0
    %v5141 = vadd.f32 0.0, %v5140
    %v5142 = vpop.f32.mrb[0].mxu0
    %5143 = vmatprep.mubr.bf16.mxu0 %v4701
    %5144 = vmatmul.mubr.bf16.gmra.mrb[0].mxu0 %v4669
    %v5145 = vpop.f32.mrb[0].mxu0
    %v5146 = vadd.f32 0.0, %v5145
    %v5147 = vpop.f32.mrb[0].mxu0
    %v5148 = vpop.f32.mrb[0].mxu0
    %v5149 = vadd.f32 0.0, %v5148
    %v5150 = vpop.f32.mrb[0].mxu0
    %5151 = vmatprep.mubr.bf16.mxu0 %v4705
    %5152 = vmatmul.mubr.bf16.gmra.mrb[0].mxu0 %v4673
    %v5153 = vpop.f32.mrb[0].mxu0
    %v5154 = vadd.f32 0.0, %v5153
    %v5155 = vpop.f32.mrb[0].mxu0
    %v5156 = vpop.f32.mrb[0].mxu0
    %v5157 = vadd.f32 0.0, %v5156
    %v5158 = vpop.f32.mrb[0].mxu0
    %5159 = vmatprep.mubr.bf16.mxu0 %v4709
    %5160 = vmatmul.mubr.bf16.gmra.mrb[0].mxu0 %v4677
    %v5161 = vpop.f32.mrb[0].mxu0
    %v5162 = vadd.f32 0.0, %v5161
    %v5163 = vpop.f32.mrb[0].mxu0
    %v5164 = vpop.f32.mrb[0].mxu0
    %v5165 = vadd.f32 0.0, %v5164
    %v5166 = vpop.f32.mrb[0].mxu0
    %5167 = vmatprep.mubr.bf16.mxu0 %v4713
    %5168 = vmatmul.mubr.bf16.gmra.mrb[0].mxu0 %v4681
    %v5169 = vpop.f32.mrb[0].mxu0
    %v5170 = vadd.f32 0.0, %v5169
    %v5171 = vpop.f32.mrb[0].mxu0
    %v5172 = vpop.f32.mrb[0].mxu0
    %v5173 = vadd.f32 0.0, %v5172
    %v5174 = vpop.f32.mrb[0].mxu0
    %5175 = vmatprep.mubr.bf16.mxu0 %v4717
    %5176 = vmatmul.mubr.bf16.gmra.mrb[0].mxu0 %v4685
    %v5177 = vpop.f32.mrb[0].mxu0
    %v5178 = vadd.f32 0.0, %v5177
    %v5179 = vpop.f32.mrb[0].mxu0
    %v5180 = vpop.f32.mrb[0].mxu0
    %v5181 = vadd.f32 0.0, %v5180
    %v5182 = vpop.f32.mrb[0].mxu0
    %5183 = vmatprep.mubr.bf16.mxu0 %v4721
    %5184 = vmatmul.mubr.bf16.gmra.mrb[0].mxu0 %v4689
    %v5185 = vpop.f32.mrb[0].mxu0
    %v5186 = vadd.f32 0.0, %v5185
    %v5187 = vpop.f32.mrb[0].mxu0
    %v5188 = vpop.f32.mrb[0].mxu0
    %v5189 = vadd.f32 0.0, %v5188
    %v5190 = vpop.f32.mrb[0].mxu0
    %5191 = vmatprep.mubr.bf16.mxu0 %v4725
    %5192 = vmatmul.mubr.bf16.gmra.mrb[0].mxu0 %v4693
    %v5193 = vpop.f32.mrb[0].mxu0
    %v5194 = vadd.f32 0.0, %v5193
    %v5195 = vpop.f32.mrb[0].mxu0
    %v5196 = vpop.f32.mrb[0].mxu0
    %v5197 = vadd.f32 0.0, %v5196
    %v5198 = vpop.f32.mrb[0].mxu0
    %5199 = vdwg.mxu0
    %5200 = vmatprep.subr.bf16.mxu0 0
    %5201 = vmatpush1.bf16.msra.mxu0 %v5023
    %5202 = vmatprep.subr.bf16.mxu0 0
    %5203 = vmatpush1.bf16.msra.mxu0 %v5024
    %5204 = vmatprep.subr.bf16.mxu0 0
    %5205 = vmatpush1.bf16.msra.mxu0 %v5025
    %5206 = vmatprep.subr.bf16.mxu0 0
    %5207 = vmatpush1.bf16.msra.mxu0 %v5026
    %5208 = vmatprep.subr.bf16.mxu0 0
    %5209 = vmatpush1.bf16.msra.mxu0 %v5027
    %5210 = vmatprep.subr.bf16.mxu0 0
    %5211 = vmatpush1.bf16.msra.mxu0 %v5028
    %5212 = vmatprep.subr.bf16.mxu0 0
    %5213 = vmatpush1.bf16.msra.mxu0 %v5029
    %5214 = vmatprep.subr.bf16.mxu0 0
    %5215 = vmatpush1.bf16.msra.mxu0 %v5030
    %5216 = vmatprep.subr.bf16.mxu0 0
    %5217 = vmatpush1.bf16.msra.mxu0 %v5031
    %5218 = vmatprep.subr.bf16.mxu0 0
    %5219 = vmatpush1.bf16.msra.mxu0 %v5032
    %5220 = vmatprep.subr.bf16.mxu0 0
    %5221 = vmatpush1.bf16.msra.mxu0 %v5033
    %5222 = vmatprep.subr.bf16.mxu0 0
    %5223 = vmatpush1.bf16.msra.mxu0 %v5034
    %5224 = vmatprep.subr.bf16.mxu0 0
    %5225 = vmatpush1.bf16.msra.mxu0 %v5035
    %5226 = vmatprep.subr.bf16.mxu0 0
    %5227 = vmatpush1.bf16.msra.mxu0 %v5036
    %5228 = vmatprep.subr.bf16.mxu0 0
    %5229 = vmatpush1.bf16.msra.mxu0 %v5037
    %5230 = vmatprep.subr.bf16.mxu0 0
    %5231 = vmatpush1.bf16.msra.mxu0 %v5038
    %5232 = vmatprep.mubr.bf16.mxu0 %v4761
    %5233 = vmatmul.mubr.bf16.gmra.mrb[0].mxu0 %v4729
    %v5234 = vpop.f32.mrb[0].mxu0
    %v5235 = vadd.f32 %v5138, %v5234
    %v5236 = vpop.f32.mrb[0].mxu0
    %v5237 = vpop.f32.mrb[0].mxu0
    %v5238 = vadd.f32 %v5141, %v5237
    %v5239 = vpop.f32.mrb[0].mxu0
    %5240 = vmatprep.mubr.bf16.mxu0 %v4765
    %5241 = vmatmul.mubr.bf16.gmra.mrb[0].mxu0 %v4733
    %v5242 = vpop.f32.mrb[0].mxu0
    %v5243 = vadd.f32 %v5146, %v5242
    %v5244 = vpop.f32.mrb[0].mxu0
    %v5245 = vpop.f32.mrb[0].mxu0
    %v5246 = vadd.f32 %v5149, %v5245
    %v5247 = vpop.f32.mrb[0].mxu0
    %5248 = vmatprep.mubr.bf16.mxu0 %v4769
    %5249 = vmatmul.mubr.bf16.gmra.mrb[0].mxu0 %v4737
    %v5250 = vpop.f32.mrb[0].mxu0
    %v5251 = vadd.f32 %v5154, %v5250
    %v5252 = vpop.f32.mrb[0].mxu0
    %v5253 = vpop.f32.mrb[0].mxu0
    %v5254 = vadd.f32 %v5157, %v5253
    %v5255 = vpop.f32.mrb[0].mxu0
    %5256 = vmatprep.mubr.bf16.mxu0 %v4773
    %5257 = vmatmul.mubr.bf16.gmra.mrb[0].mxu0 %v4741
    %v5258 = vpop.f32.mrb[0].mxu0
    %v5259 = vadd.f32 %v5162, %v5258
    %v5260 = vpop.f32.mrb[0].mxu0
    %v5261 = vpop.f32.mrb[0].mxu0
    %v5262 = vadd.f32 %v5165, %v5261
    %v5263 = vpop.f32.mrb[0].mxu0
    %5264 = vmatprep.mubr.bf16.mxu0 %v4777
    %5265 = vmatmul.mubr.bf16.gmra.mrb[0].mxu0 %v4745
    %v5266 = vpop.f32.mrb[0].mxu0
    %v5267 = vadd.f32 %v5170, %v5266
    %v5268 = vpop.f32.mrb[0].mxu0
    %v5269 = vpop.f32.mrb[0].mxu0
    %v5270 = vadd.f32 %v5173, %v5269
    %v5271 = vpop.f32.mrb[0].mxu0
    %5272 = vmatprep.mubr.bf16.mxu0 %v4781
    %5273 = vmatmul.mubr.bf16.gmra.mrb[0].mxu0 %v4749
    %v5274 = vpop.f32.mrb[0].mxu0
    %v5275 = vadd.f32 %v5178, %v5274
    %v5276 = vpop.f32.mrb[0].mxu0
    %v5277 = vpop.f32.mrb[0].mxu0
    %v5278 = vadd.f32 %v5181, %v5277
    %v5279 = vpop.f32.mrb[0].mxu0
    %5280 = vmatprep.mubr.bf16.mxu0 %v4785
    %5281 = vmatmul.mubr.bf16.gmra.mrb[0].mxu0 %v4753
    %v5282 = vpop.f32.mrb[0].mxu0
    %v5283 = vadd.f32 %v5186, %v5282
    %v5284 = vpop.f32.mrb[0].mxu0
    %v5285 = vpop.f32.mrb[0].mxu0
    %v5286 = vadd.f32 %v5189, %v5285
    %v5287 = vpop.f32.mrb[0].mxu0
    %5288 = vmatprep.mubr.bf16.mxu0 %v4789
    %5289 = vmatmul.mubr.bf16.gmra.mrb[0].mxu0 %v4757
    %v5290 = vpop.f32.mrb[0].mxu0
    %v5291 = vadd.f32 %v5194, %v5290
    %v5292 = vpop.f32.mrb[0].mxu0
    %v5293 = vpop.f32.mrb[0].mxu0
    %v5294 = vadd.f32 %v5197, %v5293
    %v5295 = vpop.f32.mrb[0].mxu0
    %5296 = vdwg.mxu0
    %5297 = vmatprep.subr.bf16.mxu0 0
    %5298 = vmatpush1.bf16.msra.mxu0 %v5039
    %5299 = vmatprep.subr.bf16.mxu0 0
    %5300 = vmatpush1.bf16.msra.mxu0 %v5040
    %5301 = vmatprep.subr.bf16.mxu0 0
    %5302 = vmatpush1.bf16.msra.mxu0 %v5041
    %5303 = vmatprep.subr.bf16.mxu0 0
    %5304 = vmatpush1.bf16.msra.mxu0 %v5042
    %5305 = vmatprep.subr.bf16.mxu0 0
    %5306 = vmatpush1.bf16.msra.mxu0 0
    %5307 = vmatprep.subr.bf16.mxu0 0
    %5308 = vmatpush1.bf16.msra.mxu0 0
    %5309 = vmatprep.subr.bf16.mxu0 0
    %5310 = vmatpush1.bf16.msra.mxu0 0
    %5311 = vmatprep.subr.bf16.mxu0 0
    %5312 = vmatpush1.bf16.msra.mxu0 0
    %5313 = vmatprep.subr.bf16.mxu0 0
    %5314 = vmatpush1.bf16.msra.mxu0 0
    %5315 = vmatprep.subr.bf16.mxu0 0
    %5316 = vmatpush1.bf16.msra.mxu0 0
    %5317 = vmatprep.subr.bf16.mxu0 0
    %5318 = vmatpush1.bf16.msra.mxu0 0
    %5319 = vmatprep.subr.bf16.mxu0 0
    %5320 = vmatpush1.bf16.msra.mxu0 0
    %5321 = vmatprep.subr.bf16.mxu0 0
    %5322 = vmatpush1.bf16.msra.mxu0 0
    %5323 = vmatprep.subr.bf16.mxu0 0
    %5324 = vmatpush1.bf16.msra.mxu0 0
    %5325 = vmatprep.subr.bf16.mxu0 0
    %5326 = vmatpush1.bf16.msra.mxu0 0
    %5327 = vmatprep.subr.bf16.mxu0 0
    %5328 = vmatpush1.bf16.msra.mxu0 0
    %5329 = vmatprep.mubr.bf16.mxu0 0
    %5330 = vmatmul.mubr.bf16.gmra.mrb[0].mxu0 %v5080
    %v5331 = vpop.f32.mrb[0].mxu0
    %v5332 = vadd.f32 %v5235, %v5331
    %v5333 = vpop.f32.mrb[0].mxu0
    %v5334 = vpop.f32.mrb[0].mxu0
    %v5335 = vadd.f32 %v5238, %v5334
    %v5336 = vpop.f32.mrb[0].mxu0
    %5337 = vmatprep.mubr.bf16.mxu0 0
    %5338 = vmatmul.mubr.bf16.gmra.mrb[0].mxu0 %v5083
    %v5339 = vpop.f32.mrb[0].mxu0
    %v5340 = vadd.f32 %v5243, %v5339
    %v5341 = vpop.f32.mrb[0].mxu0
    %v5342 = vpop.f32.mrb[0].mxu0
    %v5343 = vadd.f32 %v5246, %v5342
    %v5344 = vpop.f32.mrb[0].mxu0
    %5345 = vmatprep.mubr.bf16.mxu0 0
    %5346 = vmatmul.mubr.bf16.gmra.mrb[0].mxu0 %v5086
    %v5347 = vpop.f32.mrb[0].mxu0
    %v5348 = vadd.f32 %v5251, %v5347
    %v5349 = vpop.f32.mrb[0].mxu0
    %v5350 = vpop.f32.mrb[0].mxu0
    %v5351 = vadd.f32 %v5254, %v5350
    %v5352 = vpop.f32.mrb[0].mxu0
    %5353 = vmatprep.mubr.bf16.mxu0 0
    %5354 = vmatmul.mubr.bf16.gmra.mrb[0].mxu0 %v5089
    %v5355 = vpop.f32.mrb[0].mxu0
    %v5356 = vadd.f32 %v5259, %v5355
    %v5357 = vpop.f32.mrb[0].mxu0
    %v5358 = vpop.f32.mrb[0].mxu0
    %v5359 = vadd.f32 %v5262, %v5358
    %v5360 = vpop.f32.mrb[0].mxu0
    %5361 = vmatprep.mubr.bf16.mxu0 0
    %5362 = vmatmul.mubr.bf16.gmra.mrb[0].mxu0 %v5092
    %v5363 = vpop.f32.mrb[0].mxu0
    %v5364 = vadd.f32 %v5267, %v5363
    %v5365 = vpop.f32.mrb[0].mxu0
    %v5366 = vpop.f32.mrb[0].mxu0
    %v5367 = vadd.f32 %v5270, %v5366
    %v5368 = vpop.f32.mrb[0].mxu0
    %5369 = vmatprep.mubr.bf16.mxu0 0
    %5370 = vmatmul.mubr.bf16.gmra.mrb[0].mxu0 %v5095
    %v5371 = vpop.f32.mrb[0].mxu0
    %v5372 = vadd.f32 %v5275, %v5371
    %v5373 = vpop.f32.mrb[0].mxu0
    %v5374 = vpop.f32.mrb[0].mxu0
    %v5375 = vadd.f32 %v5278, %v5374
    %v5376 = vpop.f32.mrb[0].mxu0
    %5377 = vmatprep.mubr.bf16.mxu0 0
    %5378 = vmatmul.mubr.bf16.gmra.mrb[0].mxu0 %v5098
    %v5379 = vpop.f32.mrb[0].mxu0
    %v5380 = vadd.f32 %v5283, %v5379
    %v5381 = vpop.f32.mrb[0].mxu0
    %v5382 = vpop.f32.mrb[0].mxu0
    %v5383 = vadd.f32 %v5286, %v5382
    %v5384 = vpop.f32.mrb[0].mxu0
    %5385 = vmatprep.mubr.bf16.mxu0 0
    %5386 = vmatmul.mubr.bf16.gmra.mrb[0].mxu0 %v5101
    %v5387 = vpop.f32.mrb[0].mxu0
    %v5388 = vadd.f32 %v5291, %v5387
    %v5389 = vpop.f32.mrb[0].mxu0
    %v5390 = vpop.f32.mrb[0].mxu0
    %v5391 = vadd.f32 %v5294, %v5390
    %v5392 = vpop.f32.mrb[0].mxu0
    %5393 = vdwg.mxu0
    %v5394 = vmax.f32 %v5332, 0.0
    %v5395 = vmax.f32 %v5335, 0.0
    %v5396 = vmax.f32 %v5340, 0.0
    %v5397 = vmax.f32 %v5343, 0.0
    %v5398 = vmax.f32 %v5348, 0.0
    %v5399 = vmax.f32 %v5351, 0.0
    %v5400 = vmax.f32 %v5356, 0.0
    %v5401 = vmax.f32 %v5359, 0.0
    %v5402 = vmax.f32 %v5364, 0.0
    %v5403 = vmax.f32 %v5367, 0.0
    %v5404 = vmax.f32 %v5372, 0.0
    %v5405 = vmax.f32 %v5375, 0.0
    %v5406 = vmax.f32 %v5380, 0.0
    %v5407 = vmax.f32 %v5383, 0.0
    %v5408 = vmax.f32 %v5388, 0.0
    %v5409 = vmax.f32 %v5391, 0.0
    %v5410 = vpack.c.bf16 %v5395, %v5394
    %v5411 = vpack.c.bf16 %v5397, %v5396
    %v5412 = vpack.c.bf16 %v5399, %v5398
    %v5413 = vpack.c.bf16 %v5401, %v5400
    %v5414 = vpack.c.bf16 %v5403, %v5402
    %v5415 = vpack.c.bf16 %v5405, %v5404
    %v5416 = vpack.c.bf16 %v5407, %v5406
    %v5417 = vpack.c.bf16 %v5409, %v5408
    %v5418 = vld [vmem:[%s4] sm:$0xf]
    %v5419 = vld [vmem:[%s4 + $0x4] sm:$0xf]
    %v5420 = vld [vmem:[%s4 + $0x8] sm:$0xf]
    %v5421 = vld [vmem:[%s4 + $0xc] sm:$0xf]
    %v5422 = vld [vmem:[%s4 + $0x10] sm:$0xf]
    %v5423 = vld [vmem:[%s4 + $0x14] sm:$0xf]
    %v5424 = vld [vmem:[%s4 + $0x18] sm:$0xf]
    %v5425 = vld [vmem:[%s4 + $0x1c] sm:$0xf]
    %v5434 = vunpack.c.l.b16 %v5418
    %v5435 = vunpack.c.l.b16 %v5419
    %v5436 = vunpack.c.l.b16 %v5420
    %v5437 = vunpack.c.l.b16 %v5421
    %v5438 = vunpack.c.l.b16 %v5422
    %v5439 = vunpack.c.l.b16 %v5423
    %v5440 = vunpack.c.l.b16 %v5424
    %v5441 = vunpack.c.l.b16 %v5425
    %v5442 = vpack.c.b16 %v5435, %v5434
    %v5443 = vpack.c.b16 %v5437, %v5436
    %v5444 = vpack.c.b16 %v5439, %v5438
    %v5445 = vpack.c.b16 %v5441, %v5440
    %v5451 = vsel %vm2003, %v5410, 0
    %v5454 = vsel %vm2003, %v5411, 0
    %v5457 = vsel %vm2003, %v5412, 0
    %v5460 = vsel %vm2003, %v5413, 0
    %v5463 = vsel %vm2003, %v5414, 0
    %v5466 = vsel %vm2003, %v5415, 0
    %v5469 = vsel %vm2003, %v5416, 0
    %v5472 = vsel %vm2003, %v5417, 0
    %5474 = vmatprep.subr.bf16.mxu0 0
    %5475 = vmatpush1.bf16.msra.mxu0 %v5442
    %5476 = vmatprep.subr.bf16.mxu0 0
    %5477 = vmatpush1.bf16.msra.mxu0 %v5443
    %5478 = vmatprep.subr.bf16.mxu0 0
    %5479 = vmatpush1.bf16.msra.mxu0 %v5444
    %5480 = vmatprep.subr.bf16.mxu0 0
    %5481 = vmatpush1.bf16.msra.mxu0 %v5445
    %5482 = vmatprep.subr.bf16.mxu0 0
    %5483 = vmatpush1.bf16.msra.mxu0 0
    %5484 = vmatprep.subr.bf16.mxu0 0
    %5485 = vmatpush1.bf16.msra.mxu0 0
    %5486 = vmatprep.subr.bf16.mxu0 0
    %5487 = vmatpush1.bf16.msra.mxu0 0
    %5488 = vmatprep.subr.bf16.mxu0 0
    %5489 = vmatpush1.bf16.msra.mxu0 0
    %5490 = vmatprep.subr.bf16.mxu0 0
    %5491 = vmatpush1.bf16.msra.mxu0 0
    %5492 = vmatprep.subr.bf16.mxu0 0
    %5493 = vmatpush1.bf16.msra.mxu0 0
    %5494 = vmatprep.subr.bf16.mxu0 0
    %5495 = vmatpush1.bf16.msra.mxu0 0
    %5496 = vmatprep.subr.bf16.mxu0 0
    %5497 = vmatpush1.bf16.msra.mxu0 0
    %5498 = vmatprep.subr.bf16.mxu0 0
    %5499 = vmatpush1.bf16.msra.mxu0 0
    %5500 = vmatprep.subr.bf16.mxu0 0
    %5501 = vmatpush1.bf16.msra.mxu0 0
    %5502 = vmatprep.subr.bf16.mxu0 0
    %5503 = vmatpush1.bf16.msra.mxu0 0
    %5504 = vmatprep.subr.bf16.mxu0 0
    %5505 = vmatpush1.bf16.msra.mxu0 0
    %5506 = vmatprep.mubr.bf16.mxu0 0
    %5507 = vmatmul.mubr.bf16.gmra.mrb[0].mxu0 %v5451
    %v5508 = vpop.f32.mrb[0].mxu0
    %v5509 = vadd.f32 %v2850, %v5508
    %v5510 = vpop.f32.mrb[0].mxu0
    %v5511 = vpop.f32.mrb[0].mxu0
    %v5512 = vadd.f32 %v2853, %v5511
    %v5513 = vpop.f32.mrb[0].mxu0
    %5514 = vmatprep.mubr.bf16.mxu0 0
    %5515 = vmatmul.mubr.bf16.gmra.mrb[0].mxu0 %v5454
    %v5516 = vpop.f32.mrb[0].mxu0
    %v5517 = vadd.f32 %v2858, %v5516
    %v5518 = vpop.f32.mrb[0].mxu0
    %v5519 = vpop.f32.mrb[0].mxu0
    %v5520 = vadd.f32 %v2861, %v5519
    %v5521 = vpop.f32.mrb[0].mxu0
    %5522 = vmatprep.mubr.bf16.mxu0 0
    %5523 = vmatmul.mubr.bf16.gmra.mrb[0].mxu0 %v5457
    %v5524 = vpop.f32.mrb[0].mxu0
    %v5525 = vadd.f32 %v2866, %v5524
    %v5526 = vpop.f32.mrb[0].mxu0
    %v5527 = vpop.f32.mrb[0].mxu0
    %v5528 = vadd.f32 %v2869, %v5527
    %v5529 = vpop.f32.mrb[0].mxu0
    %5530 = vmatprep.mubr.bf16.mxu0 0
    %5531 = vmatmul.mubr.bf16.gmra.mrb[0].mxu0 %v5460
    %v5532 = vpop.f32.mrb[0].mxu0
    %v5533 = vadd.f32 %v2874, %v5532
    %v5534 = vpop.f32.mrb[0].mxu0
    %v5535 = vpop.f32.mrb[0].mxu0
    %v5536 = vadd.f32 %v2877, %v5535
    %v5537 = vpop.f32.mrb[0].mxu0
    %5538 = vmatprep.mubr.bf16.mxu0 0
    %5539 = vmatmul.mubr.bf16.gmra.mrb[0].mxu0 %v5463
    %v5540 = vpop.f32.mrb[0].mxu0
    %v5541 = vadd.f32 %v2882, %v5540
    %v5542 = vpop.f32.mrb[0].mxu0
    %v5543 = vpop.f32.mrb[0].mxu0
    %v5544 = vadd.f32 %v2885, %v5543
    %v5545 = vpop.f32.mrb[0].mxu0
    %5546 = vmatprep.mubr.bf16.mxu0 0
    %5547 = vmatmul.mubr.bf16.gmra.mrb[0].mxu0 %v5466
    %v5548 = vpop.f32.mrb[0].mxu0
    %v5549 = vadd.f32 %v2890, %v5548
    %v5550 = vpop.f32.mrb[0].mxu0
    %v5551 = vpop.f32.mrb[0].mxu0
    %v5552 = vadd.f32 %v2893, %v5551
    %v5553 = vpop.f32.mrb[0].mxu0
    %5554 = vmatprep.mubr.bf16.mxu0 0
    %5555 = vmatmul.mubr.bf16.gmra.mrb[0].mxu0 %v5469
    %v5556 = vpop.f32.mrb[0].mxu0
    %v5557 = vadd.f32 %v2898, %v5556
    %v5558 = vpop.f32.mrb[0].mxu0
    %v5559 = vpop.f32.mrb[0].mxu0
    %v5560 = vadd.f32 %v2901, %v5559
    %v5561 = vpop.f32.mrb[0].mxu0
    %5562 = vmatprep.mubr.bf16.mxu0 0
    %5563 = vmatmul.mubr.bf16.gmra.mrb[0].mxu0 %v5472
    %v5564 = vpop.f32.mrb[0].mxu0
    %v5565 = vadd.f32 %v2906, %v5564
    %v5566 = vpop.f32.mrb[0].mxu0
    %v5567 = vpop.f32.mrb[0].mxu0
    %v5568 = vadd.f32 %v2909, %v5567
    %v5569 = vpop.f32.mrb[0].mxu0
    %5570 = vdwg.mxu0
    %v5571 = vmax.f32 %v5509, 0.0
    %v5572 = vmax.f32 %v5512, 0.0
    %v5573 = vmax.f32 %v5517, 0.0
    %v5574 = vmax.f32 %v5520, 0.0
    %v5575 = vmax.f32 %v5525, 0.0
    %v5576 = vmax.f32 %v5528, 0.0
    %v5577 = vmax.f32 %v5533, 0.0
    %v5578 = vmax.f32 %v5536, 0.0
    %v5579 = vmax.f32 %v5541, 0.0
    %v5580 = vmax.f32 %v5544, 0.0
    %v5581 = vmax.f32 %v5549, 0.0
    %v5582 = vmax.f32 %v5552, 0.0
    %v5583 = vmax.f32 %v5557, 0.0
    %v5584 = vmax.f32 %v5560, 0.0
    %v5585 = vmax.f32 %v5565, 0.0
    %v5586 = vmax.f32 %v5568, 0.0
    %v5587 = vpack.c.bf16 %v5572, %v5571
    %v5588 = vpack.c.bf16 %v5574, %v5573
    %v5589 = vpack.c.bf16 %v5576, %v5575
    %v5590 = vpack.c.bf16 %v5578, %v5577
    %v5591 = vpack.c.bf16 %v5580, %v5579
    %v5592 = vpack.c.bf16 %v5582, %v5581
    %v5593 = vpack.c.bf16 %v5584, %v5583
    %v5594 = vpack.c.bf16 %v5586, %v5585
    %v5603 = vunpack.c.l.b16 %v5587
    %v5604 = vunpack.c.h.b16 %v5587
    %v5605 = vunpack.c.l.b16 %v5588
    %v5606 = vunpack.c.h.b16 %v5588
    %v5607 = vunpack.c.l.b16 %v5589
    %v5608 = vunpack.c.h.b16 %v5589
    %v5609 = vunpack.c.l.b16 %v5590
    %v5610 = vunpack.c.h.b16 %v5590
    %v5611 = vunpack.c.l.b16 %v5591
    %v5612 = vunpack.c.h.b16 %v5591
    %v5613 = vunpack.c.l.b16 %v5592
    %v5614 = vunpack.c.h.b16 %v5592
    %v5615 = vunpack.c.l.b16 %v5593
    %v5616 = vunpack.c.h.b16 %v5593
    %v5617 = vunpack.c.l.b16 %v5594
    %v5618 = vunpack.c.h.b16 %v5594
    %v5619 = vpack.c.b16 %v5603, %v5603
    %v5620 = vpack.c.b16 %v5604, %v5604
    %v5621 = vpack.c.b16 %v5605, %v5605
    %v5622 = vpack.c.b16 %v5606, %v5606
    %v5623 = vpack.c.b16 %v5607, %v5607
    %v5624 = vpack.c.b16 %v5608, %v5608
    %v5625 = vpack.c.b16 %v5609, %v5609
    %v5626 = vpack.c.b16 %v5610, %v5610
    %v5627 = vpack.c.b16 %v5611, %v5611
    %v5628 = vpack.c.b16 %v5612, %v5612
    %v5629 = vpack.c.b16 %v5613, %v5613
    %v5630 = vpack.c.b16 %v5614, %v5614
    %v5631 = vpack.c.b16 %v5615, %v5615
    %v5632 = vpack.c.b16 %v5616, %v5616
    %v5633 = vpack.c.b16 %v5617, %v5617
    %v5634 = vpack.c.b16 %v5618, %v5618
    %v5636 = vshrl.u32 %v5619, 16
    %v5638 = vrot.slane %v5636, 7
    %v5639 = vshll.u32 %v5619, 16
    %v5641 = vor.u32 %v5638, %v5639
    %v5642 = vrot.slane %v5638, 4
    %v5644 = vshrl.u32 %v5620, 16
    %v5646 = vrot.slane %v5644, 7
    %v5647 = vshll.u32 %v5620, 16
    %v5649 = vor.u32 %v5646, %v5647
    %v5650 = vrot.slane %v5646, 4
    %v5652 = vshrl.u32 %v5621, 16
    %v5654 = vrot.slane %v5652, 7
    %v5655 = vshll.u32 %v5621, 16
    %v5657 = vor.u32 %v5654, %v5655
    %v5658 = vrot.slane %v5654, 4
    %v5660 = vshrl.u32 %v5622, 16
    %v5662 = vrot.slane %v5660, 7
    %v5663 = vshll.u32 %v5622, 16
    %v5665 = vor.u32 %v5662, %v5663
    %v5666 = vrot.slane %v5662, 4
    %v5668 = vshrl.u32 %v5623, 16
    %v5670 = vrot.slane %v5668, 7
    %v5671 = vshll.u32 %v5623, 16
    %v5673 = vor.u32 %v5670, %v5671
    %v5674 = vrot.slane %v5670, 4
    %v5676 = vshrl.u32 %v5624, 16
    %v5678 = vrot.slane %v5676, 7
    %v5679 = vshll.u32 %v5624, 16
    %v5681 = vor.u32 %v5678, %v5679
    %v5682 = vrot.slane %v5678, 4
    %v5684 = vshrl.u32 %v5625, 16
    %v5686 = vrot.slane %v5684, 7
    %v5687 = vshll.u32 %v5625, 16
    %v5689 = vor.u32 %v5686, %v5687
    %v5690 = vrot.slane %v5686, 4
    %v5692 = vshrl.u32 %v5626, 16
    %v5694 = vrot.slane %v5692, 7
    %v5695 = vshll.u32 %v5626, 16
    %v5697 = vor.u32 %v5694, %v5695
    %v5698 = vrot.slane %v5694, 4
    %v5700 = vshrl.u32 %v5627, 16
    %v5702 = vrot.slane %v5700, 7
    %v5703 = vshll.u32 %v5627, 16
    %v5705 = vor.u32 %v5702, %v5703
    %v5706 = vrot.slane %v5702, 4
    %v5708 = vshrl.u32 %v5628, 16
    %v5710 = vrot.slane %v5708, 7
    %v5711 = vshll.u32 %v5628, 16
    %v5713 = vor.u32 %v5710, %v5711
    %v5714 = vrot.slane %v5710, 4
    %v5716 = vshrl.u32 %v5629, 16
    %v5718 = vrot.slane %v5716, 7
    %v5719 = vshll.u32 %v5629, 16
    %v5721 = vor.u32 %v5718, %v5719
    %v5722 = vrot.slane %v5718, 4
    %v5724 = vshrl.u32 %v5630, 16
    %v5726 = vrot.slane %v5724, 7
    %v5727 = vshll.u32 %v5630, 16
    %v5729 = vor.u32 %v5726, %v5727
    %v5730 = vrot.slane %v5726, 4
    %v5732 = vshrl.u32 %v5631, 16
    %v5734 = vrot.slane %v5732, 7
    %v5735 = vshll.u32 %v5631, 16
    %v5737 = vor.u32 %v5734, %v5735
    %v5738 = vrot.slane %v5734, 4
    %v5740 = vshrl.u32 %v5632, 16
    %v5742 = vrot.slane %v5740, 7
    %v5743 = vshll.u32 %v5632, 16
    %v5745 = vor.u32 %v5742, %v5743
    %v5746 = vrot.slane %v5742, 4
    %v5748 = vshrl.u32 %v5633, 16
    %v5750 = vrot.slane %v5748, 7
    %v5751 = vshll.u32 %v5633, 16
    %v5753 = vor.u32 %v5750, %v5751
    %v5754 = vrot.slane %v5750, 4
    %v5756 = vshrl.u32 %v5634, 16
    %v5758 = vrot.slane %v5756, 7
    %v5759 = vshll.u32 %v5634, 16
    %v5761 = vor.u32 %v5758, %v5759
    %v5762 = vrot.slane %v5758, 4
    %v5795 = vsel %vm464, %v5641, %v3599
    %5796 = vst [vmem:[%s461] sm:$0xf] %v5795
    %v5797 = vld [vmem:[%s461 + $0x4] sm:$0x1]
    %v5798 = vsel %vm470, %v5642, %v5797
    %5799 = vst [vmem:[%s461 + $0x4] sm:$0x1] %v5798
    %v5800 = vld [vmem:[%s461 + $0x8] sm:$0xf]
    %v5801 = vsel %vm464, %v5649, %v5800
    %5802 = vst [vmem:[%s461 + $0x8] sm:$0xf] %v5801
    %v5803 = vld [vmem:[%s461 + $0xc] sm:$0x1]
    %v5804 = vsel %vm470, %v5650, %v5803
    %5805 = vst [vmem:[%s461 + $0xc] sm:$0x1] %v5804
    %v5806 = vld [vmem:[%s461 + $0x10] sm:$0xf]
    %v5807 = vsel %vm464, %v5657, %v5806
    %5808 = vst [vmem:[%s461 + $0x10] sm:$0xf] %v5807
    %v5809 = vld [vmem:[%s461 + $0x14] sm:$0x1]
    %v5810 = vsel %vm470, %v5658, %v5809
    %5811 = vst [vmem:[%s461 + $0x14] sm:$0x1] %v5810
    %v5812 = vld [vmem:[%s461 + $0x18] sm:$0xf]
    %v5813 = vsel %vm464, %v5665, %v5812
    %5814 = vst [vmem:[%s461 + $0x18] sm:$0xf] %v5813
    %v5815 = vld [vmem:[%s461 + $0x1c] sm:$0x1]
    %v5816 = vsel %vm470, %v5666, %v5815
    %5817 = vst [vmem:[%s461 + $0x1c] sm:$0x1] %v5816
    %v5818 = vld [vmem:[%s461 + $0x20] sm:$0xf]
    %v5819 = vsel %vm464, %v5673, %v5818
    %5820 = vst [vmem:[%s461 + $0x20] sm:$0xf] %v5819
    %v5821 = vld [vmem:[%s461 + $0x24] sm:$0x1]
    %v5822 = vsel %vm470, %v5674, %v5821
    %5823 = vst [vmem:[%s461 + $0x24] sm:$0x1] %v5822
    %v5824 = vld [vmem:[%s461 + $0x28] sm:$0xf]
    %v5825 = vsel %vm464, %v5681, %v5824
    %5826 = vst [vmem:[%s461 + $0x28] sm:$0xf] %v5825
    %v5827 = vld [vmem:[%s461 + $0x2c] sm:$0x1]
    %v5828 = vsel %vm470, %v5682, %v5827
    %5829 = vst [vmem:[%s461 + $0x2c] sm:$0x1] %v5828
    %v5830 = vld [vmem:[%s461 + $0x30] sm:$0xf]
    %v5831 = vsel %vm464, %v5689, %v5830
    %5832 = vst [vmem:[%s461 + $0x30] sm:$0xf] %v5831
    %v5833 = vld [vmem:[%s461 + $0x34] sm:$0x1]
    %v5834 = vsel %vm470, %v5690, %v5833
    %5835 = vst [vmem:[%s461 + $0x34] sm:$0x1] %v5834
    %v5836 = vld [vmem:[%s461 + $0x38] sm:$0xf]
    %v5837 = vsel %vm464, %v5697, %v5836
    %5838 = vst [vmem:[%s461 + $0x38] sm:$0xf] %v5837
    %v5839 = vld [vmem:[%s461 + $0x3c] sm:$0x1]
    %v5840 = vsel %vm470, %v5698, %v5839
    %5841 = vst [vmem:[%s461 + $0x3c] sm:$0x1] %v5840
    %v5842 = vld [vmem:[%s461 + $0x50] sm:$0xf]
    %v5843 = vsel %vm464, %v5705, %v5842
    %5844 = vst [vmem:[%s461 + $0x50] sm:$0xf] %v5843
    %v5845 = vld [vmem:[%s461 + $0x54] sm:$0x1]
    %v5846 = vsel %vm470, %v5706, %v5845
    %5847 = vst [vmem:[%s461 + $0x54] sm:$0x1] %v5846
    %v5848 = vld [vmem:[%s461 + $0x58] sm:$0xf]
    %v5849 = vsel %vm464, %v5713, %v5848
    %5850 = vst [vmem:[%s461 + $0x58] sm:$0xf] %v5849
    %v5851 = vld [vmem:[%s461 + $0x5c] sm:$0x1]
    %v5852 = vsel %vm470, %v5714, %v5851
    %5853 = vst [vmem:[%s461 + $0x5c] sm:$0x1] %v5852
    %v5854 = vld [vmem:[%s461 + $0x60] sm:$0xf]
    %v5855 = vsel %vm464, %v5721, %v5854
    %5856 = vst [vmem:[%s461 + $0x60] sm:$0xf] %v5855
    %v5857 = vld [vmem:[%s461 + $0x64] sm:$0x1]
    %v5858 = vsel %vm470, %v5722, %v5857
    %5859 = vst [vmem:[%s461 + $0x64] sm:$0x1] %v5858
    %v5860 = vld [vmem:[%s461 + $0x68] sm:$0xf]
    %v5861 = vsel %vm464, %v5729, %v5860
    %5862 = vst [vmem:[%s461 + $0x68] sm:$0xf] %v5861
    %v5863 = vld [vmem:[%s461 + $0x6c] sm:$0x1]
    %v5864 = vsel %vm470, %v5730, %v5863
    %5865 = vst [vmem:[%s461 + $0x6c] sm:$0x1] %v5864
    %v5866 = vld [vmem:[%s461 + $0x70] sm:$0xf]
    %v5867 = vsel %vm464, %v5737, %v5866
    %5868 = vst [vmem:[%s461 + $0x70] sm:$0xf] %v5867
    %v5869 = vld [vmem:[%s461 + $0x74] sm:$0x1]
    %v5870 = vsel %vm470, %v5738, %v5869
    %5871 = vst [vmem:[%s461 + $0x74] sm:$0x1] %v5870
    %v5872 = vld [vmem:[%s461 + $0x78] sm:$0xf]
    %v5873 = vsel %vm464, %v5745, %v5872
    %5874 = vst [vmem:[%s461 + $0x78] sm:$0xf] %v5873
    %v5875 = vld [vmem:[%s461 + $0x7c] sm:$0x1]
    %v5876 = vsel %vm470, %v5746, %v5875
    %5877 = vst [vmem:[%s461 + $0x7c] sm:$0x1] %v5876
    %v5878 = vld [vmem:[%s461 + $0x80] sm:$0xf]
    %v5879 = vsel %vm464, %v5753, %v5878
    %5880 = vst [vmem:[%s461 + $0x80] sm:$0xf] %v5879
    %v5881 = vld [vmem:[%s461 + $0x84] sm:$0x1]
    %v5882 = vsel %vm470, %v5754, %v5881
    %5883 = vst [vmem:[%s461 + $0x84] sm:$0x1] %v5882
    %v5884 = vld [vmem:[%s461 + $0x88] sm:$0xf]
    %v5885 = vsel %vm464, %v5761, %v5884
    %5886 = vst [vmem:[%s461 + $0x88] sm:$0xf] %v5885
    %v5887 = vld [vmem:[%s461 + $0x8c] sm:$0x1]
    %v5888 = vsel %vm470, %v5762, %v5887
    %5889 = vst [vmem:[%s461 + $0x8c] sm:$0x1] %v5888
    %v5890 = vld [vmem:[#allocation2] sm:$0xf]
    %v5891 = vld [vmem:[#allocation2 + $0x8] sm:$0xf]
    %v5892 = vld [vmem:[#allocation2 + $0x10] sm:$0xf]
    %v5893 = vld [vmem:[#allocation2 + $0x18] sm:$0xf]
    %v5894 = vld [vmem:[#allocation2 + $0x20] sm:$0xf]
    %v5895 = vld [vmem:[#allocation2 + $0x28] sm:$0xf]
    %v5896 = vld [vmem:[#allocation2 + $0x30] sm:$0xf]
    %v5897 = vld [vmem:[#allocation2 + $0x38] sm:$0xf]
    %v5898 = vld [vmem:[#allocation2 + $0x50] sm:$0xf]
    %v5899 = vld [vmem:[#allocation2 + $0x58] sm:$0xf]
    %v5900 = vld [vmem:[#allocation2 + $0x60] sm:$0xf]
    %v5901 = vld [vmem:[#allocation2 + $0x68] sm:$0xf]
    %v5902 = vld [vmem:[#allocation2 + $0x70] sm:$0xf]
    %v5903 = vld [vmem:[#allocation2 + $0x78] sm:$0xf]
    %v5904 = vld [vmem:[#allocation2 + $0x80] sm:$0xf]
    %v5905 = vld [vmem:[#allocation2 + $0x88] sm:$0xf]
    %v5906 = vld [vmem:[#allocation2 + $0x4] sm:$0x1]
    %v5907 = vld [vmem:[#allocation2 + $0xc] sm:$0x1]
    %v5908 = vld [vmem:[#allocation2 + $0x14] sm:$0x1]
    %v5909 = vld [vmem:[#allocation2 + $0x1c] sm:$0x1]
    %v5910 = vld [vmem:[#allocation2 + $0x24] sm:$0x1]
    %v5911 = vld [vmem:[#allocation2 + $0x2c] sm:$0x1]
    %v5912 = vld [vmem:[#allocation2 + $0x34] sm:$0x1]
    %v5913 = vld [vmem:[#allocation2 + $0x3c] sm:$0x1]
    %v5914 = vld [vmem:[#allocation2 + $0x54] sm:$0x1]
    %v5915 = vld [vmem:[#allocation2 + $0x5c] sm:$0x1]
    %v5916 = vld [vmem:[#allocation2 + $0x64] sm:$0x1]
    %v5917 = vld [vmem:[#allocation2 + $0x6c] sm:$0x1]
    %v5918 = vld [vmem:[#allocation2 + $0x74] sm:$0x1]
    %v5919 = vld [vmem:[#allocation2 + $0x7c] sm:$0x1]
    %v5920 = vld [vmem:[#allocation2 + $0x84] sm:$0x1]
    %v5921 = vld [vmem:[#allocation2 + $0x8c] sm:$0x1]
    %v5923 = vshrl.u32 %v5890, 16
    %v5925 = vrot.slane %v5923, 4
    %v5926 = vshll.u32 %v5890, 16
    %v5928 = vrot.slane %v5926, 5
    %v5929 = vor.u32 %v5925, %v5928
    %v5930 = vrot.slane %v5929, 4
    %v5932 = vshll.u32 %v5906, 16
    %v5934 = vrot.slane %v5932, 5
    %v5935 = vsel %vm598, %v5930, %v5934
    %v5937 = vshrl.u32 %v5891, 16
    %v5939 = vrot.slane %v5937, 4
    %v5940 = vshll.u32 %v5891, 16
    %v5942 = vrot.slane %v5940, 5
    %v5943 = vor.u32 %v5939, %v5942
    %v5944 = vrot.slane %v5943, 4
    %v5946 = vshll.u32 %v5907, 16
    %v5948 = vrot.slane %v5946, 5
    %v5949 = vsel %vm598, %v5944, %v5948
    %v5951 = vshrl.u32 %v5892, 16
    %v5953 = vrot.slane %v5951, 4
    %v5954 = vshll.u32 %v5892, 16
    %v5956 = vrot.slane %v5954, 5
    %v5957 = vor.u32 %v5953, %v5956
    %v5958 = vrot.slane %v5957, 4
    %v5960 = vshll.u32 %v5908, 16
    %v5962 = vrot.slane %v5960, 5
    %v5963 = vsel %vm598, %v5958, %v5962
    %v5965 = vshrl.u32 %v5893, 16
    %v5967 = vrot.slane %v5965, 4
    %v5968 = vshll.u32 %v5893, 16
    %v5970 = vrot.slane %v5968, 5
    %v5971 = vor.u32 %v5967, %v5970
    %v5972 = vrot.slane %v5971, 4
    %v5974 = vshll.u32 %v5909, 16
    %v5976 = vrot.slane %v5974, 5
    %v5977 = vsel %vm598, %v5972, %v5976
    %v5979 = vshrl.u32 %v5894, 16
    %v5981 = vrot.slane %v5979, 4
    %v5982 = vshll.u32 %v5894, 16
    %v5984 = vrot.slane %v5982, 5
    %v5985 = vor.u32 %v5981, %v5984
    %v5986 = vrot.slane %v5985, 4
    %v5988 = vshll.u32 %v5910, 16
    %v5990 = vrot.slane %v5988, 5
    %v5991 = vsel %vm598, %v5986, %v5990
    %v5993 = vshrl.u32 %v5895, 16
    %v5995 = vrot.slane %v5993, 4
    %v5996 = vshll.u32 %v5895, 16
    %v5998 = vrot.slane %v5996, 5
    %v5999 = vor.u32 %v5995, %v5998
    %v6000 = vrot.slane %v5999, 4
    %v6002 = vshll.u32 %v5911, 16
    %v6004 = vrot.slane %v6002, 5
    %v6005 = vsel %vm598, %v6000, %v6004
    %v6007 = vshrl.u32 %v5896, 16
    %v6009 = vrot.slane %v6007, 4
    %v6010 = vshll.u32 %v5896, 16
    %v6012 = vrot.slane %v6010, 5
    %v6013 = vor.u32 %v6009, %v6012
    %v6014 = vrot.slane %v6013, 4
    %v6016 = vshll.u32 %v5912, 16
    %v6018 = vrot.slane %v6016, 5
    %v6019 = vsel %vm598, %v6014, %v6018
    %v6021 = vshrl.u32 %v5897, 16
    %v6023 = vrot.slane %v6021, 4
    %v6024 = vshll.u32 %v5897, 16
    %v6026 = vrot.slane %v6024, 5
    %v6027 = vor.u32 %v6023, %v6026
    %v6028 = vrot.slane %v6027, 4
    %v6030 = vshll.u32 %v5913, 16
    %v6032 = vrot.slane %v6030, 5
    %v6033 = vsel %vm598, %v6028, %v6032
    %v6035 = vshrl.u32 %v5898, 16
    %v6037 = vrot.slane %v6035, 4
    %v6038 = vshll.u32 %v5898, 16
    %v6040 = vrot.slane %v6038, 5
    %v6041 = vor.u32 %v6037, %v6040
    %v6042 = vrot.slane %v6041, 4
    %v6044 = vshll.u32 %v5914, 16
    %v6046 = vrot.slane %v6044, 5
    %v6047 = vsel %vm598, %v6042, %v6046
    %v6049 = vshrl.u32 %v5899, 16
    %v6051 = vrot.slane %v6049, 4
    %v6052 = vshll.u32 %v5899, 16
    %v6054 = vrot.slane %v6052, 5
    %v6055 = vor.u32 %v6051, %v6054
    %v6056 = vrot.slane %v6055, 4
    %v6058 = vshll.u32 %v5915, 16
    %v6060 = vrot.slane %v6058, 5
    %v6061 = vsel %vm598, %v6056, %v6060
    %v6063 = vshrl.u32 %v5900, 16
    %v6065 = vrot.slane %v6063, 4
    %v6066 = vshll.u32 %v5900, 16
    %v6068 = vrot.slane %v6066, 5
    %v6069 = vor.u32 %v6065, %v6068
    %v6070 = vrot.slane %v6069, 4
    %v6072 = vshll.u32 %v5916, 16
    %v6074 = vrot.slane %v6072, 5
    %v6075 = vsel %vm598, %v6070, %v6074
    %v6077 = vshrl.u32 %v5901, 16
    %v6079 = vrot.slane %v6077, 4
    %v6080 = vshll.u32 %v5901, 16
    %v6082 = vrot.slane %v6080, 5
    %v6083 = vor.u32 %v6079, %v6082
    %v6084 = vrot.slane %v6083, 4
    %v6086 = vshll.u32 %v5917, 16
    %v6088 = vrot.slane %v6086, 5
    %v6089 = vsel %vm598, %v6084, %v6088
    %v6091 = vshrl.u32 %v5902, 16
    %v6093 = vrot.slane %v6091, 4
    %v6094 = vshll.u32 %v5902, 16
    %v6096 = vrot.slane %v6094, 5
    %v6097 = vor.u32 %v6093, %v6096
    %v6098 = vrot.slane %v6097, 4
    %v6100 = vshll.u32 %v5918, 16
    %v6102 = vrot.slane %v6100, 5
    %v6103 = vsel %vm598, %v6098, %v6102
    %v6105 = vshrl.u32 %v5903, 16
    %v6107 = vrot.slane %v6105, 4
    %v6108 = vshll.u32 %v5903, 16
    %v6110 = vrot.slane %v6108, 5
    %v6111 = vor.u32 %v6107, %v6110
    %v6112 = vrot.slane %v6111, 4
    %v6114 = vshll.u32 %v5919, 16
    %v6116 = vrot.slane %v6114, 5
    %v6117 = vsel %vm598, %v6112, %v6116
    %v6119 = vshrl.u32 %v5904, 16
    %v6121 = vrot.slane %v6119, 4
    %v6122 = vshll.u32 %v5904, 16
    %v6124 = vrot.slane %v6122, 5
    %v6125 = vor.u32 %v6121, %v6124
    %v6126 = vrot.slane %v6125, 4
    %v6128 = vshll.u32 %v5920, 16
    %v6130 = vrot.slane %v6128, 5
    %v6131 = vsel %vm598, %v6126, %v6130
    %v6133 = vshrl.u32 %v5905, 16
    %v6135 = vrot.slane %v6133, 4
    %v6136 = vshll.u32 %v5905, 16
    %v6138 = vrot.slane %v6136, 5
    %v6139 = vor.u32 %v6135, %v6138
    %v6140 = vrot.slane %v6139, 4
    %v6142 = vshll.u32 %v5921, 16
    %v6144 = vrot.slane %v6142, 5
    %v6145 = vsel %vm598, %v6140, %v6144
    %v6146 = vld [vmem:[#allocation2] sm:$0xe]
    %v6147 = vld [vmem:[#allocation2 + $0x8] sm:$0xe]
    %v6148 = vld [vmem:[#allocation2 + $0x10] sm:$0xe]
    %v6149 = vld [vmem:[#allocation2 + $0x18] sm:$0xe]
    %v6150 = vld [vmem:[#allocation2 + $0x20] sm:$0xe]
    %v6151 = vld [vmem:[#allocation2 + $0x28] sm:$0xe]
    %v6152 = vld [vmem:[#allocation2 + $0x30] sm:$0xe]
    %v6153 = vld [vmem:[#allocation2 + $0x38] sm:$0xe]
    %v6154 = vld [vmem:[#allocation2 + $0x50] sm:$0xe]
    %v6155 = vld [vmem:[#allocation2 + $0x58] sm:$0xe]
    %v6156 = vld [vmem:[#allocation2 + $0x60] sm:$0xe]
    %v6157 = vld [vmem:[#allocation2 + $0x68] sm:$0xe]
    %v6158 = vld [vmem:[#allocation2 + $0x70] sm:$0xe]
    %v6159 = vld [vmem:[#allocation2 + $0x78] sm:$0xe]
    %v6160 = vld [vmem:[#allocation2 + $0x80] sm:$0xe]
    %v6161 = vld [vmem:[#allocation2 + $0x88] sm:$0xe]
    %v6194 = vrot.slane %v6146, 5
    %v6195 = vrot.slane %v6194, 4
    %v6196 = vrot.slane %v5906, 5
    %v6197 = vsel %vm873, %v6195, %v6196
    %v6198 = vrot.slane %v6147, 5
    %v6199 = vrot.slane %v6198, 4
    %v6200 = vrot.slane %v5907, 5
    %v6201 = vsel %vm873, %v6199, %v6200
    %v6202 = vrot.slane %v6148, 5
    %v6203 = vrot.slane %v6202, 4
    %v6204 = vrot.slane %v5908, 5
    %v6205 = vsel %vm873, %v6203, %v6204
    %v6206 = vrot.slane %v6149, 5
    %v6207 = vrot.slane %v6206, 4
    %v6208 = vrot.slane %v5909, 5
    %v6209 = vsel %vm873, %v6207, %v6208
    %v6210 = vrot.slane %v6150, 5
    %v6211 = vrot.slane %v6210, 4
    %v6212 = vrot.slane %v5910, 5
    %v6213 = vsel %vm873, %v6211, %v6212
    %v6214 = vrot.slane %v6151, 5
    %v6215 = vrot.slane %v6214, 4
    %v6216 = vrot.slane %v5911, 5
    %v6217 = vsel %vm873, %v6215, %v6216
    %v6218 = vrot.slane %v6152, 5
    %v6219 = vrot.slane %v6218, 4
    %v6220 = vrot.slane %v5912, 5
    %v6221 = vsel %vm873, %v6219, %v6220
    %v6222 = vrot.slane %v6153, 5
    %v6223 = vrot.slane %v6222, 4
    %v6224 = vrot.slane %v5913, 5
    %v6225 = vsel %vm873, %v6223, %v6224
    %v6226 = vrot.slane %v6154, 5
    %v6227 = vrot.slane %v6226, 4
    %v6228 = vrot.slane %v5914, 5
    %v6229 = vsel %vm873, %v6227, %v6228
    %v6230 = vrot.slane %v6155, 5
    %v6231 = vrot.slane %v6230, 4
    %v6232 = vrot.slane %v5915, 5
    %v6233 = vsel %vm873, %v6231, %v6232
    %v6234 = vrot.slane %v6156, 5
    %v6235 = vrot.slane %v6234, 4
    %v6236 = vrot.slane %v5916, 5
    %v6237 = vsel %vm873, %v6235, %v6236
    %v6238 = vrot.slane %v6157, 5
    %v6239 = vrot.slane %v6238, 4
    %v6240 = vrot.slane %v5917, 5
    %v6241 = vsel %vm873, %v6239, %v6240
    %v6242 = vrot.slane %v6158, 5
    %v6243 = vrot.slane %v6242, 4
    %v6244 = vrot.slane %v5918, 5
    %v6245 = vsel %vm873, %v6243, %v6244
    %v6246 = vrot.slane %v6159, 5
    %v6247 = vrot.slane %v6246, 4
    %v6248 = vrot.slane %v5919, 5
    %v6249 = vsel %vm873, %v6247, %v6248
    %v6250 = vrot.slane %v6160, 5
    %v6251 = vrot.slane %v6250, 4
    %v6252 = vrot.slane %v5920, 5
    %v6253 = vsel %vm873, %v6251, %v6252
    %v6254 = vrot.slane %v6161, 5
    %v6255 = vrot.slane %v6254, 4
    %v6256 = vrot.slane %v5921, 5
    %v6257 = vsel %vm873, %v6255, %v6256
    %v6258 = vld [vmem:[%s461] sm:$0xf]
    %v6259 = vld [vmem:[%s461 + $0x8] sm:$0xf]
    %v6260 = vld [vmem:[%s461 + $0x10] sm:$0xf]
    %v6261 = vld [vmem:[%s461 + $0x18] sm:$0xf]
    %v6262 = vld [vmem:[%s461 + $0x20] sm:$0xf]
    %v6263 = vld [vmem:[%s461 + $0x28] sm:$0xf]
    %v6264 = vld [vmem:[%s461 + $0x30] sm:$0xf]
    %v6265 = vld [vmem:[%s461 + $0x38] sm:$0xf]
    %v6266 = vld [vmem:[%s461 + $0x50] sm:$0xf]
    %v6267 = vld [vmem:[%s461 + $0x58] sm:$0xf]
    %v6268 = vld [vmem:[%s461 + $0x60] sm:$0xf]
    %v6269 = vld [vmem:[%s461 + $0x68] sm:$0xf]
    %v6270 = vld [vmem:[%s461 + $0x70] sm:$0xf]
    %v6271 = vld [vmem:[%s461 + $0x78] sm:$0xf]
    %v6272 = vld [vmem:[%s461 + $0x80] sm:$0xf]
    %v6273 = vld [vmem:[%s461 + $0x88] sm:$0xf]
    %v6274 = vld [vmem:[%s461 + $0x4] sm:$0x1]
    %v6275 = vld [vmem:[%s461 + $0xc] sm:$0x1]
    %v6276 = vld [vmem:[%s461 + $0x14] sm:$0x1]
    %v6277 = vld [vmem:[%s461 + $0x1c] sm:$0x1]
    %v6278 = vld [vmem:[%s461 + $0x24] sm:$0x1]
    %v6279 = vld [vmem:[%s461 + $0x2c] sm:$0x1]
    %v6280 = vld [vmem:[%s461 + $0x34] sm:$0x1]
    %v6281 = vld [vmem:[%s461 + $0x3c] sm:$0x1]
    %v6282 = vld [vmem:[%s461 + $0x54] sm:$0x1]
    %v6283 = vld [vmem:[%s461 + $0x5c] sm:$0x1]
    %v6284 = vld [vmem:[%s461 + $0x64] sm:$0x1]
    %v6285 = vld [vmem:[%s461 + $0x6c] sm:$0x1]
    %v6286 = vld [vmem:[%s461 + $0x74] sm:$0x1]
    %v6287 = vld [vmem:[%s461 + $0x7c] sm:$0x1]
    %v6288 = vld [vmem:[%s461 + $0x84] sm:$0x1]
    %v6289 = vld [vmem:[%s461 + $0x8c] sm:$0x1]
    %v6291 = vshrl.u32 %v6258, 16
    %v6293 = vrot.slane %v6291, 4
    %v6294 = vshll.u32 %v6258, 16
    %v6296 = vrot.slane %v6294, 5
    %v6297 = vor.u32 %v6293, %v6296
    %v6298 = vrot.slane %v6297, 4
    %v6300 = vshll.u32 %v6274, 16
    %v6302 = vrot.slane %v6300, 5
    %v6303 = vsel %vm598, %v6298, %v6302
    %v6305 = vshrl.u32 %v6259, 16
    %v6307 = vrot.slane %v6305, 4
    %v6308 = vshll.u32 %v6259, 16
    %v6310 = vrot.slane %v6308, 5
    %v6311 = vor.u32 %v6307, %v6310
    %v6312 = vrot.slane %v6311, 4
    %v6314 = vshll.u32 %v6275, 16
    %v6316 = vrot.slane %v6314, 5
    %v6317 = vsel %vm598, %v6312, %v6316
    %v6319 = vshrl.u32 %v6260, 16
    %v6321 = vrot.slane %v6319, 4
    %v6322 = vshll.u32 %v6260, 16
    %v6324 = vrot.slane %v6322, 5
    %v6325 = vor.u32 %v6321, %v6324
    %v6326 = vrot.slane %v6325, 4
    %v6328 = vshll.u32 %v6276, 16
    %v6330 = vrot.slane %v6328, 5
    %v6331 = vsel %vm598, %v6326, %v6330
    %v6333 = vshrl.u32 %v6261, 16
    %v6335 = vrot.slane %v6333, 4
    %v6336 = vshll.u32 %v6261, 16
    %v6338 = vrot.slane %v6336, 5
    %v6339 = vor.u32 %v6335, %v6338
    %v6340 = vrot.slane %v6339, 4
    %v6342 = vshll.u32 %v6277, 16
    %v6344 = vrot.slane %v6342, 5
    %v6345 = vsel %vm598, %v6340, %v6344
    %v6347 = vshrl.u32 %v6262, 16
    %v6349 = vrot.slane %v6347, 4
    %v6350 = vshll.u32 %v6262, 16
    %v6352 = vrot.slane %v6350, 5
    %v6353 = vor.u32 %v6349, %v6352
    %v6354 = vrot.slane %v6353, 4
    %v6356 = vshll.u32 %v6278, 16
    %v6358 = vrot.slane %v6356, 5
    %v6359 = vsel %vm598, %v6354, %v6358
    %v6361 = vshrl.u32 %v6263, 16
    %v6363 = vrot.slane %v6361, 4
    %v6364 = vshll.u32 %v6263, 16
    %v6366 = vrot.slane %v6364, 5
    %v6367 = vor.u32 %v6363, %v6366
    %v6368 = vrot.slane %v6367, 4
    %v6370 = vshll.u32 %v6279, 16
    %v6372 = vrot.slane %v6370, 5
    %v6373 = vsel %vm598, %v6368, %v6372
    %v6375 = vshrl.u32 %v6264, 16
    %v6377 = vrot.slane %v6375, 4
    %v6378 = vshll.u32 %v6264, 16
    %v6380 = vrot.slane %v6378, 5
    %v6381 = vor.u32 %v6377, %v6380
    %v6382 = vrot.slane %v6381, 4
    %v6384 = vshll.u32 %v6280, 16
    %v6386 = vrot.slane %v6384, 5
    %v6387 = vsel %vm598, %v6382, %v6386
    %v6389 = vshrl.u32 %v6265, 16
    %v6391 = vrot.slane %v6389, 4
    %v6392 = vshll.u32 %v6265, 16
    %v6394 = vrot.slane %v6392, 5
    %v6395 = vor.u32 %v6391, %v6394
    %v6396 = vrot.slane %v6395, 4
    %v6398 = vshll.u32 %v6281, 16
    %v6400 = vrot.slane %v6398, 5
    %v6401 = vsel %vm598, %v6396, %v6400
    %v6403 = vshrl.u32 %v6266, 16
    %v6405 = vrot.slane %v6403, 4
    %v6406 = vshll.u32 %v6266, 16
    %v6408 = vrot.slane %v6406, 5
    %v6409 = vor.u32 %v6405, %v6408
    %v6410 = vrot.slane %v6409, 4
    %v6412 = vshll.u32 %v6282, 16
    %v6414 = vrot.slane %v6412, 5
    %v6415 = vsel %vm598, %v6410, %v6414
    %v6417 = vshrl.u32 %v6267, 16
    %v6419 = vrot.slane %v6417, 4
    %v6420 = vshll.u32 %v6267, 16
    %v6422 = vrot.slane %v6420, 5
    %v6423 = vor.u32 %v6419, %v6422
    %v6424 = vrot.slane %v6423, 4
    %v6426 = vshll.u32 %v6283, 16
    %v6428 = vrot.slane %v6426, 5
    %v6429 = vsel %vm598, %v6424, %v6428
    %v6431 = vshrl.u32 %v6268, 16
    %v6433 = vrot.slane %v6431, 4
    %v6434 = vshll.u32 %v6268, 16
    %v6436 = vrot.slane %v6434, 5
    %v6437 = vor.u32 %v6433, %v6436
    %v6438 = vrot.slane %v6437, 4
    %v6440 = vshll.u32 %v6284, 16
    %v6442 = vrot.slane %v6440, 5
    %v6443 = vsel %vm598, %v6438, %v6442
    %v6445 = vshrl.u32 %v6269, 16
    %v6447 = vrot.slane %v6445, 4
    %v6448 = vshll.u32 %v6269, 16
    %v6450 = vrot.slane %v6448, 5
    %v6451 = vor.u32 %v6447, %v6450
    %v6452 = vrot.slane %v6451, 4
    %v6454 = vshll.u32 %v6285, 16
    %v6456 = vrot.slane %v6454, 5
    %v6457 = vsel %vm598, %v6452, %v6456
    %v6459 = vshrl.u32 %v6270, 16
    %v6461 = vrot.slane %v6459, 4
    %v6462 = vshll.u32 %v6270, 16
    %v6464 = vrot.slane %v6462, 5
    %v6465 = vor.u32 %v6461, %v6464
    %v6466 = vrot.slane %v6465, 4
    %v6468 = vshll.u32 %v6286, 16
    %v6470 = vrot.slane %v6468, 5
    %v6471 = vsel %vm598, %v6466, %v6470
    %v6473 = vshrl.u32 %v6271, 16
    %v6475 = vrot.slane %v6473, 4
    %v6476 = vshll.u32 %v6271, 16
    %v6478 = vrot.slane %v6476, 5
    %v6479 = vor.u32 %v6475, %v6478
    %v6480 = vrot.slane %v6479, 4
    %v6482 = vshll.u32 %v6287, 16
    %v6484 = vrot.slane %v6482, 5
    %v6485 = vsel %vm598, %v6480, %v6484
    %v6487 = vshrl.u32 %v6272, 16
    %v6489 = vrot.slane %v6487, 4
    %v6490 = vshll.u32 %v6272, 16
    %v6492 = vrot.slane %v6490, 5
    %v6493 = vor.u32 %v6489, %v6492
    %v6494 = vrot.slane %v6493, 4
    %v6496 = vshll.u32 %v6288, 16
    %v6498 = vrot.slane %v6496, 5
    %v6499 = vsel %vm598, %v6494, %v6498
    %v6501 = vshrl.u32 %v6273, 16
    %v6503 = vrot.slane %v6501, 4
    %v6504 = vshll.u32 %v6273, 16
    %v6506 = vrot.slane %v6504, 5
    %v6507 = vor.u32 %v6503, %v6506
    %v6508 = vrot.slane %v6507, 4
    %v6510 = vshll.u32 %v6289, 16
    %v6512 = vrot.slane %v6510, 5
    %v6513 = vsel %vm598, %v6508, %v6512
    %v6514 = vld [vmem:[%s461] sm:$0xe]
    %v6515 = vld [vmem:[%s461 + $0x8] sm:$0xe]
    %v6516 = vld [vmem:[%s461 + $0x10] sm:$0xe]
    %v6517 = vld [vmem:[%s461 + $0x18] sm:$0xe]
    %v6518 = vld [vmem:[%s461 + $0x20] sm:$0xe]
    %v6519 = vld [vmem:[%s461 + $0x28] sm:$0xe]
    %v6520 = vld [vmem:[%s461 + $0x30] sm:$0xe]
    %v6521 = vld [vmem:[%s461 + $0x38] sm:$0xe]
    %v6522 = vld [vmem:[%s461 + $0x50] sm:$0xe]
    %v6523 = vld [vmem:[%s461 + $0x58] sm:$0xe]
    %v6524 = vld [vmem:[%s461 + $0x60] sm:$0xe]
    %v6525 = vld [vmem:[%s461 + $0x68] sm:$0xe]
    %v6526 = vld [vmem:[%s461 + $0x70] sm:$0xe]
    %v6527 = vld [vmem:[%s461 + $0x78] sm:$0xe]
    %v6528 = vld [vmem:[%s461 + $0x80] sm:$0xe]
    %v6529 = vld [vmem:[%s461 + $0x88] sm:$0xe]
    %v6562 = vrot.slane %v6514, 5
    %v6563 = vrot.slane %v6562, 4
    %v6564 = vrot.slane %v6274, 5
    %v6565 = vsel %vm873, %v6563, %v6564
    %v6566 = vrot.slane %v6515, 5
    %v6567 = vrot.slane %v6566, 4
    %v6568 = vrot.slane %v6275, 5
    %v6569 = vsel %vm873, %v6567, %v6568
    %v6570 = vrot.slane %v6516, 5
    %v6571 = vrot.slane %v6570, 4
    %v6572 = vrot.slane %v6276, 5
    %v6573 = vsel %vm873, %v6571, %v6572
    %v6574 = vrot.slane %v6517, 5
    %v6575 = vrot.slane %v6574, 4
    %v6576 = vrot.slane %v6277, 5
    %v6577 = vsel %vm873, %v6575, %v6576
    %v6578 = vrot.slane %v6518, 5
    %v6579 = vrot.slane %v6578, 4
    %v6580 = vrot.slane %v6278, 5
    %v6581 = vsel %vm873, %v6579, %v6580
    %v6582 = vrot.slane %v6519, 5
    %v6583 = vrot.slane %v6582, 4
    %v6584 = vrot.slane %v6279, 5
    %v6585 = vsel %vm873, %v6583, %v6584
    %v6586 = vrot.slane %v6520, 5
    %v6587 = vrot.slane %v6586, 4
    %v6588 = vrot.slane %v6280, 5
    %v6589 = vsel %vm873, %v6587, %v6588
    %v6590 = vrot.slane %v6521, 5
    %v6591 = vrot.slane %v6590, 4
    %v6592 = vrot.slane %v6281, 5
    %v6593 = vsel %vm873, %v6591, %v6592
    %v6594 = vrot.slane %v6522, 5
    %v6595 = vrot.slane %v6594, 4
    %v6596 = vrot.slane %v6282, 5
    %v6597 = vsel %vm873, %v6595, %v6596
    %v6598 = vrot.slane %v6523, 5
    %v6599 = vrot.slane %v6598, 4
    %v6600 = vrot.slane %v6283, 5
    %v6601 = vsel %vm873, %v6599, %v6600
    %v6602 = vrot.slane %v6524, 5
    %v6603 = vrot.slane %v6602, 4
    %v6604 = vrot.slane %v6284, 5
    %v6605 = vsel %vm873, %v6603, %v6604
    %v6606 = vrot.slane %v6525, 5
    %v6607 = vrot.slane %v6606, 4
    %v6608 = vrot.slane %v6285, 5
    %v6609 = vsel %vm873, %v6607, %v6608
    %v6610 = vrot.slane %v6526, 5
    %v6611 = vrot.slane %v6610, 4
    %v6612 = vrot.slane %v6286, 5
    %v6613 = vsel %vm873, %v6611, %v6612
    %v6614 = vrot.slane %v6527, 5
    %v6615 = vrot.slane %v6614, 4
    %v6616 = vrot.slane %v6287, 5
    %v6617 = vsel %vm873, %v6615, %v6616
    %v6618 = vrot.slane %v6528, 5
    %v6619 = vrot.slane %v6618, 4
    %v6620 = vrot.slane %v6288, 5
    %v6621 = vsel %vm873, %v6619, %v6620
    %v6622 = vrot.slane %v6529, 5
    %v6623 = vrot.slane %v6622, 4
    %v6624 = vrot.slane %v6289, 5
    %v6625 = vsel %vm873, %v6623, %v6624
    %v6626 = vld [vmem:[%s1306] sm:$0xf]
    %v6627 = vld [vmem:[%s1306 + $0x8] sm:$0xf]
    %v6628 = vld [vmem:[%s1306 + $0x10] sm:$0xf]
    %v6629 = vld [vmem:[%s1306 + $0x18] sm:$0xf]
    %v6630 = vld [vmem:[%s1306 + $0x20] sm:$0xf]
    %v6631 = vld [vmem:[%s1306 + $0x28] sm:$0xf]
    %v6632 = vld [vmem:[%s1306 + $0x30] sm:$0xf]
    %v6633 = vld [vmem:[%s1306 + $0x38] sm:$0xf]
    %v6634 = vld [vmem:[%s1306 + $0x50] sm:$0xf]
    %v6635 = vld [vmem:[%s1306 + $0x58] sm:$0xf]
    %v6636 = vld [vmem:[%s1306 + $0x60] sm:$0xf]
    %v6637 = vld [vmem:[%s1306 + $0x68] sm:$0xf]
    %v6638 = vld [vmem:[%s1306 + $0x70] sm:$0xf]
    %v6639 = vld [vmem:[%s1306 + $0x78] sm:$0xf]
    %v6640 = vld [vmem:[%s1306 + $0x80] sm:$0xf]
    %v6641 = vld [vmem:[%s1306 + $0x88] sm:$0xf]
    %v6642 = vld [vmem:[%s1306 + $0x4] sm:$0x1]
    %v6643 = vld [vmem:[%s1306 + $0xc] sm:$0x1]
    %v6644 = vld [vmem:[%s1306 + $0x14] sm:$0x1]
    %v6645 = vld [vmem:[%s1306 + $0x1c] sm:$0x1]
    %v6646 = vld [vmem:[%s1306 + $0x24] sm:$0x1]
    %v6647 = vld [vmem:[%s1306 + $0x2c] sm:$0x1]
    %v6648 = vld [vmem:[%s1306 + $0x34] sm:$0x1]
    %v6649 = vld [vmem:[%s1306 + $0x3c] sm:$0x1]
    %v6650 = vld [vmem:[%s1306 + $0x54] sm:$0x1]
    %v6651 = vld [vmem:[%s1306 + $0x5c] sm:$0x1]
    %v6652 = vld [vmem:[%s1306 + $0x64] sm:$0x1]
    %v6653 = vld [vmem:[%s1306 + $0x6c] sm:$0x1]
    %v6654 = vld [vmem:[%s1306 + $0x74] sm:$0x1]
    %v6655 = vld [vmem:[%s1306 + $0x7c] sm:$0x1]
    %v6656 = vld [vmem:[%s1306 + $0x84] sm:$0x1]
    %v6657 = vld [vmem:[%s1306 + $0x8c] sm:$0x1]
    %v6659 = vshrl.u32 %v6626, 16
    %v6661 = vrot.slane %v6659, 4
    %v6662 = vshll.u32 %v6626, 16
    %v6664 = vrot.slane %v6662, 5
    %v6665 = vor.u32 %v6661, %v6664
    %v6666 = vrot.slane %v6665, 4
    %v6668 = vshll.u32 %v6642, 16
    %v6670 = vrot.slane %v6668, 5
    %v6671 = vsel %vm598, %v6666, %v6670
    %v6673 = vshrl.u32 %v6627, 16
    %v6675 = vrot.slane %v6673, 4
    %v6676 = vshll.u32 %v6627, 16
    %v6678 = vrot.slane %v6676, 5
    %v6679 = vor.u32 %v6675, %v6678
    %v6680 = vrot.slane %v6679, 4
    %v6682 = vshll.u32 %v6643, 16
    %v6684 = vrot.slane %v6682, 5
    %v6685 = vsel %vm598, %v6680, %v6684
    %v6687 = vshrl.u32 %v6628, 16
    %v6689 = vrot.slane %v6687, 4
    %v6690 = vshll.u32 %v6628, 16
    %v6692 = vrot.slane %v6690, 5
    %v6693 = vor.u32 %v6689, %v6692
    %v6694 = vrot.slane %v6693, 4
    %v6696 = vshll.u32 %v6644, 16
    %v6698 = vrot.slane %v6696, 5
    %v6699 = vsel %vm598, %v6694, %v6698
    %v6701 = vshrl.u32 %v6629, 16
    %v6703 = vrot.slane %v6701, 4
    %v6704 = vshll.u32 %v6629, 16
    %v6706 = vrot.slane %v6704, 5
    %v6707 = vor.u32 %v6703, %v6706
    %v6708 = vrot.slane %v6707, 4
    %v6710 = vshll.u32 %v6645, 16
    %v6712 = vrot.slane %v6710, 5
    %v6713 = vsel %vm598, %v6708, %v6712
    %v6715 = vshrl.u32 %v6630, 16
    %v6717 = vrot.slane %v6715, 4
    %v6718 = vshll.u32 %v6630, 16
    %v6720 = vrot.slane %v6718, 5
    %v6721 = vor.u32 %v6717, %v6720
    %v6722 = vrot.slane %v6721, 4
    %v6724 = vshll.u32 %v6646, 16
    %v6726 = vrot.slane %v6724, 5
    %v6727 = vsel %vm598, %v6722, %v6726
    %v6729 = vshrl.u32 %v6631, 16
    %v6731 = vrot.slane %v6729, 4
    %v6732 = vshll.u32 %v6631, 16
    %v6734 = vrot.slane %v6732, 5
    %v6735 = vor.u32 %v6731, %v6734
    %v6736 = vrot.slane %v6735, 4
    %v6738 = vshll.u32 %v6647, 16
    %v6740 = vrot.slane %v6738, 5
    %v6741 = vsel %vm598, %v6736, %v6740
    %v6743 = vshrl.u32 %v6632, 16
    %v6745 = vrot.slane %v6743, 4
    %v6746 = vshll.u32 %v6632, 16
    %v6748 = vrot.slane %v6746, 5
    %v6749 = vor.u32 %v6745, %v6748
    %v6750 = vrot.slane %v6749, 4
    %v6752 = vshll.u32 %v6648, 16
    %v6754 = vrot.slane %v6752, 5
    %v6755 = vsel %vm598, %v6750, %v6754
    %v6757 = vshrl.u32 %v6633, 16
    %v6759 = vrot.slane %v6757, 4
    %v6760 = vshll.u32 %v6633, 16
    %v6762 = vrot.slane %v6760, 5
    %v6763 = vor.u32 %v6759, %v6762
    %v6764 = vrot.slane %v6763, 4
    %v6766 = vshll.u32 %v6649, 16
    %v6768 = vrot.slane %v6766, 5
    %v6769 = vsel %vm598, %v6764, %v6768
    %v6771 = vshrl.u32 %v6634, 16
    %v6773 = vrot.slane %v6771, 4
    %v6774 = vshll.u32 %v6634, 16
    %v6776 = vrot.slane %v6774, 5
    %v6777 = vor.u32 %v6773, %v6776
    %v6778 = vrot.slane %v6777, 4
    %v6780 = vshll.u32 %v6650, 16
    %v6782 = vrot.slane %v6780, 5
    %v6783 = vsel %vm598, %v6778, %v6782
    %v6785 = vshrl.u32 %v6635, 16
    %v6787 = vrot.slane %v6785, 4
    %v6788 = vshll.u32 %v6635, 16
    %v6790 = vrot.slane %v6788, 5
    %v6791 = vor.u32 %v6787, %v6790
    %v6792 = vrot.slane %v6791, 4
    %v6794 = vshll.u32 %v6651, 16
    %v6796 = vrot.slane %v6794, 5
    %v6797 = vsel %vm598, %v6792, %v6796
    %v6799 = vshrl.u32 %v6636, 16
    %v6801 = vrot.slane %v6799, 4
    %v6802 = vshll.u32 %v6636, 16
    %v6804 = vrot.slane %v6802, 5
    %v6805 = vor.u32 %v6801, %v6804
    %v6806 = vrot.slane %v6805, 4
    %v6808 = vshll.u32 %v6652, 16
    %v6810 = vrot.slane %v6808, 5
    %v6811 = vsel %vm598, %v6806, %v6810
    %v6813 = vshrl.u32 %v6637, 16
    %v6815 = vrot.slane %v6813, 4
    %v6816 = vshll.u32 %v6637, 16
    %v6818 = vrot.slane %v6816, 5
    %v6819 = vor.u32 %v6815, %v6818
    %v6820 = vrot.slane %v6819, 4
    %v6822 = vshll.u32 %v6653, 16
    %v6824 = vrot.slane %v6822, 5
    %v6825 = vsel %vm598, %v6820, %v6824
    %v6827 = vshrl.u32 %v6638, 16
    %v6829 = vrot.slane %v6827, 4
    %v6830 = vshll.u32 %v6638, 16
    %v6832 = vrot.slane %v6830, 5
    %v6833 = vor.u32 %v6829, %v6832
    %v6834 = vrot.slane %v6833, 4
    %v6836 = vshll.u32 %v6654, 16
    %v6838 = vrot.slane %v6836, 5
    %v6839 = vsel %vm598, %v6834, %v6838
    %v6841 = vshrl.u32 %v6639, 16
    %v6843 = vrot.slane %v6841, 4
    %v6844 = vshll.u32 %v6639, 16
    %v6846 = vrot.slane %v6844, 5
    %v6847 = vor.u32 %v6843, %v6846
    %v6848 = vrot.slane %v6847, 4
    %v6850 = vshll.u32 %v6655, 16
    %v6852 = vrot.slane %v6850, 5
    %v6853 = vsel %vm598, %v6848, %v6852
    %v6855 = vshrl.u32 %v6640, 16
    %v6857 = vrot.slane %v6855, 4
    %v6858 = vshll.u32 %v6640, 16
    %v6860 = vrot.slane %v6858, 5
    %v6861 = vor.u32 %v6857, %v6860
    %v6862 = vrot.slane %v6861, 4
    %v6864 = vshll.u32 %v6656, 16
    %v6866 = vrot.slane %v6864, 5
    %v6867 = vsel %vm598, %v6862, %v6866
    %v6869 = vshrl.u32 %v6641, 16
    %v6871 = vrot.slane %v6869, 4
    %v6872 = vshll.u32 %v6641, 16
    %v6874 = vrot.slane %v6872, 5
    %v6875 = vor.u32 %v6871, %v6874
    %v6876 = vrot.slane %v6875, 4
    %v6878 = vshll.u32 %v6657, 16
    %v6880 = vrot.slane %v6878, 5
    %v6881 = vsel %vm598, %v6876, %v6880
    %v6882 = vld [vmem:[%s1306] sm:$0xe]
    %v6883 = vld [vmem:[%s1306 + $0x8] sm:$0xe]
    %v6884 = vld [vmem:[%s1306 + $0x10] sm:$0xe]
    %v6885 = vld [vmem:[%s1306 + $0x18] sm:$0xe]
    %v6886 = vld [vmem:[%s1306 + $0x20] sm:$0xe]
    %v6887 = vld [vmem:[%s1306 + $0x28] sm:$0xe]
    %v6888 = vld [vmem:[%s1306 + $0x30] sm:$0xe]
    %v6889 = vld [vmem:[%s1306 + $0x38] sm:$0xe]
    %v6890 = vld [vmem:[%s1306 + $0x50] sm:$0xe]
    %v6891 = vld [vmem:[%s1306 + $0x58] sm:$0xe]
    %v6892 = vld [vmem:[%s1306 + $0x60] sm:$0xe]
    %v6893 = vld [vmem:[%s1306 + $0x68] sm:$0xe]
    %v6894 = vld [vmem:[%s1306 + $0x70] sm:$0xe]
    %v6895 = vld [vmem:[%s1306 + $0x78] sm:$0xe]
    %v6896 = vld [vmem:[%s1306 + $0x80] sm:$0xe]
    %v6897 = vld [vmem:[%s1306 + $0x88] sm:$0xe]
    %v6930 = vrot.slane %v6882, 5
    %v6931 = vrot.slane %v6930, 4
    %v6932 = vrot.slane %v6642, 5
    %v6933 = vsel %vm873, %v6931, %v6932
    %v6934 = vrot.slane %v6883, 5
    %v6935 = vrot.slane %v6934, 4
    %v6936 = vrot.slane %v6643, 5
    %v6937 = vsel %vm873, %v6935, %v6936
    %v6938 = vrot.slane %v6884, 5
    %v6939 = vrot.slane %v6938, 4
    %v6940 = vrot.slane %v6644, 5
    %v6941 = vsel %vm873, %v6939, %v6940
    %v6942 = vrot.slane %v6885, 5
    %v6943 = vrot.slane %v6942, 4
    %v6944 = vrot.slane %v6645, 5
    %v6945 = vsel %vm873, %v6943, %v6944
    %v6946 = vrot.slane %v6886, 5
    %v6947 = vrot.slane %v6946, 4
    %v6948 = vrot.slane %v6646, 5
    %v6949 = vsel %vm873, %v6947, %v6948
    %v6950 = vrot.slane %v6887, 5
    %v6951 = vrot.slane %v6950, 4
    %v6952 = vrot.slane %v6647, 5
    %v6953 = vsel %vm873, %v6951, %v6952
    %v6954 = vrot.slane %v6888, 5
    %v6955 = vrot.slane %v6954, 4
    %v6956 = vrot.slane %v6648, 5
    %v6957 = vsel %vm873, %v6955, %v6956
    %v6958 = vrot.slane %v6889, 5
    %v6959 = vrot.slane %v6958, 4
    %v6960 = vrot.slane %v6649, 5
    %v6961 = vsel %vm873, %v6959, %v6960
    %v6962 = vrot.slane %v6890, 5
    %v6963 = vrot.slane %v6962, 4
    %v6964 = vrot.slane %v6650, 5
    %v6965 = vsel %vm873, %v6963, %v6964
    %v6966 = vrot.slane %v6891, 5
    %v6967 = vrot.slane %v6966, 4
    %v6968 = vrot.slane %v6651, 5
    %v6969 = vsel %vm873, %v6967, %v6968
    %v6970 = vrot.slane %v6892, 5
    %v6971 = vrot.slane %v6970, 4
    %v6972 = vrot.slane %v6652, 5
    %v6973 = vsel %vm873, %v6971, %v6972
    %v6974 = vrot.slane %v6893, 5
    %v6975 = vrot.slane %v6974, 4
    %v6976 = vrot.slane %v6653, 5
    %v6977 = vsel %vm873, %v6975, %v6976
    %v6978 = vrot.slane %v6894, 5
    %v6979 = vrot.slane %v6978, 4
    %v6980 = vrot.slane %v6654, 5
    %v6981 = vsel %vm873, %v6979, %v6980
    %v6982 = vrot.slane %v6895, 5
    %v6983 = vrot.slane %v6982, 4
    %v6984 = vrot.slane %v6655, 5
    %v6985 = vsel %vm873, %v6983, %v6984
    %v6986 = vrot.slane %v6896, 5
    %v6987 = vrot.slane %v6986, 4
    %v6988 = vrot.slane %v6656, 5
    %v6989 = vsel %vm873, %v6987, %v6988
    %v6990 = vrot.slane %v6897, 5
    %v6991 = vrot.slane %v6990, 4
    %v6992 = vrot.slane %v6657, 5
    %v6993 = vsel %vm873, %v6991, %v6992
    %v7010 = vunpack.c.l.b16 %v5890
    %v7011 = vunpack.c.l.b16 %v5891
    %v7012 = vunpack.c.l.b16 %v5892
    %v7013 = vunpack.c.l.b16 %v5893
    %v7014 = vunpack.c.l.b16 %v5894
    %v7015 = vunpack.c.l.b16 %v5895
    %v7016 = vunpack.c.l.b16 %v5896
    %v7017 = vunpack.c.l.b16 %v5897
    %v7018 = vunpack.c.l.b16 %v5898
    %v7019 = vunpack.c.l.b16 %v5899
    %v7020 = vunpack.c.l.b16 %v5900
    %v7021 = vunpack.c.l.b16 %v5901
    %v7022 = vunpack.c.l.b16 %v5902
    %v7023 = vunpack.c.l.b16 %v5903
    %v7024 = vunpack.c.l.b16 %v5904
    %v7025 = vunpack.c.l.b16 %v5905
    %v7026 = vpack.c.b16 %v7011, %v7010
    %v7027 = vpack.c.b16 %v7013, %v7012
    %v7028 = vpack.c.b16 %v7015, %v7014
    %v7029 = vpack.c.b16 %v7017, %v7016
    %v7030 = vpack.c.b16 %v7019, %v7018
    %v7031 = vpack.c.b16 %v7021, %v7020
    %v7032 = vpack.c.b16 %v7023, %v7022
    %v7033 = vpack.c.b16 %v7025, %v7024
    %v7034 = vunpack.c.l.b16 %v5935
    %v7035 = vunpack.c.l.b16 %v5949
    %v7036 = vunpack.c.l.b16 %v5963
    %v7037 = vunpack.c.l.b16 %v5977
    %v7038 = vunpack.c.l.b16 %v5991
    %v7039 = vunpack.c.l.b16 %v6005
    %v7040 = vunpack.c.l.b16 %v6019
    %v7041 = vunpack.c.l.b16 %v6033
    %v7042 = vunpack.c.l.b16 %v6047
    %v7043 = vunpack.c.l.b16 %v6061
    %v7044 = vunpack.c.l.b16 %v6075
    %v7045 = vunpack.c.l.b16 %v6089
    %v7046 = vunpack.c.l.b16 %v6103
    %v7047 = vunpack.c.l.b16 %v6117
    %v7048 = vunpack.c.l.b16 %v6131
    %v7049 = vunpack.c.l.b16 %v6145
    %v7050 = vpack.c.b16 %v7035, %v7034
    %v7051 = vpack.c.b16 %v7037, %v7036
    %v7052 = vpack.c.b16 %v7039, %v7038
    %v7053 = vpack.c.b16 %v7041, %v7040
    %v7054 = vpack.c.b16 %v7043, %v7042
    %v7055 = vpack.c.b16 %v7045, %v7044
    %v7056 = vpack.c.b16 %v7047, %v7046
    %v7057 = vpack.c.b16 %v7049, %v7048
    %7058 = vrot.lane.b32.xlu0 %v7050, 64
    %v7059 = vpop.permute.xlu0 %7058
    %7060 = vrot.lane.b32.xlu0 %v7051, 64
    %v7061 = vpop.permute.xlu0 %7060
    %7062 = vrot.lane.b32.xlu0 %v7052, 64
    %v7063 = vpop.permute.xlu0 %7062
    %7064 = vrot.lane.b32.xlu0 %v7053, 64
    %v7065 = vpop.permute.xlu0 %7064
    %7066 = vrot.lane.b32.xlu0 %v7054, 64
    %v7067 = vpop.permute.xlu0 %7066
    %7068 = vrot.lane.b32.xlu0 %v7055, 64
    %v7069 = vpop.permute.xlu0 %7068
    %7070 = vrot.lane.b32.xlu0 %v7056, 64
    %v7071 = vpop.permute.xlu0 %7070
    %7072 = vrot.lane.b32.xlu0 %v7057, 64
    %v7073 = vpop.permute.xlu0 %7072
    %v7074 = vunpack.c.l.b16 %v6197
    %v7075 = vunpack.c.l.b16 %v6201
    %v7076 = vunpack.c.l.b16 %v6205
    %v7077 = vunpack.c.l.b16 %v6209
    %v7078 = vunpack.c.l.b16 %v6213
    %v7079 = vunpack.c.l.b16 %v6217
    %v7080 = vunpack.c.l.b16 %v6221
    %v7081 = vunpack.c.l.b16 %v6225
    %v7082 = vunpack.c.l.b16 %v6229
    %v7083 = vunpack.c.l.b16 %v6233
    %v7084 = vunpack.c.l.b16 %v6237
    %v7085 = vunpack.c.l.b16 %v6241
    %v7086 = vunpack.c.l.b16 %v6245
    %v7087 = vunpack.c.l.b16 %v6249
    %v7088 = vunpack.c.l.b16 %v6253
    %v7089 = vunpack.c.l.b16 %v6257
    %v7090 = vpack.c.b16 %v7075, %v7074
    %v7091 = vpack.c.b16 %v7077, %v7076
    %v7092 = vpack.c.b16 %v7079, %v7078
    %v7093 = vpack.c.b16 %v7081, %v7080
    %v7094 = vpack.c.b16 %v7083, %v7082
    %v7095 = vpack.c.b16 %v7085, %v7084
    %v7096 = vpack.c.b16 %v7087, %v7086
    %v7097 = vpack.c.b16 %v7089, %v7088
    %v7114 = vunpack.c.l.b16 %v6258
    %v7115 = vunpack.c.l.b16 %v6259
    %v7116 = vunpack.c.l.b16 %v6260
    %v7117 = vunpack.c.l.b16 %v6261
    %v7118 = vunpack.c.l.b16 %v6262
    %v7119 = vunpack.c.l.b16 %v6263
    %v7120 = vunpack.c.l.b16 %v6264
    %v7121 = vunpack.c.l.b16 %v6265
    %v7122 = vunpack.c.l.b16 %v6266
    %v7123 = vunpack.c.l.b16 %v6267
    %v7124 = vunpack.c.l.b16 %v6268
    %v7125 = vunpack.c.l.b16 %v6269
    %v7126 = vunpack.c.l.b16 %v6270
    %v7127 = vunpack.c.l.b16 %v6271
    %v7128 = vunpack.c.l.b16 %v6272
    %v7129 = vunpack.c.l.b16 %v6273
    %v7130 = vpack.c.b16 %v7115, %v7114
    %v7131 = vpack.c.b16 %v7117, %v7116
    %v7132 = vpack.c.b16 %v7119, %v7118
    %v7133 = vpack.c.b16 %v7121, %v7120
    %v7134 = vpack.c.b16 %v7123, %v7122
    %v7135 = vpack.c.b16 %v7125, %v7124
    %v7136 = vpack.c.b16 %v7127, %v7126
    %v7137 = vpack.c.b16 %v7129, %v7128
    %7138 = vrot.lane.b32.xlu0 %v7130, 64
    %v7139 = vpop.permute.xlu0 %7138
    %7140 = vrot.lane.b32.xlu0 %v7131, 64
    %v7141 = vpop.permute.xlu0 %7140
    %7142 = vrot.lane.b32.xlu0 %v7132, 64
    %v7143 = vpop.permute.xlu0 %7142
    %7144 = vrot.lane.b32.xlu0 %v7133, 64
    %v7145 = vpop.permute.xlu0 %7144
    %7146 = vrot.lane.b32.xlu0 %v7134, 64
    %v7147 = vpop.permute.xlu0 %7146
    %7148 = vrot.lane.b32.xlu0 %v7135, 64
    %v7149 = vpop.permute.xlu0 %7148
    %7150 = vrot.lane.b32.xlu0 %v7136, 64
    %v7151 = vpop.permute.xlu0 %7150
    %7152 = vrot.lane.b32.xlu0 %v7137, 64
    %v7153 = vpop.permute.xlu0 %7152
    %v7154 = vunpack.c.l.b16 %v6303
    %v7155 = vunpack.c.l.b16 %v6317
    %v7156 = vunpack.c.l.b16 %v6331
    %v7157 = vunpack.c.l.b16 %v6345
    %v7158 = vunpack.c.l.b16 %v6359
    %v7159 = vunpack.c.l.b16 %v6373
    %v7160 = vunpack.c.l.b16 %v6387
    %v7161 = vunpack.c.l.b16 %v6401
    %v7162 = vunpack.c.l.b16 %v6415
    %v7163 = vunpack.c.l.b16 %v6429
    %v7164 = vunpack.c.l.b16 %v6443
    %v7165 = vunpack.c.l.b16 %v6457
    %v7166 = vunpack.c.l.b16 %v6471
    %v7167 = vunpack.c.l.b16 %v6485
    %v7168 = vunpack.c.l.b16 %v6499
    %v7169 = vunpack.c.l.b16 %v6513
    %v7170 = vpack.c.b16 %v7155, %v7154
    %v7171 = vpack.c.b16 %v7157, %v7156
    %v7172 = vpack.c.b16 %v7159, %v7158
    %v7173 = vpack.c.b16 %v7161, %v7160
    %v7174 = vpack.c.b16 %v7163, %v7162
    %v7175 = vpack.c.b16 %v7165, %v7164
    %v7176 = vpack.c.b16 %v7167, %v7166
    %v7177 = vpack.c.b16 %v7169, %v7168
    %v7178 = vunpack.c.l.b16 %v6565
    %v7179 = vunpack.c.l.b16 %v6569
    %v7180 = vunpack.c.l.b16 %v6573
    %v7181 = vunpack.c.l.b16 %v6577
    %v7182 = vunpack.c.l.b16 %v6581
    %v7183 = vunpack.c.l.b16 %v6585
    %v7184 = vunpack.c.l.b16 %v6589
    %v7185 = vunpack.c.l.b16 %v6593
    %v7186 = vunpack.c.l.b16 %v6597
    %v7187 = vunpack.c.l.b16 %v6601
    %v7188 = vunpack.c.l.b16 %v6605
    %v7189 = vunpack.c.l.b16 %v6609
    %v7190 = vunpack.c.l.b16 %v6613
    %v7191 = vunpack.c.l.b16 %v6617
    %v7192 = vunpack.c.l.b16 %v6621
    %v7193 = vunpack.c.l.b16 %v6625
    %v7194 = vpack.c.b16 %v7179, %v7178
    %v7195 = vpack.c.b16 %v7181, %v7180
    %v7196 = vpack.c.b16 %v7183, %v7182
    %v7197 = vpack.c.b16 %v7185, %v7184
    %v7198 = vpack.c.b16 %v7187, %v7186
    %v7199 = vpack.c.b16 %v7189, %v7188
    %v7200 = vpack.c.b16 %v7191, %v7190
    %v7201 = vpack.c.b16 %v7193, %v7192
    %7202 = vrot.lane.b32.xlu0 %v7194, 64
    %v7203 = vpop.permute.xlu0 %7202
    %7204 = vrot.lane.b32.xlu0 %v7195, 64
    %v7205 = vpop.permute.xlu0 %7204
    %7206 = vrot.lane.b32.xlu0 %v7196, 64
    %v7207 = vpop.permute.xlu0 %7206
    %7208 = vrot.lane.b32.xlu0 %v7197, 64
    %v7209 = vpop.permute.xlu0 %7208
    %7210 = vrot.lane.b32.xlu0 %v7198, 64
    %v7211 = vpop.permute.xlu0 %7210
    %7212 = vrot.lane.b32.xlu0 %v7199, 64
    %v7213 = vpop.permute.xlu0 %7212
    %7214 = vrot.lane.b32.xlu0 %v7200, 64
    %v7215 = vpop.permute.xlu0 %7214
    %7216 = vrot.lane.b32.xlu0 %v7201, 64
    %v7217 = vpop.permute.xlu0 %7216
    %v7234 = vunpack.c.l.b16 %v6626
    %v7235 = vunpack.c.l.b16 %v6627
    %v7236 = vunpack.c.l.b16 %v6628
    %v7237 = vunpack.c.l.b16 %v6629
    %v7238 = vunpack.c.l.b16 %v6630
    %v7239 = vunpack.c.l.b16 %v6631
    %v7240 = vunpack.c.l.b16 %v6632
    %v7241 = vunpack.c.l.b16 %v6633
    %v7242 = vunpack.c.l.b16 %v6634
    %v7243 = vunpack.c.l.b16 %v6635
    %v7244 = vunpack.c.l.b16 %v6636
    %v7245 = vunpack.c.l.b16 %v6637
    %v7246 = vunpack.c.l.b16 %v6638
    %v7247 = vunpack.c.l.b16 %v6639
    %v7248 = vunpack.c.l.b16 %v6640
    %v7249 = vunpack.c.l.b16 %v6641
    %v7250 = vpack.c.b16 %v7235, %v7234
    %v7251 = vpack.c.b16 %v7237, %v7236
    %v7252 = vpack.c.b16 %v7239, %v7238
    %v7253 = vpack.c.b16 %v7241, %v7240
    %v7254 = vpack.c.b16 %v7243, %v7242
    %v7255 = vpack.c.b16 %v7245, %v7244
    %v7256 = vpack.c.b16 %v7247, %v7246
    %v7257 = vpack.c.b16 %v7249, %v7248
    %v7258 = vunpack.c.l.b16 %v6671
    %v7259 = vunpack.c.l.b16 %v6685
    %v7260 = vunpack.c.l.b16 %v6699
    %v7261 = vunpack.c.l.b16 %v6713
    %v7262 = vunpack.c.l.b16 %v6727
    %v7263 = vunpack.c.l.b16 %v6741
    %v7264 = vunpack.c.l.b16 %v6755
    %v7265 = vunpack.c.l.b16 %v6769
    %v7266 = vunpack.c.l.b16 %v6783
    %v7267 = vunpack.c.l.b16 %v6797
    %v7268 = vunpack.c.l.b16 %v6811
    %v7269 = vunpack.c.l.b16 %v6825
    %v7270 = vunpack.c.l.b16 %v6839
    %v7271 = vunpack.c.l.b16 %v6853
    %v7272 = vunpack.c.l.b16 %v6867
    %v7273 = vunpack.c.l.b16 %v6881
    %v7274 = vpack.c.b16 %v7259, %v7258
    %v7275 = vpack.c.b16 %v7261, %v7260
    %v7276 = vpack.c.b16 %v7263, %v7262
    %v7277 = vpack.c.b16 %v7265, %v7264
    %v7278 = vpack.c.b16 %v7267, %v7266
    %v7279 = vpack.c.b16 %v7269, %v7268
    %v7280 = vpack.c.b16 %v7271, %v7270
    %v7281 = vpack.c.b16 %v7273, %v7272
    %7282 = vrot.lane.b32.xlu0 %v7274, 64
    %v7283 = vpop.permute.xlu0 %7282
    %7284 = vrot.lane.b32.xlu0 %v7275, 64
    %v7285 = vpop.permute.xlu0 %7284
    %7286 = vrot.lane.b32.xlu0 %v7276, 64
    %v7287 = vpop.permute.xlu0 %7286
    %7288 = vrot.lane.b32.xlu0 %v7277, 64
    %v7289 = vpop.permute.xlu0 %7288
    %7290 = vrot.lane.b32.xlu0 %v7278, 64
    %v7291 = vpop.permute.xlu0 %7290
    %7292 = vrot.lane.b32.xlu0 %v7279, 64
    %v7293 = vpop.permute.xlu0 %7292
    %7294 = vrot.lane.b32.xlu0 %v7280, 64
    %v7295 = vpop.permute.xlu0 %7294
    %7296 = vrot.lane.b32.xlu0 %v7281, 64
    %v7297 = vpop.permute.xlu0 %7296
    %v7298 = vunpack.c.l.b16 %v6933
    %v7299 = vunpack.c.l.b16 %v6937
    %v7300 = vunpack.c.l.b16 %v6941
    %v7301 = vunpack.c.l.b16 %v6945
    %v7302 = vunpack.c.l.b16 %v6949
    %v7303 = vunpack.c.l.b16 %v6953
    %v7304 = vunpack.c.l.b16 %v6957
    %v7305 = vunpack.c.l.b16 %v6961
    %v7306 = vunpack.c.l.b16 %v6965
    %v7307 = vunpack.c.l.b16 %v6969
    %v7308 = vunpack.c.l.b16 %v6973
    %v7309 = vunpack.c.l.b16 %v6977
    %v7310 = vunpack.c.l.b16 %v6981
    %v7311 = vunpack.c.l.b16 %v6985
    %v7312 = vunpack.c.l.b16 %v6989
    %v7313 = vunpack.c.l.b16 %v6993
    %v7314 = vpack.c.b16 %v7299, %v7298
    %v7315 = vpack.c.b16 %v7301, %v7300
    %v7316 = vpack.c.b16 %v7303, %v7302
    %v7317 = vpack.c.b16 %v7305, %v7304
    %v7318 = vpack.c.b16 %v7307, %v7306
    %v7319 = vpack.c.b16 %v7309, %v7308
    %v7320 = vpack.c.b16 %v7311, %v7310
    %v7321 = vpack.c.b16 %v7313, %v7312
    %v7324 = vsel %vm2003, %v7026, %v7059
    %v7328 = vsel %vm2003, %v7027, %v7061
    %v7332 = vsel %vm2003, %v7028, %v7063
    %v7336 = vsel %vm2003, %v7029, %v7065
    %v7340 = vsel %vm2003, %v7030, %v7067
    %v7344 = vsel %vm2003, %v7031, %v7069
    %v7348 = vsel %vm2003, %v7032, %v7071
    %v7352 = vsel %vm2003, %v7033, %v7073
    %v7356 = vsel %vm2003, %v7090, %v7139
    %v7360 = vsel %vm2003, %v7091, %v7141
    %v7364 = vsel %vm2003, %v7092, %v7143
    %v7368 = vsel %vm2003, %v7093, %v7145
    %v7372 = vsel %vm2003, %v7094, %v7147
    %v7376 = vsel %vm2003, %v7095, %v7149
    %v7380 = vsel %vm2003, %v7096, %v7151
    %v7384 = vsel %vm2003, %v7097, %v7153
    %v7388 = vsel %vm2003, %v7170, %v7203
    %v7392 = vsel %vm2003, %v7171, %v7205
    %v7396 = vsel %vm2003, %v7172, %v7207
    %v7400 = vsel %vm2003, %v7173, %v7209
    %v7404 = vsel %vm2003, %v7174, %v7211
    %v7408 = vsel %vm2003, %v7175, %v7213
    %v7412 = vsel %vm2003, %v7176, %v7215
    %v7416 = vsel %vm2003, %v7177, %v7217
    %v7420 = vsel %vm2003, %v7250, %v7283
    %v7424 = vsel %vm2003, %v7251, %v7285
    %v7428 = vsel %vm2003, %v7252, %v7287
    %v7432 = vsel %vm2003, %v7253, %v7289
    %v7436 = vsel %vm2003, %v7254, %v7291
    %v7440 = vsel %vm2003, %v7255, %v7293
    %v7444 = vsel %vm2003, %v7256, %v7295
    %v7448 = vsel %vm2003, %v7257, %v7297
    %v7450 = vld [vmem:[#allocation9] sm:$0xf]
    %v7451 = vld [vmem:[#allocation9 + $0x4] sm:$0xf]
    %v7452 = vld [vmem:[#allocation9 + $0x8] sm:$0xf]
    %v7453 = vld [vmem:[#allocation9 + $0xc] sm:$0xf]
    %v7454 = vld [vmem:[#allocation9 + $0x10] sm:$0xf]
    %v7455 = vld [vmem:[#allocation9 + $0x14] sm:$0xf]
    %v7456 = vld [vmem:[#allocation9 + $0x18] sm:$0xf]
    %v7457 = vld [vmem:[#allocation9 + $0x1c] sm:$0xf]
    %v7458 = vld [vmem:[#allocation9 + $0x20] sm:$0xf]
    %v7459 = vld [vmem:[#allocation9 + $0x24] sm:$0xf]
    %v7460 = vld [vmem:[#allocation9 + $0x28] sm:$0xf]
    %v7461 = vld [vmem:[#allocation9 + $0x2c] sm:$0xf]
    %v7462 = vld [vmem:[#allocation9 + $0x30] sm:$0xf]
    %v7463 = vld [vmem:[#allocation9 + $0x34] sm:$0xf]
    %v7464 = vld [vmem:[#allocation9 + $0x38] sm:$0xf]
    %v7465 = vld [vmem:[#allocation9 + $0x3c] sm:$0xf]
    %v7466 = vld [vmem:[#allocation9 + $0x40] sm:$0xf]
    %v7467 = vld [vmem:[#allocation9 + $0x44] sm:$0xf]
    %v7468 = vld [vmem:[#allocation9 + $0x48] sm:$0xf]
    %v7469 = vld [vmem:[#allocation9 + $0x4c] sm:$0xf]
    %v7470 = vld [vmem:[#allocation9 + $0x50] sm:$0xf]
    %v7471 = vld [vmem:[#allocation9 + $0x54] sm:$0xf]
    %v7472 = vld [vmem:[#allocation9 + $0x58] sm:$0xf]
    %v7473 = vld [vmem:[#allocation9 + $0x5c] sm:$0xf]
    %v7474 = vld [vmem:[#allocation9 + $0x60] sm:$0xf]
    %v7475 = vld [vmem:[#allocation9 + $0x64] sm:$0xf]
    %v7476 = vld [vmem:[#allocation9 + $0x68] sm:$0xf]
    %v7477 = vld [vmem:[#allocation9 + $0x6c] sm:$0xf]
    %v7478 = vld [vmem:[#allocation9 + $0x70] sm:$0xf]
    %v7479 = vld [vmem:[#allocation9 + $0x74] sm:$0xf]
    %v7480 = vld [vmem:[#allocation9 + $0x78] sm:$0xf]
    %v7481 = vld [vmem:[#allocation9 + $0x7c] sm:$0xf]
    %v7482 = vld [vmem:[#allocation9 + $0x80] sm:$0xf]
    %v7483 = vld [vmem:[#allocation9 + $0x84] sm:$0xf]
    %v7484 = vld [vmem:[#allocation9 + $0x88] sm:$0xf]
    %v7485 = vld [vmem:[#allocation9 + $0x8c] sm:$0xf]
    %v7486 = vld [vmem:[#allocation9 + $0x90] sm:$0xf]
    %v7487 = vld [vmem:[#allocation9 + $0x94] sm:$0xf]
    %v7488 = vld [vmem:[#allocation9 + $0x98] sm:$0xf]
    %v7489 = vld [vmem:[#allocation9 + $0x9c] sm:$0xf]
    %v7490 = vld [vmem:[#allocation9 + $0xa0] sm:$0xf]
    %v7491 = vld [vmem:[#allocation9 + $0xa4] sm:$0xf]
    %v7492 = vld [vmem:[#allocation9 + $0xa8] sm:$0xf]
    %v7493 = vld [vmem:[#allocation9 + $0xac] sm:$0xf]
    %v7494 = vld [vmem:[#allocation9 + $0xb0] sm:$0xf]
    %v7495 = vld [vmem:[#allocation9 + $0xb4] sm:$0xf]
    %v7496 = vld [vmem:[#allocation9 + $0xb8] sm:$0xf]
    %v7497 = vld [vmem:[#allocation9 + $0xbc] sm:$0xf]
    %v7498 = vld [vmem:[#allocation9 + $0xc0] sm:$0xf]
    %v7499 = vld [vmem:[#allocation9 + $0xc4] sm:$0xf]
    %v7500 = vld [vmem:[#allocation9 + $0xc8] sm:$0xf]
    %v7501 = vld [vmem:[#allocation9 + $0xcc] sm:$0xf]
    %v7502 = vld [vmem:[#allocation9 + $0xd0] sm:$0xf]
    %v7503 = vld [vmem:[#allocation9 + $0xd4] sm:$0xf]
    %v7504 = vld [vmem:[#allocation9 + $0xd8] sm:$0xf]
    %v7505 = vld [vmem:[#allocation9 + $0xdc] sm:$0xf]
    %v7506 = vld [vmem:[#allocation9 + $0xe0] sm:$0xf]
    %v7507 = vld [vmem:[#allocation9 + $0xe4] sm:$0xf]
    %v7508 = vld [vmem:[#allocation9 + $0xe8] sm:$0xf]
    %v7509 = vld [vmem:[#allocation9 + $0xec] sm:$0xf]
    %v7510 = vld [vmem:[#allocation9 + $0xf0] sm:$0xf]
    %v7511 = vld [vmem:[#allocation9 + $0xf4] sm:$0xf]
    %v7512 = vld [vmem:[#allocation9 + $0xf8] sm:$0xf]
    %v7513 = vld [vmem:[#allocation9 + $0xfc] sm:$0xf]
    %v7514 = vld [vmem:[#allocation9 + $0x100] sm:$0xf]
    %v7515 = vld [vmem:[#allocation9 + $0x104] sm:$0xf]
    %v7516 = vld [vmem:[#allocation9 + $0x108] sm:$0xf]
    %v7517 = vld [vmem:[#allocation9 + $0x10c] sm:$0xf]
    %v7518 = vld [vmem:[#allocation9 + $0x110] sm:$0xf]
    %v7519 = vld [vmem:[#allocation9 + $0x114] sm:$0xf]
    %v7520 = vld [vmem:[#allocation9 + $0x118] sm:$0xf]
    %v7521 = vld [vmem:[#allocation9 + $0x11c] sm:$0xf]
    %v7522 = vld [vmem:[%s6] sm:$0x1]
    %v7524 = vlaneseq
    %v7525 = vshrl.u32 %v7524, 7
    %v7526 = vsub.s32 0, %v7525
    %v7527 = vrot.slane %v7522, %v7526
    %v7601 = vunpack.c.l.b16 %v7450
    %v7602 = vunpack.c.l.b16 %v7451
    %v7603 = vunpack.c.l.b16 %v7452
    %v7604 = vunpack.c.l.b16 %v7453
    %v7605 = vunpack.c.l.b16 %v7454
    %v7606 = vunpack.c.l.b16 %v7455
    %v7607 = vunpack.c.l.b16 %v7456
    %v7608 = vunpack.c.l.b16 %v7457
    %v7609 = vunpack.c.l.b16 %v7458
    %v7610 = vunpack.c.l.b16 %v7459
    %v7611 = vunpack.c.l.b16 %v7460
    %v7612 = vunpack.c.l.b16 %v7461
    %v7613 = vunpack.c.l.b16 %v7462
    %v7614 = vunpack.c.l.b16 %v7463
    %v7615 = vunpack.c.l.b16 %v7464
    %v7616 = vunpack.c.l.b16 %v7465
    %v7617 = vunpack.c.l.b16 %v7466
    %v7618 = vunpack.c.l.b16 %v7467
    %v7619 = vunpack.c.l.b16 %v7468
    %v7620 = vunpack.c.l.b16 %v7469
    %v7621 = vunpack.c.l.b16 %v7470
    %v7622 = vunpack.c.l.b16 %v7471
    %v7623 = vunpack.c.l.b16 %v7472
    %v7624 = vunpack.c.l.b16 %v7473
    %v7625 = vunpack.c.l.b16 %v7474
    %v7626 = vunpack.c.l.b16 %v7475
    %v7627 = vunpack.c.l.b16 %v7476
    %v7628 = vunpack.c.l.b16 %v7477
    %v7629 = vunpack.c.l.b16 %v7478
    %v7630 = vunpack.c.l.b16 %v7479
    %v7631 = vunpack.c.l.b16 %v7480
    %v7632 = vunpack.c.l.b16 %v7481
    %v7633 = vunpack.c.l.b16 %v7482
    %v7634 = vunpack.c.l.b16 %v7483
    %v7635 = vunpack.c.l.b16 %v7484
    %v7636 = vunpack.c.l.b16 %v7485
    %v7637 = vunpack.c.l.b16 %v7486
    %v7638 = vunpack.c.l.b16 %v7487
    %v7639 = vunpack.c.l.b16 %v7488
    %v7640 = vunpack.c.l.b16 %v7489
    %v7641 = vunpack.c.l.b16 %v7490
    %v7642 = vunpack.c.l.b16 %v7491
    %v7643 = vunpack.c.l.b16 %v7492
    %v7644 = vunpack.c.l.b16 %v7493
    %v7645 = vunpack.c.l.b16 %v7494
    %v7646 = vunpack.c.l.b16 %v7495
    %v7647 = vunpack.c.l.b16 %v7496
    %v7648 = vunpack.c.l.b16 %v7497
    %v7649 = vunpack.c.l.b16 %v7498
    %v7650 = vunpack.c.l.b16 %v7499
    %v7651 = vunpack.c.l.b16 %v7500
    %v7652 = vunpack.c.l.b16 %v7501
    %v7653 = vunpack.c.l.b16 %v7502
    %v7654 = vunpack.c.l.b16 %v7503
    %v7655 = vunpack.c.l.b16 %v7504
    %v7656 = vunpack.c.l.b16 %v7505
    %v7657 = vunpack.c.l.b16 %v7506
    %v7658 = vunpack.c.l.b16 %v7507
    %v7659 = vunpack.c.l.b16 %v7508
    %v7660 = vunpack.c.l.b16 %v7509
    %v7661 = vunpack.c.l.b16 %v7510
    %v7662 = vunpack.c.l.b16 %v7511
    %v7663 = vunpack.c.l.b16 %v7512
    %v7664 = vunpack.c.l.b16 %v7513
    %v7665 = vunpack.c.l.b16 %v7514
    %v7666 = vunpack.c.l.b16 %v7515
    %v7667 = vunpack.c.l.b16 %v7516
    %v7668 = vunpack.c.l.b16 %v7517
    %v7669 = vunpack.c.l.b16 %v7518
    %v7670 = vunpack.c.l.b16 %v7519
    %v7671 = vunpack.c.l.b16 %v7520
    %v7672 = vunpack.c.l.b16 %v7521
    %v7673 = vpack.c.b16 %v7602, %v7601
    %v7674 = vpack.c.b16 %v7604, %v7603
    %v7675 = vpack.c.b16 %v7606, %v7605
    %v7676 = vpack.c.b16 %v7608, %v7607
    %v7677 = vpack.c.b16 %v7610, %v7609
    %v7678 = vpack.c.b16 %v7612, %v7611
    %v7679 = vpack.c.b16 %v7614, %v7613
    %v7680 = vpack.c.b16 %v7616, %v7615
    %v7681 = vpack.c.b16 %v7618, %v7617
    %v7682 = vpack.c.b16 %v7620, %v7619
    %v7683 = vpack.c.b16 %v7622, %v7621
    %v7684 = vpack.c.b16 %v7624, %v7623
    %v7685 = vpack.c.b16 %v7626, %v7625
    %v7686 = vpack.c.b16 %v7628, %v7627
    %v7687 = vpack.c.b16 %v7630, %v7629
    %v7688 = vpack.c.b16 %v7632, %v7631
    %v7689 = vpack.c.b16 %v7634, %v7633
    %v7690 = vpack.c.b16 %v7636, %v7635
    %v7691 = vpack.c.b16 %v7638, %v7637
    %v7692 = vpack.c.b16 %v7640, %v7639
    %v7693 = vpack.c.b16 %v7642, %v7641
    %v7694 = vpack.c.b16 %v7644, %v7643
    %v7695 = vpack.c.b16 %v7646, %v7645
    %v7696 = vpack.c.b16 %v7648, %v7647
    %v7697 = vpack.c.b16 %v7650, %v7649
    %v7698 = vpack.c.b16 %v7652, %v7651
    %v7699 = vpack.c.b16 %v7654, %v7653
    %v7700 = vpack.c.b16 %v7656, %v7655
    %v7701 = vpack.c.b16 %v7658, %v7657
    %v7702 = vpack.c.b16 %v7660, %v7659
    %v7703 = vpack.c.b16 %v7662, %v7661
    %v7704 = vpack.c.b16 %v7664, %v7663
    %v7705 = vpack.c.b16 %v7666, %v7665
    %v7706 = vpack.c.b16 %v7668, %v7667
    %v7707 = vpack.c.b16 %v7670, %v7669
    %v7708 = vpack.c.b16 %v7672, %v7671
    %v7746 = vsel %vm2003, %v7314, 0
    %v7749 = vsel %vm2003, %v7315, 0
    %v7752 = vsel %vm2003, %v7316, 0
    %v7755 = vsel %vm2003, %v7317, 0
    %v7758 = vsel %vm2003, %v7318, 0
    %v7761 = vsel %vm2003, %v7319, 0
    %v7764 = vsel %vm2003, %v7320, 0
    %v7767 = vsel %vm2003, %v7321, 0
    %7769 = vmatprep.subr.bf16.mxu0 0
    %7770 = vmatpush1.bf16.msra.mxu0 %v7673
    %7771 = vmatprep.subr.bf16.mxu0 0
    %7772 = vmatpush1.bf16.msra.mxu0 %v7674
    %7773 = vmatprep.subr.bf16.mxu0 0
    %7774 = vmatpush1.bf16.msra.mxu0 %v7675
    %7775 = vmatprep.subr.bf16.mxu0 0
    %7776 = vmatpush1.bf16.msra.mxu0 %v7676
    %7777 = vmatprep.subr.bf16.mxu0 0
    %7778 = vmatpush1.bf16.msra.mxu0 %v7677
    %7779 = vmatprep.subr.bf16.mxu0 0
    %7780 = vmatpush1.bf16.msra.mxu0 %v7678
    %7781 = vmatprep.subr.bf16.mxu0 0
    %7782 = vmatpush1.bf16.msra.mxu0 %v7679
    %7783 = vmatprep.subr.bf16.mxu0 0
    %7784 = vmatpush1.bf16.msra.mxu0 %v7680
    %7785 = vmatprep.subr.bf16.mxu0 0
    %7786 = vmatpush1.bf16.msra.mxu0 %v7681
    %7787 = vmatprep.subr.bf16.mxu0 0
    %7788 = vmatpush1.bf16.msra.mxu0 %v7682
    %7789 = vmatprep.subr.bf16.mxu0 0
    %7790 = vmatpush1.bf16.msra.mxu0 %v7683
    %7791 = vmatprep.subr.bf16.mxu0 0
    %7792 = vmatpush1.bf16.msra.mxu0 %v7684
    %7793 = vmatprep.subr.bf16.mxu0 0
    %7794 = vmatpush1.bf16.msra.mxu0 %v7685
    %7795 = vmatprep.subr.bf16.mxu0 0
    %7796 = vmatpush1.bf16.msra.mxu0 %v7686
    %7797 = vmatprep.subr.bf16.mxu0 0
    %7798 = vmatpush1.bf16.msra.mxu0 %v7687
    %7799 = vmatprep.subr.bf16.mxu0 0
    %7800 = vmatpush1.bf16.msra.mxu0 %v7688
    %7801 = vmatprep.mubr.bf16.mxu0 %v7356
    %7802 = vmatmul.mubr.bf16.gmra.mrb[0].mxu0 %v7324
    %v7803 = vpop.f32.mrb[0].mxu0
    %v7804 = vadd.f32 %v7527, %v7803
    %v7805 = vpop.f32.mrb[0].mxu0
    %v7806 = vpop.f32.mrb[0].mxu0
    %v7807 = vadd.f32 %v7527, %v7806
    %v7808 = vpop.f32.mrb[0].mxu0
    %7809 = vmatprep.mubr.bf16.mxu0 %v7360
    %7810 = vmatmul.mubr.bf16.gmra.mrb[0].mxu0 %v7328
    %v7811 = vpop.f32.mrb[0].mxu0
    %v7812 = vadd.f32 %v7527, %v7811
    %v7813 = vpop.f32.mrb[0].mxu0
    %v7814 = vpop.f32.mrb[0].mxu0
    %v7815 = vadd.f32 %v7527, %v7814
    %v7816 = vpop.f32.mrb[0].mxu0
    %7817 = vmatprep.mubr.bf16.mxu0 %v7364
    %7818 = vmatmul.mubr.bf16.gmra.mrb[0].mxu0 %v7332
    %v7819 = vpop.f32.mrb[0].mxu0
    %v7820 = vadd.f32 %v7527, %v7819
    %v7821 = vpop.f32.mrb[0].mxu0
    %v7822 = vpop.f32.mrb[0].mxu0
    %v7823 = vadd.f32 %v7527, %v7822
    %v7824 = vpop.f32.mrb[0].mxu0
    %7825 = vmatprep.mubr.bf16.mxu0 %v7368
    %7826 = vmatmul.mubr.bf16.gmra.mrb[0].mxu0 %v7336
    %v7827 = vpop.f32.mrb[0].mxu0
    %v7828 = vadd.f32 %v7527, %v7827
    %v7829 = vpop.f32.mrb[0].mxu0
    %v7830 = vpop.f32.mrb[0].mxu0
    %v7831 = vadd.f32 %v7527, %v7830
    %v7832 = vpop.f32.mrb[0].mxu0
    %7833 = vmatprep.mubr.bf16.mxu0 %v7372
    %7834 = vmatmul.mubr.bf16.gmra.mrb[0].mxu0 %v7340
    %v7835 = vpop.f32.mrb[0].mxu0
    %v7836 = vadd.f32 %v7527, %v7835
    %v7837 = vpop.f32.mrb[0].mxu0
    %v7838 = vpop.f32.mrb[0].mxu0
    %v7839 = vadd.f32 %v7527, %v7838
    %v7840 = vpop.f32.mrb[0].mxu0
    %7841 = vmatprep.mubr.bf16.mxu0 %v7376
    %7842 = vmatmul.mubr.bf16.gmra.mrb[0].mxu0 %v7344
    %v7843 = vpop.f32.mrb[0].mxu0
    %v7844 = vadd.f32 %v7527, %v7843
    %v7845 = vpop.f32.mrb[0].mxu0
    %v7846 = vpop.f32.mrb[0].mxu0
    %v7847 = vadd.f32 %v7527, %v7846
    %v7848 = vpop.f32.mrb[0].mxu0
    %7849 = vmatprep.mubr.bf16.mxu0 %v7380
    %7850 = vmatmul.mubr.bf16.gmra.mrb[0].mxu0 %v7348
    %v7851 = vpop.f32.mrb[0].mxu0
    %v7852 = vadd.f32 %v7527, %v7851
    %v7853 = vpop.f32.mrb[0].mxu0
    %v7854 = vpop.f32.mrb[0].mxu0
    %v7855 = vadd.f32 %v7527, %v7854
    %v7856 = vpop.f32.mrb[0].mxu0
    %7857 = vmatprep.mubr.bf16.mxu0 %v7384
    %7858 = vmatmul.mubr.bf16.gmra.mrb[0].mxu0 %v7352
    %v7859 = vpop.f32.mrb[0].mxu0
    %v7860 = vadd.f32 %v7527, %v7859
    %v7861 = vpop.f32.mrb[0].mxu0
    %v7862 = vpop.f32.mrb[0].mxu0
    %v7863 = vadd.f32 %v7527, %v7862
    %v7864 = vpop.f32.mrb[0].mxu0
    %7865 = vdwg.mxu0
    %7866 = vmatprep.subr.bf16.mxu0 0
    %7867 = vmatpush1.bf16.msra.mxu0 %v7689
    %7868 = vmatprep.subr.bf16.mxu0 0
    %7869 = vmatpush1.bf16.msra.mxu0 %v7690
    %7870 = vmatprep.subr.bf16.mxu0 0
    %7871 = vmatpush1.bf16.msra.mxu0 %v7691
    %7872 = vmatprep.subr.bf16.mxu0 0
    %7873 = vmatpush1.bf16.msra.mxu0 %v7692
    %7874 = vmatprep.subr.bf16.mxu0 0
    %7875 = vmatpush1.bf16.msra.mxu0 %v7693
    %7876 = vmatprep.subr.bf16.mxu0 0
    %7877 = vmatpush1.bf16.msra.mxu0 %v7694
    %7878 = vmatprep.subr.bf16.mxu0 0
    %7879 = vmatpush1.bf16.msra.mxu0 %v7695
    %7880 = vmatprep.subr.bf16.mxu0 0
    %7881 = vmatpush1.bf16.msra.mxu0 %v7696
    %7882 = vmatprep.subr.bf16.mxu0 0
    %7883 = vmatpush1.bf16.msra.mxu0 %v7697
    %7884 = vmatprep.subr.bf16.mxu0 0
    %7885 = vmatpush1.bf16.msra.mxu0 %v7698
    %7886 = vmatprep.subr.bf16.mxu0 0
    %7887 = vmatpush1.bf16.msra.mxu0 %v7699
    %7888 = vmatprep.subr.bf16.mxu0 0
    %7889 = vmatpush1.bf16.msra.mxu0 %v7700
    %7890 = vmatprep.subr.bf16.mxu0 0
    %7891 = vmatpush1.bf16.msra.mxu0 %v7701
    %7892 = vmatprep.subr.bf16.mxu0 0
    %7893 = vmatpush1.bf16.msra.mxu0 %v7702
    %7894 = vmatprep.subr.bf16.mxu0 0
    %7895 = vmatpush1.bf16.msra.mxu0 %v7703
    %7896 = vmatprep.subr.bf16.mxu0 0
    %7897 = vmatpush1.bf16.msra.mxu0 %v7704
    %7898 = vmatprep.mubr.bf16.mxu0 %v7420
    %7899 = vmatmul.mubr.bf16.gmra.mrb[0].mxu0 %v7388
    %v7900 = vpop.f32.mrb[0].mxu0
    %v7901 = vadd.f32 %v7804, %v7900
    %v7902 = vpop.f32.mrb[0].mxu0
    %v7903 = vpop.f32.mrb[0].mxu0
    %v7904 = vadd.f32 %v7807, %v7903
    %v7905 = vpop.f32.mrb[0].mxu0
    %7906 = vmatprep.mubr.bf16.mxu0 %v7424
    %7907 = vmatmul.mubr.bf16.gmra.mrb[0].mxu0 %v7392
    %v7908 = vpop.f32.mrb[0].mxu0
    %v7909 = vadd.f32 %v7812, %v7908
    %v7910 = vpop.f32.mrb[0].mxu0
    %v7911 = vpop.f32.mrb[0].mxu0
    %v7912 = vadd.f32 %v7815, %v7911
    %v7913 = vpop.f32.mrb[0].mxu0
    %7914 = vmatprep.mubr.bf16.mxu0 %v7428
    %7915 = vmatmul.mubr.bf16.gmra.mrb[0].mxu0 %v7396
    %v7916 = vpop.f32.mrb[0].mxu0
    %v7917 = vadd.f32 %v7820, %v7916
    %v7918 = vpop.f32.mrb[0].mxu0
    %v7919 = vpop.f32.mrb[0].mxu0
    %v7920 = vadd.f32 %v7823, %v7919
    %v7921 = vpop.f32.mrb[0].mxu0
    %7922 = vmatprep.mubr.bf16.mxu0 %v7432
    %7923 = vmatmul.mubr.bf16.gmra.mrb[0].mxu0 %v7400
    %v7924 = vpop.f32.mrb[0].mxu0
    %v7925 = vadd.f32 %v7828, %v7924
    %v7926 = vpop.f32.mrb[0].mxu0
    %v7927 = vpop.f32.mrb[0].mxu0
    %v7928 = vadd.f32 %v7831, %v7927
    %v7929 = vpop.f32.mrb[0].mxu0
    %7930 = vmatprep.mubr.bf16.mxu0 %v7436
    %7931 = vmatmul.mubr.bf16.gmra.mrb[0].mxu0 %v7404
    %v7932 = vpop.f32.mrb[0].mxu0
    %v7933 = vadd.f32 %v7836, %v7932
    %v7934 = vpop.f32.mrb[0].mxu0
    %v7935 = vpop.f32.mrb[0].mxu0
    %v7936 = vadd.f32 %v7839, %v7935
    %v7937 = vpop.f32.mrb[0].mxu0
    %7938 = vmatprep.mubr.bf16.mxu0 %v7440
    %7939 = vmatmul.mubr.bf16.gmra.mrb[0].mxu0 %v7408
    %v7940 = vpop.f32.mrb[0].mxu0
    %v7941 = vadd.f32 %v7844, %v7940
    %v7942 = vpop.f32.mrb[0].mxu0
    %v7943 = vpop.f32.mrb[0].mxu0
    %v7944 = vadd.f32 %v7847, %v7943
    %v7945 = vpop.f32.mrb[0].mxu0
    %7946 = vmatprep.mubr.bf16.mxu0 %v7444
    %7947 = vmatmul.mubr.bf16.gmra.mrb[0].mxu0 %v7412
    %v7948 = vpop.f32.mrb[0].mxu0
    %v7949 = vadd.f32 %v7852, %v7948
    %v7950 = vpop.f32.mrb[0].mxu0
    %v7951 = vpop.f32.mrb[0].mxu0
    %v7952 = vadd.f32 %v7855, %v7951
    %v7953 = vpop.f32.mrb[0].mxu0
    %7954 = vmatprep.mubr.bf16.mxu0 %v7448
    %7955 = vmatmul.mubr.bf16.gmra.mrb[0].mxu0 %v7416
    %v7956 = vpop.f32.mrb[0].mxu0
    %v7957 = vadd.f32 %v7860, %v7956
    %v7958 = vpop.f32.mrb[0].mxu0
    %v7959 = vpop.f32.mrb[0].mxu0
    %v7960 = vadd.f32 %v7863, %v7959
    %v7961 = vpop.f32.mrb[0].mxu0
    %7962 = vdwg.mxu0
    %7963 = vmatprep.subr.bf16.mxu0 0
    %7964 = vmatpush1.bf16.msra.mxu0 %v7705
    %7965 = vmatprep.subr.bf16.mxu0 0
    %7966 = vmatpush1.bf16.msra.mxu0 %v7706
    %7967 = vmatprep.subr.bf16.mxu0 0
    %7968 = vmatpush1.bf16.msra.mxu0 %v7707
    %7969 = vmatprep.subr.bf16.mxu0 0
    %7970 = vmatpush1.bf16.msra.mxu0 %v7708
    %7971 = vmatprep.subr.bf16.mxu0 0
    %7972 = vmatpush1.bf16.msra.mxu0 0
    %7973 = vmatprep.subr.bf16.mxu0 0
    %7974 = vmatpush1.bf16.msra.mxu0 0
    %7975 = vmatprep.subr.bf16.mxu0 0
    %7976 = vmatpush1.bf16.msra.mxu0 0
    %7977 = vmatprep.subr.bf16.mxu0 0
    %7978 = vmatpush1.bf16.msra.mxu0 0
    %7979 = vmatprep.subr.bf16.mxu0 0
    %7980 = vmatpush1.bf16.msra.mxu0 0
    %7981 = vmatprep.subr.bf16.mxu0 0
    %7982 = vmatpush1.bf16.msra.mxu0 0
    %7983 = vmatprep.subr.bf16.mxu0 0
    %7984 = vmatpush1.bf16.msra.mxu0 0
    %7985 = vmatprep.subr.bf16.mxu0 0
    %7986 = vmatpush1.bf16.msra.mxu0 0
    %7987 = vmatprep.subr.bf16.mxu0 0
    %7988 = vmatpush1.bf16.msra.mxu0 0
    %7989 = vmatprep.subr.bf16.mxu0 0
    %7990 = vmatpush1.bf16.msra.mxu0 0
    %7991 = vmatprep.subr.bf16.mxu0 0
    %7992 = vmatpush1.bf16.msra.mxu0 0
    %7993 = vmatprep.subr.bf16.mxu0 0
    %7994 = vmatpush1.bf16.msra.mxu0 0
    %7995 = vmatprep.mubr.bf16.mxu0 0
    %7996 = vmatmul.mubr.bf16.gmra.mrb[0].mxu0 %v7746
    %v7997 = vpop.f32.mrb[0].mxu0
    %v7998 = vadd.f32 %v7901, %v7997
    %v7999 = vpop.f32.mrb[0].mxu0
    %v8000 = vpop.f32.mrb[0].mxu0
    %v8001 = vadd.f32 %v7904, %v8000
    %v8002 = vpop.f32.mrb[0].mxu0
    %8003 = vmatprep.mubr.bf16.mxu0 0
    %8004 = vmatmul.mubr.bf16.gmra.mrb[0].mxu0 %v7749
    %v8005 = vpop.f32.mrb[0].mxu0
    %v8006 = vadd.f32 %v7909, %v8005
    %v8007 = vpop.f32.mrb[0].mxu0
    %v8008 = vpop.f32.mrb[0].mxu0
    %v8009 = vadd.f32 %v7912, %v8008
    %v8010 = vpop.f32.mrb[0].mxu0
    %8011 = vmatprep.mubr.bf16.mxu0 0
    %8012 = vmatmul.mubr.bf16.gmra.mrb[0].mxu0 %v7752
    %v8013 = vpop.f32.mrb[0].mxu0
    %v8014 = vadd.f32 %v7917, %v8013
    %v8015 = vpop.f32.mrb[0].mxu0
    %v8016 = vpop.f32.mrb[0].mxu0
    %v8017 = vadd.f32 %v7920, %v8016
    %v8018 = vpop.f32.mrb[0].mxu0
    %8019 = vmatprep.mubr.bf16.mxu0 0
    %8020 = vmatmul.mubr.bf16.gmra.mrb[0].mxu0 %v7755
    %v8021 = vpop.f32.mrb[0].mxu0
    %v8022 = vadd.f32 %v7925, %v8021
    %v8023 = vpop.f32.mrb[0].mxu0
    %v8024 = vpop.f32.mrb[0].mxu0
    %v8025 = vadd.f32 %v7928, %v8024
    %v8026 = vpop.f32.mrb[0].mxu0
    %8027 = vmatprep.mubr.bf16.mxu0 0
    %8028 = vmatmul.mubr.bf16.gmra.mrb[0].mxu0 %v7758
    %v8029 = vpop.f32.mrb[0].mxu0
    %v8030 = vadd.f32 %v7933, %v8029
    %v8031 = vpop.f32.mrb[0].mxu0
    %v8032 = vpop.f32.mrb[0].mxu0
    %v8033 = vadd.f32 %v7936, %v8032
    %v8034 = vpop.f32.mrb[0].mxu0
    %8035 = vmatprep.mubr.bf16.mxu0 0
    %8036 = vmatmul.mubr.bf16.gmra.mrb[0].mxu0 %v7761
    %v8037 = vpop.f32.mrb[0].mxu0
    %v8038 = vadd.f32 %v7941, %v8037
    %v8039 = vpop.f32.mrb[0].mxu0
    %v8040 = vpop.f32.mrb[0].mxu0
    %v8041 = vadd.f32 %v7944, %v8040
    %v8042 = vpop.f32.mrb[0].mxu0
    %8043 = vmatprep.mubr.bf16.mxu0 0
    %8044 = vmatmul.mubr.bf16.gmra.mrb[0].mxu0 %v7764
    %v8045 = vpop.f32.mrb[0].mxu0
    %v8046 = vadd.f32 %v7949, %v8045
    %v8047 = vpop.f32.mrb[0].mxu0
    %v8048 = vpop.f32.mrb[0].mxu0
    %v8049 = vadd.f32 %v7952, %v8048
    %v8050 = vpop.f32.mrb[0].mxu0
    %8051 = vmatprep.mubr.bf16.mxu0 0
    %8052 = vmatmul.mubr.bf16.gmra.mrb[0].mxu0 %v7767
    %v8053 = vpop.f32.mrb[0].mxu0
    %v8054 = vadd.f32 %v7957, %v8053
    %v8055 = vpop.f32.mrb[0].mxu0
    %v8056 = vpop.f32.mrb[0].mxu0
    %v8057 = vadd.f32 %v7960, %v8056
    %v8058 = vpop.f32.mrb[0].mxu0
    %8059 = vdwg.mxu0
    %v8060 = vmax.f32 %v7998, 0.0
    %v8061 = vmax.f32 %v8001, 0.0
    %v8062 = vmax.f32 %v8006, 0.0
    %v8063 = vmax.f32 %v8009, 0.0
    %v8064 = vmax.f32 %v8014, 0.0
    %v8065 = vmax.f32 %v8017, 0.0
    %v8066 = vmax.f32 %v8022, 0.0
    %v8067 = vmax.f32 %v8025, 0.0
    %v8068 = vmax.f32 %v8030, 0.0
    %v8069 = vmax.f32 %v8033, 0.0
    %v8070 = vmax.f32 %v8038, 0.0
    %v8071 = vmax.f32 %v8041, 0.0
    %v8072 = vmax.f32 %v8046, 0.0
    %v8073 = vmax.f32 %v8049, 0.0
    %v8074 = vmax.f32 %v8054, 0.0
    %v8075 = vmax.f32 %v8057, 0.0
    %v8076 = vpack.c.bf16 %v8061, %v8060
    %v8077 = vpack.c.bf16 %v8063, %v8062
    %v8078 = vpack.c.bf16 %v8065, %v8064
    %v8079 = vpack.c.bf16 %v8067, %v8066
    %v8080 = vpack.c.bf16 %v8069, %v8068
    %v8081 = vpack.c.bf16 %v8071, %v8070
    %v8082 = vpack.c.bf16 %v8073, %v8072
    %v8083 = vpack.c.bf16 %v8075, %v8074
    %v8092 = vunpack.c.l.b16 %v8076
    %v8093 = vunpack.c.h.b16 %v8076
    %v8094 = vunpack.c.l.b16 %v8077
    %v8095 = vunpack.c.h.b16 %v8077
    %v8096 = vunpack.c.l.b16 %v8078
    %v8097 = vunpack.c.h.b16 %v8078
    %v8098 = vunpack.c.l.b16 %v8079
    %v8099 = vunpack.c.h.b16 %v8079
    %v8100 = vunpack.c.l.b16 %v8080
    %v8101 = vunpack.c.h.b16 %v8080
    %v8102 = vunpack.c.l.b16 %v8081
    %v8103 = vunpack.c.h.b16 %v8081
    %v8104 = vunpack.c.l.b16 %v8082
    %v8105 = vunpack.c.h.b16 %v8082
    %v8106 = vunpack.c.l.b16 %v8083
    %v8107 = vunpack.c.h.b16 %v8083
    %v8108 = vpack.c.b16 %v8092, %v8092
    %v8109 = vpack.c.b16 %v8093, %v8093
    %v8110 = vpack.c.b16 %v8094, %v8094
    %v8111 = vpack.c.b16 %v8095, %v8095
    %v8112 = vpack.c.b16 %v8096, %v8096
    %v8113 = vpack.c.b16 %v8097, %v8097
    %v8114 = vpack.c.b16 %v8098, %v8098
    %v8115 = vpack.c.b16 %v8099, %v8099
    %v8116 = vpack.c.b16 %v8100, %v8100
    %v8117 = vpack.c.b16 %v8101, %v8101
    %v8118 = vpack.c.b16 %v8102, %v8102
    %v8119 = vpack.c.b16 %v8103, %v8103
    %v8120 = vpack.c.b16 %v8104, %v8104
    %v8121 = vpack.c.b16 %v8105, %v8105
    %v8122 = vpack.c.b16 %v8106, %v8106
    %v8123 = vpack.c.b16 %v8107, %v8107
    %v8125 = vshrl.u32 %v8108, 16
    %v8127 = vrot.slane %v8125, 7
    %v8128 = vshll.u32 %v8108, 16
    %v8130 = vor.u32 %v8127, %v8128
    %v8131 = vrot.slane %v8127, 4
    %v8133 = vshrl.u32 %v8109, 16
    %v8135 = vrot.slane %v8133, 7
    %v8136 = vshll.u32 %v8109, 16
    %v8138 = vor.u32 %v8135, %v8136
    %v8139 = vrot.slane %v8135, 4
    %v8141 = vshrl.u32 %v8110, 16
    %v8143 = vrot.slane %v8141, 7
    %v8144 = vshll.u32 %v8110, 16
    %v8146 = vor.u32 %v8143, %v8144
    %v8147 = vrot.slane %v8143, 4
    %v8149 = vshrl.u32 %v8111, 16
    %v8151 = vrot.slane %v8149, 7
    %v8152 = vshll.u32 %v8111, 16
    %v8154 = vor.u32 %v8151, %v8152
    %v8155 = vrot.slane %v8151, 4
    %v8157 = vshrl.u32 %v8112, 16
    %v8159 = vrot.slane %v8157, 7
    %v8160 = vshll.u32 %v8112, 16
    %v8162 = vor.u32 %v8159, %v8160
    %v8163 = vrot.slane %v8159, 4
    %v8165 = vshrl.u32 %v8113, 16
    %v8167 = vrot.slane %v8165, 7
    %v8168 = vshll.u32 %v8113, 16
    %v8170 = vor.u32 %v8167, %v8168
    %v8171 = vrot.slane %v8167, 4
    %v8173 = vshrl.u32 %v8114, 16
    %v8175 = vrot.slane %v8173, 7
    %v8176 = vshll.u32 %v8114, 16
    %v8178 = vor.u32 %v8175, %v8176
    %v8179 = vrot.slane %v8175, 4
    %v8181 = vshrl.u32 %v8115, 16
    %v8183 = vrot.slane %v8181, 7
    %v8184 = vshll.u32 %v8115, 16
    %v8186 = vor.u32 %v8183, %v8184
    %v8187 = vrot.slane %v8183, 4
    %v8189 = vshrl.u32 %v8116, 16
    %v8191 = vrot.slane %v8189, 7
    %v8192 = vshll.u32 %v8116, 16
    %v8194 = vor.u32 %v8191, %v8192
    %v8195 = vrot.slane %v8191, 4
    %v8197 = vshrl.u32 %v8117, 16
    %v8199 = vrot.slane %v8197, 7
    %v8200 = vshll.u32 %v8117, 16
    %v8202 = vor.u32 %v8199, %v8200
    %v8203 = vrot.slane %v8199, 4
    %v8205 = vshrl.u32 %v8118, 16
    %v8207 = vrot.slane %v8205, 7
    %v8208 = vshll.u32 %v8118, 16
    %v8210 = vor.u32 %v8207, %v8208
    %v8211 = vrot.slane %v8207, 4
    %v8213 = vshrl.u32 %v8119, 16
    %v8215 = vrot.slane %v8213, 7
    %v8216 = vshll.u32 %v8119, 16
    %v8218 = vor.u32 %v8215, %v8216
    %v8219 = vrot.slane %v8215, 4
    %v8221 = vshrl.u32 %v8120, 16
    %v8223 = vrot.slane %v8221, 7
    %v8224 = vshll.u32 %v8120, 16
    %v8226 = vor.u32 %v8223, %v8224
    %v8227 = vrot.slane %v8223, 4
    %v8229 = vshrl.u32 %v8121, 16
    %v8231 = vrot.slane %v8229, 7
    %v8232 = vshll.u32 %v8121, 16
    %v8234 = vor.u32 %v8231, %v8232
    %v8235 = vrot.slane %v8231, 4
    %v8237 = vshrl.u32 %v8122, 16
    %v8239 = vrot.slane %v8237, 7
    %v8240 = vshll.u32 %v8122, 16
    %v8242 = vor.u32 %v8239, %v8240
    %v8243 = vrot.slane %v8239, 4
    %v8245 = vshrl.u32 %v8123, 16
    %v8247 = vrot.slane %v8245, 7
    %v8248 = vshll.u32 %v8123, 16
    %v8250 = vor.u32 %v8247, %v8248
    %v8251 = vrot.slane %v8247, 4
    %v8284 = vsel %vm464, %v8130, %v6258
    %8285 = vst [vmem:[%s461] sm:$0xf] %v8284
    %v8286 = vld [vmem:[%s461 + $0x4] sm:$0x1]
    %v8287 = vsel %vm470, %v8131, %v8286
    %8288 = vst [vmem:[%s461 + $0x4] sm:$0x1] %v8287
    %v8289 = vld [vmem:[%s461 + $0x8] sm:$0xf]
    %v8290 = vsel %vm464, %v8138, %v8289
    %8291 = vst [vmem:[%s461 + $0x8] sm:$0xf] %v8290
    %v8292 = vld [vmem:[%s461 + $0xc] sm:$0x1]
    %v8293 = vsel %vm470, %v8139, %v8292
    %8294 = vst [vmem:[%s461 + $0xc] sm:$0x1] %v8293
    %v8295 = vld [vmem:[%s461 + $0x10] sm:$0xf]
    %v8296 = vsel %vm464, %v8146, %v8295
    %8297 = vst [vmem:[%s461 + $0x10] sm:$0xf] %v8296
    %v8298 = vld [vmem:[%s461 + $0x14] sm:$0x1]
    %v8299 = vsel %vm470, %v8147, %v8298
    %8300 = vst [vmem:[%s461 + $0x14] sm:$0x1] %v8299
    %v8301 = vld [vmem:[%s461 + $0x18] sm:$0xf]
    %v8302 = vsel %vm464, %v8154, %v8301
    %8303 = vst [vmem:[%s461 + $0x18] sm:$0xf] %v8302
    %v8304 = vld [vmem:[%s461 + $0x1c] sm:$0x1]
    %v8305 = vsel %vm470, %v8155, %v8304
    %8306 = vst [vmem:[%s461 + $0x1c] sm:$0x1] %v8305
    %v8307 = vld [vmem:[%s461 + $0x20] sm:$0xf]
    %v8308 = vsel %vm464, %v8162, %v8307
    %8309 = vst [vmem:[%s461 + $0x20] sm:$0xf] %v8308
    %v8310 = vld [vmem:[%s461 + $0x24] sm:$0x1]
    %v8311 = vsel %vm470, %v8163, %v8310
    %8312 = vst [vmem:[%s461 + $0x24] sm:$0x1] %v8311
    %v8313 = vld [vmem:[%s461 + $0x28] sm:$0xf]
    %v8314 = vsel %vm464, %v8170, %v8313
    %8315 = vst [vmem:[%s461 + $0x28] sm:$0xf] %v8314
    %v8316 = vld [vmem:[%s461 + $0x2c] sm:$0x1]
    %v8317 = vsel %vm470, %v8171, %v8316
    %8318 = vst [vmem:[%s461 + $0x2c] sm:$0x1] %v8317
    %v8319 = vld [vmem:[%s461 + $0x30] sm:$0xf]
    %v8320 = vsel %vm464, %v8178, %v8319
    %8321 = vst [vmem:[%s461 + $0x30] sm:$0xf] %v8320
    %v8322 = vld [vmem:[%s461 + $0x34] sm:$0x1]
    %v8323 = vsel %vm470, %v8179, %v8322
    %8324 = vst [vmem:[%s461 + $0x34] sm:$0x1] %v8323
    %v8325 = vld [vmem:[%s461 + $0x38] sm:$0xf]
    %v8326 = vsel %vm464, %v8186, %v8325
    %8327 = vst [vmem:[%s461 + $0x38] sm:$0xf] %v8326
    %v8328 = vld [vmem:[%s461 + $0x3c] sm:$0x1]
    %v8329 = vsel %vm470, %v8187, %v8328
    %8330 = vst [vmem:[%s461 + $0x3c] sm:$0x1] %v8329
    %v8331 = vld [vmem:[%s461 + $0x50] sm:$0xf]
    %v8332 = vsel %vm464, %v8194, %v8331
    %8333 = vst [vmem:[%s461 + $0x50] sm:$0xf] %v8332
    %v8334 = vld [vmem:[%s461 + $0x54] sm:$0x1]
    %v8335 = vsel %vm470, %v8195, %v8334
    %8336 = vst [vmem:[%s461 + $0x54] sm:$0x1] %v8335
    %v8337 = vld [vmem:[%s461 + $0x58] sm:$0xf]
    %v8338 = vsel %vm464, %v8202, %v8337
    %8339 = vst [vmem:[%s461 + $0x58] sm:$0xf] %v8338
    %v8340 = vld [vmem:[%s461 + $0x5c] sm:$0x1]
    %v8341 = vsel %vm470, %v8203, %v8340
    %8342 = vst [vmem:[%s461 + $0x5c] sm:$0x1] %v8341
    %v8343 = vld [vmem:[%s461 + $0x60] sm:$0xf]
    %v8344 = vsel %vm464, %v8210, %v8343
    %8345 = vst [vmem:[%s461 + $0x60] sm:$0xf] %v8344
    %v8346 = vld [vmem:[%s461 + $0x64] sm:$0x1]
    %v8347 = vsel %vm470, %v8211, %v8346
    %8348 = vst [vmem:[%s461 + $0x64] sm:$0x1] %v8347
    %v8349 = vld [vmem:[%s461 + $0x68] sm:$0xf]
    %v8350 = vsel %vm464, %v8218, %v8349
    %8351 = vst [vmem:[%s461 + $0x68] sm:$0xf] %v8350
    %v8352 = vld [vmem:[%s461 + $0x6c] sm:$0x1]
    %v8353 = vsel %vm470, %v8219, %v8352
    %8354 = vst [vmem:[%s461 + $0x6c] sm:$0x1] %v8353
    %v8355 = vld [vmem:[%s461 + $0x70] sm:$0xf]
    %v8356 = vsel %vm464, %v8226, %v8355
    %8357 = vst [vmem:[%s461 + $0x70] sm:$0xf] %v8356
    %v8358 = vld [vmem:[%s461 + $0x74] sm:$0x1]
    %v8359 = vsel %vm470, %v8227, %v8358
    %8360 = vst [vmem:[%s461 + $0x74] sm:$0x1] %v8359
    %v8361 = vld [vmem:[%s461 + $0x78] sm:$0xf]
    %v8362 = vsel %vm464, %v8234, %v8361
    %8363 = vst [vmem:[%s461 + $0x78] sm:$0xf] %v8362
    %v8364 = vld [vmem:[%s461 + $0x7c] sm:$0x1]
    %v8365 = vsel %vm470, %v8235, %v8364
    %8366 = vst [vmem:[%s461 + $0x7c] sm:$0x1] %v8365
    %v8367 = vld [vmem:[%s461 + $0x80] sm:$0xf]
    %v8368 = vsel %vm464, %v8242, %v8367
    %8369 = vst [vmem:[%s461 + $0x80] sm:$0xf] %v8368
    %v8370 = vld [vmem:[%s461 + $0x84] sm:$0x1]
    %v8371 = vsel %vm470, %v8243, %v8370
    %8372 = vst [vmem:[%s461 + $0x84] sm:$0x1] %v8371
    %v8373 = vld [vmem:[%s461 + $0x88] sm:$0xf]
    %v8374 = vsel %vm464, %v8250, %v8373
    %8375 = vst [vmem:[%s461 + $0x88] sm:$0xf] %v8374
    %v8376 = vld [vmem:[%s461 + $0x8c] sm:$0x1]
    %v8377 = vsel %vm470, %v8251, %v8376
    %8378 = vst [vmem:[%s461 + $0x8c] sm:$0x1] %v8377
    %v8379 = vld [vmem:[#allocation2] sm:$0xf]
    %v8380 = vld [vmem:[#allocation2 + $0x8] sm:$0xf]
    %v8381 = vld [vmem:[#allocation2 + $0x10] sm:$0xf]
    %v8382 = vld [vmem:[#allocation2 + $0x18] sm:$0xf]
    %v8383 = vld [vmem:[#allocation2 + $0x20] sm:$0xf]
    %v8384 = vld [vmem:[#allocation2 + $0x28] sm:$0xf]
    %v8385 = vld [vmem:[#allocation2 + $0x30] sm:$0xf]
    %v8386 = vld [vmem:[#allocation2 + $0x38] sm:$0xf]
    %v8387 = vld [vmem:[#allocation2 + $0x50] sm:$0xf]
    %v8388 = vld [vmem:[#allocation2 + $0x58] sm:$0xf]
    %v8389 = vld [vmem:[#allocation2 + $0x60] sm:$0xf]
    %v8390 = vld [vmem:[#allocation2 + $0x68] sm:$0xf]
    %v8391 = vld [vmem:[#allocation2 + $0x70] sm:$0xf]
    %v8392 = vld [vmem:[#allocation2 + $0x78] sm:$0xf]
    %v8393 = vld [vmem:[#allocation2 + $0x80] sm:$0xf]
    %v8394 = vld [vmem:[#allocation2 + $0x88] sm:$0xf]
    %v8395 = vld [vmem:[#allocation2 + $0x4] sm:$0x1]
    %v8396 = vld [vmem:[#allocation2 + $0xc] sm:$0x1]
    %v8397 = vld [vmem:[#allocation2 + $0x14] sm:$0x1]
    %v8398 = vld [vmem:[#allocation2 + $0x1c] sm:$0x1]
    %v8399 = vld [vmem:[#allocation2 + $0x24] sm:$0x1]
    %v8400 = vld [vmem:[#allocation2 + $0x2c] sm:$0x1]
    %v8401 = vld [vmem:[#allocation2 + $0x34] sm:$0x1]
    %v8402 = vld [vmem:[#allocation2 + $0x3c] sm:$0x1]
    %v8403 = vld [vmem:[#allocation2 + $0x54] sm:$0x1]
    %v8404 = vld [vmem:[#allocation2 + $0x5c] sm:$0x1]
    %v8405 = vld [vmem:[#allocation2 + $0x64] sm:$0x1]
    %v8406 = vld [vmem:[#allocation2 + $0x6c] sm:$0x1]
    %v8407 = vld [vmem:[#allocation2 + $0x74] sm:$0x1]
    %v8408 = vld [vmem:[#allocation2 + $0x7c] sm:$0x1]
    %v8409 = vld [vmem:[#allocation2 + $0x84] sm:$0x1]
    %v8410 = vld [vmem:[#allocation2 + $0x8c] sm:$0x1]
    %v8412 = vshrl.u32 %v8379, 16
    %v8414 = vrot.slane %v8412, 4
    %v8415 = vshll.u32 %v8379, 16
    %v8417 = vrot.slane %v8415, 5
    %v8418 = vor.u32 %v8414, %v8417
    %v8419 = vrot.slane %v8418, 4
    %v8421 = vshll.u32 %v8395, 16
    %v8423 = vrot.slane %v8421, 5
    %v8424 = vsel %vm598, %v8419, %v8423
    %v8426 = vshrl.u32 %v8380, 16
    %v8428 = vrot.slane %v8426, 4
    %v8429 = vshll.u32 %v8380, 16
    %v8431 = vrot.slane %v8429, 5
    %v8432 = vor.u32 %v8428, %v8431
    %v8433 = vrot.slane %v8432, 4
    %v8435 = vshll.u32 %v8396, 16
    %v8437 = vrot.slane %v8435, 5
    %v8438 = vsel %vm598, %v8433, %v8437
    %v8440 = vshrl.u32 %v8381, 16
    %v8442 = vrot.slane %v8440, 4
    %v8443 = vshll.u32 %v8381, 16
    %v8445 = vrot.slane %v8443, 5
    %v8446 = vor.u32 %v8442, %v8445
    %v8447 = vrot.slane %v8446, 4
    %v8449 = vshll.u32 %v8397, 16
    %v8451 = vrot.slane %v8449, 5
    %v8452 = vsel %vm598, %v8447, %v8451
    %v8454 = vshrl.u32 %v8382, 16
    %v8456 = vrot.slane %v8454, 4
    %v8457 = vshll.u32 %v8382, 16
    %v8459 = vrot.slane %v8457, 5
    %v8460 = vor.u32 %v8456, %v8459
    %v8461 = vrot.slane %v8460, 4
    %v8463 = vshll.u32 %v8398, 16
    %v8465 = vrot.slane %v8463, 5
    %v8466 = vsel %vm598, %v8461, %v8465
    %v8468 = vshrl.u32 %v8383, 16
    %v8470 = vrot.slane %v8468, 4
    %v8471 = vshll.u32 %v8383, 16
    %v8473 = vrot.slane %v8471, 5
    %v8474 = vor.u32 %v8470, %v8473
    %v8475 = vrot.slane %v8474, 4
    %v8477 = vshll.u32 %v8399, 16
    %v8479 = vrot.slane %v8477, 5
    %v8480 = vsel %vm598, %v8475, %v8479
    %v8482 = vshrl.u32 %v8384, 16
    %v8484 = vrot.slane %v8482, 4
    %v8485 = vshll.u32 %v8384, 16
    %v8487 = vrot.slane %v8485, 5
    %v8488 = vor.u32 %v8484, %v8487
    %v8489 = vrot.slane %v8488, 4
    %v8491 = vshll.u32 %v8400, 16
    %v8493 = vrot.slane %v8491, 5
    %v8494 = vsel %vm598, %v8489, %v8493
    %v8496 = vshrl.u32 %v8385, 16
    %v8498 = vrot.slane %v8496, 4
    %v8499 = vshll.u32 %v8385, 16
    %v8501 = vrot.slane %v8499, 5
    %v8502 = vor.u32 %v8498, %v8501
    %v8503 = vrot.slane %v8502, 4
    %v8505 = vshll.u32 %v8401, 16
    %v8507 = vrot.slane %v8505, 5
    %v8508 = vsel %vm598, %v8503, %v8507
    %v8510 = vshrl.u32 %v8386, 16
    %v8512 = vrot.slane %v8510, 4
    %v8513 = vshll.u32 %v8386, 16
    %v8515 = vrot.slane %v8513, 5
    %v8516 = vor.u32 %v8512, %v8515
    %v8517 = vrot.slane %v8516, 4
    %v8519 = vshll.u32 %v8402, 16
    %v8521 = vrot.slane %v8519, 5
    %v8522 = vsel %vm598, %v8517, %v8521
    %v8524 = vshrl.u32 %v8387, 16
    %v8526 = vrot.slane %v8524, 4
    %v8527 = vshll.u32 %v8387, 16
    %v8529 = vrot.slane %v8527, 5
    %v8530 = vor.u32 %v8526, %v8529
    %v8531 = vrot.slane %v8530, 4
    %v8533 = vshll.u32 %v8403, 16
    %v8535 = vrot.slane %v8533, 5
    %v8536 = vsel %vm598, %v8531, %v8535
    %v8538 = vshrl.u32 %v8388, 16
    %v8540 = vrot.slane %v8538, 4
    %v8541 = vshll.u32 %v8388, 16
    %v8543 = vrot.slane %v8541, 5
    %v8544 = vor.u32 %v8540, %v8543
    %v8545 = vrot.slane %v8544, 4
    %v8547 = vshll.u32 %v8404, 16
    %v8549 = vrot.slane %v8547, 5
    %v8550 = vsel %vm598, %v8545, %v8549
    %v8552 = vshrl.u32 %v8389, 16
    %v8554 = vrot.slane %v8552, 4
    %v8555 = vshll.u32 %v8389, 16
    %v8557 = vrot.slane %v8555, 5
    %v8558 = vor.u32 %v8554, %v8557
    %v8559 = vrot.slane %v8558, 4
    %v8561 = vshll.u32 %v8405, 16
    %v8563 = vrot.slane %v8561, 5
    %v8564 = vsel %vm598, %v8559, %v8563
    %v8566 = vshrl.u32 %v8390, 16
    %v8568 = vrot.slane %v8566, 4
    %v8569 = vshll.u32 %v8390, 16
    %v8571 = vrot.slane %v8569, 5
    %v8572 = vor.u32 %v8568, %v8571
    %v8573 = vrot.slane %v8572, 4
    %v8575 = vshll.u32 %v8406, 16
    %v8577 = vrot.slane %v8575, 5
    %v8578 = vsel %vm598, %v8573, %v8577
    %v8580 = vshrl.u32 %v8391, 16
    %v8582 = vrot.slane %v8580, 4
    %v8583 = vshll.u32 %v8391, 16
    %v8585 = vrot.slane %v8583, 5
    %v8586 = vor.u32 %v8582, %v8585
    %v8587 = vrot.slane %v8586, 4
    %v8589 = vshll.u32 %v8407, 16
    %v8591 = vrot.slane %v8589, 5
    %v8592 = vsel %vm598, %v8587, %v8591
    %v8594 = vshrl.u32 %v8392, 16
    %v8596 = vrot.slane %v8594, 4
    %v8597 = vshll.u32 %v8392, 16
    %v8599 = vrot.slane %v8597, 5
    %v8600 = vor.u32 %v8596, %v8599
    %v8601 = vrot.slane %v8600, 4
    %v8603 = vshll.u32 %v8408, 16
    %v8605 = vrot.slane %v8603, 5
    %v8606 = vsel %vm598, %v8601, %v8605
    %v8608 = vshrl.u32 %v8393, 16
    %v8610 = vrot.slane %v8608, 4
    %v8611 = vshll.u32 %v8393, 16
    %v8613 = vrot.slane %v8611, 5
    %v8614 = vor.u32 %v8610, %v8613
    %v8615 = vrot.slane %v8614, 4
    %v8617 = vshll.u32 %v8409, 16
    %v8619 = vrot.slane %v8617, 5
    %v8620 = vsel %vm598, %v8615, %v8619
    %v8622 = vshrl.u32 %v8394, 16
    %v8624 = vrot.slane %v8622, 4
    %v8625 = vshll.u32 %v8394, 16
    %v8627 = vrot.slane %v8625, 5
    %v8628 = vor.u32 %v8624, %v8627
    %v8629 = vrot.slane %v8628, 4
    %v8631 = vshll.u32 %v8410, 16
    %v8633 = vrot.slane %v8631, 5
    %v8634 = vsel %vm598, %v8629, %v8633
    %v8635 = vld [vmem:[#allocation2] sm:$0xe]
    %v8636 = vld [vmem:[#allocation2 + $0x8] sm:$0xe]
    %v8637 = vld [vmem:[#allocation2 + $0x10] sm:$0xe]
    %v8638 = vld [vmem:[#allocation2 + $0x18] sm:$0xe]
    %v8639 = vld [vmem:[#allocation2 + $0x20] sm:$0xe]
    %v8640 = vld [vmem:[#allocation2 + $0x28] sm:$0xe]
    %v8641 = vld [vmem:[#allocation2 + $0x30] sm:$0xe]
    %v8642 = vld [vmem:[#allocation2 + $0x38] sm:$0xe]
    %v8643 = vld [vmem:[#allocation2 + $0x50] sm:$0xe]
    %v8644 = vld [vmem:[#allocation2 + $0x58] sm:$0xe]
    %v8645 = vld [vmem:[#allocation2 + $0x60] sm:$0xe]
    %v8646 = vld [vmem:[#allocation2 + $0x68] sm:$0xe]
    %v8647 = vld [vmem:[#allocation2 + $0x70] sm:$0xe]
    %v8648 = vld [vmem:[#allocation2 + $0x78] sm:$0xe]
    %v8649 = vld [vmem:[#allocation2 + $0x80] sm:$0xe]
    %v8650 = vld [vmem:[#allocation2 + $0x88] sm:$0xe]
    %v8683 = vrot.slane %v8635, 5
    %v8684 = vrot.slane %v8683, 4
    %v8685 = vrot.slane %v8395, 5
    %v8686 = vsel %vm873, %v8684, %v8685
    %v8687 = vrot.slane %v8636, 5
    %v8688 = vrot.slane %v8687, 4
    %v8689 = vrot.slane %v8396, 5
    %v8690 = vsel %vm873, %v8688, %v8689
    %v8691 = vrot.slane %v8637, 5
    %v8692 = vrot.slane %v8691, 4
    %v8693 = vrot.slane %v8397, 5
    %v8694 = vsel %vm873, %v8692, %v8693
    %v8695 = vrot.slane %v8638, 5
    %v8696 = vrot.slane %v8695, 4
    %v8697 = vrot.slane %v8398, 5
    %v8698 = vsel %vm873, %v8696, %v8697
    %v8699 = vrot.slane %v8639, 5
    %v8700 = vrot.slane %v8699, 4
    %v8701 = vrot.slane %v8399, 5
    %v8702 = vsel %vm873, %v8700, %v8701
    %v8703 = vrot.slane %v8640, 5
    %v8704 = vrot.slane %v8703, 4
    %v8705 = vrot.slane %v8400, 5
    %v8706 = vsel %vm873, %v8704, %v8705
    %v8707 = vrot.slane %v8641, 5
    %v8708 = vrot.slane %v8707, 4
    %v8709 = vrot.slane %v8401, 5
    %v8710 = vsel %vm873, %v8708, %v8709
    %v8711 = vrot.slane %v8642, 5
    %v8712 = vrot.slane %v8711, 4
    %v8713 = vrot.slane %v8402, 5
    %v8714 = vsel %vm873, %v8712, %v8713
    %v8715 = vrot.slane %v8643, 5
    %v8716 = vrot.slane %v8715, 4
    %v8717 = vrot.slane %v8403, 5
    %v8718 = vsel %vm873, %v8716, %v8717
    %v8719 = vrot.slane %v8644, 5
    %v8720 = vrot.slane %v8719, 4
    %v8721 = vrot.slane %v8404, 5
    %v8722 = vsel %vm873, %v8720, %v8721
    %v8723 = vrot.slane %v8645, 5
    %v8724 = vrot.slane %v8723, 4
    %v8725 = vrot.slane %v8405, 5
    %v8726 = vsel %vm873, %v8724, %v8725
    %v8727 = vrot.slane %v8646, 5
    %v8728 = vrot.slane %v8727, 4
    %v8729 = vrot.slane %v8406, 5
    %v8730 = vsel %vm873, %v8728, %v8729
    %v8731 = vrot.slane %v8647, 5
    %v8732 = vrot.slane %v8731, 4
    %v8733 = vrot.slane %v8407, 5
    %v8734 = vsel %vm873, %v8732, %v8733
    %v8735 = vrot.slane %v8648, 5
    %v8736 = vrot.slane %v8735, 4
    %v8737 = vrot.slane %v8408, 5
    %v8738 = vsel %vm873, %v8736, %v8737
    %v8739 = vrot.slane %v8649, 5
    %v8740 = vrot.slane %v8739, 4
    %v8741 = vrot.slane %v8409, 5
    %v8742 = vsel %vm873, %v8740, %v8741
    %v8743 = vrot.slane %v8650, 5
    %v8744 = vrot.slane %v8743, 4
    %v8745 = vrot.slane %v8410, 5
    %v8746 = vsel %vm873, %v8744, %v8745
    %v8747 = vld [vmem:[%s461] sm:$0xf]
    %v8748 = vld [vmem:[%s461 + $0x8] sm:$0xf]
    %v8749 = vld [vmem:[%s461 + $0x10] sm:$0xf]
    %v8750 = vld [vmem:[%s461 + $0x18] sm:$0xf]
    %v8751 = vld [vmem:[%s461 + $0x20] sm:$0xf]
    %v8752 = vld [vmem:[%s461 + $0x28] sm:$0xf]
    %v8753 = vld [vmem:[%s461 + $0x30] sm:$0xf]
    %v8754 = vld [vmem:[%s461 + $0x38] sm:$0xf]
    %v8755 = vld [vmem:[%s461 + $0x50] sm:$0xf]
    %v8756 = vld [vmem:[%s461 + $0x58] sm:$0xf]
    %v8757 = vld [vmem:[%s461 + $0x60] sm:$0xf]
    %v8758 = vld [vmem:[%s461 + $0x68] sm:$0xf]
    %v8759 = vld [vmem:[%s461 + $0x70] sm:$0xf]
    %v8760 = vld [vmem:[%s461 + $0x78] sm:$0xf]
    %v8761 = vld [vmem:[%s461 + $0x80] sm:$0xf]
    %v8762 = vld [vmem:[%s461 + $0x88] sm:$0xf]
    %v8763 = vld [vmem:[%s461 + $0x4] sm:$0x1]
    %v8764 = vld [vmem:[%s461 + $0xc] sm:$0x1]
    %v8765 = vld [vmem:[%s461 + $0x14] sm:$0x1]
    %v8766 = vld [vmem:[%s461 + $0x1c] sm:$0x1]
    %v8767 = vld [vmem:[%s461 + $0x24] sm:$0x1]
    %v8768 = vld [vmem:[%s461 + $0x2c] sm:$0x1]
    %v8769 = vld [vmem:[%s461 + $0x34] sm:$0x1]
    %v8770 = vld [vmem:[%s461 + $0x3c] sm:$0x1]
    %v8771 = vld [vmem:[%s461 + $0x54] sm:$0x1]
    %v8772 = vld [vmem:[%s461 + $0x5c] sm:$0x1]
    %v8773 = vld [vmem:[%s461 + $0x64] sm:$0x1]
    %v8774 = vld [vmem:[%s461 + $0x6c] sm:$0x1]
    %v8775 = vld [vmem:[%s461 + $0x74] sm:$0x1]
    %v8776 = vld [vmem:[%s461 + $0x7c] sm:$0x1]
    %v8777 = vld [vmem:[%s461 + $0x84] sm:$0x1]
    %v8778 = vld [vmem:[%s461 + $0x8c] sm:$0x1]
    %v8780 = vshrl.u32 %v8747, 16
    %v8782 = vrot.slane %v8780, 4
    %v8783 = vshll.u32 %v8747, 16
    %v8785 = vrot.slane %v8783, 5
    %v8786 = vor.u32 %v8782, %v8785
    %v8787 = vrot.slane %v8786, 4
    %v8789 = vshll.u32 %v8763, 16
    %v8791 = vrot.slane %v8789, 5
    %v8792 = vsel %vm598, %v8787, %v8791
    %v8794 = vshrl.u32 %v8748, 16
    %v8796 = vrot.slane %v8794, 4
    %v8797 = vshll.u32 %v8748, 16
    %v8799 = vrot.slane %v8797, 5
    %v8800 = vor.u32 %v8796, %v8799
    %v8801 = vrot.slane %v8800, 4
    %v8803 = vshll.u32 %v8764, 16
    %v8805 = vrot.slane %v8803, 5
    %v8806 = vsel %vm598, %v8801, %v8805
    %v8808 = vshrl.u32 %v8749, 16
    %v8810 = vrot.slane %v8808, 4
    %v8811 = vshll.u32 %v8749, 16
    %v8813 = vrot.slane %v8811, 5
    %v8814 = vor.u32 %v8810, %v8813
    %v8815 = vrot.slane %v8814, 4
    %v8817 = vshll.u32 %v8765, 16
    %v8819 = vrot.slane %v8817, 5
    %v8820 = vsel %vm598, %v8815, %v8819
    %v8822 = vshrl.u32 %v8750, 16
    %v8824 = vrot.slane %v8822, 4
    %v8825 = vshll.u32 %v8750, 16
    %v8827 = vrot.slane %v8825, 5
    %v8828 = vor.u32 %v8824, %v8827
    %v8829 = vrot.slane %v8828, 4
    %v8831 = vshll.u32 %v8766, 16
    %v8833 = vrot.slane %v8831, 5
    %v8834 = vsel %vm598, %v8829, %v8833
    %v8836 = vshrl.u32 %v8751, 16
    %v8838 = vrot.slane %v8836, 4
    %v8839 = vshll.u32 %v8751, 16
    %v8841 = vrot.slane %v8839, 5
    %v8842 = vor.u32 %v8838, %v8841
    %v8843 = vrot.slane %v8842, 4
    %v8845 = vshll.u32 %v8767, 16
    %v8847 = vrot.slane %v8845, 5
    %v8848 = vsel %vm598, %v8843, %v8847
    %v8850 = vshrl.u32 %v8752, 16
    %v8852 = vrot.slane %v8850, 4
    %v8853 = vshll.u32 %v8752, 16
    %v8855 = vrot.slane %v8853, 5
    %v8856 = vor.u32 %v8852, %v8855
    %v8857 = vrot.slane %v8856, 4
    %v8859 = vshll.u32 %v8768, 16
    %v8861 = vrot.slane %v8859, 5
    %v8862 = vsel %vm598, %v8857, %v8861
    %v8864 = vshrl.u32 %v8753, 16
    %v8866 = vrot.slane %v8864, 4
    %v8867 = vshll.u32 %v8753, 16
    %v8869 = vrot.slane %v8867, 5
    %v8870 = vor.u32 %v8866, %v8869
    %v8871 = vrot.slane %v8870, 4
    %v8873 = vshll.u32 %v8769, 16
    %v8875 = vrot.slane %v8873, 5
    %v8876 = vsel %vm598, %v8871, %v8875
    %v8878 = vshrl.u32 %v8754, 16
    %v8880 = vrot.slane %v8878, 4
    %v8881 = vshll.u32 %v8754, 16
    %v8883 = vrot.slane %v8881, 5
    %v8884 = vor.u32 %v8880, %v8883
    %v8885 = vrot.slane %v8884, 4
    %v8887 = vshll.u32 %v8770, 16
    %v8889 = vrot.slane %v8887, 5
    %v8890 = vsel %vm598, %v8885, %v8889
    %v8892 = vshrl.u32 %v8755, 16
    %v8894 = vrot.slane %v8892, 4
    %v8895 = vshll.u32 %v8755, 16
    %v8897 = vrot.slane %v8895, 5
    %v8898 = vor.u32 %v8894, %v8897
    %v8899 = vrot.slane %v8898, 4
    %v8901 = vshll.u32 %v8771, 16
    %v8903 = vrot.slane %v8901, 5
    %v8904 = vsel %vm598, %v8899, %v8903
    %v8906 = vshrl.u32 %v8756, 16
    %v8908 = vrot.slane %v8906, 4
    %v8909 = vshll.u32 %v8756, 16
    %v8911 = vrot.slane %v8909, 5
    %v8912 = vor.u32 %v8908, %v8911
    %v8913 = vrot.slane %v8912, 4
    %v8915 = vshll.u32 %v8772, 16
    %v8917 = vrot.slane %v8915, 5
    %v8918 = vsel %vm598, %v8913, %v8917
    %v8920 = vshrl.u32 %v8757, 16
    %v8922 = vrot.slane %v8920, 4
    %v8923 = vshll.u32 %v8757, 16
    %v8925 = vrot.slane %v8923, 5
    %v8926 = vor.u32 %v8922, %v8925
    %v8927 = vrot.slane %v8926, 4
    %v8929 = vshll.u32 %v8773, 16
    %v8931 = vrot.slane %v8929, 5
    %v8932 = vsel %vm598, %v8927, %v8931
    %v8934 = vshrl.u32 %v8758, 16
    %v8936 = vrot.slane %v8934, 4
    %v8937 = vshll.u32 %v8758, 16
    %v8939 = vrot.slane %v8937, 5
    %v8940 = vor.u32 %v8936, %v8939
    %v8941 = vrot.slane %v8940, 4
    %v8943 = vshll.u32 %v8774, 16
    %v8945 = vrot.slane %v8943, 5
    %v8946 = vsel %vm598, %v8941, %v8945
    %v8948 = vshrl.u32 %v8759, 16
    %v8950 = vrot.slane %v8948, 4
    %v8951 = vshll.u32 %v8759, 16
    %v8953 = vrot.slane %v8951, 5
    %v8954 = vor.u32 %v8950, %v8953
    %v8955 = vrot.slane %v8954, 4
    %v8957 = vshll.u32 %v8775, 16
    %v8959 = vrot.slane %v8957, 5
    %v8960 = vsel %vm598, %v8955, %v8959
    %v8962 = vshrl.u32 %v8760, 16
    %v8964 = vrot.slane %v8962, 4
    %v8965 = vshll.u32 %v8760, 16
    %v8967 = vrot.slane %v8965, 5
    %v8968 = vor.u32 %v8964, %v8967
    %v8969 = vrot.slane %v8968, 4
    %v8971 = vshll.u32 %v8776, 16
    %v8973 = vrot.slane %v8971, 5
    %v8974 = vsel %vm598, %v8969, %v8973
    %v8976 = vshrl.u32 %v8761, 16
    %v8978 = vrot.slane %v8976, 4
    %v8979 = vshll.u32 %v8761, 16
    %v8981 = vrot.slane %v8979, 5
    %v8982 = vor.u32 %v8978, %v8981
    %v8983 = vrot.slane %v8982, 4
    %v8985 = vshll.u32 %v8777, 16
    %v8987 = vrot.slane %v8985, 5
    %v8988 = vsel %vm598, %v8983, %v8987
    %v8990 = vshrl.u32 %v8762, 16
    %v8992 = vrot.slane %v8990, 4
    %v8993 = vshll.u32 %v8762, 16
    %v8995 = vrot.slane %v8993, 5
    %v8996 = vor.u32 %v8992, %v8995
    %v8997 = vrot.slane %v8996, 4
    %v8999 = vshll.u32 %v8778, 16
    %v9001 = vrot.slane %v8999, 5
    %v9002 = vsel %vm598, %v8997, %v9001
    %v9003 = vld [vmem:[%s461] sm:$0xe]
    %v9004 = vld [vmem:[%s461 + $0x8] sm:$0xe]
    %v9005 = vld [vmem:[%s461 + $0x10] sm:$0xe]
    %v9006 = vld [vmem:[%s461 + $0x18] sm:$0xe]
    %v9007 = vld [vmem:[%s461 + $0x20] sm:$0xe]
    %v9008 = vld [vmem:[%s461 + $0x28] sm:$0xe]
    %v9009 = vld [vmem:[%s461 + $0x30] sm:$0xe]
    %v9010 = vld [vmem:[%s461 + $0x38] sm:$0xe]
    %v9011 = vld [vmem:[%s461 + $0x50] sm:$0xe]
    %v9012 = vld [vmem:[%s461 + $0x58] sm:$0xe]
    %v9013 = vld [vmem:[%s461 + $0x60] sm:$0xe]
    %v9014 = vld [vmem:[%s461 + $0x68] sm:$0xe]
    %v9015 = vld [vmem:[%s461 + $0x70] sm:$0xe]
    %v9016 = vld [vmem:[%s461 + $0x78] sm:$0xe]
    %v9017 = vld [vmem:[%s461 + $0x80] sm:$0xe]
    %v9018 = vld [vmem:[%s461 + $0x88] sm:$0xe]
    %v9051 = vrot.slane %v9003, 5
    %v9052 = vrot.slane %v9051, 4
    %v9053 = vrot.slane %v8763, 5
    %v9054 = vsel %vm873, %v9052, %v9053
    %v9055 = vrot.slane %v9004, 5
    %v9056 = vrot.slane %v9055, 4
    %v9057 = vrot.slane %v8764, 5
    %v9058 = vsel %vm873, %v9056, %v9057
    %v9059 = vrot.slane %v9005, 5
    %v9060 = vrot.slane %v9059, 4
    %v9061 = vrot.slane %v8765, 5
    %v9062 = vsel %vm873, %v9060, %v9061
    %v9063 = vrot.slane %v9006, 5
    %v9064 = vrot.slane %v9063, 4
    %v9065 = vrot.slane %v8766, 5
    %v9066 = vsel %vm873, %v9064, %v9065
    %v9067 = vrot.slane %v9007, 5
    %v9068 = vrot.slane %v9067, 4
    %v9069 = vrot.slane %v8767, 5
    %v9070 = vsel %vm873, %v9068, %v9069
    %v9071 = vrot.slane %v9008, 5
    %v9072 = vrot.slane %v9071, 4
    %v9073 = vrot.slane %v8768, 5
    %v9074 = vsel %vm873, %v9072, %v9073
    %v9075 = vrot.slane %v9009, 5
    %v9076 = vrot.slane %v9075, 4
    %v9077 = vrot.slane %v8769, 5
    %v9078 = vsel %vm873, %v9076, %v9077
    %v9079 = vrot.slane %v9010, 5
    %v9080 = vrot.slane %v9079, 4
    %v9081 = vrot.slane %v8770, 5
    %v9082 = vsel %vm873, %v9080, %v9081
    %v9083 = vrot.slane %v9011, 5
    %v9084 = vrot.slane %v9083, 4
    %v9085 = vrot.slane %v8771, 5
    %v9086 = vsel %vm873, %v9084, %v9085
    %v9087 = vrot.slane %v9012, 5
    %v9088 = vrot.slane %v9087, 4
    %v9089 = vrot.slane %v8772, 5
    %v9090 = vsel %vm873, %v9088, %v9089
    %v9091 = vrot.slane %v9013, 5
    %v9092 = vrot.slane %v9091, 4
    %v9093 = vrot.slane %v8773, 5
    %v9094 = vsel %vm873, %v9092, %v9093
    %v9095 = vrot.slane %v9014, 5
    %v9096 = vrot.slane %v9095, 4
    %v9097 = vrot.slane %v8774, 5
    %v9098 = vsel %vm873, %v9096, %v9097
    %v9099 = vrot.slane %v9015, 5
    %v9100 = vrot.slane %v9099, 4
    %v9101 = vrot.slane %v8775, 5
    %v9102 = vsel %vm873, %v9100, %v9101
    %v9103 = vrot.slane %v9016, 5
    %v9104 = vrot.slane %v9103, 4
    %v9105 = vrot.slane %v8776, 5
    %v9106 = vsel %vm873, %v9104, %v9105
    %v9107 = vrot.slane %v9017, 5
    %v9108 = vrot.slane %v9107, 4
    %v9109 = vrot.slane %v8777, 5
    %v9110 = vsel %vm873, %v9108, %v9109
    %v9111 = vrot.slane %v9018, 5
    %v9112 = vrot.slane %v9111, 4
    %v9113 = vrot.slane %v8778, 5
    %v9114 = vsel %vm873, %v9112, %v9113
    %v9115 = vld [vmem:[%s1306] sm:$0xf]
    %v9116 = vld [vmem:[%s1306 + $0x8] sm:$0xf]
    %v9117 = vld [vmem:[%s1306 + $0x10] sm:$0xf]
    %v9118 = vld [vmem:[%s1306 + $0x18] sm:$0xf]
    %v9119 = vld [vmem:[%s1306 + $0x20] sm:$0xf]
    %v9120 = vld [vmem:[%s1306 + $0x28] sm:$0xf]
    %v9121 = vld [vmem:[%s1306 + $0x30] sm:$0xf]
    %v9122 = vld [vmem:[%s1306 + $0x38] sm:$0xf]
    %v9123 = vld [vmem:[%s1306 + $0x50] sm:$0xf]
    %v9124 = vld [vmem:[%s1306 + $0x58] sm:$0xf]
    %v9125 = vld [vmem:[%s1306 + $0x60] sm:$0xf]
    %v9126 = vld [vmem:[%s1306 + $0x68] sm:$0xf]
    %v9127 = vld [vmem:[%s1306 + $0x70] sm:$0xf]
    %v9128 = vld [vmem:[%s1306 + $0x78] sm:$0xf]
    %v9129 = vld [vmem:[%s1306 + $0x80] sm:$0xf]
    %v9130 = vld [vmem:[%s1306 + $0x88] sm:$0xf]
    %v9131 = vld [vmem:[%s1306 + $0x4] sm:$0x1]
    %v9132 = vld [vmem:[%s1306 + $0xc] sm:$0x1]
    %v9133 = vld [vmem:[%s1306 + $0x14] sm:$0x1]
    %v9134 = vld [vmem:[%s1306 + $0x1c] sm:$0x1]
    %v9135 = vld [vmem:[%s1306 + $0x24] sm:$0x1]
    %v9136 = vld [vmem:[%s1306 + $0x2c] sm:$0x1]
    %v9137 = vld [vmem:[%s1306 + $0x34] sm:$0x1]
    %v9138 = vld [vmem:[%s1306 + $0x3c] sm:$0x1]
    %v9139 = vld [vmem:[%s1306 + $0x54] sm:$0x1]
    %v9140 = vld [vmem:[%s1306 + $0x5c] sm:$0x1]
    %v9141 = vld [vmem:[%s1306 + $0x64] sm:$0x1]
    %v9142 = vld [vmem:[%s1306 + $0x6c] sm:$0x1]
    %v9143 = vld [vmem:[%s1306 + $0x74] sm:$0x1]
    %v9144 = vld [vmem:[%s1306 + $0x7c] sm:$0x1]
    %v9145 = vld [vmem:[%s1306 + $0x84] sm:$0x1]
    %v9146 = vld [vmem:[%s1306 + $0x8c] sm:$0x1]
    %v9148 = vshrl.u32 %v9115, 16
    %v9150 = vrot.slane %v9148, 4
    %v9151 = vshll.u32 %v9115, 16
    %v9153 = vrot.slane %v9151, 5
    %v9154 = vor.u32 %v9150, %v9153
    %v9155 = vrot.slane %v9154, 4
    %v9157 = vshll.u32 %v9131, 16
    %v9159 = vrot.slane %v9157, 5
    %v9160 = vsel %vm598, %v9155, %v9159
    %v9162 = vshrl.u32 %v9116, 16
    %v9164 = vrot.slane %v9162, 4
    %v9165 = vshll.u32 %v9116, 16
    %v9167 = vrot.slane %v9165, 5
    %v9168 = vor.u32 %v9164, %v9167
    %v9169 = vrot.slane %v9168, 4
    %v9171 = vshll.u32 %v9132, 16
    %v9173 = vrot.slane %v9171, 5
    %v9174 = vsel %vm598, %v9169, %v9173
    %v9176 = vshrl.u32 %v9117, 16
    %v9178 = vrot.slane %v9176, 4
    %v9179 = vshll.u32 %v9117, 16
    %v9181 = vrot.slane %v9179, 5
    %v9182 = vor.u32 %v9178, %v9181
    %v9183 = vrot.slane %v9182, 4
    %v9185 = vshll.u32 %v9133, 16
    %v9187 = vrot.slane %v9185, 5
    %v9188 = vsel %vm598, %v9183, %v9187
    %v9190 = vshrl.u32 %v9118, 16
    %v9192 = vrot.slane %v9190, 4
    %v9193 = vshll.u32 %v9118, 16
    %v9195 = vrot.slane %v9193, 5
    %v9196 = vor.u32 %v9192, %v9195
    %v9197 = vrot.slane %v9196, 4
    %v9199 = vshll.u32 %v9134, 16
    %v9201 = vrot.slane %v9199, 5
    %v9202 = vsel %vm598, %v9197, %v9201
    %v9204 = vshrl.u32 %v9119, 16
    %v9206 = vrot.slane %v9204, 4
    %v9207 = vshll.u32 %v9119, 16
    %v9209 = vrot.slane %v9207, 5
    %v9210 = vor.u32 %v9206, %v9209
    %v9211 = vrot.slane %v9210, 4
    %v9213 = vshll.u32 %v9135, 16
    %v9215 = vrot.slane %v9213, 5
    %v9216 = vsel %vm598, %v9211, %v9215
    %v9218 = vshrl.u32 %v9120, 16
    %v9220 = vrot.slane %v9218, 4
    %v9221 = vshll.u32 %v9120, 16
    %v9223 = vrot.slane %v9221, 5
    %v9224 = vor.u32 %v9220, %v9223
    %v9225 = vrot.slane %v9224, 4
    %v9227 = vshll.u32 %v9136, 16
    %v9229 = vrot.slane %v9227, 5
    %v9230 = vsel %vm598, %v9225, %v9229
    %v9232 = vshrl.u32 %v9121, 16
    %v9234 = vrot.slane %v9232, 4
    %v9235 = vshll.u32 %v9121, 16
    %v9237 = vrot.slane %v9235, 5
    %v9238 = vor.u32 %v9234, %v9237
    %v9239 = vrot.slane %v9238, 4
    %v9241 = vshll.u32 %v9137, 16
    %v9243 = vrot.slane %v9241, 5
    %v9244 = vsel %vm598, %v9239, %v9243
    %v9246 = vshrl.u32 %v9122, 16
    %v9248 = vrot.slane %v9246, 4
    %v9249 = vshll.u32 %v9122, 16
    %v9251 = vrot.slane %v9249, 5
    %v9252 = vor.u32 %v9248, %v9251
    %v9253 = vrot.slane %v9252, 4
    %v9255 = vshll.u32 %v9138, 16
    %v9257 = vrot.slane %v9255, 5
    %v9258 = vsel %vm598, %v9253, %v9257
    %v9260 = vshrl.u32 %v9123, 16
    %v9262 = vrot.slane %v9260, 4
    %v9263 = vshll.u32 %v9123, 16
    %v9265 = vrot.slane %v9263, 5
    %v9266 = vor.u32 %v9262, %v9265
    %v9267 = vrot.slane %v9266, 4
    %v9269 = vshll.u32 %v9139, 16
    %v9271 = vrot.slane %v9269, 5
    %v9272 = vsel %vm598, %v9267, %v9271
    %v9274 = vshrl.u32 %v9124, 16
    %v9276 = vrot.slane %v9274, 4
    %v9277 = vshll.u32 %v9124, 16
    %v9279 = vrot.slane %v9277, 5
    %v9280 = vor.u32 %v9276, %v9279
    %v9281 = vrot.slane %v9280, 4
    %v9283 = vshll.u32 %v9140, 16
    %v9285 = vrot.slane %v9283, 5
    %v9286 = vsel %vm598, %v9281, %v9285
    %v9288 = vshrl.u32 %v9125, 16
    %v9290 = vrot.slane %v9288, 4
    %v9291 = vshll.u32 %v9125, 16
    %v9293 = vrot.slane %v9291, 5
    %v9294 = vor.u32 %v9290, %v9293
    %v9295 = vrot.slane %v9294, 4
    %v9297 = vshll.u32 %v9141, 16
    %v9299 = vrot.slane %v9297, 5
    %v9300 = vsel %vm598, %v9295, %v9299
    %v9302 = vshrl.u32 %v9126, 16
    %v9304 = vrot.slane %v9302, 4
    %v9305 = vshll.u32 %v9126, 16
    %v9307 = vrot.slane %v9305, 5
    %v9308 = vor.u32 %v9304, %v9307
    %v9309 = vrot.slane %v9308, 4
    %v9311 = vshll.u32 %v9142, 16
    %v9313 = vrot.slane %v9311, 5
    %v9314 = vsel %vm598, %v9309, %v9313
    %v9316 = vshrl.u32 %v9127, 16
    %v9318 = vrot.slane %v9316, 4
    %v9319 = vshll.u32 %v9127, 16
    %v9321 = vrot.slane %v9319, 5
    %v9322 = vor.u32 %v9318, %v9321
    %v9323 = vrot.slane %v9322, 4
    %v9325 = vshll.u32 %v9143, 16
    %v9327 = vrot.slane %v9325, 5
    %v9328 = vsel %vm598, %v9323, %v9327
    %v9330 = vshrl.u32 %v9128, 16
    %v9332 = vrot.slane %v9330, 4
    %v9333 = vshll.u32 %v9128, 16
    %v9335 = vrot.slane %v9333, 5
    %v9336 = vor.u32 %v9332, %v9335
    %v9337 = vrot.slane %v9336, 4
    %v9339 = vshll.u32 %v9144, 16
    %v9341 = vrot.slane %v9339, 5
    %v9342 = vsel %vm598, %v9337, %v9341
    %v9344 = vshrl.u32 %v9129, 16
    %v9346 = vrot.slane %v9344, 4
    %v9347 = vshll.u32 %v9129, 16
    %v9349 = vrot.slane %v9347, 5
    %v9350 = vor.u32 %v9346, %v9349
    %v9351 = vrot.slane %v9350, 4
    %v9353 = vshll.u32 %v9145, 16
    %v9355 = vrot.slane %v9353, 5
    %v9356 = vsel %vm598, %v9351, %v9355
    %v9358 = vshrl.u32 %v9130, 16
    %v9360 = vrot.slane %v9358, 4
    %v9361 = vshll.u32 %v9130, 16
    %v9363 = vrot.slane %v9361, 5
    %v9364 = vor.u32 %v9360, %v9363
    %v9365 = vrot.slane %v9364, 4
    %v9367 = vshll.u32 %v9146, 16
    %v9369 = vrot.slane %v9367, 5
    %v9370 = vsel %vm598, %v9365, %v9369
    %v9371 = vld [vmem:[%s1306] sm:$0xe]
    %v9372 = vld [vmem:[%s1306 + $0x8] sm:$0xe]
    %v9373 = vld [vmem:[%s1306 + $0x10] sm:$0xe]
    %v9374 = vld [vmem:[%s1306 + $0x18] sm:$0xe]
    %v9375 = vld [vmem:[%s1306 + $0x20] sm:$0xe]
    %v9376 = vld [vmem:[%s1306 + $0x28] sm:$0xe]
    %v9377 = vld [vmem:[%s1306 + $0x30] sm:$0xe]
    %v9378 = vld [vmem:[%s1306 + $0x38] sm:$0xe]
    %v9379 = vld [vmem:[%s1306 + $0x50] sm:$0xe]
    %v9380 = vld [vmem:[%s1306 + $0x58] sm:$0xe]
    %v9381 = vld [vmem:[%s1306 + $0x60] sm:$0xe]
    %v9382 = vld [vmem:[%s1306 + $0x68] sm:$0xe]
    %v9383 = vld [vmem:[%s1306 + $0x70] sm:$0xe]
    %v9384 = vld [vmem:[%s1306 + $0x78] sm:$0xe]
    %v9385 = vld [vmem:[%s1306 + $0x80] sm:$0xe]
    %v9386 = vld [vmem:[%s1306 + $0x88] sm:$0xe]
    %v9419 = vrot.slane %v9371, 5
    %v9420 = vrot.slane %v9419, 4
    %v9421 = vrot.slane %v9131, 5
    %v9422 = vsel %vm873, %v9420, %v9421
    %v9423 = vrot.slane %v9372, 5
    %v9424 = vrot.slane %v9423, 4
    %v9425 = vrot.slane %v9132, 5
    %v9426 = vsel %vm873, %v9424, %v9425
    %v9427 = vrot.slane %v9373, 5
    %v9428 = vrot.slane %v9427, 4
    %v9429 = vrot.slane %v9133, 5
    %v9430 = vsel %vm873, %v9428, %v9429
    %v9431 = vrot.slane %v9374, 5
    %v9432 = vrot.slane %v9431, 4
    %v9433 = vrot.slane %v9134, 5
    %v9434 = vsel %vm873, %v9432, %v9433
    %v9435 = vrot.slane %v9375, 5
    %v9436 = vrot.slane %v9435, 4
    %v9437 = vrot.slane %v9135, 5
    %v9438 = vsel %vm873, %v9436, %v9437
    %v9439 = vrot.slane %v9376, 5
    %v9440 = vrot.slane %v9439, 4
    %v9441 = vrot.slane %v9136, 5
    %v9442 = vsel %vm873, %v9440, %v9441
    %v9443 = vrot.slane %v9377, 5
    %v9444 = vrot.slane %v9443, 4
    %v9445 = vrot.slane %v9137, 5
    %v9446 = vsel %vm873, %v9444, %v9445
    %v9447 = vrot.slane %v9378, 5
    %v9448 = vrot.slane %v9447, 4
    %v9449 = vrot.slane %v9138, 5
    %v9450 = vsel %vm873, %v9448, %v9449
    %v9451 = vrot.slane %v9379, 5
    %v9452 = vrot.slane %v9451, 4
    %v9453 = vrot.slane %v9139, 5
    %v9454 = vsel %vm873, %v9452, %v9453
    %v9455 = vrot.slane %v9380, 5
    %v9456 = vrot.slane %v9455, 4
    %v9457 = vrot.slane %v9140, 5
    %v9458 = vsel %vm873, %v9456, %v9457
    %v9459 = vrot.slane %v9381, 5
    %v9460 = vrot.slane %v9459, 4
    %v9461 = vrot.slane %v9141, 5
    %v9462 = vsel %vm873, %v9460, %v9461
    %v9463 = vrot.slane %v9382, 5
    %v9464 = vrot.slane %v9463, 4
    %v9465 = vrot.slane %v9142, 5
    %v9466 = vsel %vm873, %v9464, %v9465
    %v9467 = vrot.slane %v9383, 5
    %v9468 = vrot.slane %v9467, 4
    %v9469 = vrot.slane %v9143, 5
    %v9470 = vsel %vm873, %v9468, %v9469
    %v9471 = vrot.slane %v9384, 5
    %v9472 = vrot.slane %v9471, 4
    %v9473 = vrot.slane %v9144, 5
    %v9474 = vsel %vm873, %v9472, %v9473
    %v9475 = vrot.slane %v9385, 5
    %v9476 = vrot.slane %v9475, 4
    %v9477 = vrot.slane %v9145, 5
    %v9478 = vsel %vm873, %v9476, %v9477
    %v9479 = vrot.slane %v9386, 5
    %v9480 = vrot.slane %v9479, 4
    %v9481 = vrot.slane %v9146, 5
    %v9482 = vsel %vm873, %v9480, %v9481
    %v9499 = vunpack.c.l.b16 %v8379
    %v9500 = vunpack.c.l.b16 %v8380
    %v9501 = vunpack.c.l.b16 %v8381
    %v9502 = vunpack.c.l.b16 %v8382
    %v9503 = vunpack.c.l.b16 %v8383
    %v9504 = vunpack.c.l.b16 %v8384
    %v9505 = vunpack.c.l.b16 %v8385
    %v9506 = vunpack.c.l.b16 %v8386
    %v9507 = vunpack.c.l.b16 %v8387
    %v9508 = vunpack.c.l.b16 %v8388
    %v9509 = vunpack.c.l.b16 %v8389
    %v9510 = vunpack.c.l.b16 %v8390
    %v9511 = vunpack.c.l.b16 %v8391
    %v9512 = vunpack.c.l.b16 %v8392
    %v9513 = vunpack.c.l.b16 %v8393
    %v9514 = vunpack.c.l.b16 %v8394
    %v9515 = vpack.c.b16 %v9500, %v9499
    %v9516 = vpack.c.b16 %v9502, %v9501
    %v9517 = vpack.c.b16 %v9504, %v9503
    %v9518 = vpack.c.b16 %v9506, %v9505
    %v9519 = vpack.c.b16 %v9508, %v9507
    %v9520 = vpack.c.b16 %v9510, %v9509
    %v9521 = vpack.c.b16 %v9512, %v9511
    %v9522 = vpack.c.b16 %v9514, %v9513
    %v9523 = vunpack.c.l.b16 %v8424
    %v9524 = vunpack.c.l.b16 %v8438
    %v9525 = vunpack.c.l.b16 %v8452
    %v9526 = vunpack.c.l.b16 %v8466
    %v9527 = vunpack.c.l.b16 %v8480
    %v9528 = vunpack.c.l.b16 %v8494
    %v9529 = vunpack.c.l.b16 %v8508
    %v9530 = vunpack.c.l.b16 %v8522
    %v9531 = vunpack.c.l.b16 %v8536
    %v9532 = vunpack.c.l.b16 %v8550
    %v9533 = vunpack.c.l.b16 %v8564
    %v9534 = vunpack.c.l.b16 %v8578
    %v9535 = vunpack.c.l.b16 %v8592
    %v9536 = vunpack.c.l.b16 %v8606
    %v9537 = vunpack.c.l.b16 %v8620
    %v9538 = vunpack.c.l.b16 %v8634
    %v9539 = vpack.c.b16 %v9524, %v9523
    %v9540 = vpack.c.b16 %v9526, %v9525
    %v9541 = vpack.c.b16 %v9528, %v9527
    %v9542 = vpack.c.b16 %v9530, %v9529
    %v9543 = vpack.c.b16 %v9532, %v9531
    %v9544 = vpack.c.b16 %v9534, %v9533
    %v9545 = vpack.c.b16 %v9536, %v9535
    %v9546 = vpack.c.b16 %v9538, %v9537
    %9547 = vrot.lane.b32.xlu0 %v9539, 64
    %v9548 = vpop.permute.xlu0 %9547
    %9549 = vrot.lane.b32.xlu0 %v9540, 64
    %v9550 = vpop.permute.xlu0 %9549
    %9551 = vrot.lane.b32.xlu0 %v9541, 64
    %v9552 = vpop.permute.xlu0 %9551
    %9553 = vrot.lane.b32.xlu0 %v9542, 64
    %v9554 = vpop.permute.xlu0 %9553
    %9555 = vrot.lane.b32.xlu0 %v9543, 64
    %v9556 = vpop.permute.xlu0 %9555
    %9557 = vrot.lane.b32.xlu0 %v9544, 64
    %v9558 = vpop.permute.xlu0 %9557
    %9559 = vrot.lane.b32.xlu0 %v9545, 64
    %v9560 = vpop.permute.xlu0 %9559
    %9561 = vrot.lane.b32.xlu0 %v9546, 64
    %v9562 = vpop.permute.xlu0 %9561
    %v9563 = vunpack.c.l.b16 %v8686
    %v9564 = vunpack.c.l.b16 %v8690
    %v9565 = vunpack.c.l.b16 %v8694
    %v9566 = vunpack.c.l.b16 %v8698
    %v9567 = vunpack.c.l.b16 %v8702
    %v9568 = vunpack.c.l.b16 %v8706
    %v9569 = vunpack.c.l.b16 %v8710
    %v9570 = vunpack.c.l.b16 %v8714
    %v9571 = vunpack.c.l.b16 %v8718
    %v9572 = vunpack.c.l.b16 %v8722
    %v9573 = vunpack.c.l.b16 %v8726
    %v9574 = vunpack.c.l.b16 %v8730
    %v9575 = vunpack.c.l.b16 %v8734
    %v9576 = vunpack.c.l.b16 %v8738
    %v9577 = vunpack.c.l.b16 %v8742
    %v9578 = vunpack.c.l.b16 %v8746
    %v9579 = vpack.c.b16 %v9564, %v9563
    %v9580 = vpack.c.b16 %v9566, %v9565
    %v9581 = vpack.c.b16 %v9568, %v9567
    %v9582 = vpack.c.b16 %v9570, %v9569
    %v9583 = vpack.c.b16 %v9572, %v9571
    %v9584 = vpack.c.b16 %v9574, %v9573
    %v9585 = vpack.c.b16 %v9576, %v9575
    %v9586 = vpack.c.b16 %v9578, %v9577
    %v9603 = vunpack.c.l.b16 %v8747
    %v9604 = vunpack.c.l.b16 %v8748
    %v9605 = vunpack.c.l.b16 %v8749
    %v9606 = vunpack.c.l.b16 %v8750
    %v9607 = vunpack.c.l.b16 %v8751
    %v9608 = vunpack.c.l.b16 %v8752
    %v9609 = vunpack.c.l.b16 %v8753
    %v9610 = vunpack.c.l.b16 %v8754
    %v9611 = vunpack.c.l.b16 %v8755
    %v9612 = vunpack.c.l.b16 %v8756
    %v9613 = vunpack.c.l.b16 %v8757
    %v9614 = vunpack.c.l.b16 %v8758
    %v9615 = vunpack.c.l.b16 %v8759
    %v9616 = vunpack.c.l.b16 %v8760
    %v9617 = vunpack.c.l.b16 %v8761
    %v9618 = vunpack.c.l.b16 %v8762
    %v9619 = vpack.c.b16 %v9604, %v9603
    %v9620 = vpack.c.b16 %v9606, %v9605
    %v9621 = vpack.c.b16 %v9608, %v9607
    %v9622 = vpack.c.b16 %v9610, %v9609
    %v9623 = vpack.c.b16 %v9612, %v9611
    %v9624 = vpack.c.b16 %v9614, %v9613
    %v9625 = vpack.c.b16 %v9616, %v9615
    %v9626 = vpack.c.b16 %v9618, %v9617
    %9627 = vrot.lane.b32.xlu0 %v9619, 64
    %v9628 = vpop.permute.xlu0 %9627
    %9629 = vrot.lane.b32.xlu0 %v9620, 64
    %v9630 = vpop.permute.xlu0 %9629
    %9631 = vrot.lane.b32.xlu0 %v9621, 64
    %v9632 = vpop.permute.xlu0 %9631
    %9633 = vrot.lane.b32.xlu0 %v9622, 64
    %v9634 = vpop.permute.xlu0 %9633
    %9635 = vrot.lane.b32.xlu0 %v9623, 64
    %v9636 = vpop.permute.xlu0 %9635
    %9637 = vrot.lane.b32.xlu0 %v9624, 64
    %v9638 = vpop.permute.xlu0 %9637
    %9639 = vrot.lane.b32.xlu0 %v9625, 64
    %v9640 = vpop.permute.xlu0 %9639
    %9641 = vrot.lane.b32.xlu0 %v9626, 64
    %v9642 = vpop.permute.xlu0 %9641
    %v9643 = vunpack.c.l.b16 %v8792
    %v9644 = vunpack.c.l.b16 %v8806
    %v9645 = vunpack.c.l.b16 %v8820
    %v9646 = vunpack.c.l.b16 %v8834
    %v9647 = vunpack.c.l.b16 %v8848
    %v9648 = vunpack.c.l.b16 %v8862
    %v9649 = vunpack.c.l.b16 %v8876
    %v9650 = vunpack.c.l.b16 %v8890
    %v9651 = vunpack.c.l.b16 %v8904
    %v9652 = vunpack.c.l.b16 %v8918
    %v9653 = vunpack.c.l.b16 %v8932
    %v9654 = vunpack.c.l.b16 %v8946
    %v9655 = vunpack.c.l.b16 %v8960
    %v9656 = vunpack.c.l.b16 %v8974
    %v9657 = vunpack.c.l.b16 %v8988
    %v9658 = vunpack.c.l.b16 %v9002
    %v9659 = vpack.c.b16 %v9644, %v9643
    %v9660 = vpack.c.b16 %v9646, %v9645
    %v9661 = vpack.c.b16 %v9648, %v9647
    %v9662 = vpack.c.b16 %v9650, %v9649
    %v9663 = vpack.c.b16 %v9652, %v9651
    %v9664 = vpack.c.b16 %v9654, %v9653
    %v9665 = vpack.c.b16 %v9656, %v9655
    %v9666 = vpack.c.b16 %v9658, %v9657
    %v9667 = vunpack.c.l.b16 %v9054
    %v9668 = vunpack.c.l.b16 %v9058
    %v9669 = vunpack.c.l.b16 %v9062
    %v9670 = vunpack.c.l.b16 %v9066
    %v9671 = vunpack.c.l.b16 %v9070
    %v9672 = vunpack.c.l.b16 %v9074
    %v9673 = vunpack.c.l.b16 %v9078
    %v9674 = vunpack.c.l.b16 %v9082
    %v9675 = vunpack.c.l.b16 %v9086
    %v9676 = vunpack.c.l.b16 %v9090
    %v9677 = vunpack.c.l.b16 %v9094
    %v9678 = vunpack.c.l.b16 %v9098
    %v9679 = vunpack.c.l.b16 %v9102
    %v9680 = vunpack.c.l.b16 %v9106
    %v9681 = vunpack.c.l.b16 %v9110
    %v9682 = vunpack.c.l.b16 %v9114
    %v9683 = vpack.c.b16 %v9668, %v9667
    %v9684 = vpack.c.b16 %v9670, %v9669
    %v9685 = vpack.c.b16 %v9672, %v9671
    %v9686 = vpack.c.b16 %v9674, %v9673
    %v9687 = vpack.c.b16 %v9676, %v9675
    %v9688 = vpack.c.b16 %v9678, %v9677
    %v9689 = vpack.c.b16 %v9680, %v9679
    %v9690 = vpack.c.b16 %v9682, %v9681
    %9691 = vrot.lane.b32.xlu0 %v9683, 64
    %v9692 = vpop.permute.xlu0 %9691
    %9693 = vrot.lane.b32.xlu0 %v9684, 64
    %v9694 = vpop.permute.xlu0 %9693
    %9695 = vrot.lane.b32.xlu0 %v9685, 64
    %v9696 = vpop.permute.xlu0 %9695
    %9697 = vrot.lane.b32.xlu0 %v9686, 64
    %v9698 = vpop.permute.xlu0 %9697
    %9699 = vrot.lane.b32.xlu0 %v9687, 64
    %v9700 = vpop.permute.xlu0 %9699
    %9701 = vrot.lane.b32.xlu0 %v9688, 64
    %v9702 = vpop.permute.xlu0 %9701
    %9703 = vrot.lane.b32.xlu0 %v9689, 64
    %v9704 = vpop.permute.xlu0 %9703
    %9705 = vrot.lane.b32.xlu0 %v9690, 64
    %v9706 = vpop.permute.xlu0 %9705
    %v9723 = vunpack.c.l.b16 %v9115
    %v9724 = vunpack.c.l.b16 %v9116
    %v9725 = vunpack.c.l.b16 %v9117
    %v9726 = vunpack.c.l.b16 %v9118
    %v9727 = vunpack.c.l.b16 %v9119
    %v9728 = vunpack.c.l.b16 %v9120
    %v9729 = vunpack.c.l.b16 %v9121
    %v9730 = vunpack.c.l.b16 %v9122
    %v9731 = vunpack.c.l.b16 %v9123
    %v9732 = vunpack.c.l.b16 %v9124
    %v9733 = vunpack.c.l.b16 %v9125
    %v9734 = vunpack.c.l.b16 %v9126
    %v9735 = vunpack.c.l.b16 %v9127
    %v9736 = vunpack.c.l.b16 %v9128
    %v9737 = vunpack.c.l.b16 %v9129
    %v9738 = vunpack.c.l.b16 %v9130
    %v9739 = vpack.c.b16 %v9724, %v9723
    %v9740 = vpack.c.b16 %v9726, %v9725
    %v9741 = vpack.c.b16 %v9728, %v9727
    %v9742 = vpack.c.b16 %v9730, %v9729
    %v9743 = vpack.c.b16 %v9732, %v9731
    %v9744 = vpack.c.b16 %v9734, %v9733
    %v9745 = vpack.c.b16 %v9736, %v9735
    %v9746 = vpack.c.b16 %v9738, %v9737
    %v9747 = vunpack.c.l.b16 %v9160
    %v9748 = vunpack.c.l.b16 %v9174
    %v9749 = vunpack.c.l.b16 %v9188
    %v9750 = vunpack.c.l.b16 %v9202
    %v9751 = vunpack.c.l.b16 %v9216
    %v9752 = vunpack.c.l.b16 %v9230
    %v9753 = vunpack.c.l.b16 %v9244
    %v9754 = vunpack.c.l.b16 %v9258
    %v9755 = vunpack.c.l.b16 %v9272
    %v9756 = vunpack.c.l.b16 %v9286
    %v9757 = vunpack.c.l.b16 %v9300
    %v9758 = vunpack.c.l.b16 %v9314
    %v9759 = vunpack.c.l.b16 %v9328
    %v9760 = vunpack.c.l.b16 %v9342
    %v9761 = vunpack.c.l.b16 %v9356
    %v9762 = vunpack.c.l.b16 %v9370
    %v9763 = vpack.c.b16 %v9748, %v9747
    %v9764 = vpack.c.b16 %v9750, %v9749
    %v9765 = vpack.c.b16 %v9752, %v9751
    %v9766 = vpack.c.b16 %v9754, %v9753
    %v9767 = vpack.c.b16 %v9756, %v9755
    %v9768 = vpack.c.b16 %v9758, %v9757
    %v9769 = vpack.c.b16 %v9760, %v9759
    %v9770 = vpack.c.b16 %v9762, %v9761
    %9771 = vrot.lane.b32.xlu0 %v9763, 64
    %v9772 = vpop.permute.xlu0 %9771
    %9773 = vrot.lane.b32.xlu0 %v9764, 64
    %v9774 = vpop.permute.xlu0 %9773
    %9775 = vrot.lane.b32.xlu0 %v9765, 64
    %v9776 = vpop.permute.xlu0 %9775
    %9777 = vrot.lane.b32.xlu0 %v9766, 64
    %v9778 = vpop.permute.xlu0 %9777
    %9779 = vrot.lane.b32.xlu0 %v9767, 64
    %v9780 = vpop.permute.xlu0 %9779
    %9781 = vrot.lane.b32.xlu0 %v9768, 64
    %v9782 = vpop.permute.xlu0 %9781
    %9783 = vrot.lane.b32.xlu0 %v9769, 64
    %v9784 = vpop.permute.xlu0 %9783
    %9785 = vrot.lane.b32.xlu0 %v9770, 64
    %v9786 = vpop.permute.xlu0 %9785
    %v9787 = vunpack.c.l.b16 %v9422
    %v9788 = vunpack.c.l.b16 %v9426
    %v9789 = vunpack.c.l.b16 %v9430
    %v9790 = vunpack.c.l.b16 %v9434
    %v9791 = vunpack.c.l.b16 %v9438
    %v9792 = vunpack.c.l.b16 %v9442
    %v9793 = vunpack.c.l.b16 %v9446
    %v9794 = vunpack.c.l.b16 %v9450
    %v9795 = vunpack.c.l.b16 %v9454
    %v9796 = vunpack.c.l.b16 %v9458
    %v9797 = vunpack.c.l.b16 %v9462
    %v9798 = vunpack.c.l.b16 %v9466
    %v9799 = vunpack.c.l.b16 %v9470
    %v9800 = vunpack.c.l.b16 %v9474
    %v9801 = vunpack.c.l.b16 %v9478
    %v9802 = vunpack.c.l.b16 %v9482
    %v9803 = vpack.c.b16 %v9788, %v9787
    %v9804 = vpack.c.b16 %v9790, %v9789
    %v9805 = vpack.c.b16 %v9792, %v9791
    %v9806 = vpack.c.b16 %v9794, %v9793
    %v9807 = vpack.c.b16 %v9796, %v9795
    %v9808 = vpack.c.b16 %v9798, %v9797
    %v9809 = vpack.c.b16 %v9800, %v9799
    %v9810 = vpack.c.b16 %v9802, %v9801
    %v9813 = vsel %vm2003, %v9515, %v9548
    %v9817 = vsel %vm2003, %v9516, %v9550
    %v9821 = vsel %vm2003, %v9517, %v9552
    %v9825 = vsel %vm2003, %v9518, %v9554
    %v9829 = vsel %vm2003, %v9519, %v9556
    %v9833 = vsel %vm2003, %v9520, %v9558
    %v9837 = vsel %vm2003, %v9521, %v9560
    %v9841 = vsel %vm2003, %v9522, %v9562
    %v9845 = vsel %vm2003, %v9579, %v9628
    %v9849 = vsel %vm2003, %v9580, %v9630
    %v9853 = vsel %vm2003, %v9581, %v9632
    %v9857 = vsel %vm2003, %v9582, %v9634
    %v9861 = vsel %vm2003, %v9583, %v9636
    %v9865 = vsel %vm2003, %v9584, %v9638
    %v9869 = vsel %vm2003, %v9585, %v9640
    %v9873 = vsel %vm2003, %v9586, %v9642
    %v9877 = vsel %vm2003, %v9659, %v9692
    %v9881 = vsel %vm2003, %v9660, %v9694
    %v9885 = vsel %vm2003, %v9661, %v9696
    %v9889 = vsel %vm2003, %v9662, %v9698
    %v9893 = vsel %vm2003, %v9663, %v9700
    %v9897 = vsel %vm2003, %v9664, %v9702
    %v9901 = vsel %vm2003, %v9665, %v9704
    %v9905 = vsel %vm2003, %v9666, %v9706
    %v9909 = vsel %vm2003, %v9739, %v9772
    %v9913 = vsel %vm2003, %v9740, %v9774
    %v9917 = vsel %vm2003, %v9741, %v9776
    %v9921 = vsel %vm2003, %v9742, %v9778
    %v9925 = vsel %vm2003, %v9743, %v9780
    %v9929 = vsel %vm2003, %v9744, %v9782
    %v9933 = vsel %vm2003, %v9745, %v9784
    %v9937 = vsel %vm2003, %v9746, %v9786
    %v9939 = vld [vmem:[#allocation10] sm:$0xf]
    %v9940 = vld [vmem:[#allocation10 + $0x4] sm:$0xf]
    %v9941 = vld [vmem:[#allocation10 + $0x8] sm:$0xf]
    %v9942 = vld [vmem:[#allocation10 + $0xc] sm:$0xf]
    %v9943 = vld [vmem:[#allocation10 + $0x10] sm:$0xf]
    %v9944 = vld [vmem:[#allocation10 + $0x14] sm:$0xf]
    %v9945 = vld [vmem:[#allocation10 + $0x18] sm:$0xf]
    %v9946 = vld [vmem:[#allocation10 + $0x1c] sm:$0xf]
    %v9947 = vld [vmem:[#allocation10 + $0x20] sm:$0xf]
    %v9948 = vld [vmem:[#allocation10 + $0x24] sm:$0xf]
    %v9949 = vld [vmem:[#allocation10 + $0x28] sm:$0xf]
    %v9950 = vld [vmem:[#allocation10 + $0x2c] sm:$0xf]
    %v9951 = vld [vmem:[#allocation10 + $0x30] sm:$0xf]
    %v9952 = vld [vmem:[#allocation10 + $0x34] sm:$0xf]
    %v9953 = vld [vmem:[#allocation10 + $0x38] sm:$0xf]
    %v9954 = vld [vmem:[#allocation10 + $0x3c] sm:$0xf]
    %v9955 = vld [vmem:[#allocation10 + $0x40] sm:$0xf]
    %v9956 = vld [vmem:[#allocation10 + $0x44] sm:$0xf]
    %v9957 = vld [vmem:[#allocation10 + $0x48] sm:$0xf]
    %v9958 = vld [vmem:[#allocation10 + $0x4c] sm:$0xf]
    %v9959 = vld [vmem:[#allocation10 + $0x50] sm:$0xf]
    %v9960 = vld [vmem:[#allocation10 + $0x54] sm:$0xf]
    %v9961 = vld [vmem:[#allocation10 + $0x58] sm:$0xf]
    %v9962 = vld [vmem:[#allocation10 + $0x5c] sm:$0xf]
    %v9963 = vld [vmem:[#allocation10 + $0x60] sm:$0xf]
    %v9964 = vld [vmem:[#allocation10 + $0x64] sm:$0xf]
    %v9965 = vld [vmem:[#allocation10 + $0x68] sm:$0xf]
    %v9966 = vld [vmem:[#allocation10 + $0x6c] sm:$0xf]
    %v9967 = vld [vmem:[#allocation10 + $0x70] sm:$0xf]
    %v9968 = vld [vmem:[#allocation10 + $0x74] sm:$0xf]
    %v9969 = vld [vmem:[#allocation10 + $0x78] sm:$0xf]
    %v9970 = vld [vmem:[#allocation10 + $0x7c] sm:$0xf]
    %v9971 = vld [vmem:[#allocation10 + $0x80] sm:$0xf]
    %v9972 = vld [vmem:[#allocation10 + $0x84] sm:$0xf]
    %v9973 = vld [vmem:[#allocation10 + $0x88] sm:$0xf]
    %v9974 = vld [vmem:[#allocation10 + $0x8c] sm:$0xf]
    %v9975 = vld [vmem:[#allocation10 + $0x90] sm:$0xf]
    %v9976 = vld [vmem:[#allocation10 + $0x94] sm:$0xf]
    %v9977 = vld [vmem:[#allocation10 + $0x98] sm:$0xf]
    %v9978 = vld [vmem:[#allocation10 + $0x9c] sm:$0xf]
    %v9979 = vld [vmem:[#allocation10 + $0xa0] sm:$0xf]
    %v9980 = vld [vmem:[#allocation10 + $0xa4] sm:$0xf]
    %v9981 = vld [vmem:[#allocation10 + $0xa8] sm:$0xf]
    %v9982 = vld [vmem:[#allocation10 + $0xac] sm:$0xf]
    %v9983 = vld [vmem:[#allocation10 + $0xb0] sm:$0xf]
    %v9984 = vld [vmem:[#allocation10 + $0xb4] sm:$0xf]
    %v9985 = vld [vmem:[#allocation10 + $0xb8] sm:$0xf]
    %v9986 = vld [vmem:[#allocation10 + $0xbc] sm:$0xf]
    %v9987 = vld [vmem:[#allocation10 + $0xc0] sm:$0xf]
    %v9988 = vld [vmem:[#allocation10 + $0xc4] sm:$0xf]
    %v9989 = vld [vmem:[#allocation10 + $0xc8] sm:$0xf]
    %v9990 = vld [vmem:[#allocation10 + $0xcc] sm:$0xf]
    %v9991 = vld [vmem:[#allocation10 + $0xd0] sm:$0xf]
    %v9992 = vld [vmem:[#allocation10 + $0xd4] sm:$0xf]
    %v9993 = vld [vmem:[#allocation10 + $0xd8] sm:$0xf]
    %v9994 = vld [vmem:[#allocation10 + $0xdc] sm:$0xf]
    %v9995 = vld [vmem:[#allocation10 + $0xe0] sm:$0xf]
    %v9996 = vld [vmem:[#allocation10 + $0xe4] sm:$0xf]
    %v9997 = vld [vmem:[#allocation10 + $0xe8] sm:$0xf]
    %v9998 = vld [vmem:[#allocation10 + $0xec] sm:$0xf]
    %v9999 = vld [vmem:[#allocation10 + $0xf0] sm:$0xf]
    %v10000 = vld [vmem:[#allocation10 + $0xf4] sm:$0xf]
    %v10001 = vld [vmem:[#allocation10 + $0xf8] sm:$0xf]
    %v10002 = vld [vmem:[#allocation10 + $0xfc] sm:$0xf]
    %v10003 = vld [vmem:[#allocation10 + $0x100] sm:$0xf]
    %v10004 = vld [vmem:[#allocation10 + $0x104] sm:$0xf]
    %v10005 = vld [vmem:[#allocation10 + $0x108] sm:$0xf]
    %v10006 = vld [vmem:[#allocation10 + $0x10c] sm:$0xf]
    %v10007 = vld [vmem:[#allocation10 + $0x110] sm:$0xf]
    %v10008 = vld [vmem:[#allocation10 + $0x114] sm:$0xf]
    %v10009 = vld [vmem:[#allocation10 + $0x118] sm:$0xf]
    %v10010 = vld [vmem:[#allocation10 + $0x11c] sm:$0xf]
    %v10011 = vld [vmem:[%s8] sm:$0x1]
    %v10013 = vlaneseq
    %v10014 = vshrl.u32 %v10013, 7
    %v10015 = vsub.s32 0, %v10014
    %v10016 = vrot.slane %v10011, %v10015
    %v10090 = vunpack.c.l.b16 %v9939
    %v10091 = vunpack.c.l.b16 %v9940
    %v10092 = vunpack.c.l.b16 %v9941
    %v10093 = vunpack.c.l.b16 %v9942
    %v10094 = vunpack.c.l.b16 %v9943
    %v10095 = vunpack.c.l.b16 %v9944
    %v10096 = vunpack.c.l.b16 %v9945
    %v10097 = vunpack.c.l.b16 %v9946
    %v10098 = vunpack.c.l.b16 %v9947
    %v10099 = vunpack.c.l.b16 %v9948
    %v10100 = vunpack.c.l.b16 %v9949
    %v10101 = vunpack.c.l.b16 %v9950
    %v10102 = vunpack.c.l.b16 %v9951
    %v10103 = vunpack.c.l.b16 %v9952
    %v10104 = vunpack.c.l.b16 %v9953
    %v10105 = vunpack.c.l.b16 %v9954
    %v10106 = vunpack.c.l.b16 %v9955
    %v10107 = vunpack.c.l.b16 %v9956
    %v10108 = vunpack.c.l.b16 %v9957
    %v10109 = vunpack.c.l.b16 %v9958
    %v10110 = vunpack.c.l.b16 %v9959
    %v10111 = vunpack.c.l.b16 %v9960
    %v10112 = vunpack.c.l.b16 %v9961
    %v10113 = vunpack.c.l.b16 %v9962
    %v10114 = vunpack.c.l.b16 %v9963
    %v10115 = vunpack.c.l.b16 %v9964
    %v10116 = vunpack.c.l.b16 %v9965
    %v10117 = vunpack.c.l.b16 %v9966
    %v10118 = vunpack.c.l.b16 %v9967
    %v10119 = vunpack.c.l.b16 %v9968
    %v10120 = vunpack.c.l.b16 %v9969
    %v10121 = vunpack.c.l.b16 %v9970
    %v10122 = vunpack.c.l.b16 %v9971
    %v10123 = vunpack.c.l.b16 %v9972
    %v10124 = vunpack.c.l.b16 %v9973
    %v10125 = vunpack.c.l.b16 %v9974
    %v10126 = vunpack.c.l.b16 %v9975
    %v10127 = vunpack.c.l.b16 %v9976
    %v10128 = vunpack.c.l.b16 %v9977
    %v10129 = vunpack.c.l.b16 %v9978
    %v10130 = vunpack.c.l.b16 %v9979
    %v10131 = vunpack.c.l.b16 %v9980
    %v10132 = vunpack.c.l.b16 %v9981
    %v10133 = vunpack.c.l.b16 %v9982
    %v10134 = vunpack.c.l.b16 %v9983
    %v10135 = vunpack.c.l.b16 %v9984
    %v10136 = vunpack.c.l.b16 %v9985
    %v10137 = vunpack.c.l.b16 %v9986
    %v10138 = vunpack.c.l.b16 %v9987
    %v10139 = vunpack.c.l.b16 %v9988
    %v10140 = vunpack.c.l.b16 %v9989
    %v10141 = vunpack.c.l.b16 %v9990
    %v10142 = vunpack.c.l.b16 %v9991
    %v10143 = vunpack.c.l.b16 %v9992
    %v10144 = vunpack.c.l.b16 %v9993
    %v10145 = vunpack.c.l.b16 %v9994
    %v10146 = vunpack.c.l.b16 %v9995
    %v10147 = vunpack.c.l.b16 %v9996
    %v10148 = vunpack.c.l.b16 %v9997
    %v10149 = vunpack.c.l.b16 %v9998
    %v10150 = vunpack.c.l.b16 %v9999
    %v10151 = vunpack.c.l.b16 %v10000
    %v10152 = vunpack.c.l.b16 %v10001
    %v10153 = vunpack.c.l.b16 %v10002
    %v10154 = vunpack.c.l.b16 %v10003
    %v10155 = vunpack.c.l.b16 %v10004
    %v10156 = vunpack.c.l.b16 %v10005
    %v10157 = vunpack.c.l.b16 %v10006
    %v10158 = vunpack.c.l.b16 %v10007
    %v10159 = vunpack.c.l.b16 %v10008
    %v10160 = vunpack.c.l.b16 %v10009
    %v10161 = vunpack.c.l.b16 %v10010
    %v10162 = vpack.c.b16 %v10091, %v10090
    %v10163 = vpack.c.b16 %v10093, %v10092
    %v10164 = vpack.c.b16 %v10095, %v10094
    %v10165 = vpack.c.b16 %v10097, %v10096
    %v10166 = vpack.c.b16 %v10099, %v10098
    %v10167 = vpack.c.b16 %v10101, %v10100
    %v10168 = vpack.c.b16 %v10103, %v10102
    %v10169 = vpack.c.b16 %v10105, %v10104
    %v10170 = vpack.c.b16 %v10107, %v10106
    %v10171 = vpack.c.b16 %v10109, %v10108
    %v10172 = vpack.c.b16 %v10111, %v10110
    %v10173 = vpack.c.b16 %v10113, %v10112
    %v10174 = vpack.c.b16 %v10115, %v10114
    %v10175 = vpack.c.b16 %v10117, %v10116
    %v10176 = vpack.c.b16 %v10119, %v10118
    %v10177 = vpack.c.b16 %v10121, %v10120
    %v10178 = vpack.c.b16 %v10123, %v10122
    %v10179 = vpack.c.b16 %v10125, %v10124
    %v10180 = vpack.c.b16 %v10127, %v10126
    %v10181 = vpack.c.b16 %v10129, %v10128
    %v10182 = vpack.c.b16 %v10131, %v10130
    %v10183 = vpack.c.b16 %v10133, %v10132
    %v10184 = vpack.c.b16 %v10135, %v10134
    %v10185 = vpack.c.b16 %v10137, %v10136
    %v10186 = vpack.c.b16 %v10139, %v10138
    %v10187 = vpack.c.b16 %v10141, %v10140
    %v10188 = vpack.c.b16 %v10143, %v10142
    %v10189 = vpack.c.b16 %v10145, %v10144
    %v10190 = vpack.c.b16 %v10147, %v10146
    %v10191 = vpack.c.b16 %v10149, %v10148
    %v10192 = vpack.c.b16 %v10151, %v10150
    %v10193 = vpack.c.b16 %v10153, %v10152
    %v10194 = vpack.c.b16 %v10155, %v10154
    %v10195 = vpack.c.b16 %v10157, %v10156
    %v10196 = vpack.c.b16 %v10159, %v10158
    %v10197 = vpack.c.b16 %v10161, %v10160
    %v10235 = vsel %vm2003, %v9803, 0
    %v10238 = vsel %vm2003, %v9804, 0
    %v10241 = vsel %vm2003, %v9805, 0
    %v10244 = vsel %vm2003, %v9806, 0
    %v10247 = vsel %vm2003, %v9807, 0
    %v10250 = vsel %vm2003, %v9808, 0
    %v10253 = vsel %vm2003, %v9809, 0
    %v10256 = vsel %vm2003, %v9810, 0
    %10258 = vmatprep.subr.bf16.mxu0 0
    %10259 = vmatpush1.bf16.msra.mxu0 %v10162
    %10260 = vmatprep.subr.bf16.mxu0 0
    %10261 = vmatpush1.bf16.msra.mxu0 %v10163
    %10262 = vmatprep.subr.bf16.mxu0 0
    %10263 = vmatpush1.bf16.msra.mxu0 %v10164
    %10264 = vmatprep.subr.bf16.mxu0 0
    %10265 = vmatpush1.bf16.msra.mxu0 %v10165
    %10266 = vmatprep.subr.bf16.mxu0 0
    %10267 = vmatpush1.bf16.msra.mxu0 %v10166
    %10268 = vmatprep.subr.bf16.mxu0 0
    %10269 = vmatpush1.bf16.msra.mxu0 %v10167
    %10270 = vmatprep.subr.bf16.mxu0 0
    %10271 = vmatpush1.bf16.msra.mxu0 %v10168
    %10272 = vmatprep.subr.bf16.mxu0 0
    %10273 = vmatpush1.bf16.msra.mxu0 %v10169
    %10274 = vmatprep.subr.bf16.mxu0 0
    %10275 = vmatpush1.bf16.msra.mxu0 %v10170
    %10276 = vmatprep.subr.bf16.mxu0 0
    %10277 = vmatpush1.bf16.msra.mxu0 %v10171
    %10278 = vmatprep.subr.bf16.mxu0 0
    %10279 = vmatpush1.bf16.msra.mxu0 %v10172
    %10280 = vmatprep.subr.bf16.mxu0 0
    %10281 = vmatpush1.bf16.msra.mxu0 %v10173
    %10282 = vmatprep.subr.bf16.mxu0 0
    %10283 = vmatpush1.bf16.msra.mxu0 %v10174
    %10284 = vmatprep.subr.bf16.mxu0 0
    %10285 = vmatpush1.bf16.msra.mxu0 %v10175
    %10286 = vmatprep.subr.bf16.mxu0 0
    %10287 = vmatpush1.bf16.msra.mxu0 %v10176
    %10288 = vmatprep.subr.bf16.mxu0 0
    %10289 = vmatpush1.bf16.msra.mxu0 %v10177
    %10290 = vmatprep.mubr.bf16.mxu0 %v9845
    %10291 = vmatmul.mubr.bf16.gmra.mrb[0].mxu0 %v9813
    %v10292 = vpop.f32.mrb[0].mxu0
    %v10293 = vadd.f32 %v10016, %v10292
    %v10294 = vpop.f32.mrb[0].mxu0
    %v10295 = vpop.f32.mrb[0].mxu0
    %v10296 = vadd.f32 %v10016, %v10295
    %v10297 = vpop.f32.mrb[0].mxu0
    %10298 = vmatprep.mubr.bf16.mxu0 %v9849
    %10299 = vmatmul.mubr.bf16.gmra.mrb[0].mxu0 %v9817
    %v10300 = vpop.f32.mrb[0].mxu0
    %v10301 = vadd.f32 %v10016, %v10300
    %v10302 = vpop.f32.mrb[0].mxu0
    %v10303 = vpop.f32.mrb[0].mxu0
    %v10304 = vadd.f32 %v10016, %v10303
    %v10305 = vpop.f32.mrb[0].mxu0
    %10306 = vmatprep.mubr.bf16.mxu0 %v9853
    %10307 = vmatmul.mubr.bf16.gmra.mrb[0].mxu0 %v9821
    %v10308 = vpop.f32.mrb[0].mxu0
    %v10309 = vadd.f32 %v10016, %v10308
    %v10310 = vpop.f32.mrb[0].mxu0
    %v10311 = vpop.f32.mrb[0].mxu0
    %v10312 = vadd.f32 %v10016, %v10311
    %v10313 = vpop.f32.mrb[0].mxu0
    %10314 = vmatprep.mubr.bf16.mxu0 %v9857
    %10315 = vmatmul.mubr.bf16.gmra.mrb[0].mxu0 %v9825
    %v10316 = vpop.f32.mrb[0].mxu0
    %v10317 = vadd.f32 %v10016, %v10316
    %v10318 = vpop.f32.mrb[0].mxu0
    %v10319 = vpop.f32.mrb[0].mxu0
    %v10320 = vadd.f32 %v10016, %v10319
    %v10321 = vpop.f32.mrb[0].mxu0
    %10322 = vmatprep.mubr.bf16.mxu0 %v9861
    %10323 = vmatmul.mubr.bf16.gmra.mrb[0].mxu0 %v9829
    %v10324 = vpop.f32.mrb[0].mxu0
    %v10325 = vadd.f32 %v10016, %v10324
    %v10326 = vpop.f32.mrb[0].mxu0
    %v10327 = vpop.f32.mrb[0].mxu0
    %v10328 = vadd.f32 %v10016, %v10327
    %v10329 = vpop.f32.mrb[0].mxu0
    %10330 = vmatprep.mubr.bf16.mxu0 %v9865
    %10331 = vmatmul.mubr.bf16.gmra.mrb[0].mxu0 %v9833
    %v10332 = vpop.f32.mrb[0].mxu0
    %v10333 = vadd.f32 %v10016, %v10332
    %v10334 = vpop.f32.mrb[0].mxu0
    %v10335 = vpop.f32.mrb[0].mxu0
    %v10336 = vadd.f32 %v10016, %v10335
    %v10337 = vpop.f32.mrb[0].mxu0
    %10338 = vmatprep.mubr.bf16.mxu0 %v9869
    %10339 = vmatmul.mubr.bf16.gmra.mrb[0].mxu0 %v9837
    %v10340 = vpop.f32.mrb[0].mxu0
    %v10341 = vadd.f32 %v10016, %v10340
    %v10342 = vpop.f32.mrb[0].mxu0
    %v10343 = vpop.f32.mrb[0].mxu0
    %v10344 = vadd.f32 %v10016, %v10343
    %v10345 = vpop.f32.mrb[0].mxu0
    %10346 = vmatprep.mubr.bf16.mxu0 %v9873
    %10347 = vmatmul.mubr.bf16.gmra.mrb[0].mxu0 %v9841
    %v10348 = vpop.f32.mrb[0].mxu0
    %v10349 = vadd.f32 %v10016, %v10348
    %v10350 = vpop.f32.mrb[0].mxu0
    %v10351 = vpop.f32.mrb[0].mxu0
    %v10352 = vadd.f32 %v10016, %v10351
    %v10353 = vpop.f32.mrb[0].mxu0
    %10354 = vdwg.mxu0
    %10355 = vmatprep.subr.bf16.mxu0 0
    %10356 = vmatpush1.bf16.msra.mxu0 %v10178
    %10357 = vmatprep.subr.bf16.mxu0 0
    %10358 = vmatpush1.bf16.msra.mxu0 %v10179
    %10359 = vmatprep.subr.bf16.mxu0 0
    %10360 = vmatpush1.bf16.msra.mxu0 %v10180
    %10361 = vmatprep.subr.bf16.mxu0 0
    %10362 = vmatpush1.bf16.msra.mxu0 %v10181
    %10363 = vmatprep.subr.bf16.mxu0 0
    %10364 = vmatpush1.bf16.msra.mxu0 %v10182
    %10365 = vmatprep.subr.bf16.mxu0 0
    %10366 = vmatpush1.bf16.msra.mxu0 %v10183
    %10367 = vmatprep.subr.bf16.mxu0 0
    %10368 = vmatpush1.bf16.msra.mxu0 %v10184
    %10369 = vmatprep.subr.bf16.mxu0 0
    %10370 = vmatpush1.bf16.msra.mxu0 %v10185
    %10371 = vmatprep.subr.bf16.mxu0 0
    %10372 = vmatpush1.bf16.msra.mxu0 %v10186
    %10373 = vmatprep.subr.bf16.mxu0 0
    %10374 = vmatpush1.bf16.msra.mxu0 %v10187
    %10375 = vmatprep.subr.bf16.mxu0 0
    %10376 = vmatpush1.bf16.msra.mxu0 %v10188
    %10377 = vmatprep.subr.bf16.mxu0 0
    %10378 = vmatpush1.bf16.msra.mxu0 %v10189
    %10379 = vmatprep.subr.bf16.mxu0 0
    %10380 = vmatpush1.bf16.msra.mxu0 %v10190
    %10381 = vmatprep.subr.bf16.mxu0 0
    %10382 = vmatpush1.bf16.msra.mxu0 %v10191
    %10383 = vmatprep.subr.bf16.mxu0 0
    %10384 = vmatpush1.bf16.msra.mxu0 %v10192
    %10385 = vmatprep.subr.bf16.mxu0 0
    %10386 = vmatpush1.bf16.msra.mxu0 %v10193
    %10387 = vmatprep.mubr.bf16.mxu0 %v9909
    %10388 = vmatmul.mubr.bf16.gmra.mrb[0].mxu0 %v9877
    %v10389 = vpop.f32.mrb[0].mxu0
    %v10390 = vadd.f32 %v10293, %v10389
    %v10391 = vpop.f32.mrb[0].mxu0
    %v10392 = vpop.f32.mrb[0].mxu0
    %v10393 = vadd.f32 %v10296, %v10392
    %v10394 = vpop.f32.mrb[0].mxu0
    %10395 = vmatprep.mubr.bf16.mxu0 %v9913
    %10396 = vmatmul.mubr.bf16.gmra.mrb[0].mxu0 %v9881
    %v10397 = vpop.f32.mrb[0].mxu0
    %v10398 = vadd.f32 %v10301, %v10397
    %v10399 = vpop.f32.mrb[0].mxu0
    %v10400 = vpop.f32.mrb[0].mxu0
    %v10401 = vadd.f32 %v10304, %v10400
    %v10402 = vpop.f32.mrb[0].mxu0
    %10403 = vmatprep.mubr.bf16.mxu0 %v9917
    %10404 = vmatmul.mubr.bf16.gmra.mrb[0].mxu0 %v9885
    %v10405 = vpop.f32.mrb[0].mxu0
    %v10406 = vadd.f32 %v10309, %v10405
    %v10407 = vpop.f32.mrb[0].mxu0
    %v10408 = vpop.f32.mrb[0].mxu0
    %v10409 = vadd.f32 %v10312, %v10408
    %v10410 = vpop.f32.mrb[0].mxu0
    %10411 = vmatprep.mubr.bf16.mxu0 %v9921
    %10412 = vmatmul.mubr.bf16.gmra.mrb[0].mxu0 %v9889
    %v10413 = vpop.f32.mrb[0].mxu0
    %v10414 = vadd.f32 %v10317, %v10413
    %v10415 = vpop.f32.mrb[0].mxu0
    %v10416 = vpop.f32.mrb[0].mxu0
    %v10417 = vadd.f32 %v10320, %v10416
    %v10418 = vpop.f32.mrb[0].mxu0
    %10419 = vmatprep.mubr.bf16.mxu0 %v9925
    %10420 = vmatmul.mubr.bf16.gmra.mrb[0].mxu0 %v9893
    %v10421 = vpop.f32.mrb[0].mxu0
    %v10422 = vadd.f32 %v10325, %v10421
    %v10423 = vpop.f32.mrb[0].mxu0
    %v10424 = vpop.f32.mrb[0].mxu0
    %v10425 = vadd.f32 %v10328, %v10424
    %v10426 = vpop.f32.mrb[0].mxu0
    %10427 = vmatprep.mubr.bf16.mxu0 %v9929
    %10428 = vmatmul.mubr.bf16.gmra.mrb[0].mxu0 %v9897
    %v10429 = vpop.f32.mrb[0].mxu0
    %v10430 = vadd.f32 %v10333, %v10429
    %v10431 = vpop.f32.mrb[0].mxu0
    %v10432 = vpop.f32.mrb[0].mxu0
    %v10433 = vadd.f32 %v10336, %v10432
    %v10434 = vpop.f32.mrb[0].mxu0
    %10435 = vmatprep.mubr.bf16.mxu0 %v9933
    %10436 = vmatmul.mubr.bf16.gmra.mrb[0].mxu0 %v9901
    %v10437 = vpop.f32.mrb[0].mxu0
    %v10438 = vadd.f32 %v10341, %v10437
    %v10439 = vpop.f32.mrb[0].mxu0
    %v10440 = vpop.f32.mrb[0].mxu0
    %v10441 = vadd.f32 %v10344, %v10440
    %v10442 = vpop.f32.mrb[0].mxu0
    %10443 = vmatprep.mubr.bf16.mxu0 %v9937
    %10444 = vmatmul.mubr.bf16.gmra.mrb[0].mxu0 %v9905
    %v10445 = vpop.f32.mrb[0].mxu0
    %v10446 = vadd.f32 %v10349, %v10445
    %v10447 = vpop.f32.mrb[0].mxu0
    %v10448 = vpop.f32.mrb[0].mxu0
    %v10449 = vadd.f32 %v10352, %v10448
    %v10450 = vpop.f32.mrb[0].mxu0
    %10451 = vdwg.mxu0
    %10452 = vmatprep.subr.bf16.mxu0 0
    %10453 = vmatpush1.bf16.msra.mxu0 %v10194
    %10454 = vmatprep.subr.bf16.mxu0 0
    %10455 = vmatpush1.bf16.msra.mxu0 %v10195
    %10456 = vmatprep.subr.bf16.mxu0 0
    %10457 = vmatpush1.bf16.msra.mxu0 %v10196
    %10458 = vmatprep.subr.bf16.mxu0 0
    %10459 = vmatpush1.bf16.msra.mxu0 %v10197
    %10460 = vmatprep.subr.bf16.mxu0 0
    %10461 = vmatpush1.bf16.msra.mxu0 0
    %10462 = vmatprep.subr.bf16.mxu0 0
    %10463 = vmatpush1.bf16.msra.mxu0 0
    %10464 = vmatprep.subr.bf16.mxu0 0
    %10465 = vmatpush1.bf16.msra.mxu0 0
    %10466 = vmatprep.subr.bf16.mxu0 0
    %10467 = vmatpush1.bf16.msra.mxu0 0
    %10468 = vmatprep.subr.bf16.mxu0 0
    %10469 = vmatpush1.bf16.msra.mxu0 0
    %10470 = vmatprep.subr.bf16.mxu0 0
    %10471 = vmatpush1.bf16.msra.mxu0 0
    %10472 = vmatprep.subr.bf16.mxu0 0
    %10473 = vmatpush1.bf16.msra.mxu0 0
    %10474 = vmatprep.subr.bf16.mxu0 0
    %10475 = vmatpush1.bf16.msra.mxu0 0
    %10476 = vmatprep.subr.bf16.mxu0 0
    %10477 = vmatpush1.bf16.msra.mxu0 0
    %10478 = vmatprep.subr.bf16.mxu0 0
    %10479 = vmatpush1.bf16.msra.mxu0 0
    %10480 = vmatprep.subr.bf16.mxu0 0
    %10481 = vmatpush1.bf16.msra.mxu0 0
    %10482 = vmatprep.subr.bf16.mxu0 0
    %10483 = vmatpush1.bf16.msra.mxu0 0
    %10484 = vmatprep.mubr.bf16.mxu0 0
    %10485 = vmatmul.mubr.bf16.gmra.mrb[0].mxu0 %v10235
    %v10486 = vpop.f32.mrb[0].mxu0
    %v10487 = vadd.f32 %v10390, %v10486
    %v10488 = vpop.f32.mrb[0].mxu0
    %v10489 = vpop.f32.mrb[0].mxu0
    %v10490 = vadd.f32 %v10393, %v10489
    %v10491 = vpop.f32.mrb[0].mxu0
    %10492 = vmatprep.mubr.bf16.mxu0 0
    %10493 = vmatmul.mubr.bf16.gmra.mrb[0].mxu0 %v10238
    %v10494 = vpop.f32.mrb[0].mxu0
    %v10495 = vadd.f32 %v10398, %v10494
    %v10496 = vpop.f32.mrb[0].mxu0
    %v10497 = vpop.f32.mrb[0].mxu0
    %v10498 = vadd.f32 %v10401, %v10497
    %v10499 = vpop.f32.mrb[0].mxu0
    %10500 = vmatprep.mubr.bf16.mxu0 0
    %10501 = vmatmul.mubr.bf16.gmra.mrb[0].mxu0 %v10241
    %v10502 = vpop.f32.mrb[0].mxu0
    %v10503 = vadd.f32 %v10406, %v10502
    %v10504 = vpop.f32.mrb[0].mxu0
    %v10505 = vpop.f32.mrb[0].mxu0
    %v10506 = vadd.f32 %v10409, %v10505
    %v10507 = vpop.f32.mrb[0].mxu0
    %10508 = vmatprep.mubr.bf16.mxu0 0
    %10509 = vmatmul.mubr.bf16.gmra.mrb[0].mxu0 %v10244
    %v10510 = vpop.f32.mrb[0].mxu0
    %v10511 = vadd.f32 %v10414, %v10510
    %v10512 = vpop.f32.mrb[0].mxu0
    %v10513 = vpop.f32.mrb[0].mxu0
    %v10514 = vadd.f32 %v10417, %v10513
    %v10515 = vpop.f32.mrb[0].mxu0
    %10516 = vmatprep.mubr.bf16.mxu0 0
    %10517 = vmatmul.mubr.bf16.gmra.mrb[0].mxu0 %v10247
    %v10518 = vpop.f32.mrb[0].mxu0
    %v10519 = vadd.f32 %v10422, %v10518
    %v10520 = vpop.f32.mrb[0].mxu0
    %v10521 = vpop.f32.mrb[0].mxu0
    %v10522 = vadd.f32 %v10425, %v10521
    %v10523 = vpop.f32.mrb[0].mxu0
    %10524 = vmatprep.mubr.bf16.mxu0 0
    %10525 = vmatmul.mubr.bf16.gmra.mrb[0].mxu0 %v10250
    %v10526 = vpop.f32.mrb[0].mxu0
    %v10527 = vadd.f32 %v10430, %v10526
    %v10528 = vpop.f32.mrb[0].mxu0
    %v10529 = vpop.f32.mrb[0].mxu0
    %v10530 = vadd.f32 %v10433, %v10529
    %v10531 = vpop.f32.mrb[0].mxu0
    %10532 = vmatprep.mubr.bf16.mxu0 0
    %10533 = vmatmul.mubr.bf16.gmra.mrb[0].mxu0 %v10253
    %v10534 = vpop.f32.mrb[0].mxu0
    %v10535 = vadd.f32 %v10438, %v10534
    %v10536 = vpop.f32.mrb[0].mxu0
    %v10537 = vpop.f32.mrb[0].mxu0
    %v10538 = vadd.f32 %v10441, %v10537
    %v10539 = vpop.f32.mrb[0].mxu0
    %10540 = vmatprep.mubr.bf16.mxu0 0
    %10541 = vmatmul.mubr.bf16.gmra.mrb[0].mxu0 %v10256
    %v10542 = vpop.f32.mrb[0].mxu0
    %v10543 = vadd.f32 %v10446, %v10542
    %v10544 = vpop.f32.mrb[0].mxu0
    %v10545 = vpop.f32.mrb[0].mxu0
    %v10546 = vadd.f32 %v10449, %v10545
    %v10547 = vpop.f32.mrb[0].mxu0
    %10548 = vdwg.mxu0
    %v10549 = vmax.f32 %v10487, 0.0
    %v10550 = vmax.f32 %v10490, 0.0
    %v10551 = vmax.f32 %v10495, 0.0
    %v10552 = vmax.f32 %v10498, 0.0
    %v10553 = vmax.f32 %v10503, 0.0
    %v10554 = vmax.f32 %v10506, 0.0
    %v10555 = vmax.f32 %v10511, 0.0
    %v10556 = vmax.f32 %v10514, 0.0
    %v10557 = vmax.f32 %v10519, 0.0
    %v10558 = vmax.f32 %v10522, 0.0
    %v10559 = vmax.f32 %v10527, 0.0
    %v10560 = vmax.f32 %v10530, 0.0
    %v10561 = vmax.f32 %v10535, 0.0
    %v10562 = vmax.f32 %v10538, 0.0
    %v10563 = vmax.f32 %v10543, 0.0
    %v10564 = vmax.f32 %v10546, 0.0
    %v10565 = vpack.c.bf16 %v10550, %v10549
    %v10566 = vpack.c.bf16 %v10552, %v10551
    %v10567 = vpack.c.bf16 %v10554, %v10553
    %v10568 = vpack.c.bf16 %v10556, %v10555
    %v10569 = vpack.c.bf16 %v10558, %v10557
    %v10570 = vpack.c.bf16 %v10560, %v10559
    %v10571 = vpack.c.bf16 %v10562, %v10561
    %v10572 = vpack.c.bf16 %v10564, %v10563
    %v10581 = vunpack.c.l.b16 %v10565
    %v10582 = vunpack.c.h.b16 %v10565
    %v10583 = vunpack.c.l.b16 %v10566
    %v10584 = vunpack.c.h.b16 %v10566
    %v10585 = vunpack.c.l.b16 %v10567
    %v10586 = vunpack.c.h.b16 %v10567
    %v10587 = vunpack.c.l.b16 %v10568
    %v10588 = vunpack.c.h.b16 %v10568
    %v10589 = vunpack.c.l.b16 %v10569
    %v10590 = vunpack.c.h.b16 %v10569
    %v10591 = vunpack.c.l.b16 %v10570
    %v10592 = vunpack.c.h.b16 %v10570
    %v10593 = vunpack.c.l.b16 %v10571
    %v10594 = vunpack.c.h.b16 %v10571
    %v10595 = vunpack.c.l.b16 %v10572
    %v10596 = vunpack.c.h.b16 %v10572
    %v10597 = vpack.c.b16 %v10581, %v10581
    %v10598 = vpack.c.b16 %v10582, %v10582
    %v10599 = vpack.c.b16 %v10583, %v10583
    %v10600 = vpack.c.b16 %v10584, %v10584
    %v10601 = vpack.c.b16 %v10585, %v10585
    %v10602 = vpack.c.b16 %v10586, %v10586
    %v10603 = vpack.c.b16 %v10587, %v10587
    %v10604 = vpack.c.b16 %v10588, %v10588
    %v10605 = vpack.c.b16 %v10589, %v10589
    %v10606 = vpack.c.b16 %v10590, %v10590
    %v10607 = vpack.c.b16 %v10591, %v10591
    %v10608 = vpack.c.b16 %v10592, %v10592
    %v10609 = vpack.c.b16 %v10593, %v10593
    %v10610 = vpack.c.b16 %v10594, %v10594
    %v10611 = vpack.c.b16 %v10595, %v10595
    %v10612 = vpack.c.b16 %v10596, %v10596
    %v10614 = vshrl.u32 %v10597, 16
    %v10616 = vrot.slane %v10614, 7
    %v10617 = vshll.u32 %v10597, 16
    %v10619 = vor.u32 %v10616, %v10617
    %v10620 = vrot.slane %v10616, 4
    %v10622 = vshrl.u32 %v10598, 16
    %v10624 = vrot.slane %v10622, 7
    %v10625 = vshll.u32 %v10598, 16
    %v10627 = vor.u32 %v10624, %v10625
    %v10628 = vrot.slane %v10624, 4
    %v10630 = vshrl.u32 %v10599, 16
    %v10632 = vrot.slane %v10630, 7
    %v10633 = vshll.u32 %v10599, 16
    %v10635 = vor.u32 %v10632, %v10633
    %v10636 = vrot.slane %v10632, 4
    %v10638 = vshrl.u32 %v10600, 16
    %v10640 = vrot.slane %v10638, 7
    %v10641 = vshll.u32 %v10600, 16
    %v10643 = vor.u32 %v10640, %v10641
    %v10644 = vrot.slane %v10640, 4
    %v10646 = vshrl.u32 %v10601, 16
    %v10648 = vrot.slane %v10646, 7
    %v10649 = vshll.u32 %v10601, 16
    %v10651 = vor.u32 %v10648, %v10649
    %v10652 = vrot.slane %v10648, 4
    %v10654 = vshrl.u32 %v10602, 16
    %v10656 = vrot.slane %v10654, 7
    %v10657 = vshll.u32 %v10602, 16
    %v10659 = vor.u32 %v10656, %v10657
    %v10660 = vrot.slane %v10656, 4
    %v10662 = vshrl.u32 %v10603, 16
    %v10664 = vrot.slane %v10662, 7
    %v10665 = vshll.u32 %v10603, 16
    %v10667 = vor.u32 %v10664, %v10665
    %v10668 = vrot.slane %v10664, 4
    %v10670 = vshrl.u32 %v10604, 16
    %v10672 = vrot.slane %v10670, 7
    %v10673 = vshll.u32 %v10604, 16
    %v10675 = vor.u32 %v10672, %v10673
    %v10676 = vrot.slane %v10672, 4
    %v10678 = vshrl.u32 %v10605, 16
    %v10680 = vrot.slane %v10678, 7
    %v10681 = vshll.u32 %v10605, 16
    %v10683 = vor.u32 %v10680, %v10681
    %v10684 = vrot.slane %v10680, 4
    %v10686 = vshrl.u32 %v10606, 16
    %v10688 = vrot.slane %v10686, 7
    %v10689 = vshll.u32 %v10606, 16
    %v10691 = vor.u32 %v10688, %v10689
    %v10692 = vrot.slane %v10688, 4
    %v10694 = vshrl.u32 %v10607, 16
    %v10696 = vrot.slane %v10694, 7
    %v10697 = vshll.u32 %v10607, 16
    %v10699 = vor.u32 %v10696, %v10697
    %v10700 = vrot.slane %v10696, 4
    %v10702 = vshrl.u32 %v10608, 16
    %v10704 = vrot.slane %v10702, 7
    %v10705 = vshll.u32 %v10608, 16
    %v10707 = vor.u32 %v10704, %v10705
    %v10708 = vrot.slane %v10704, 4
    %v10710 = vshrl.u32 %v10609, 16
    %v10712 = vrot.slane %v10710, 7
    %v10713 = vshll.u32 %v10609, 16
    %v10715 = vor.u32 %v10712, %v10713
    %v10716 = vrot.slane %v10712, 4
    %v10718 = vshrl.u32 %v10610, 16
    %v10720 = vrot.slane %v10718, 7
    %v10721 = vshll.u32 %v10610, 16
    %v10723 = vor.u32 %v10720, %v10721
    %v10724 = vrot.slane %v10720, 4
    %v10726 = vshrl.u32 %v10611, 16
    %v10728 = vrot.slane %v10726, 7
    %v10729 = vshll.u32 %v10611, 16
    %v10731 = vor.u32 %v10728, %v10729
    %v10732 = vrot.slane %v10728, 4
    %v10734 = vshrl.u32 %v10612, 16
    %v10736 = vrot.slane %v10734, 7
    %v10737 = vshll.u32 %v10612, 16
    %v10739 = vor.u32 %v10736, %v10737
    %v10740 = vrot.slane %v10736, 4
    %s10773 = scalar_lea.vmem [#allocation3], 8
    %vm10774 = vcmask 1043456
    %vm10775 = vmand %vm10774, %vm463
    %v10776 = vld [vmem:[%s10773] sm:$0xf]
    %v10777 = vsel %vm10775, %v10619, %v10776
    %10778 = vst [vmem:[%s10773] sm:$0xf] %v10777
    %vm10779 = vcmask 1040384
    %vm10780 = vmand %vm10779, %vm469
    %v10781 = vld [vmem:[%s10773 + $0x4] sm:$0x1]
    %v10782 = vsel %vm10780, %v10620, %v10781
    %10783 = vst [vmem:[%s10773 + $0x4] sm:$0x1] %v10782
    %v10784 = vld [vmem:[%s10773 + $0x8] sm:$0xf]
    %v10785 = vsel %vm10775, %v10627, %v10784
    %10786 = vst [vmem:[%s10773 + $0x8] sm:$0xf] %v10785
    %v10787 = vld [vmem:[%s10773 + $0xc] sm:$0x1]
    %v10788 = vsel %vm10780, %v10628, %v10787
    %10789 = vst [vmem:[%s10773 + $0xc] sm:$0x1] %v10788
    %v10790 = vld [vmem:[%s10773 + $0x10] sm:$0xf]
    %v10791 = vsel %vm10775, %v10635, %v10790
    %10792 = vst [vmem:[%s10773 + $0x10] sm:$0xf] %v10791
    %v10793 = vld [vmem:[%s10773 + $0x14] sm:$0x1]
    %v10794 = vsel %vm10780, %v10636, %v10793
    %10795 = vst [vmem:[%s10773 + $0x14] sm:$0x1] %v10794
    %v10796 = vld [vmem:[%s10773 + $0x18] sm:$0xf]
    %v10797 = vsel %vm10775, %v10643, %v10796
    %10798 = vst [vmem:[%s10773 + $0x18] sm:$0xf] %v10797
    %v10799 = vld [vmem:[%s10773 + $0x1c] sm:$0x1]
    %v10800 = vsel %vm10780, %v10644, %v10799
    %10801 = vst [vmem:[%s10773 + $0x1c] sm:$0x1] %v10800
    %v10802 = vld [vmem:[%s10773 + $0x20] sm:$0xf]
    %v10803 = vsel %vm10775, %v10651, %v10802
    %10804 = vst [vmem:[%s10773 + $0x20] sm:$0xf] %v10803
    %v10805 = vld [vmem:[%s10773 + $0x24] sm:$0x1]
    %v10806 = vsel %vm10780, %v10652, %v10805
    %10807 = vst [vmem:[%s10773 + $0x24] sm:$0x1] %v10806
    %v10808 = vld [vmem:[%s10773 + $0x28] sm:$0xf]
    %v10809 = vsel %vm10775, %v10659, %v10808
    %10810 = vst [vmem:[%s10773 + $0x28] sm:$0xf] %v10809
    %v10811 = vld [vmem:[%s10773 + $0x2c] sm:$0x1]
    %v10812 = vsel %vm10780, %v10660, %v10811
    %10813 = vst [vmem:[%s10773 + $0x2c] sm:$0x1] %v10812
    %v10814 = vld [vmem:[%s10773 + $0x30] sm:$0xf]
    %v10815 = vsel %vm10775, %v10667, %v10814
    %10816 = vst [vmem:[%s10773 + $0x30] sm:$0xf] %v10815
    %v10817 = vld [vmem:[%s10773 + $0x34] sm:$0x1]
    %v10818 = vsel %vm10780, %v10668, %v10817
    %10819 = vst [vmem:[%s10773 + $0x34] sm:$0x1] %v10818
    %v10820 = vld [vmem:[%s10773 + $0x38] sm:$0xf]
    %v10821 = vsel %vm10775, %v10675, %v10820
    %10822 = vst [vmem:[%s10773 + $0x38] sm:$0xf] %v10821
    %v10823 = vld [vmem:[%s10773 + $0x3c] sm:$0x1]
    %v10824 = vsel %vm10780, %v10676, %v10823
    %10825 = vst [vmem:[%s10773 + $0x3c] sm:$0x1] %v10824
    %v10826 = vld [vmem:[%s10773 + $0x50] sm:$0xf]
    %v10827 = vsel %vm10775, %v10683, %v10826
    %10828 = vst [vmem:[%s10773 + $0x50] sm:$0xf] %v10827
    %v10829 = vld [vmem:[%s10773 + $0x54] sm:$0x1]
    %v10830 = vsel %vm10780, %v10684, %v10829
    %10831 = vst [vmem:[%s10773 + $0x54] sm:$0x1] %v10830
    %v10832 = vld [vmem:[%s10773 + $0x58] sm:$0xf]
    %v10833 = vsel %vm10775, %v10691, %v10832
    %10834 = vst [vmem:[%s10773 + $0x58] sm:$0xf] %v10833
    %v10835 = vld [vmem:[%s10773 + $0x5c] sm:$0x1]
    %v10836 = vsel %vm10780, %v10692, %v10835
    %10837 = vst [vmem:[%s10773 + $0x5c] sm:$0x1] %v10836
    %v10838 = vld [vmem:[%s10773 + $0x60] sm:$0xf]
    %v10839 = vsel %vm10775, %v10699, %v10838
    %10840 = vst [vmem:[%s10773 + $0x60] sm:$0xf] %v10839
    %v10841 = vld [vmem:[%s10773 + $0x64] sm:$0x1]
    %v10842 = vsel %vm10780, %v10700, %v10841
    %10843 = vst [vmem:[%s10773 + $0x64] sm:$0x1] %v10842
    %v10844 = vld [vmem:[%s10773 + $0x68] sm:$0xf]
    %v10845 = vsel %vm10775, %v10707, %v10844
    %10846 = vst [vmem:[%s10773 + $0x68] sm:$0xf] %v10845
    %v10847 = vld [vmem:[%s10773 + $0x6c] sm:$0x1]
    %v10848 = vsel %vm10780, %v10708, %v10847
    %10849 = vst [vmem:[%s10773 + $0x6c] sm:$0x1] %v10848
    %v10850 = vld [vmem:[%s10773 + $0x70] sm:$0xf]
    %v10851 = vsel %vm10775, %v10715, %v10850
    %10852 = vst [vmem:[%s10773 + $0x70] sm:$0xf] %v10851
    %v10853 = vld [vmem:[%s10773 + $0x74] sm:$0x1]
    %v10854 = vsel %vm10780, %v10716, %v10853
    %10855 = vst [vmem:[%s10773 + $0x74] sm:$0x1] %v10854
    %v10856 = vld [vmem:[%s10773 + $0x78] sm:$0xf]
    %v10857 = vsel %vm10775, %v10723, %v10856
    %10858 = vst [vmem:[%s10773 + $0x78] sm:$0xf] %v10857
    %v10859 = vld [vmem:[%s10773 + $0x7c] sm:$0x1]
    %v10860 = vsel %vm10780, %v10724, %v10859
    %10861 = vst [vmem:[%s10773 + $0x7c] sm:$0x1] %v10860
    %v10862 = vld [vmem:[%s10773 + $0x80] sm:$0xf]
    %v10863 = vsel %vm10775, %v10731, %v10862
    %10864 = vst [vmem:[%s10773 + $0x80] sm:$0xf] %v10863
    %v10865 = vld [vmem:[%s10773 + $0x84] sm:$0x1]
    %v10866 = vsel %vm10780, %v10732, %v10865
    %10867 = vst [vmem:[%s10773 + $0x84] sm:$0x1] %v10866
    %v10868 = vld [vmem:[%s10773 + $0x88] sm:$0xf]
    %v10869 = vsel %vm10775, %v10739, %v10868
    %10870 = vst [vmem:[%s10773 + $0x88] sm:$0xf] %v10869
    %v10871 = vld [vmem:[%s10773 + $0x8c] sm:$0x1]
    %v10872 = vsel %vm10780, %v10740, %v10871
    %10873 = vst [vmem:[%s10773 + $0x8c] sm:$0x1] %v10872
    %v10874 = vld [vmem:[#allocation3] sm:$0xf]
    %v10875 = vld [vmem:[#allocation3 + $0x8] sm:$0xf]
    %v10876 = vld [vmem:[#allocation3 + $0x10] sm:$0xf]
    %v10877 = vld [vmem:[#allocation3 + $0x18] sm:$0xf]
    %v10878 = vld [vmem:[#allocation3 + $0x20] sm:$0xf]
    %v10879 = vld [vmem:[#allocation3 + $0x28] sm:$0xf]
    %v10880 = vld [vmem:[#allocation3 + $0x30] sm:$0xf]
    %v10881 = vld [vmem:[#allocation3 + $0x38] sm:$0xf]
    %v10882 = vld [vmem:[#allocation3 + $0x50] sm:$0xf]
    %v10883 = vld [vmem:[#allocation3 + $0x58] sm:$0xf]
    %v10884 = vld [vmem:[#allocation3 + $0x60] sm:$0xf]
    %v10885 = vld [vmem:[#allocation3 + $0x68] sm:$0xf]
    %v10886 = vld [vmem:[#allocation3 + $0x70] sm:$0xf]
    %v10887 = vld [vmem:[#allocation3 + $0x78] sm:$0xf]
    %v10888 = vld [vmem:[#allocation3 + $0x80] sm:$0xf]
    %v10889 = vld [vmem:[#allocation3 + $0x88] sm:$0xf]
    %v10890 = vld [vmem:[#allocation3 + $0x4] sm:$0x1]
    %v10891 = vld [vmem:[#allocation3 + $0xc] sm:$0x1]
    %v10892 = vld [vmem:[#allocation3 + $0x14] sm:$0x1]
    %v10893 = vld [vmem:[#allocation3 + $0x1c] sm:$0x1]
    %v10894 = vld [vmem:[#allocation3 + $0x24] sm:$0x1]
    %v10895 = vld [vmem:[#allocation3 + $0x2c] sm:$0x1]
    %v10896 = vld [vmem:[#allocation3 + $0x34] sm:$0x1]
    %v10897 = vld [vmem:[#allocation3 + $0x3c] sm:$0x1]
    %v10898 = vld [vmem:[#allocation3 + $0x54] sm:$0x1]
    %v10899 = vld [vmem:[#allocation3 + $0x5c] sm:$0x1]
    %v10900 = vld [vmem:[#allocation3 + $0x64] sm:$0x1]
    %v10901 = vld [vmem:[#allocation3 + $0x6c] sm:$0x1]
    %v10902 = vld [vmem:[#allocation3 + $0x74] sm:$0x1]
    %v10903 = vld [vmem:[#allocation3 + $0x7c] sm:$0x1]
    %v10904 = vld [vmem:[#allocation3 + $0x84] sm:$0x1]
    %v10905 = vld [vmem:[#allocation3 + $0x8c] sm:$0x1]
    %v10907 = vshrl.u32 %v10874, 16
    %v10909 = vrot.slane %v10907, 4
    %v10910 = vshll.u32 %v10874, 16
    %v10912 = vrot.slane %v10910, 5
    %v10913 = vor.u32 %v10909, %v10912
    %v10914 = vrot.slane %v10913, 4
    %v10916 = vshll.u32 %v10890, 16
    %v10918 = vrot.slane %v10916, 5
    %v10919 = vsel %vm598, %v10914, %v10918
    %v10921 = vshrl.u32 %v10875, 16
    %v10923 = vrot.slane %v10921, 4
    %v10924 = vshll.u32 %v10875, 16
    %v10926 = vrot.slane %v10924, 5
    %v10927 = vor.u32 %v10923, %v10926
    %v10928 = vrot.slane %v10927, 4
    %v10930 = vshll.u32 %v10891, 16
    %v10932 = vrot.slane %v10930, 5
    %v10933 = vsel %vm598, %v10928, %v10932
    %v10935 = vshrl.u32 %v10876, 16
    %v10937 = vrot.slane %v10935, 4
    %v10938 = vshll.u32 %v10876, 16
    %v10940 = vrot.slane %v10938, 5
    %v10941 = vor.u32 %v10937, %v10940
    %v10942 = vrot.slane %v10941, 4
    %v10944 = vshll.u32 %v10892, 16
    %v10946 = vrot.slane %v10944, 5
    %v10947 = vsel %vm598, %v10942, %v10946
    %v10949 = vshrl.u32 %v10877, 16
    %v10951 = vrot.slane %v10949, 4
    %v10952 = vshll.u32 %v10877, 16
    %v10954 = vrot.slane %v10952, 5
    %v10955 = vor.u32 %v10951, %v10954
    %v10956 = vrot.slane %v10955, 4
    %v10958 = vshll.u32 %v10893, 16
    %v10960 = vrot.slane %v10958, 5
    %v10961 = vsel %vm598, %v10956, %v10960
    %v10963 = vshrl.u32 %v10878, 16
    %v10965 = vrot.slane %v10963, 4
    %v10966 = vshll.u32 %v10878, 16
    %v10968 = vrot.slane %v10966, 5
    %v10969 = vor.u32 %v10965, %v10968
    %v10970 = vrot.slane %v10969, 4
    %v10972 = vshll.u32 %v10894, 16
    %v10974 = vrot.slane %v10972, 5
    %v10975 = vsel %vm598, %v10970, %v10974
    %v10977 = vshrl.u32 %v10879, 16
    %v10979 = vrot.slane %v10977, 4
    %v10980 = vshll.u32 %v10879, 16
    %v10982 = vrot.slane %v10980, 5
    %v10983 = vor.u32 %v10979, %v10982
    %v10984 = vrot.slane %v10983, 4
    %v10986 = vshll.u32 %v10895, 16
    %v10988 = vrot.slane %v10986, 5
    %v10989 = vsel %vm598, %v10984, %v10988
    %v10991 = vshrl.u32 %v10880, 16
    %v10993 = vrot.slane %v10991, 4
    %v10994 = vshll.u32 %v10880, 16
    %v10996 = vrot.slane %v10994, 5
    %v10997 = vor.u32 %v10993, %v10996
    %v10998 = vrot.slane %v10997, 4
    %v11000 = vshll.u32 %v10896, 16
    %v11002 = vrot.slane %v11000, 5
    %v11003 = vsel %vm598, %v10998, %v11002
    %v11005 = vshrl.u32 %v10881, 16
    %v11007 = vrot.slane %v11005, 4
    %v11008 = vshll.u32 %v10881, 16
    %v11010 = vrot.slane %v11008, 5
    %v11011 = vor.u32 %v11007, %v11010
    %v11012 = vrot.slane %v11011, 4
    %v11014 = vshll.u32 %v10897, 16
    %v11016 = vrot.slane %v11014, 5
    %v11017 = vsel %vm598, %v11012, %v11016
    %v11019 = vshrl.u32 %v10882, 16
    %v11021 = vrot.slane %v11019, 4
    %v11022 = vshll.u32 %v10882, 16
    %v11024 = vrot.slane %v11022, 5
    %v11025 = vor.u32 %v11021, %v11024
    %v11026 = vrot.slane %v11025, 4
    %v11028 = vshll.u32 %v10898, 16
    %v11030 = vrot.slane %v11028, 5
    %v11031 = vsel %vm598, %v11026, %v11030
    %v11033 = vshrl.u32 %v10883, 16
    %v11035 = vrot.slane %v11033, 4
    %v11036 = vshll.u32 %v10883, 16
    %v11038 = vrot.slane %v11036, 5
    %v11039 = vor.u32 %v11035, %v11038
    %v11040 = vrot.slane %v11039, 4
    %v11042 = vshll.u32 %v10899, 16
    %v11044 = vrot.slane %v11042, 5
    %v11045 = vsel %vm598, %v11040, %v11044
    %v11047 = vshrl.u32 %v10884, 16
    %v11049 = vrot.slane %v11047, 4
    %v11050 = vshll.u32 %v10884, 16
    %v11052 = vrot.slane %v11050, 5
    %v11053 = vor.u32 %v11049, %v11052
    %v11054 = vrot.slane %v11053, 4
    %v11056 = vshll.u32 %v10900, 16
    %v11058 = vrot.slane %v11056, 5
    %v11059 = vsel %vm598, %v11054, %v11058
    %v11061 = vshrl.u32 %v10885, 16
    %v11063 = vrot.slane %v11061, 4
    %v11064 = vshll.u32 %v10885, 16
    %v11066 = vrot.slane %v11064, 5
    %v11067 = vor.u32 %v11063, %v11066
    %v11068 = vrot.slane %v11067, 4
    %v11070 = vshll.u32 %v10901, 16
    %v11072 = vrot.slane %v11070, 5
    %v11073 = vsel %vm598, %v11068, %v11072
    %v11075 = vshrl.u32 %v10886, 16
    %v11077 = vrot.slane %v11075, 4
    %v11078 = vshll.u32 %v10886, 16
    %v11080 = vrot.slane %v11078, 5
    %v11081 = vor.u32 %v11077, %v11080
    %v11082 = vrot.slane %v11081, 4
    %v11084 = vshll.u32 %v10902, 16
    %v11086 = vrot.slane %v11084, 5
    %v11087 = vsel %vm598, %v11082, %v11086
    %v11089 = vshrl.u32 %v10887, 16
    %v11091 = vrot.slane %v11089, 4
    %v11092 = vshll.u32 %v10887, 16
    %v11094 = vrot.slane %v11092, 5
    %v11095 = vor.u32 %v11091, %v11094
    %v11096 = vrot.slane %v11095, 4
    %v11098 = vshll.u32 %v10903, 16
    %v11100 = vrot.slane %v11098, 5
    %v11101 = vsel %vm598, %v11096, %v11100
    %v11103 = vshrl.u32 %v10888, 16
    %v11105 = vrot.slane %v11103, 4
    %v11106 = vshll.u32 %v10888, 16
    %v11108 = vrot.slane %v11106, 5
    %v11109 = vor.u32 %v11105, %v11108
    %v11110 = vrot.slane %v11109, 4
    %v11112 = vshll.u32 %v10904, 16
    %v11114 = vrot.slane %v11112, 5
    %v11115 = vsel %vm598, %v11110, %v11114
    %v11117 = vshrl.u32 %v10889, 16
    %v11119 = vrot.slane %v11117, 4
    %v11120 = vshll.u32 %v10889, 16
    %v11122 = vrot.slane %v11120, 5
    %v11123 = vor.u32 %v11119, %v11122
    %v11124 = vrot.slane %v11123, 4
    %v11126 = vshll.u32 %v10905, 16
    %v11128 = vrot.slane %v11126, 5
    %v11129 = vsel %vm598, %v11124, %v11128
    %v11130 = vld [vmem:[#allocation3] sm:$0xe]
    %v11131 = vld [vmem:[#allocation3 + $0x8] sm:$0xe]
    %v11132 = vld [vmem:[#allocation3 + $0x10] sm:$0xe]
    %v11133 = vld [vmem:[#allocation3 + $0x18] sm:$0xe]
    %v11134 = vld [vmem:[#allocation3 + $0x20] sm:$0xe]
    %v11135 = vld [vmem:[#allocation3 + $0x28] sm:$0xe]
    %v11136 = vld [vmem:[#allocation3 + $0x30] sm:$0xe]
    %v11137 = vld [vmem:[#allocation3 + $0x38] sm:$0xe]
    %v11138 = vld [vmem:[#allocation3 + $0x50] sm:$0xe]
    %v11139 = vld [vmem:[#allocation3 + $0x58] sm:$0xe]
    %v11140 = vld [vmem:[#allocation3 + $0x60] sm:$0xe]
    %v11141 = vld [vmem:[#allocation3 + $0x68] sm:$0xe]
    %v11142 = vld [vmem:[#allocation3 + $0x70] sm:$0xe]
    %v11143 = vld [vmem:[#allocation3 + $0x78] sm:$0xe]
    %v11144 = vld [vmem:[#allocation3 + $0x80] sm:$0xe]
    %v11145 = vld [vmem:[#allocation3 + $0x88] sm:$0xe]
    %v11178 = vrot.slane %v11130, 5
    %v11179 = vrot.slane %v11178, 4
    %v11180 = vrot.slane %v10890, 5
    %v11181 = vsel %vm873, %v11179, %v11180
    %v11182 = vrot.slane %v11131, 5
    %v11183 = vrot.slane %v11182, 4
    %v11184 = vrot.slane %v10891, 5
    %v11185 = vsel %vm873, %v11183, %v11184
    %v11186 = vrot.slane %v11132, 5
    %v11187 = vrot.slane %v11186, 4
    %v11188 = vrot.slane %v10892, 5
    %v11189 = vsel %vm873, %v11187, %v11188
    %v11190 = vrot.slane %v11133, 5
    %v11191 = vrot.slane %v11190, 4
    %v11192 = vrot.slane %v10893, 5
    %v11193 = vsel %vm873, %v11191, %v11192
    %v11194 = vrot.slane %v11134, 5
    %v11195 = vrot.slane %v11194, 4
    %v11196 = vrot.slane %v10894, 5
    %v11197 = vsel %vm873, %v11195, %v11196
    %v11198 = vrot.slane %v11135, 5
    %v11199 = vrot.slane %v11198, 4
    %v11200 = vrot.slane %v10895, 5
    %v11201 = vsel %vm873, %v11199, %v11200
    %v11202 = vrot.slane %v11136, 5
    %v11203 = vrot.slane %v11202, 4
    %v11204 = vrot.slane %v10896, 5
    %v11205 = vsel %vm873, %v11203, %v11204
    %v11206 = vrot.slane %v11137, 5
    %v11207 = vrot.slane %v11206, 4
    %v11208 = vrot.slane %v10897, 5
    %v11209 = vsel %vm873, %v11207, %v11208
    %v11210 = vrot.slane %v11138, 5
    %v11211 = vrot.slane %v11210, 4
    %v11212 = vrot.slane %v10898, 5
    %v11213 = vsel %vm873, %v11211, %v11212
    %v11214 = vrot.slane %v11139, 5
    %v11215 = vrot.slane %v11214, 4
    %v11216 = vrot.slane %v10899, 5
    %v11217 = vsel %vm873, %v11215, %v11216
    %v11218 = vrot.slane %v11140, 5
    %v11219 = vrot.slane %v11218, 4
    %v11220 = vrot.slane %v10900, 5
    %v11221 = vsel %vm873, %v11219, %v11220
    %v11222 = vrot.slane %v11141, 5
    %v11223 = vrot.slane %v11222, 4
    %v11224 = vrot.slane %v10901, 5
    %v11225 = vsel %vm873, %v11223, %v11224
    %v11226 = vrot.slane %v11142, 5
    %v11227 = vrot.slane %v11226, 4
    %v11228 = vrot.slane %v10902, 5
    %v11229 = vsel %vm873, %v11227, %v11228
    %v11230 = vrot.slane %v11143, 5
    %v11231 = vrot.slane %v11230, 4
    %v11232 = vrot.slane %v10903, 5
    %v11233 = vsel %vm873, %v11231, %v11232
    %v11234 = vrot.slane %v11144, 5
    %v11235 = vrot.slane %v11234, 4
    %v11236 = vrot.slane %v10904, 5
    %v11237 = vsel %vm873, %v11235, %v11236
    %v11238 = vrot.slane %v11145, 5
    %v11239 = vrot.slane %v11238, 4
    %v11240 = vrot.slane %v10905, 5
    %v11241 = vsel %vm873, %v11239, %v11240
    %v11242 = vld [vmem:[%s10773] sm:$0xf]
    %v11243 = vld [vmem:[%s10773 + $0x8] sm:$0xf]
    %v11244 = vld [vmem:[%s10773 + $0x10] sm:$0xf]
    %v11245 = vld [vmem:[%s10773 + $0x18] sm:$0xf]
    %v11246 = vld [vmem:[%s10773 + $0x20] sm:$0xf]
    %v11247 = vld [vmem:[%s10773 + $0x28] sm:$0xf]
    %v11248 = vld [vmem:[%s10773 + $0x30] sm:$0xf]
    %v11249 = vld [vmem:[%s10773 + $0x38] sm:$0xf]
    %v11250 = vld [vmem:[%s10773 + $0x50] sm:$0xf]
    %v11251 = vld [vmem:[%s10773 + $0x58] sm:$0xf]
    %v11252 = vld [vmem:[%s10773 + $0x60] sm:$0xf]
    %v11253 = vld [vmem:[%s10773 + $0x68] sm:$0xf]
    %v11254 = vld [vmem:[%s10773 + $0x70] sm:$0xf]
    %v11255 = vld [vmem:[%s10773 + $0x78] sm:$0xf]
    %v11256 = vld [vmem:[%s10773 + $0x80] sm:$0xf]
    %v11257 = vld [vmem:[%s10773 + $0x88] sm:$0xf]
    %v11258 = vld [vmem:[%s10773 + $0x4] sm:$0x1]
    %v11259 = vld [vmem:[%s10773 + $0xc] sm:$0x1]
    %v11260 = vld [vmem:[%s10773 + $0x14] sm:$0x1]
    %v11261 = vld [vmem:[%s10773 + $0x1c] sm:$0x1]
    %v11262 = vld [vmem:[%s10773 + $0x24] sm:$0x1]
    %v11263 = vld [vmem:[%s10773 + $0x2c] sm:$0x1]
    %v11264 = vld [vmem:[%s10773 + $0x34] sm:$0x1]
    %v11265 = vld [vmem:[%s10773 + $0x3c] sm:$0x1]
    %v11266 = vld [vmem:[%s10773 + $0x54] sm:$0x1]
    %v11267 = vld [vmem:[%s10773 + $0x5c] sm:$0x1]
    %v11268 = vld [vmem:[%s10773 + $0x64] sm:$0x1]
    %v11269 = vld [vmem:[%s10773 + $0x6c] sm:$0x1]
    %v11270 = vld [vmem:[%s10773 + $0x74] sm:$0x1]
    %v11271 = vld [vmem:[%s10773 + $0x7c] sm:$0x1]
    %v11272 = vld [vmem:[%s10773 + $0x84] sm:$0x1]
    %v11273 = vld [vmem:[%s10773 + $0x8c] sm:$0x1]
    %v11275 = vshrl.u32 %v11242, 16
    %v11277 = vrot.slane %v11275, 4
    %v11278 = vshll.u32 %v11242, 16
    %v11280 = vrot.slane %v11278, 5
    %v11281 = vor.u32 %v11277, %v11280
    %v11282 = vrot.slane %v11281, 4
    %v11284 = vshll.u32 %v11258, 16
    %v11286 = vrot.slane %v11284, 5
    %v11287 = vsel %vm598, %v11282, %v11286
    %v11289 = vshrl.u32 %v11243, 16
    %v11291 = vrot.slane %v11289, 4
    %v11292 = vshll.u32 %v11243, 16
    %v11294 = vrot.slane %v11292, 5
    %v11295 = vor.u32 %v11291, %v11294
    %v11296 = vrot.slane %v11295, 4
    %v11298 = vshll.u32 %v11259, 16
    %v11300 = vrot.slane %v11298, 5
    %v11301 = vsel %vm598, %v11296, %v11300
    %v11303 = vshrl.u32 %v11244, 16
    %v11305 = vrot.slane %v11303, 4
    %v11306 = vshll.u32 %v11244, 16
    %v11308 = vrot.slane %v11306, 5
    %v11309 = vor.u32 %v11305, %v11308
    %v11310 = vrot.slane %v11309, 4
    %v11312 = vshll.u32 %v11260, 16
    %v11314 = vrot.slane %v11312, 5
    %v11315 = vsel %vm598, %v11310, %v11314
    %v11317 = vshrl.u32 %v11245, 16
    %v11319 = vrot.slane %v11317, 4
    %v11320 = vshll.u32 %v11245, 16
    %v11322 = vrot.slane %v11320, 5
    %v11323 = vor.u32 %v11319, %v11322
    %v11324 = vrot.slane %v11323, 4
    %v11326 = vshll.u32 %v11261, 16
    %v11328 = vrot.slane %v11326, 5
    %v11329 = vsel %vm598, %v11324, %v11328
    %v11331 = vshrl.u32 %v11246, 16
    %v11333 = vrot.slane %v11331, 4
    %v11334 = vshll.u32 %v11246, 16
    %v11336 = vrot.slane %v11334, 5
    %v11337 = vor.u32 %v11333, %v11336
    %v11338 = vrot.slane %v11337, 4
    %v11340 = vshll.u32 %v11262, 16
    %v11342 = vrot.slane %v11340, 5
    %v11343 = vsel %vm598, %v11338, %v11342
    %v11345 = vshrl.u32 %v11247, 16
    %v11347 = vrot.slane %v11345, 4
    %v11348 = vshll.u32 %v11247, 16
    %v11350 = vrot.slane %v11348, 5
    %v11351 = vor.u32 %v11347, %v11350
    %v11352 = vrot.slane %v11351, 4
    %v11354 = vshll.u32 %v11263, 16
    %v11356 = vrot.slane %v11354, 5
    %v11357 = vsel %vm598, %v11352, %v11356
    %v11359 = vshrl.u32 %v11248, 16
    %v11361 = vrot.slane %v11359, 4
    %v11362 = vshll.u32 %v11248, 16
    %v11364 = vrot.slane %v11362, 5
    %v11365 = vor.u32 %v11361, %v11364
    %v11366 = vrot.slane %v11365, 4
    %v11368 = vshll.u32 %v11264, 16
    %v11370 = vrot.slane %v11368, 5
    %v11371 = vsel %vm598, %v11366, %v11370
    %v11373 = vshrl.u32 %v11249, 16
    %v11375 = vrot.slane %v11373, 4
    %v11376 = vshll.u32 %v11249, 16
    %v11378 = vrot.slane %v11376, 5
    %v11379 = vor.u32 %v11375, %v11378
    %v11380 = vrot.slane %v11379, 4
    %v11382 = vshll.u32 %v11265, 16
    %v11384 = vrot.slane %v11382, 5
    %v11385 = vsel %vm598, %v11380, %v11384
    %v11387 = vshrl.u32 %v11250, 16
    %v11389 = vrot.slane %v11387, 4
    %v11390 = vshll.u32 %v11250, 16
    %v11392 = vrot.slane %v11390, 5
    %v11393 = vor.u32 %v11389, %v11392
    %v11394 = vrot.slane %v11393, 4
    %v11396 = vshll.u32 %v11266, 16
    %v11398 = vrot.slane %v11396, 5
    %v11399 = vsel %vm598, %v11394, %v11398
    %v11401 = vshrl.u32 %v11251, 16
    %v11403 = vrot.slane %v11401, 4
    %v11404 = vshll.u32 %v11251, 16
    %v11406 = vrot.slane %v11404, 5
    %v11407 = vor.u32 %v11403, %v11406
    %v11408 = vrot.slane %v11407, 4
    %v11410 = vshll.u32 %v11267, 16
    %v11412 = vrot.slane %v11410, 5
    %v11413 = vsel %vm598, %v11408, %v11412
    %v11415 = vshrl.u32 %v11252, 16
    %v11417 = vrot.slane %v11415, 4
    %v11418 = vshll.u32 %v11252, 16
    %v11420 = vrot.slane %v11418, 5
    %v11421 = vor.u32 %v11417, %v11420
    %v11422 = vrot.slane %v11421, 4
    %v11424 = vshll.u32 %v11268, 16
    %v11426 = vrot.slane %v11424, 5
    %v11427 = vsel %vm598, %v11422, %v11426
    %v11429 = vshrl.u32 %v11253, 16
    %v11431 = vrot.slane %v11429, 4
    %v11432 = vshll.u32 %v11253, 16
    %v11434 = vrot.slane %v11432, 5
    %v11435 = vor.u32 %v11431, %v11434
    %v11436 = vrot.slane %v11435, 4
    %v11438 = vshll.u32 %v11269, 16
    %v11440 = vrot.slane %v11438, 5
    %v11441 = vsel %vm598, %v11436, %v11440
    %v11443 = vshrl.u32 %v11254, 16
    %v11445 = vrot.slane %v11443, 4
    %v11446 = vshll.u32 %v11254, 16
    %v11448 = vrot.slane %v11446, 5
    %v11449 = vor.u32 %v11445, %v11448
    %v11450 = vrot.slane %v11449, 4
    %v11452 = vshll.u32 %v11270, 16
    %v11454 = vrot.slane %v11452, 5
    %v11455 = vsel %vm598, %v11450, %v11454
    %v11457 = vshrl.u32 %v11255, 16
    %v11459 = vrot.slane %v11457, 4
    %v11460 = vshll.u32 %v11255, 16
    %v11462 = vrot.slane %v11460, 5
    %v11463 = vor.u32 %v11459, %v11462
    %v11464 = vrot.slane %v11463, 4
    %v11466 = vshll.u32 %v11271, 16
    %v11468 = vrot.slane %v11466, 5
    %v11469 = vsel %vm598, %v11464, %v11468
    %v11471 = vshrl.u32 %v11256, 16
    %v11473 = vrot.slane %v11471, 4
    %v11474 = vshll.u32 %v11256, 16
    %v11476 = vrot.slane %v11474, 5
    %v11477 = vor.u32 %v11473, %v11476
    %v11478 = vrot.slane %v11477, 4
    %v11480 = vshll.u32 %v11272, 16
    %v11482 = vrot.slane %v11480, 5
    %v11483 = vsel %vm598, %v11478, %v11482
    %v11485 = vshrl.u32 %v11257, 16
    %v11487 = vrot.slane %v11485, 4
    %v11488 = vshll.u32 %v11257, 16
    %v11490 = vrot.slane %v11488, 5
    %v11491 = vor.u32 %v11487, %v11490
    %v11492 = vrot.slane %v11491, 4
    %v11494 = vshll.u32 %v11273, 16
    %v11496 = vrot.slane %v11494, 5
    %v11497 = vsel %vm598, %v11492, %v11496
    %v11498 = vld [vmem:[%s10773] sm:$0xe]
    %v11499 = vld [vmem:[%s10773 + $0x8] sm:$0xe]
    %v11500 = vld [vmem:[%s10773 + $0x10] sm:$0xe]
    %v11501 = vld [vmem:[%s10773 + $0x18] sm:$0xe]
    %v11502 = vld [vmem:[%s10773 + $0x20] sm:$0xe]
    %v11503 = vld [vmem:[%s10773 + $0x28] sm:$0xe]
    %v11504 = vld [vmem:[%s10773 + $0x30] sm:$0xe]
    %v11505 = vld [vmem:[%s10773 + $0x38] sm:$0xe]
    %v11506 = vld [vmem:[%s10773 + $0x50] sm:$0xe]
    %v11507 = vld [vmem:[%s10773 + $0x58] sm:$0xe]
    %v11508 = vld [vmem:[%s10773 + $0x60] sm:$0xe]
    %v11509 = vld [vmem:[%s10773 + $0x68] sm:$0xe]
    %v11510 = vld [vmem:[%s10773 + $0x70] sm:$0xe]
    %v11511 = vld [vmem:[%s10773 + $0x78] sm:$0xe]
    %v11512 = vld [vmem:[%s10773 + $0x80] sm:$0xe]
    %v11513 = vld [vmem:[%s10773 + $0x88] sm:$0xe]
    %v11546 = vrot.slane %v11498, 5
    %v11547 = vrot.slane %v11546, 4
    %v11548 = vrot.slane %v11258, 5
    %v11549 = vsel %vm873, %v11547, %v11548
    %v11550 = vrot.slane %v11499, 5
    %v11551 = vrot.slane %v11550, 4
    %v11552 = vrot.slane %v11259, 5
    %v11553 = vsel %vm873, %v11551, %v11552
    %v11554 = vrot.slane %v11500, 5
    %v11555 = vrot.slane %v11554, 4
    %v11556 = vrot.slane %v11260, 5
    %v11557 = vsel %vm873, %v11555, %v11556
    %v11558 = vrot.slane %v11501, 5
    %v11559 = vrot.slane %v11558, 4
    %v11560 = vrot.slane %v11261, 5
    %v11561 = vsel %vm873, %v11559, %v11560
    %v11562 = vrot.slane %v11502, 5
    %v11563 = vrot.slane %v11562, 4
    %v11564 = vrot.slane %v11262, 5
    %v11565 = vsel %vm873, %v11563, %v11564
    %v11566 = vrot.slane %v11503, 5
    %v11567 = vrot.slane %v11566, 4
    %v11568 = vrot.slane %v11263, 5
    %v11569 = vsel %vm873, %v11567, %v11568
    %v11570 = vrot.slane %v11504, 5
    %v11571 = vrot.slane %v11570, 4
    %v11572 = vrot.slane %v11264, 5
    %v11573 = vsel %vm873, %v11571, %v11572
    %v11574 = vrot.slane %v11505, 5
    %v11575 = vrot.slane %v11574, 4
    %v11576 = vrot.slane %v11265, 5
    %v11577 = vsel %vm873, %v11575, %v11576
    %v11578 = vrot.slane %v11506, 5
    %v11579 = vrot.slane %v11578, 4
    %v11580 = vrot.slane %v11266, 5
    %v11581 = vsel %vm873, %v11579, %v11580
    %v11582 = vrot.slane %v11507, 5
    %v11583 = vrot.slane %v11582, 4
    %v11584 = vrot.slane %v11267, 5
    %v11585 = vsel %vm873, %v11583, %v11584
    %v11586 = vrot.slane %v11508, 5
    %v11587 = vrot.slane %v11586, 4
    %v11588 = vrot.slane %v11268, 5
    %v11589 = vsel %vm873, %v11587, %v11588
    %v11590 = vrot.slane %v11509, 5
    %v11591 = vrot.slane %v11590, 4
    %v11592 = vrot.slane %v11269, 5
    %v11593 = vsel %vm873, %v11591, %v11592
    %v11594 = vrot.slane %v11510, 5
    %v11595 = vrot.slane %v11594, 4
    %v11596 = vrot.slane %v11270, 5
    %v11597 = vsel %vm873, %v11595, %v11596
    %v11598 = vrot.slane %v11511, 5
    %v11599 = vrot.slane %v11598, 4
    %v11600 = vrot.slane %v11271, 5
    %v11601 = vsel %vm873, %v11599, %v11600
    %v11602 = vrot.slane %v11512, 5
    %v11603 = vrot.slane %v11602, 4
    %v11604 = vrot.slane %v11272, 5
    %v11605 = vsel %vm873, %v11603, %v11604
    %v11606 = vrot.slane %v11513, 5
    %v11607 = vrot.slane %v11606, 4
    %v11608 = vrot.slane %v11273, 5
    %v11609 = vsel %vm873, %v11607, %v11608
    %s11610 = scalar_lea.vmem [#allocation3], 16
    %v11611 = vld [vmem:[%s11610] sm:$0xf]
    %v11612 = vld [vmem:[%s11610 + $0x8] sm:$0xf]
    %v11613 = vld [vmem:[%s11610 + $0x10] sm:$0xf]
    %v11614 = vld [vmem:[%s11610 + $0x18] sm:$0xf]
    %v11615 = vld [vmem:[%s11610 + $0x20] sm:$0xf]
    %v11616 = vld [vmem:[%s11610 + $0x28] sm:$0xf]
    %v11617 = vld [vmem:[%s11610 + $0x30] sm:$0xf]
    %v11618 = vld [vmem:[%s11610 + $0x38] sm:$0xf]
    %v11619 = vld [vmem:[%s11610 + $0x50] sm:$0xf]
    %v11620 = vld [vmem:[%s11610 + $0x58] sm:$0xf]
    %v11621 = vld [vmem:[%s11610 + $0x60] sm:$0xf]
    %v11622 = vld [vmem:[%s11610 + $0x68] sm:$0xf]
    %v11623 = vld [vmem:[%s11610 + $0x70] sm:$0xf]
    %v11624 = vld [vmem:[%s11610 + $0x78] sm:$0xf]
    %v11625 = vld [vmem:[%s11610 + $0x80] sm:$0xf]
    %v11626 = vld [vmem:[%s11610 + $0x88] sm:$0xf]
    %v11627 = vld [vmem:[%s11610 + $0x4] sm:$0x1]
    %v11628 = vld [vmem:[%s11610 + $0xc] sm:$0x1]
    %v11629 = vld [vmem:[%s11610 + $0x14] sm:$0x1]
    %v11630 = vld [vmem:[%s11610 + $0x1c] sm:$0x1]
    %v11631 = vld [vmem:[%s11610 + $0x24] sm:$0x1]
    %v11632 = vld [vmem:[%s11610 + $0x2c] sm:$0x1]
    %v11633 = vld [vmem:[%s11610 + $0x34] sm:$0x1]
    %v11634 = vld [vmem:[%s11610 + $0x3c] sm:$0x1]
    %v11635 = vld [vmem:[%s11610 + $0x54] sm:$0x1]
    %v11636 = vld [vmem:[%s11610 + $0x5c] sm:$0x1]
    %v11637 = vld [vmem:[%s11610 + $0x64] sm:$0x1]
    %v11638 = vld [vmem:[%s11610 + $0x6c] sm:$0x1]
    %v11639 = vld [vmem:[%s11610 + $0x74] sm:$0x1]
    %v11640 = vld [vmem:[%s11610 + $0x7c] sm:$0x1]
    %v11641 = vld [vmem:[%s11610 + $0x84] sm:$0x1]
    %v11642 = vld [vmem:[%s11610 + $0x8c] sm:$0x1]
    %v11644 = vshrl.u32 %v11611, 16
    %v11646 = vrot.slane %v11644, 4
    %v11647 = vshll.u32 %v11611, 16
    %v11649 = vrot.slane %v11647, 5
    %v11650 = vor.u32 %v11646, %v11649
    %v11651 = vrot.slane %v11650, 4
    %v11653 = vshll.u32 %v11627, 16
    %v11655 = vrot.slane %v11653, 5
    %v11656 = vsel %vm598, %v11651, %v11655
    %v11658 = vshrl.u32 %v11612, 16
    %v11660 = vrot.slane %v11658, 4
    %v11661 = vshll.u32 %v11612, 16
    %v11663 = vrot.slane %v11661, 5
    %v11664 = vor.u32 %v11660, %v11663
    %v11665 = vrot.slane %v11664, 4
    %v11667 = vshll.u32 %v11628, 16
    %v11669 = vrot.slane %v11667, 5
    %v11670 = vsel %vm598, %v11665, %v11669
    %v11672 = vshrl.u32 %v11613, 16
    %v11674 = vrot.slane %v11672, 4
    %v11675 = vshll.u32 %v11613, 16
    %v11677 = vrot.slane %v11675, 5
    %v11678 = vor.u32 %v11674, %v11677
    %v11679 = vrot.slane %v11678, 4
    %v11681 = vshll.u32 %v11629, 16
    %v11683 = vrot.slane %v11681, 5
    %v11684 = vsel %vm598, %v11679, %v11683
    %v11686 = vshrl.u32 %v11614, 16
    %v11688 = vrot.slane %v11686, 4
    %v11689 = vshll.u32 %v11614, 16
    %v11691 = vrot.slane %v11689, 5
    %v11692 = vor.u32 %v11688, %v11691
    %v11693 = vrot.slane %v11692, 4
    %v11695 = vshll.u32 %v11630, 16
    %v11697 = vrot.slane %v11695, 5
    %v11698 = vsel %vm598, %v11693, %v11697
    %v11700 = vshrl.u32 %v11615, 16
    %v11702 = vrot.slane %v11700, 4
    %v11703 = vshll.u32 %v11615, 16
    %v11705 = vrot.slane %v11703, 5
    %v11706 = vor.u32 %v11702, %v11705
    %v11707 = vrot.slane %v11706, 4
    %v11709 = vshll.u32 %v11631, 16
    %v11711 = vrot.slane %v11709, 5
    %v11712 = vsel %vm598, %v11707, %v11711
    %v11714 = vshrl.u32 %v11616, 16
    %v11716 = vrot.slane %v11714, 4
    %v11717 = vshll.u32 %v11616, 16
    %v11719 = vrot.slane %v11717, 5
    %v11720 = vor.u32 %v11716, %v11719
    %v11721 = vrot.slane %v11720, 4
    %v11723 = vshll.u32 %v11632, 16
    %v11725 = vrot.slane %v11723, 5
    %v11726 = vsel %vm598, %v11721, %v11725
    %v11728 = vshrl.u32 %v11617, 16
    %v11730 = vrot.slane %v11728, 4
    %v11731 = vshll.u32 %v11617, 16
    %v11733 = vrot.slane %v11731, 5
    %v11734 = vor.u32 %v11730, %v11733
    %v11735 = vrot.slane %v11734, 4
    %v11737 = vshll.u32 %v11633, 16
    %v11739 = vrot.slane %v11737, 5
    %v11740 = vsel %vm598, %v11735, %v11739
    %v11742 = vshrl.u32 %v11618, 16
    %v11744 = vrot.slane %v11742, 4
    %v11745 = vshll.u32 %v11618, 16
    %v11747 = vrot.slane %v11745, 5
    %v11748 = vor.u32 %v11744, %v11747
    %v11749 = vrot.slane %v11748, 4
    %v11751 = vshll.u32 %v11634, 16
    %v11753 = vrot.slane %v11751, 5
    %v11754 = vsel %vm598, %v11749, %v11753
    %v11756 = vshrl.u32 %v11619, 16
    %v11758 = vrot.slane %v11756, 4
    %v11759 = vshll.u32 %v11619, 16
    %v11761 = vrot.slane %v11759, 5
    %v11762 = vor.u32 %v11758, %v11761
    %v11763 = vrot.slane %v11762, 4
    %v11765 = vshll.u32 %v11635, 16
    %v11767 = vrot.slane %v11765, 5
    %v11768 = vsel %vm598, %v11763, %v11767
    %v11770 = vshrl.u32 %v11620, 16
    %v11772 = vrot.slane %v11770, 4
    %v11773 = vshll.u32 %v11620, 16
    %v11775 = vrot.slane %v11773, 5
    %v11776 = vor.u32 %v11772, %v11775
    %v11777 = vrot.slane %v11776, 4
    %v11779 = vshll.u32 %v11636, 16
    %v11781 = vrot.slane %v11779, 5
    %v11782 = vsel %vm598, %v11777, %v11781
    %v11784 = vshrl.u32 %v11621, 16
    %v11786 = vrot.slane %v11784, 4
    %v11787 = vshll.u32 %v11621, 16
    %v11789 = vrot.slane %v11787, 5
    %v11790 = vor.u32 %v11786, %v11789
    %v11791 = vrot.slane %v11790, 4
    %v11793 = vshll.u32 %v11637, 16
    %v11795 = vrot.slane %v11793, 5
    %v11796 = vsel %vm598, %v11791, %v11795
    %v11798 = vshrl.u32 %v11622, 16
    %v11800 = vrot.slane %v11798, 4
    %v11801 = vshll.u32 %v11622, 16
    %v11803 = vrot.slane %v11801, 5
    %v11804 = vor.u32 %v11800, %v11803
    %v11805 = vrot.slane %v11804, 4
    %v11807 = vshll.u32 %v11638, 16
    %v11809 = vrot.slane %v11807, 5
    %v11810 = vsel %vm598, %v11805, %v11809
    %v11812 = vshrl.u32 %v11623, 16
    %v11814 = vrot.slane %v11812, 4
    %v11815 = vshll.u32 %v11623, 16
    %v11817 = vrot.slane %v11815, 5
    %v11818 = vor.u32 %v11814, %v11817
    %v11819 = vrot.slane %v11818, 4
    %v11821 = vshll.u32 %v11639, 16
    %v11823 = vrot.slane %v11821, 5
    %v11824 = vsel %vm598, %v11819, %v11823
    %v11826 = vshrl.u32 %v11624, 16
    %v11828 = vrot.slane %v11826, 4
    %v11829 = vshll.u32 %v11624, 16
    %v11831 = vrot.slane %v11829, 5
    %v11832 = vor.u32 %v11828, %v11831
    %v11833 = vrot.slane %v11832, 4
    %v11835 = vshll.u32 %v11640, 16
    %v11837 = vrot.slane %v11835, 5
    %v11838 = vsel %vm598, %v11833, %v11837
    %v11840 = vshrl.u32 %v11625, 16
    %v11842 = vrot.slane %v11840, 4
    %v11843 = vshll.u32 %v11625, 16
    %v11845 = vrot.slane %v11843, 5
    %v11846 = vor.u32 %v11842, %v11845
    %v11847 = vrot.slane %v11846, 4
    %v11849 = vshll.u32 %v11641, 16
    %v11851 = vrot.slane %v11849, 5
    %v11852 = vsel %vm598, %v11847, %v11851
    %v11854 = vshrl.u32 %v11626, 16
    %v11856 = vrot.slane %v11854, 4
    %v11857 = vshll.u32 %v11626, 16
    %v11859 = vrot.slane %v11857, 5
    %v11860 = vor.u32 %v11856, %v11859
    %v11861 = vrot.slane %v11860, 4
    %v11863 = vshll.u32 %v11642, 16
    %v11865 = vrot.slane %v11863, 5
    %v11866 = vsel %vm598, %v11861, %v11865
    %v11867 = vld [vmem:[%s11610] sm:$0xe]
    %v11868 = vld [vmem:[%s11610 + $0x8] sm:$0xe]
    %v11869 = vld [vmem:[%s11610 + $0x10] sm:$0xe]
    %v11870 = vld [vmem:[%s11610 + $0x18] sm:$0xe]
    %v11871 = vld [vmem:[%s11610 + $0x20] sm:$0xe]
    %v11872 = vld [vmem:[%s11610 + $0x28] sm:$0xe]
    %v11873 = vld [vmem:[%s11610 + $0x30] sm:$0xe]
    %v11874 = vld [vmem:[%s11610 + $0x38] sm:$0xe]
    %v11875 = vld [vmem:[%s11610 + $0x50] sm:$0xe]
    %v11876 = vld [vmem:[%s11610 + $0x58] sm:$0xe]
    %v11877 = vld [vmem:[%s11610 + $0x60] sm:$0xe]
    %v11878 = vld [vmem:[%s11610 + $0x68] sm:$0xe]
    %v11879 = vld [vmem:[%s11610 + $0x70] sm:$0xe]
    %v11880 = vld [vmem:[%s11610 + $0x78] sm:$0xe]
    %v11881 = vld [vmem:[%s11610 + $0x80] sm:$0xe]
    %v11882 = vld [vmem:[%s11610 + $0x88] sm:$0xe]
    %v11915 = vrot.slane %v11867, 5
    %v11916 = vrot.slane %v11915, 4
    %v11917 = vrot.slane %v11627, 5
    %v11918 = vsel %vm873, %v11916, %v11917
    %v11919 = vrot.slane %v11868, 5
    %v11920 = vrot.slane %v11919, 4
    %v11921 = vrot.slane %v11628, 5
    %v11922 = vsel %vm873, %v11920, %v11921
    %v11923 = vrot.slane %v11869, 5
    %v11924 = vrot.slane %v11923, 4
    %v11925 = vrot.slane %v11629, 5
    %v11926 = vsel %vm873, %v11924, %v11925
    %v11927 = vrot.slane %v11870, 5
    %v11928 = vrot.slane %v11927, 4
    %v11929 = vrot.slane %v11630, 5
    %v11930 = vsel %vm873, %v11928, %v11929
    %v11931 = vrot.slane %v11871, 5
    %v11932 = vrot.slane %v11931, 4
    %v11933 = vrot.slane %v11631, 5
    %v11934 = vsel %vm873, %v11932, %v11933
    %v11935 = vrot.slane %v11872, 5
    %v11936 = vrot.slane %v11935, 4
    %v11937 = vrot.slane %v11632, 5
    %v11938 = vsel %vm873, %v11936, %v11937
    %v11939 = vrot.slane %v11873, 5
    %v11940 = vrot.slane %v11939, 4
    %v11941 = vrot.slane %v11633, 5
    %v11942 = vsel %vm873, %v11940, %v11941
    %v11943 = vrot.slane %v11874, 5
    %v11944 = vrot.slane %v11943, 4
    %v11945 = vrot.slane %v11634, 5
    %v11946 = vsel %vm873, %v11944, %v11945
    %v11947 = vrot.slane %v11875, 5
    %v11948 = vrot.slane %v11947, 4
    %v11949 = vrot.slane %v11635, 5
    %v11950 = vsel %vm873, %v11948, %v11949
    %v11951 = vrot.slane %v11876, 5
    %v11952 = vrot.slane %v11951, 4
    %v11953 = vrot.slane %v11636, 5
    %v11954 = vsel %vm873, %v11952, %v11953
    %v11955 = vrot.slane %v11877, 5
    %v11956 = vrot.slane %v11955, 4
    %v11957 = vrot.slane %v11637, 5
    %v11958 = vsel %vm873, %v11956, %v11957
    %v11959 = vrot.slane %v11878, 5
    %v11960 = vrot.slane %v11959, 4
    %v11961 = vrot.slane %v11638, 5
    %v11962 = vsel %vm873, %v11960, %v11961
    %v11963 = vrot.slane %v11879, 5
    %v11964 = vrot.slane %v11963, 4
    %v11965 = vrot.slane %v11639, 5
    %v11966 = vsel %vm873, %v11964, %v11965
    %v11967 = vrot.slane %v11880, 5
    %v11968 = vrot.slane %v11967, 4
    %v11969 = vrot.slane %v11640, 5
    %v11970 = vsel %vm873, %v11968, %v11969
    %v11971 = vrot.slane %v11881, 5
    %v11972 = vrot.slane %v11971, 4
    %v11973 = vrot.slane %v11641, 5
    %v11974 = vsel %vm873, %v11972, %v11973
    %v11975 = vrot.slane %v11882, 5
    %v11976 = vrot.slane %v11975, 4
    %v11977 = vrot.slane %v11642, 5
    %v11978 = vsel %vm873, %v11976, %v11977
    %v11995 = vunpack.c.l.b16 %v10874
    %v11996 = vunpack.c.l.b16 %v10875
    %v11997 = vunpack.c.l.b16 %v10876
    %v11998 = vunpack.c.l.b16 %v10877
    %v11999 = vunpack.c.l.b16 %v10878
    %v12000 = vunpack.c.l.b16 %v10879
    %v12001 = vunpack.c.l.b16 %v10880
    %v12002 = vunpack.c.l.b16 %v10881
    %v12003 = vunpack.c.l.b16 %v10882
    %v12004 = vunpack.c.l.b16 %v10883
    %v12005 = vunpack.c.l.b16 %v10884
    %v12006 = vunpack.c.l.b16 %v10885
    %v12007 = vunpack.c.l.b16 %v10886
    %v12008 = vunpack.c.l.b16 %v10887
    %v12009 = vunpack.c.l.b16 %v10888
    %v12010 = vunpack.c.l.b16 %v10889
    %v12011 = vpack.c.b16 %v11996, %v11995
    %v12012 = vpack.c.b16 %v11998, %v11997
    %v12013 = vpack.c.b16 %v12000, %v11999
    %v12014 = vpack.c.b16 %v12002, %v12001
    %v12015 = vpack.c.b16 %v12004, %v12003
    %v12016 = vpack.c.b16 %v12006, %v12005
    %v12017 = vpack.c.b16 %v12008, %v12007
    %v12018 = vpack.c.b16 %v12010, %v12009
    %v12027 = vunpack.c.l.b16 %v10919
    %v12028 = vunpack.c.l.b16 %v10933
    %v12029 = vunpack.c.l.b16 %v10947
    %v12030 = vunpack.c.l.b16 %v10961
    %v12031 = vunpack.c.l.b16 %v10975
    %v12032 = vunpack.c.l.b16 %v10989
    %v12033 = vunpack.c.l.b16 %v11003
    %v12034 = vunpack.c.l.b16 %v11017
    %v12035 = vunpack.c.l.b16 %v11031
    %v12036 = vunpack.c.l.b16 %v11045
    %v12037 = vunpack.c.l.b16 %v11059
    %v12038 = vunpack.c.l.b16 %v11073
    %v12039 = vunpack.c.l.b16 %v11087
    %v12040 = vunpack.c.l.b16 %v11101
    %v12041 = vunpack.c.l.b16 %v11115
    %v12042 = vunpack.c.l.b16 %v11129
    %v12043 = vpack.c.b16 %v12028, %v12027
    %v12044 = vpack.c.b16 %v12030, %v12029
    %v12045 = vpack.c.b16 %v12032, %v12031
    %v12046 = vpack.c.b16 %v12034, %v12033
    %v12047 = vpack.c.b16 %v12036, %v12035
    %v12048 = vpack.c.b16 %v12038, %v12037
    %v12049 = vpack.c.b16 %v12040, %v12039
    %v12050 = vpack.c.b16 %v12042, %v12041
    %v12059 = vunpack.c.l.b16 %v11181
    %v12060 = vunpack.c.l.b16 %v11185
    %v12061 = vunpack.c.l.b16 %v11189
    %v12062 = vunpack.c.l.b16 %v11193
    %v12063 = vunpack.c.l.b16 %v11197
    %v12064 = vunpack.c.l.b16 %v11201
    %v12065 = vunpack.c.l.b16 %v11205
    %v12066 = vunpack.c.l.b16 %v11209
    %v12067 = vunpack.c.l.b16 %v11213
    %v12068 = vunpack.c.l.b16 %v11217
    %v12069 = vunpack.c.l.b16 %v11221
    %v12070 = vunpack.c.l.b16 %v11225
    %v12071 = vunpack.c.l.b16 %v11229
    %v12072 = vunpack.c.l.b16 %v11233
    %v12073 = vunpack.c.l.b16 %v11237
    %v12074 = vunpack.c.l.b16 %v11241
    %v12075 = vpack.c.b16 %v12060, %v12059
    %v12076 = vpack.c.b16 %v12062, %v12061
    %v12077 = vpack.c.b16 %v12064, %v12063
    %v12078 = vpack.c.b16 %v12066, %v12065
    %v12079 = vpack.c.b16 %v12068, %v12067
    %v12080 = vpack.c.b16 %v12070, %v12069
    %v12081 = vpack.c.b16 %v12072, %v12071
    %v12082 = vpack.c.b16 %v12074, %v12073
    %v12107 = vunpack.c.l.b16 %v11242
    %v12108 = vunpack.c.l.b16 %v11243
    %v12109 = vunpack.c.l.b16 %v11244
    %v12110 = vunpack.c.l.b16 %v11245
    %v12111 = vunpack.c.l.b16 %v11246
    %v12112 = vunpack.c.l.b16 %v11247
    %v12113 = vunpack.c.l.b16 %v11248
    %v12114 = vunpack.c.l.b16 %v11249
    %v12115 = vunpack.c.l.b16 %v11250
    %v12116 = vunpack.c.l.b16 %v11251
    %v12117 = vunpack.c.l.b16 %v11252
    %v12118 = vunpack.c.l.b16 %v11253
    %v12119 = vunpack.c.l.b16 %v11254
    %v12120 = vunpack.c.l.b16 %v11255
    %v12121 = vunpack.c.l.b16 %v11256
    %v12122 = vunpack.c.l.b16 %v11257
    %v12123 = vpack.c.b16 %v12108, %v12107
    %v12124 = vpack.c.b16 %v12110, %v12109
    %v12125 = vpack.c.b16 %v12112, %v12111
    %v12126 = vpack.c.b16 %v12114, %v12113
    %v12127 = vpack.c.b16 %v12116, %v12115
    %v12128 = vpack.c.b16 %v12118, %v12117
    %v12129 = vpack.c.b16 %v12120, %v12119
    %v12130 = vpack.c.b16 %v12122, %v12121
    %v12139 = vunpack.c.l.b16 %v11287
    %v12140 = vunpack.c.l.b16 %v11301
    %v12141 = vunpack.c.l.b16 %v11315
    %v12142 = vunpack.c.l.b16 %v11329
    %v12143 = vunpack.c.l.b16 %v11343
    %v12144 = vunpack.c.l.b16 %v11357
    %v12145 = vunpack.c.l.b16 %v11371
    %v12146 = vunpack.c.l.b16 %v11385
    %v12147 = vunpack.c.l.b16 %v11399
    %v12148 = vunpack.c.l.b16 %v11413
    %v12149 = vunpack.c.l.b16 %v11427
    %v12150 = vunpack.c.l.b16 %v11441
    %v12151 = vunpack.c.l.b16 %v11455
    %v12152 = vunpack.c.l.b16 %v11469
    %v12153 = vunpack.c.l.b16 %v11483
    %v12154 = vunpack.c.l.b16 %v11497
    %v12155 = vpack.c.b16 %v12140, %v12139
    %v12156 = vpack.c.b16 %v12142, %v12141
    %v12157 = vpack.c.b16 %v12144, %v12143
    %v12158 = vpack.c.b16 %v12146, %v12145
    %v12159 = vpack.c.b16 %v12148, %v12147
    %v12160 = vpack.c.b16 %v12150, %v12149
    %v12161 = vpack.c.b16 %v12152, %v12151
    %v12162 = vpack.c.b16 %v12154, %v12153
    %v12171 = vunpack.c.l.b16 %v11549
    %v12172 = vunpack.c.l.b16 %v11553
    %v12173 = vunpack.c.l.b16 %v11557
    %v12174 = vunpack.c.l.b16 %v11561
    %v12175 = vunpack.c.l.b16 %v11565
    %v12176 = vunpack.c.l.b16 %v11569
    %v12177 = vunpack.c.l.b16 %v11573
    %v12178 = vunpack.c.l.b16 %v11577
    %v12179 = vunpack.c.l.b16 %v11581
    %v12180 = vunpack.c.l.b16 %v11585
    %v12181 = vunpack.c.l.b16 %v11589
    %v12182 = vunpack.c.l.b16 %v11593
    %v12183 = vunpack.c.l.b16 %v11597
    %v12184 = vunpack.c.l.b16 %v11601
    %v12185 = vunpack.c.l.b16 %v11605
    %v12186 = vunpack.c.l.b16 %v11609
    %v12187 = vpack.c.b16 %v12172, %v12171
    %v12188 = vpack.c.b16 %v12174, %v12173
    %v12189 = vpack.c.b16 %v12176, %v12175
    %v12190 = vpack.c.b16 %v12178, %v12177
    %v12191 = vpack.c.b16 %v12180, %v12179
    %v12192 = vpack.c.b16 %v12182, %v12181
    %v12193 = vpack.c.b16 %v12184, %v12183
    %v12194 = vpack.c.b16 %v12186, %v12185
    %v12219 = vunpack.c.l.b16 %v11611
    %v12220 = vunpack.c.l.b16 %v11612
    %v12221 = vunpack.c.l.b16 %v11613
    %v12222 = vunpack.c.l.b16 %v11614
    %v12223 = vunpack.c.l.b16 %v11615
    %v12224 = vunpack.c.l.b16 %v11616
    %v12225 = vunpack.c.l.b16 %v11617
    %v12226 = vunpack.c.l.b16 %v11618
    %v12227 = vunpack.c.l.b16 %v11619
    %v12228 = vunpack.c.l.b16 %v11620
    %v12229 = vunpack.c.l.b16 %v11621
    %v12230 = vunpack.c.l.b16 %v11622
    %v12231 = vunpack.c.l.b16 %v11623
    %v12232 = vunpack.c.l.b16 %v11624
    %v12233 = vunpack.c.l.b16 %v11625
    %v12234 = vunpack.c.l.b16 %v11626
    %v12235 = vpack.c.b16 %v12220, %v12219
    %v12236 = vpack.c.b16 %v12222, %v12221
    %v12237 = vpack.c.b16 %v12224, %v12223
    %v12238 = vpack.c.b16 %v12226, %v12225
    %v12239 = vpack.c.b16 %v12228, %v12227
    %v12240 = vpack.c.b16 %v12230, %v12229
    %v12241 = vpack.c.b16 %v12232, %v12231
    %v12242 = vpack.c.b16 %v12234, %v12233
    %v12251 = vunpack.c.l.b16 %v11656
    %v12252 = vunpack.c.l.b16 %v11670
    %v12253 = vunpack.c.l.b16 %v11684
    %v12254 = vunpack.c.l.b16 %v11698
    %v12255 = vunpack.c.l.b16 %v11712
    %v12256 = vunpack.c.l.b16 %v11726
    %v12257 = vunpack.c.l.b16 %v11740
    %v12258 = vunpack.c.l.b16 %v11754
    %v12259 = vunpack.c.l.b16 %v11768
    %v12260 = vunpack.c.l.b16 %v11782
    %v12261 = vunpack.c.l.b16 %v11796
    %v12262 = vunpack.c.l.b16 %v11810
    %v12263 = vunpack.c.l.b16 %v11824
    %v12264 = vunpack.c.l.b16 %v11838
    %v12265 = vunpack.c.l.b16 %v11852
    %v12266 = vunpack.c.l.b16 %v11866
    %v12267 = vpack.c.b16 %v12252, %v12251
    %v12268 = vpack.c.b16 %v12254, %v12253
    %v12269 = vpack.c.b16 %v12256, %v12255
    %v12270 = vpack.c.b16 %v12258, %v12257
    %v12271 = vpack.c.b16 %v12260, %v12259
    %v12272 = vpack.c.b16 %v12262, %v12261
    %v12273 = vpack.c.b16 %v12264, %v12263
    %v12274 = vpack.c.b16 %v12266, %v12265
    %v12283 = vunpack.c.l.b16 %v11918
    %v12284 = vunpack.c.l.b16 %v11922
    %v12285 = vunpack.c.l.b16 %v11926
    %v12286 = vunpack.c.l.b16 %v11930
    %v12287 = vunpack.c.l.b16 %v11934
    %v12288 = vunpack.c.l.b16 %v11938
    %v12289 = vunpack.c.l.b16 %v11942
    %v12290 = vunpack.c.l.b16 %v11946
    %v12291 = vunpack.c.l.b16 %v11950
    %v12292 = vunpack.c.l.b16 %v11954
    %v12293 = vunpack.c.l.b16 %v11958
    %v12294 = vunpack.c.l.b16 %v11962
    %v12295 = vunpack.c.l.b16 %v11966
    %v12296 = vunpack.c.l.b16 %v11970
    %v12297 = vunpack.c.l.b16 %v11974
    %v12298 = vunpack.c.l.b16 %v11978
    %v12299 = vpack.c.b16 %v12284, %v12283
    %v12300 = vpack.c.b16 %v12286, %v12285
    %v12301 = vpack.c.b16 %v12288, %v12287
    %v12302 = vpack.c.b16 %v12290, %v12289
    %v12303 = vpack.c.b16 %v12292, %v12291
    %v12304 = vpack.c.b16 %v12294, %v12293
    %v12305 = vpack.c.b16 %v12296, %v12295
    %v12306 = vpack.c.b16 %v12298, %v12297
    %v12315 = vld [vmem:[#allocation12] sm:$0xf]
    %v12316 = vld [vmem:[#allocation12 + $0x4] sm:$0xf]
    %v12317 = vld [vmem:[#allocation12 + $0x8] sm:$0xf]
    %v12318 = vld [vmem:[#allocation12 + $0xc] sm:$0xf]
    %v12319 = vld [vmem:[#allocation12 + $0x10] sm:$0xf]
    %v12320 = vld [vmem:[#allocation12 + $0x14] sm:$0xf]
    %v12321 = vld [vmem:[#allocation12 + $0x18] sm:$0xf]
    %v12322 = vld [vmem:[#allocation12 + $0x1c] sm:$0xf]
    %v12323 = vld [vmem:[#allocation12 + $0x20] sm:$0xf]
    %v12324 = vld [vmem:[#allocation12 + $0x24] sm:$0xf]
    %v12325 = vld [vmem:[#allocation12 + $0x28] sm:$0xf]
    %v12326 = vld [vmem:[#allocation12 + $0x2c] sm:$0xf]
    %v12327 = vld [vmem:[#allocation12 + $0x30] sm:$0xf]
    %v12328 = vld [vmem:[#allocation12 + $0x34] sm:$0xf]
    %v12329 = vld [vmem:[#allocation12 + $0x38] sm:$0xf]
    %v12330 = vld [vmem:[#allocation12 + $0x3c] sm:$0xf]
    %v12331 = vld [vmem:[#allocation12 + $0x40] sm:$0xf]
    %v12332 = vld [vmem:[#allocation12 + $0x44] sm:$0xf]
    %v12333 = vld [vmem:[#allocation12 + $0x48] sm:$0xf]
    %v12334 = vld [vmem:[#allocation12 + $0x4c] sm:$0xf]
    %v12335 = vld [vmem:[#allocation12 + $0x50] sm:$0xf]
    %v12336 = vld [vmem:[#allocation12 + $0x54] sm:$0xf]
    %v12337 = vld [vmem:[#allocation12 + $0x58] sm:$0xf]
    %v12338 = vld [vmem:[#allocation12 + $0x5c] sm:$0xf]
    %v12339 = vld [vmem:[#allocation12 + $0x60] sm:$0xf]
    %v12340 = vld [vmem:[#allocation12 + $0x64] sm:$0xf]
    %v12341 = vld [vmem:[#allocation12 + $0x68] sm:$0xf]
    %v12342 = vld [vmem:[#allocation12 + $0x6c] sm:$0xf]
    %v12343 = vld [vmem:[#allocation12 + $0x70] sm:$0xf]
    %v12344 = vld [vmem:[#allocation12 + $0x74] sm:$0xf]
    %v12345 = vld [vmem:[#allocation12 + $0x78] sm:$0xf]
    %v12346 = vld [vmem:[#allocation12 + $0x7c] sm:$0xf]
    %v12347 = vld [vmem:[#allocation12 + $0x80] sm:$0xf]
    %v12348 = vld [vmem:[#allocation12 + $0x84] sm:$0xf]
    %v12349 = vld [vmem:[#allocation12 + $0x88] sm:$0xf]
    %v12350 = vld [vmem:[#allocation12 + $0x8c] sm:$0xf]
    %v12351 = vld [vmem:[#allocation12 + $0x90] sm:$0xf]
    %v12352 = vld [vmem:[#allocation12 + $0x94] sm:$0xf]
    %v12353 = vld [vmem:[#allocation12 + $0x98] sm:$0xf]
    %v12354 = vld [vmem:[#allocation12 + $0x9c] sm:$0xf]
    %v12355 = vld [vmem:[#allocation12 + $0xa0] sm:$0xf]
    %v12356 = vld [vmem:[#allocation12 + $0xa4] sm:$0xf]
    %v12357 = vld [vmem:[#allocation12 + $0xa8] sm:$0xf]
    %v12358 = vld [vmem:[#allocation12 + $0xac] sm:$0xf]
    %v12359 = vld [vmem:[#allocation12 + $0xb0] sm:$0xf]
    %v12360 = vld [vmem:[#allocation12 + $0xb4] sm:$0xf]
    %v12361 = vld [vmem:[#allocation12 + $0xb8] sm:$0xf]
    %v12362 = vld [vmem:[#allocation12 + $0xbc] sm:$0xf]
    %v12363 = vld [vmem:[#allocation12 + $0xc0] sm:$0xf]
    %v12364 = vld [vmem:[#allocation12 + $0xc4] sm:$0xf]
    %v12365 = vld [vmem:[#allocation12 + $0xc8] sm:$0xf]
    %v12366 = vld [vmem:[#allocation12 + $0xcc] sm:$0xf]
    %v12367 = vld [vmem:[#allocation12 + $0xd0] sm:$0xf]
    %v12368 = vld [vmem:[#allocation12 + $0xd4] sm:$0xf]
    %v12369 = vld [vmem:[#allocation12 + $0xd8] sm:$0xf]
    %v12370 = vld [vmem:[#allocation12 + $0xdc] sm:$0xf]
    %v12371 = vld [vmem:[#allocation12 + $0xe0] sm:$0xf]
    %v12372 = vld [vmem:[#allocation12 + $0xe4] sm:$0xf]
    %v12373 = vld [vmem:[#allocation12 + $0xe8] sm:$0xf]
    %v12374 = vld [vmem:[#allocation12 + $0xec] sm:$0xf]
    %v12375 = vld [vmem:[#allocation12 + $0xf0] sm:$0xf]
    %v12376 = vld [vmem:[#allocation12 + $0xf4] sm:$0xf]
    %v12377 = vld [vmem:[#allocation12 + $0xf8] sm:$0xf]
    %v12378 = vld [vmem:[#allocation12 + $0xfc] sm:$0xf]
    %v12379 = vld [vmem:[#allocation12 + $0x100] sm:$0xf]
    %v12380 = vld [vmem:[#allocation12 + $0x104] sm:$0xf]
    %v12381 = vld [vmem:[#allocation12 + $0x108] sm:$0xf]
    %v12382 = vld [vmem:[#allocation12 + $0x10c] sm:$0xf]
    %v12383 = vld [vmem:[#allocation12 + $0x110] sm:$0xf]
    %v12384 = vld [vmem:[#allocation12 + $0x114] sm:$0xf]
    %v12385 = vld [vmem:[#allocation12 + $0x118] sm:$0xf]
    %v12386 = vld [vmem:[#allocation12 + $0x11c] sm:$0xf]
    %v12387 = vld [vmem:[#allocation12 + $0x120] sm:$0xf]
    %v12388 = vld [vmem:[#allocation12 + $0x124] sm:$0xf]
    %v12389 = vld [vmem:[#allocation12 + $0x128] sm:$0xf]
    %v12390 = vld [vmem:[#allocation12 + $0x12c] sm:$0xf]
    %v12391 = vld [vmem:[#allocation12 + $0x130] sm:$0xf]
    %v12392 = vld [vmem:[#allocation12 + $0x134] sm:$0xf]
    %v12393 = vld [vmem:[#allocation12 + $0x138] sm:$0xf]
    %v12394 = vld [vmem:[#allocation12 + $0x13c] sm:$0xf]
    %v12395 = vld [vmem:[#allocation12 + $0x140] sm:$0xf]
    %v12396 = vld [vmem:[#allocation12 + $0x144] sm:$0xf]
    %v12397 = vld [vmem:[#allocation12 + $0x148] sm:$0xf]
    %v12398 = vld [vmem:[#allocation12 + $0x14c] sm:$0xf]
    %v12399 = vld [vmem:[#allocation12 + $0x150] sm:$0xf]
    %v12400 = vld [vmem:[#allocation12 + $0x154] sm:$0xf]
    %v12401 = vld [vmem:[#allocation12 + $0x158] sm:$0xf]
    %v12402 = vld [vmem:[#allocation12 + $0x15c] sm:$0xf]
    %v12403 = vld [vmem:[#allocation12 + $0x160] sm:$0xf]
    %v12404 = vld [vmem:[#allocation12 + $0x164] sm:$0xf]
    %v12405 = vld [vmem:[#allocation12 + $0x168] sm:$0xf]
    %v12406 = vld [vmem:[#allocation12 + $0x16c] sm:$0xf]
    %v12407 = vld [vmem:[#allocation12 + $0x170] sm:$0xf]
    %v12408 = vld [vmem:[#allocation12 + $0x174] sm:$0xf]
    %v12409 = vld [vmem:[#allocation12 + $0x178] sm:$0xf]
    %v12410 = vld [vmem:[#allocation12 + $0x17c] sm:$0xf]
    %v12411 = vld [vmem:[#allocation12 + $0x180] sm:$0xf]
    %v12412 = vld [vmem:[#allocation12 + $0x184] sm:$0xf]
    %v12413 = vld [vmem:[#allocation12 + $0x188] sm:$0xf]
    %v12414 = vld [vmem:[#allocation12 + $0x18c] sm:$0xf]
    %v12415 = vld [vmem:[#allocation12 + $0x190] sm:$0xf]
    %v12416 = vld [vmem:[#allocation12 + $0x194] sm:$0xf]
    %v12417 = vld [vmem:[#allocation12 + $0x198] sm:$0xf]
    %v12418 = vld [vmem:[#allocation12 + $0x19c] sm:$0xf]
    %v12419 = vld [vmem:[#allocation12 + $0x1a0] sm:$0xf]
    %v12420 = vld [vmem:[#allocation12 + $0x1a4] sm:$0xf]
    %v12421 = vld [vmem:[#allocation12 + $0x1a8] sm:$0xf]
    %v12422 = vld [vmem:[#allocation12 + $0x1ac] sm:$0xf]
    %v12423 = vld [vmem:[#allocation12 + $0x1b0] sm:$0xf]
    %v12424 = vld [vmem:[#allocation12 + $0x1b4] sm:$0xf]
    %v12425 = vld [vmem:[#allocation12 + $0x1b8] sm:$0xf]
    %v12426 = vld [vmem:[#allocation12 + $0x1bc] sm:$0xf]
    %v12427 = vld [vmem:[#allocation12 + $0x1c0] sm:$0xf]
    %v12428 = vld [vmem:[#allocation12 + $0x1c4] sm:$0xf]
    %v12429 = vld [vmem:[#allocation12 + $0x1c8] sm:$0xf]
    %v12430 = vld [vmem:[#allocation12 + $0x1cc] sm:$0xf]
    %v12431 = vld [vmem:[#allocation12 + $0x1d0] sm:$0xf]
    %v12432 = vld [vmem:[#allocation12 + $0x1d4] sm:$0xf]
    %v12433 = vld [vmem:[#allocation12 + $0x1d8] sm:$0xf]
    %v12434 = vld [vmem:[#allocation12 + $0x1dc] sm:$0xf]
    %v12435 = vld [vmem:[#allocation12 + $0x1e0] sm:$0xf]
    %v12436 = vld [vmem:[#allocation12 + $0x1e4] sm:$0xf]
    %v12437 = vld [vmem:[#allocation12 + $0x1e8] sm:$0xf]
    %v12438 = vld [vmem:[#allocation12 + $0x1ec] sm:$0xf]
    %v12439 = vld [vmem:[#allocation12 + $0x1f0] sm:$0xf]
    %v12440 = vld [vmem:[#allocation12 + $0x1f4] sm:$0xf]
    %v12441 = vld [vmem:[#allocation12 + $0x1f8] sm:$0xf]
    %v12442 = vld [vmem:[#allocation12 + $0x1fc] sm:$0xf]
    %v12443 = vld [vmem:[#allocation12 + $0x200] sm:$0xf]
    %v12444 = vld [vmem:[#allocation12 + $0x204] sm:$0xf]
    %v12445 = vld [vmem:[#allocation12 + $0x208] sm:$0xf]
    %v12446 = vld [vmem:[#allocation12 + $0x20c] sm:$0xf]
    %v12447 = vld [vmem:[#allocation12 + $0x210] sm:$0xf]
    %v12448 = vld [vmem:[#allocation12 + $0x214] sm:$0xf]
    %v12449 = vld [vmem:[#allocation12 + $0x218] sm:$0xf]
    %v12450 = vld [vmem:[#allocation12 + $0x21c] sm:$0xf]
    %v12451 = vld [vmem:[#allocation12 + $0x220] sm:$0xf]
    %v12452 = vld [vmem:[#allocation12 + $0x224] sm:$0xf]
    %v12453 = vld [vmem:[#allocation12 + $0x228] sm:$0xf]
    %v12454 = vld [vmem:[#allocation12 + $0x22c] sm:$0xf]
    %v12455 = vld [vmem:[#allocation12 + $0x230] sm:$0xf]
    %v12456 = vld [vmem:[#allocation12 + $0x234] sm:$0xf]
    %v12457 = vld [vmem:[#allocation12 + $0x238] sm:$0xf]
    %v12458 = vld [vmem:[#allocation12 + $0x23c] sm:$0xf]
    %v12459 = vld [vmem:[%s10] sm:$0x1]
    %v12461 = vlaneseq
    %v12462 = vshrl.u32 %v12461, 7
    %v12463 = vsub.s32 0, %v12462
    %v12464 = vrot.slane %v12459, %v12463
    %v12610 = vunpack.c.l.b16 %v12315
    %v12611 = vunpack.c.l.b16 %v12316
    %v12612 = vunpack.c.l.b16 %v12317
    %v12613 = vunpack.c.l.b16 %v12318
    %v12614 = vunpack.c.l.b16 %v12319
    %v12615 = vunpack.c.l.b16 %v12320
    %v12616 = vunpack.c.l.b16 %v12321
    %v12617 = vunpack.c.l.b16 %v12322
    %v12618 = vunpack.c.l.b16 %v12323
    %v12619 = vunpack.c.l.b16 %v12324
    %v12620 = vunpack.c.l.b16 %v12325
    %v12621 = vunpack.c.l.b16 %v12326
    %v12622 = vunpack.c.l.b16 %v12327
    %v12623 = vunpack.c.l.b16 %v12328
    %v12624 = vunpack.c.l.b16 %v12329
    %v12625 = vunpack.c.l.b16 %v12330
    %v12626 = vunpack.c.l.b16 %v12331
    %v12627 = vunpack.c.l.b16 %v12332
    %v12628 = vunpack.c.l.b16 %v12333
    %v12629 = vunpack.c.l.b16 %v12334
    %v12630 = vunpack.c.l.b16 %v12335
    %v12631 = vunpack.c.l.b16 %v12336
    %v12632 = vunpack.c.l.b16 %v12337
    %v12633 = vunpack.c.l.b16 %v12338
    %v12634 = vunpack.c.l.b16 %v12339
    %v12635 = vunpack.c.l.b16 %v12340
    %v12636 = vunpack.c.l.b16 %v12341
    %v12637 = vunpack.c.l.b16 %v12342
    %v12638 = vunpack.c.l.b16 %v12343
    %v12639 = vunpack.c.l.b16 %v12344
    %v12640 = vunpack.c.l.b16 %v12345
    %v12641 = vunpack.c.l.b16 %v12346
    %v12642 = vunpack.c.l.b16 %v12347
    %v12643 = vunpack.c.l.b16 %v12348
    %v12644 = vunpack.c.l.b16 %v12349
    %v12645 = vunpack.c.l.b16 %v12350
    %v12646 = vunpack.c.l.b16 %v12351
    %v12647 = vunpack.c.l.b16 %v12352
    %v12648 = vunpack.c.l.b16 %v12353
    %v12649 = vunpack.c.l.b16 %v12354
    %v12650 = vunpack.c.l.b16 %v12355
    %v12651 = vunpack.c.l.b16 %v12356
    %v12652 = vunpack.c.l.b16 %v12357
    %v12653 = vunpack.c.l.b16 %v12358
    %v12654 = vunpack.c.l.b16 %v12359
    %v12655 = vunpack.c.l.b16 %v12360
    %v12656 = vunpack.c.l.b16 %v12361
    %v12657 = vunpack.c.l.b16 %v12362
    %v12658 = vunpack.c.l.b16 %v12363
    %v12659 = vunpack.c.l.b16 %v12364
    %v12660 = vunpack.c.l.b16 %v12365
    %v12661 = vunpack.c.l.b16 %v12366
    %v12662 = vunpack.c.l.b16 %v12367
    %v12663 = vunpack.c.l.b16 %v12368
    %v12664 = vunpack.c.l.b16 %v12369
    %v12665 = vunpack.c.l.b16 %v12370
    %v12666 = vunpack.c.l.b16 %v12371
    %v12667 = vunpack.c.l.b16 %v12372
    %v12668 = vunpack.c.l.b16 %v12373
    %v12669 = vunpack.c.l.b16 %v12374
    %v12670 = vunpack.c.l.b16 %v12375
    %v12671 = vunpack.c.l.b16 %v12376
    %v12672 = vunpack.c.l.b16 %v12377
    %v12673 = vunpack.c.l.b16 %v12378
    %v12674 = vunpack.c.l.b16 %v12379
    %v12675 = vunpack.c.l.b16 %v12380
    %v12676 = vunpack.c.l.b16 %v12381
    %v12677 = vunpack.c.l.b16 %v12382
    %v12678 = vunpack.c.l.b16 %v12383
    %v12679 = vunpack.c.l.b16 %v12384
    %v12680 = vunpack.c.l.b16 %v12385
    %v12681 = vunpack.c.l.b16 %v12386
    %v12682 = vunpack.c.l.b16 %v12387
    %v12683 = vunpack.c.l.b16 %v12388
    %v12684 = vunpack.c.l.b16 %v12389
    %v12685 = vunpack.c.l.b16 %v12390
    %v12686 = vunpack.c.l.b16 %v12391
    %v12687 = vunpack.c.l.b16 %v12392
    %v12688 = vunpack.c.l.b16 %v12393
    %v12689 = vunpack.c.l.b16 %v12394
    %v12690 = vunpack.c.l.b16 %v12395
    %v12691 = vunpack.c.l.b16 %v12396
    %v12692 = vunpack.c.l.b16 %v12397
    %v12693 = vunpack.c.l.b16 %v12398
    %v12694 = vunpack.c.l.b16 %v12399
    %v12695 = vunpack.c.l.b16 %v12400
    %v12696 = vunpack.c.l.b16 %v12401
    %v12697 = vunpack.c.l.b16 %v12402
    %v12698 = vunpack.c.l.b16 %v12403
    %v12699 = vunpack.c.l.b16 %v12404
    %v12700 = vunpack.c.l.b16 %v12405
    %v12701 = vunpack.c.l.b16 %v12406
    %v12702 = vunpack.c.l.b16 %v12407
    %v12703 = vunpack.c.l.b16 %v12408
    %v12704 = vunpack.c.l.b16 %v12409
    %v12705 = vunpack.c.l.b16 %v12410
    %v12706 = vunpack.c.l.b16 %v12411
    %v12707 = vunpack.c.l.b16 %v12412
    %v12708 = vunpack.c.l.b16 %v12413
    %v12709 = vunpack.c.l.b16 %v12414
    %v12710 = vunpack.c.l.b16 %v12415
    %v12711 = vunpack.c.l.b16 %v12416
    %v12712 = vunpack.c.l.b16 %v12417
    %v12713 = vunpack.c.l.b16 %v12418
    %v12714 = vunpack.c.l.b16 %v12419
    %v12715 = vunpack.c.l.b16 %v12420
    %v12716 = vunpack.c.l.b16 %v12421
    %v12717 = vunpack.c.l.b16 %v12422
    %v12718 = vunpack.c.l.b16 %v12423
    %v12719 = vunpack.c.l.b16 %v12424
    %v12720 = vunpack.c.l.b16 %v12425
    %v12721 = vunpack.c.l.b16 %v12426
    %v12722 = vunpack.c.l.b16 %v12427
    %v12723 = vunpack.c.l.b16 %v12428
    %v12724 = vunpack.c.l.b16 %v12429
    %v12725 = vunpack.c.l.b16 %v12430
    %v12726 = vunpack.c.l.b16 %v12431
    %v12727 = vunpack.c.l.b16 %v12432
    %v12728 = vunpack.c.l.b16 %v12433
    %v12729 = vunpack.c.l.b16 %v12434
    %v12730 = vunpack.c.l.b16 %v12435
    %v12731 = vunpack.c.l.b16 %v12436
    %v12732 = vunpack.c.l.b16 %v12437
    %v12733 = vunpack.c.l.b16 %v12438
    %v12734 = vunpack.c.l.b16 %v12439
    %v12735 = vunpack.c.l.b16 %v12440
    %v12736 = vunpack.c.l.b16 %v12441
    %v12737 = vunpack.c.l.b16 %v12442
    %v12738 = vunpack.c.l.b16 %v12443
    %v12739 = vunpack.c.l.b16 %v12444
    %v12740 = vunpack.c.l.b16 %v12445
    %v12741 = vunpack.c.l.b16 %v12446
    %v12742 = vunpack.c.l.b16 %v12447
    %v12743 = vunpack.c.l.b16 %v12448
    %v12744 = vunpack.c.l.b16 %v12449
    %v12745 = vunpack.c.l.b16 %v12450
    %v12746 = vunpack.c.l.b16 %v12451
    %v12747 = vunpack.c.l.b16 %v12452
    %v12748 = vunpack.c.l.b16 %v12453
    %v12749 = vunpack.c.l.b16 %v12454
    %v12750 = vunpack.c.l.b16 %v12455
    %v12751 = vunpack.c.l.b16 %v12456
    %v12752 = vunpack.c.l.b16 %v12457
    %v12753 = vunpack.c.l.b16 %v12458
    %v12754 = vpack.c.b16 %v12611, %v12610
    %v12755 = vpack.c.b16 %v12613, %v12612
    %v12756 = vpack.c.b16 %v12615, %v12614
    %v12757 = vpack.c.b16 %v12617, %v12616
    %v12758 = vpack.c.b16 %v12619, %v12618
    %v12759 = vpack.c.b16 %v12621, %v12620
    %v12760 = vpack.c.b16 %v12623, %v12622
    %v12761 = vpack.c.b16 %v12625, %v12624
    %v12762 = vpack.c.b16 %v12627, %v12626
    %v12763 = vpack.c.b16 %v12629, %v12628
    %v12764 = vpack.c.b16 %v12631, %v12630
    %v12765 = vpack.c.b16 %v12633, %v12632
    %v12766 = vpack.c.b16 %v12635, %v12634
    %v12767 = vpack.c.b16 %v12637, %v12636
    %v12768 = vpack.c.b16 %v12639, %v12638
    %v12769 = vpack.c.b16 %v12641, %v12640
    %v12770 = vpack.c.b16 %v12643, %v12642
    %v12771 = vpack.c.b16 %v12645, %v12644
    %v12772 = vpack.c.b16 %v12647, %v12646
    %v12773 = vpack.c.b16 %v12649, %v12648
    %v12774 = vpack.c.b16 %v12651, %v12650
    %v12775 = vpack.c.b16 %v12653, %v12652
    %v12776 = vpack.c.b16 %v12655, %v12654
    %v12777 = vpack.c.b16 %v12657, %v12656
    %v12778 = vpack.c.b16 %v12659, %v12658
    %v12779 = vpack.c.b16 %v12661, %v12660
    %v12780 = vpack.c.b16 %v12663, %v12662
    %v12781 = vpack.c.b16 %v12665, %v12664
    %v12782 = vpack.c.b16 %v12667, %v12666
    %v12783 = vpack.c.b16 %v12669, %v12668
    %v12784 = vpack.c.b16 %v12671, %v12670
    %v12785 = vpack.c.b16 %v12673, %v12672
    %v12786 = vpack.c.b16 %v12675, %v12674
    %v12787 = vpack.c.b16 %v12677, %v12676
    %v12788 = vpack.c.b16 %v12679, %v12678
    %v12789 = vpack.c.b16 %v12681, %v12680
    %v12790 = vpack.c.b16 %v12683, %v12682
    %v12791 = vpack.c.b16 %v12685, %v12684
    %v12792 = vpack.c.b16 %v12687, %v12686
    %v12793 = vpack.c.b16 %v12689, %v12688
    %v12794 = vpack.c.b16 %v12691, %v12690
    %v12795 = vpack.c.b16 %v12693, %v12692
    %v12796 = vpack.c.b16 %v12695, %v12694
    %v12797 = vpack.c.b16 %v12697, %v12696
    %v12798 = vpack.c.b16 %v12699, %v12698
    %v12799 = vpack.c.b16 %v12701, %v12700
    %v12800 = vpack.c.b16 %v12703, %v12702
    %v12801 = vpack.c.b16 %v12705, %v12704
    %v12802 = vpack.c.b16 %v12707, %v12706
    %v12803 = vpack.c.b16 %v12709, %v12708
    %v12804 = vpack.c.b16 %v12711, %v12710
    %v12805 = vpack.c.b16 %v12713, %v12712
    %v12806 = vpack.c.b16 %v12715, %v12714
    %v12807 = vpack.c.b16 %v12717, %v12716
    %v12808 = vpack.c.b16 %v12719, %v12718
    %v12809 = vpack.c.b16 %v12721, %v12720
    %v12810 = vpack.c.b16 %v12723, %v12722
    %v12811 = vpack.c.b16 %v12725, %v12724
    %v12812 = vpack.c.b16 %v12727, %v12726
    %v12813 = vpack.c.b16 %v12729, %v12728
    %v12814 = vpack.c.b16 %v12731, %v12730
    %v12815 = vpack.c.b16 %v12733, %v12732
    %v12816 = vpack.c.b16 %v12735, %v12734
    %v12817 = vpack.c.b16 %v12737, %v12736
    %v12818 = vpack.c.b16 %v12739, %v12738
    %v12819 = vpack.c.b16 %v12741, %v12740
    %v12820 = vpack.c.b16 %v12743, %v12742
    %v12821 = vpack.c.b16 %v12745, %v12744
    %v12822 = vpack.c.b16 %v12747, %v12746
    %v12823 = vpack.c.b16 %v12749, %v12748
    %v12824 = vpack.c.b16 %v12751, %v12750
    %v12825 = vpack.c.b16 %v12753, %v12752
    %12898 = vmatprep.subr.bf16.mxu0 0
    %12899 = vmatpush1.bf16.msra.mxu0 %v12754
    %12900 = vmatprep.subr.bf16.mxu0 0
    %12901 = vmatpush1.bf16.msra.mxu0 %v12755
    %12902 = vmatprep.subr.bf16.mxu0 0
    %12903 = vmatpush1.bf16.msra.mxu0 %v12756
    %12904 = vmatprep.subr.bf16.mxu0 0
    %12905 = vmatpush1.bf16.msra.mxu0 %v12757
    %12906 = vmatprep.subr.bf16.mxu0 0
    %12907 = vmatpush1.bf16.msra.mxu0 %v12758
    %12908 = vmatprep.subr.bf16.mxu0 0
    %12909 = vmatpush1.bf16.msra.mxu0 %v12759
    %12910 = vmatprep.subr.bf16.mxu0 0
    %12911 = vmatpush1.bf16.msra.mxu0 %v12760
    %12912 = vmatprep.subr.bf16.mxu0 0
    %12913 = vmatpush1.bf16.msra.mxu0 %v12761
    %12914 = vmatprep.subr.bf16.mxu0 0
    %12915 = vmatpush1.bf16.msra.mxu0 %v12762
    %12916 = vmatprep.subr.bf16.mxu0 0
    %12917 = vmatpush1.bf16.msra.mxu0 %v12763
    %12918 = vmatprep.subr.bf16.mxu0 0
    %12919 = vmatpush1.bf16.msra.mxu0 %v12764
    %12920 = vmatprep.subr.bf16.mxu0 0
    %12921 = vmatpush1.bf16.msra.mxu0 %v12765
    %12922 = vmatprep.subr.bf16.mxu0 0
    %12923 = vmatpush1.bf16.msra.mxu0 %v12766
    %12924 = vmatprep.subr.bf16.mxu0 0
    %12925 = vmatpush1.bf16.msra.mxu0 %v12767
    %12926 = vmatprep.subr.bf16.mxu0 0
    %12927 = vmatpush1.bf16.msra.mxu0 %v12768
    %12928 = vmatprep.subr.bf16.mxu0 0
    %12929 = vmatpush1.bf16.msra.mxu0 %v12769
    %12930 = vmatprep.mubr.bf16.mxu0 %v12043
    %12931 = vmatmul.mubr.bf16.gmra.mrb[0].mxu0 %v12011
    %v12932 = vpop.f32.mrb[0].mxu0
    %v12933 = vadd.f32 %v12464, %v12932
    %v12934 = vpop.f32.mrb[0].mxu0
    %v12935 = vpop.f32.mrb[0].mxu0
    %v12936 = vadd.f32 %v12464, %v12935
    %v12937 = vpop.f32.mrb[0].mxu0
    %12938 = vmatprep.mubr.bf16.mxu0 %v12044
    %12939 = vmatmul.mubr.bf16.gmra.mrb[0].mxu0 %v12012
    %v12940 = vpop.f32.mrb[0].mxu0
    %v12941 = vadd.f32 %v12464, %v12940
    %v12942 = vpop.f32.mrb[0].mxu0
    %v12943 = vpop.f32.mrb[0].mxu0
    %v12944 = vadd.f32 %v12464, %v12943
    %v12945 = vpop.f32.mrb[0].mxu0
    %12946 = vmatprep.mubr.bf16.mxu0 %v12045
    %12947 = vmatmul.mubr.bf16.gmra.mrb[0].mxu0 %v12013
    %v12948 = vpop.f32.mrb[0].mxu0
    %v12949 = vadd.f32 %v12464, %v12948
    %v12950 = vpop.f32.mrb[0].mxu0
    %v12951 = vpop.f32.mrb[0].mxu0
    %v12952 = vadd.f32 %v12464, %v12951
    %v12953 = vpop.f32.mrb[0].mxu0
    %12954 = vmatprep.mubr.bf16.mxu0 %v12046
    %12955 = vmatmul.mubr.bf16.gmra.mrb[0].mxu0 %v12014
    %v12956 = vpop.f32.mrb[0].mxu0
    %v12957 = vadd.f32 %v12464, %v12956
    %v12958 = vpop.f32.mrb[0].mxu0
    %v12959 = vpop.f32.mrb[0].mxu0
    %v12960 = vadd.f32 %v12464, %v12959
    %v12961 = vpop.f32.mrb[0].mxu0
    %12962 = vmatprep.mubr.bf16.mxu0 %v12047
    %12963 = vmatmul.mubr.bf16.gmra.mrb[0].mxu0 %v12015
    %v12964 = vpop.f32.mrb[0].mxu0
    %v12965 = vadd.f32 %v12464, %v12964
    %v12966 = vpop.f32.mrb[0].mxu0
    %v12967 = vpop.f32.mrb[0].mxu0
    %v12968 = vadd.f32 %v12464, %v12967
    %v12969 = vpop.f32.mrb[0].mxu0
    %12970 = vmatprep.mubr.bf16.mxu0 %v12048
    %12971 = vmatmul.mubr.bf16.gmra.mrb[0].mxu0 %v12016
    %v12972 = vpop.f32.mrb[0].mxu0
    %v12973 = vadd.f32 %v12464, %v12972
    %v12974 = vpop.f32.mrb[0].mxu0
    %v12975 = vpop.f32.mrb[0].mxu0
    %v12976 = vadd.f32 %v12464, %v12975
    %v12977 = vpop.f32.mrb[0].mxu0
    %12978 = vmatprep.mubr.bf16.mxu0 %v12049
    %12979 = vmatmul.mubr.bf16.gmra.mrb[0].mxu0 %v12017
    %v12980 = vpop.f32.mrb[0].mxu0
    %v12981 = vadd.f32 %v12464, %v12980
    %v12982 = vpop.f32.mrb[0].mxu0
    %v12983 = vpop.f32.mrb[0].mxu0
    %v12984 = vadd.f32 %v12464, %v12983
    %v12985 = vpop.f32.mrb[0].mxu0
    %12986 = vmatprep.mubr.bf16.mxu0 %v12050
    %12987 = vmatmul.mubr.bf16.gmra.mrb[0].mxu0 %v12018
    %v12988 = vpop.f32.mrb[0].mxu0
    %v12989 = vadd.f32 %v12464, %v12988
    %v12990 = vpop.f32.mrb[0].mxu0
    %v12991 = vpop.f32.mrb[0].mxu0
    %v12992 = vadd.f32 %v12464, %v12991
    %v12993 = vpop.f32.mrb[0].mxu0
    %12994 = vdwg.mxu0
    %12995 = vmatprep.subr.bf16.mxu0 0
    %12996 = vmatpush1.bf16.msra.mxu0 %v12770
    %12997 = vmatprep.subr.bf16.mxu0 0
    %12998 = vmatpush1.bf16.msra.mxu0 %v12771
    %12999 = vmatprep.subr.bf16.mxu0 0
    %13000 = vmatpush1.bf16.msra.mxu0 %v12772
    %13001 = vmatprep.subr.bf16.mxu0 0
    %13002 = vmatpush1.bf16.msra.mxu0 %v12773
    %13003 = vmatprep.subr.bf16.mxu0 0
    %13004 = vmatpush1.bf16.msra.mxu0 %v12774
    %13005 = vmatprep.subr.bf16.mxu0 0
    %13006 = vmatpush1.bf16.msra.mxu0 %v12775
    %13007 = vmatprep.subr.bf16.mxu0 0
    %13008 = vmatpush1.bf16.msra.mxu0 %v12776
    %13009 = vmatprep.subr.bf16.mxu0 0
    %13010 = vmatpush1.bf16.msra.mxu0 %v12777
    %13011 = vmatprep.subr.bf16.mxu0 0
    %13012 = vmatpush1.bf16.msra.mxu0 %v12778
    %13013 = vmatprep.subr.bf16.mxu0 0
    %13014 = vmatpush1.bf16.msra.mxu0 %v12779
    %13015 = vmatprep.subr.bf16.mxu0 0
    %13016 = vmatpush1.bf16.msra.mxu0 %v12780
    %13017 = vmatprep.subr.bf16.mxu0 0
    %13018 = vmatpush1.bf16.msra.mxu0 %v12781
    %13019 = vmatprep.subr.bf16.mxu0 0
    %13020 = vmatpush1.bf16.msra.mxu0 %v12782
    %13021 = vmatprep.subr.bf16.mxu0 0
    %13022 = vmatpush1.bf16.msra.mxu0 %v12783
    %13023 = vmatprep.subr.bf16.mxu0 0
    %13024 = vmatpush1.bf16.msra.mxu0 %v12784
    %13025 = vmatprep.subr.bf16.mxu0 0
    %13026 = vmatpush1.bf16.msra.mxu0 %v12785
    %13027 = vmatprep.mubr.bf16.mxu0 %v12123
    %13028 = vmatmul.mubr.bf16.gmra.mrb[0].mxu0 %v12075
    %v13029 = vpop.f32.mrb[0].mxu0
    %v13030 = vadd.f32 %v12933, %v13029
    %v13031 = vpop.f32.mrb[0].mxu0
    %v13032 = vpop.f32.mrb[0].mxu0
    %v13033 = vadd.f32 %v12936, %v13032
    %v13034 = vpop.f32.mrb[0].mxu0
    %13035 = vmatprep.mubr.bf16.mxu0 %v12124
    %13036 = vmatmul.mubr.bf16.gmra.mrb[0].mxu0 %v12076
    %v13037 = vpop.f32.mrb[0].mxu0
    %v13038 = vadd.f32 %v12941, %v13037
    %v13039 = vpop.f32.mrb[0].mxu0
    %v13040 = vpop.f32.mrb[0].mxu0
    %v13041 = vadd.f32 %v12944, %v13040
    %v13042 = vpop.f32.mrb[0].mxu0
    %13043 = vmatprep.mubr.bf16.mxu0 %v12125
    %13044 = vmatmul.mubr.bf16.gmra.mrb[0].mxu0 %v12077
    %v13045 = vpop.f32.mrb[0].mxu0
    %v13046 = vadd.f32 %v12949, %v13045
    %v13047 = vpop.f32.mrb[0].mxu0
    %v13048 = vpop.f32.mrb[0].mxu0
    %v13049 = vadd.f32 %v12952, %v13048
    %v13050 = vpop.f32.mrb[0].mxu0
    %13051 = vmatprep.mubr.bf16.mxu0 %v12126
    %13052 = vmatmul.mubr.bf16.gmra.mrb[0].mxu0 %v12078
    %v13053 = vpop.f32.mrb[0].mxu0
    %v13054 = vadd.f32 %v12957, %v13053
    %v13055 = vpop.f32.mrb[0].mxu0
    %v13056 = vpop.f32.mrb[0].mxu0
    %v13057 = vadd.f32 %v12960, %v13056
    %v13058 = vpop.f32.mrb[0].mxu0
    %13059 = vmatprep.mubr.bf16.mxu0 %v12127
    %13060 = vmatmul.mubr.bf16.gmra.mrb[0].mxu0 %v12079
    %v13061 = vpop.f32.mrb[0].mxu0
    %v13062 = vadd.f32 %v12965, %v13061
    %v13063 = vpop.f32.mrb[0].mxu0
    %v13064 = vpop.f32.mrb[0].mxu0
    %v13065 = vadd.f32 %v12968, %v13064
    %v13066 = vpop.f32.mrb[0].mxu0
    %13067 = vmatprep.mubr.bf16.mxu0 %v12128
    %13068 = vmatmul.mubr.bf16.gmra.mrb[0].mxu0 %v12080
    %v13069 = vpop.f32.mrb[0].mxu0
    %v13070 = vadd.f32 %v12973, %v13069
    %v13071 = vpop.f32.mrb[0].mxu0
    %v13072 = vpop.f32.mrb[0].mxu0
    %v13073 = vadd.f32 %v12976, %v13072
    %v13074 = vpop.f32.mrb[0].mxu0
    %13075 = vmatprep.mubr.bf16.mxu0 %v12129
    %13076 = vmatmul.mubr.bf16.gmra.mrb[0].mxu0 %v12081
    %v13077 = vpop.f32.mrb[0].mxu0
    %v13078 = vadd.f32 %v12981, %v13077
    %v13079 = vpop.f32.mrb[0].mxu0
    %v13080 = vpop.f32.mrb[0].mxu0
    %v13081 = vadd.f32 %v12984, %v13080
    %v13082 = vpop.f32.mrb[0].mxu0
    %13083 = vmatprep.mubr.bf16.mxu0 %v12130
    %13084 = vmatmul.mubr.bf16.gmra.mrb[0].mxu0 %v12082
    %v13085 = vpop.f32.mrb[0].mxu0
    %v13086 = vadd.f32 %v12989, %v13085
    %v13087 = vpop.f32.mrb[0].mxu0
    %v13088 = vpop.f32.mrb[0].mxu0
    %v13089 = vadd.f32 %v12992, %v13088
    %v13090 = vpop.f32.mrb[0].mxu0
    %13091 = vdwg.mxu0
    %13092 = vmatprep.subr.bf16.mxu0 0
    %13093 = vmatpush1.bf16.msra.mxu0 %v12786
    %13094 = vmatprep.subr.bf16.mxu0 0
    %13095 = vmatpush1.bf16.msra.mxu0 %v12787
    %13096 = vmatprep.subr.bf16.mxu0 0
    %13097 = vmatpush1.bf16.msra.mxu0 %v12788
    %13098 = vmatprep.subr.bf16.mxu0 0
    %13099 = vmatpush1.bf16.msra.mxu0 %v12789
    %13100 = vmatprep.subr.bf16.mxu0 0
    %13101 = vmatpush1.bf16.msra.mxu0 %v12790
    %13102 = vmatprep.subr.bf16.mxu0 0
    %13103 = vmatpush1.bf16.msra.mxu0 %v12791
    %13104 = vmatprep.subr.bf16.mxu0 0
    %13105 = vmatpush1.bf16.msra.mxu0 %v12792
    %13106 = vmatprep.subr.bf16.mxu0 0
    %13107 = vmatpush1.bf16.msra.mxu0 %v12793
    %13108 = vmatprep.subr.bf16.mxu0 0
    %13109 = vmatpush1.bf16.msra.mxu0 %v12794
    %13110 = vmatprep.subr.bf16.mxu0 0
    %13111 = vmatpush1.bf16.msra.mxu0 %v12795
    %13112 = vmatprep.subr.bf16.mxu0 0
    %13113 = vmatpush1.bf16.msra.mxu0 %v12796
    %13114 = vmatprep.subr.bf16.mxu0 0
    %13115 = vmatpush1.bf16.msra.mxu0 %v12797
    %13116 = vmatprep.subr.bf16.mxu0 0
    %13117 = vmatpush1.bf16.msra.mxu0 %v12798
    %13118 = vmatprep.subr.bf16.mxu0 0
    %13119 = vmatpush1.bf16.msra.mxu0 %v12799
    %13120 = vmatprep.subr.bf16.mxu0 0
    %13121 = vmatpush1.bf16.msra.mxu0 %v12800
    %13122 = vmatprep.subr.bf16.mxu0 0
    %13123 = vmatpush1.bf16.msra.mxu0 %v12801
    %13124 = vmatprep.mubr.bf16.mxu0 %v12187
    %13125 = vmatmul.mubr.bf16.gmra.mrb[0].mxu0 %v12155
    %v13126 = vpop.f32.mrb[0].mxu0
    %v13127 = vadd.f32 %v13030, %v13126
    %v13128 = vpop.f32.mrb[0].mxu0
    %v13129 = vpop.f32.mrb[0].mxu0
    %v13130 = vadd.f32 %v13033, %v13129
    %v13131 = vpop.f32.mrb[0].mxu0
    %13132 = vmatprep.mubr.bf16.mxu0 %v12188
    %13133 = vmatmul.mubr.bf16.gmra.mrb[0].mxu0 %v12156
    %v13134 = vpop.f32.mrb[0].mxu0
    %v13135 = vadd.f32 %v13038, %v13134
    %v13136 = vpop.f32.mrb[0].mxu0
    %v13137 = vpop.f32.mrb[0].mxu0
    %v13138 = vadd.f32 %v13041, %v13137
    %v13139 = vpop.f32.mrb[0].mxu0
    %13140 = vmatprep.mubr.bf16.mxu0 %v12189
    %13141 = vmatmul.mubr.bf16.gmra.mrb[0].mxu0 %v12157
    %v13142 = vpop.f32.mrb[0].mxu0
    %v13143 = vadd.f32 %v13046, %v13142
    %v13144 = vpop.f32.mrb[0].mxu0
    %v13145 = vpop.f32.mrb[0].mxu0
    %v13146 = vadd.f32 %v13049, %v13145
    %v13147 = vpop.f32.mrb[0].mxu0
    %13148 = vmatprep.mubr.bf16.mxu0 %v12190
    %13149 = vmatmul.mubr.bf16.gmra.mrb[0].mxu0 %v12158
    %v13150 = vpop.f32.mrb[0].mxu0
    %v13151 = vadd.f32 %v13054, %v13150
    %v13152 = vpop.f32.mrb[0].mxu0
    %v13153 = vpop.f32.mrb[0].mxu0
    %v13154 = vadd.f32 %v13057, %v13153
    %v13155 = vpop.f32.mrb[0].mxu0
    %13156 = vmatprep.mubr.bf16.mxu0 %v12191
    %13157 = vmatmul.mubr.bf16.gmra.mrb[0].mxu0 %v12159
    %v13158 = vpop.f32.mrb[0].mxu0
    %v13159 = vadd.f32 %v13062, %v13158
    %v13160 = vpop.f32.mrb[0].mxu0
    %v13161 = vpop.f32.mrb[0].mxu0
    %v13162 = vadd.f32 %v13065, %v13161
    %v13163 = vpop.f32.mrb[0].mxu0
    %13164 = vmatprep.mubr.bf16.mxu0 %v12192
    %13165 = vmatmul.mubr.bf16.gmra.mrb[0].mxu0 %v12160
    %v13166 = vpop.f32.mrb[0].mxu0
    %v13167 = vadd.f32 %v13070, %v13166
    %v13168 = vpop.f32.mrb[0].mxu0
    %v13169 = vpop.f32.mrb[0].mxu0
    %v13170 = vadd.f32 %v13073, %v13169
    %v13171 = vpop.f32.mrb[0].mxu0
    %13172 = vmatprep.mubr.bf16.mxu0 %v12193
    %13173 = vmatmul.mubr.bf16.gmra.mrb[0].mxu0 %v12161
    %v13174 = vpop.f32.mrb[0].mxu0
    %v13175 = vadd.f32 %v13078, %v13174
    %v13176 = vpop.f32.mrb[0].mxu0
    %v13177 = vpop.f32.mrb[0].mxu0
    %v13178 = vadd.f32 %v13081, %v13177
    %v13179 = vpop.f32.mrb[0].mxu0
    %13180 = vmatprep.mubr.bf16.mxu0 %v12194
    %13181 = vmatmul.mubr.bf16.gmra.mrb[0].mxu0 %v12162
    %v13182 = vpop.f32.mrb[0].mxu0
    %v13183 = vadd.f32 %v13086, %v13182
    %v13184 = vpop.f32.mrb[0].mxu0
    %v13185 = vpop.f32.mrb[0].mxu0
    %v13186 = vadd.f32 %v13089, %v13185
    %v13187 = vpop.f32.mrb[0].mxu0
    %13188 = vdwg.mxu0
    %13189 = vmatprep.subr.bf16.mxu0 0
    %13190 = vmatpush1.bf16.msra.mxu0 %v12802
    %13191 = vmatprep.subr.bf16.mxu0 0
    %13192 = vmatpush1.bf16.msra.mxu0 %v12803
    %13193 = vmatprep.subr.bf16.mxu0 0
    %13194 = vmatpush1.bf16.msra.mxu0 %v12804
    %13195 = vmatprep.subr.bf16.mxu0 0
    %13196 = vmatpush1.bf16.msra.mxu0 %v12805
    %13197 = vmatprep.subr.bf16.mxu0 0
    %13198 = vmatpush1.bf16.msra.mxu0 %v12806
    %13199 = vmatprep.subr.bf16.mxu0 0
    %13200 = vmatpush1.bf16.msra.mxu0 %v12807
    %13201 = vmatprep.subr.bf16.mxu0 0
    %13202 = vmatpush1.bf16.msra.mxu0 %v12808
    %13203 = vmatprep.subr.bf16.mxu0 0
    %13204 = vmatpush1.bf16.msra.mxu0 %v12809
    %13205 = vmatprep.subr.bf16.mxu0 0
    %13206 = vmatpush1.bf16.msra.mxu0 %v12810
    %13207 = vmatprep.subr.bf16.mxu0 0
    %13208 = vmatpush1.bf16.msra.mxu0 %v12811
    %13209 = vmatprep.subr.bf16.mxu0 0
    %13210 = vmatpush1.bf16.msra.mxu0 %v12812
    %13211 = vmatprep.subr.bf16.mxu0 0
    %13212 = vmatpush1.bf16.msra.mxu0 %v12813
    %13213 = vmatprep.subr.bf16.mxu0 0
    %13214 = vmatpush1.bf16.msra.mxu0 %v12814
    %13215 = vmatprep.subr.bf16.mxu0 0
    %13216 = vmatpush1.bf16.msra.mxu0 %v12815
    %13217 = vmatprep.subr.bf16.mxu0 0
    %13218 = vmatpush1.bf16.msra.mxu0 %v12816
    %13219 = vmatprep.subr.bf16.mxu0 0
    %13220 = vmatpush1.bf16.msra.mxu0 %v12817
    %13221 = vmatprep.mubr.bf16.mxu0 %v12267
    %13222 = vmatmul.mubr.bf16.gmra.mrb[0].mxu0 %v12235
    %v13223 = vpop.f32.mrb[0].mxu0
    %v13224 = vadd.f32 %v13127, %v13223
    %v13225 = vpop.f32.mrb[0].mxu0
    %v13226 = vpop.f32.mrb[0].mxu0
    %v13227 = vadd.f32 %v13130, %v13226
    %v13228 = vpop.f32.mrb[0].mxu0
    %13229 = vmatprep.mubr.bf16.mxu0 %v12268
    %13230 = vmatmul.mubr.bf16.gmra.mrb[0].mxu0 %v12236
    %v13231 = vpop.f32.mrb[0].mxu0
    %v13232 = vadd.f32 %v13135, %v13231
    %v13233 = vpop.f32.mrb[0].mxu0
    %v13234 = vpop.f32.mrb[0].mxu0
    %v13235 = vadd.f32 %v13138, %v13234
    %v13236 = vpop.f32.mrb[0].mxu0
    %13237 = vmatprep.mubr.bf16.mxu0 %v12269
    %13238 = vmatmul.mubr.bf16.gmra.mrb[0].mxu0 %v12237
    %v13239 = vpop.f32.mrb[0].mxu0
    %v13240 = vadd.f32 %v13143, %v13239
    %v13241 = vpop.f32.mrb[0].mxu0
    %v13242 = vpop.f32.mrb[0].mxu0
    %v13243 = vadd.f32 %v13146, %v13242
    %v13244 = vpop.f32.mrb[0].mxu0
    %13245 = vmatprep.mubr.bf16.mxu0 %v12270
    %13246 = vmatmul.mubr.bf16.gmra.mrb[0].mxu0 %v12238
    %v13247 = vpop.f32.mrb[0].mxu0
    %v13248 = vadd.f32 %v13151, %v13247
    %v13249 = vpop.f32.mrb[0].mxu0
    %v13250 = vpop.f32.mrb[0].mxu0
    %v13251 = vadd.f32 %v13154, %v13250
    %v13252 = vpop.f32.mrb[0].mxu0
    %13253 = vmatprep.mubr.bf16.mxu0 %v12271
    %13254 = vmatmul.mubr.bf16.gmra.mrb[0].mxu0 %v12239
    %v13255 = vpop.f32.mrb[0].mxu0
    %v13256 = vadd.f32 %v13159, %v13255
    %v13257 = vpop.f32.mrb[0].mxu0
    %v13258 = vpop.f32.mrb[0].mxu0
    %v13259 = vadd.f32 %v13162, %v13258
    %v13260 = vpop.f32.mrb[0].mxu0
    %13261 = vmatprep.mubr.bf16.mxu0 %v12272
    %13262 = vmatmul.mubr.bf16.gmra.mrb[0].mxu0 %v12240
    %v13263 = vpop.f32.mrb[0].mxu0
    %v13264 = vadd.f32 %v13167, %v13263
    %v13265 = vpop.f32.mrb[0].mxu0
    %v13266 = vpop.f32.mrb[0].mxu0
    %v13267 = vadd.f32 %v13170, %v13266
    %v13268 = vpop.f32.mrb[0].mxu0
    %13269 = vmatprep.mubr.bf16.mxu0 %v12273
    %13270 = vmatmul.mubr.bf16.gmra.mrb[0].mxu0 %v12241
    %v13271 = vpop.f32.mrb[0].mxu0
    %v13272 = vadd.f32 %v13175, %v13271
    %v13273 = vpop.f32.mrb[0].mxu0
    %v13274 = vpop.f32.mrb[0].mxu0
    %v13275 = vadd.f32 %v13178, %v13274
    %v13276 = vpop.f32.mrb[0].mxu0
    %13277 = vmatprep.mubr.bf16.mxu0 %v12274
    %13278 = vmatmul.mubr.bf16.gmra.mrb[0].mxu0 %v12242
    %v13279 = vpop.f32.mrb[0].mxu0
    %v13280 = vadd.f32 %v13183, %v13279
    %v13281 = vpop.f32.mrb[0].mxu0
    %v13282 = vpop.f32.mrb[0].mxu0
    %v13283 = vadd.f32 %v13186, %v13282
    %v13284 = vpop.f32.mrb[0].mxu0
    %13285 = vdwg.mxu0
    %13286 = vmatprep.subr.bf16.mxu0 0
    %13287 = vmatpush1.bf16.msra.mxu0 %v12818
    %13288 = vmatprep.subr.bf16.mxu0 0
    %13289 = vmatpush1.bf16.msra.mxu0 %v12819
    %13290 = vmatprep.subr.bf16.mxu0 0
    %13291 = vmatpush1.bf16.msra.mxu0 %v12820
    %13292 = vmatprep.subr.bf16.mxu0 0
    %13293 = vmatpush1.bf16.msra.mxu0 %v12821
    %13294 = vmatprep.subr.bf16.mxu0 0
    %13295 = vmatpush1.bf16.msra.mxu0 %v12822
    %13296 = vmatprep.subr.bf16.mxu0 0
    %13297 = vmatpush1.bf16.msra.mxu0 %v12823
    %13298 = vmatprep.subr.bf16.mxu0 0
    %13299 = vmatpush1.bf16.msra.mxu0 %v12824
    %13300 = vmatprep.subr.bf16.mxu0 0
    %13301 = vmatpush1.bf16.msra.mxu0 %v12825
    %13302 = vmatprep.subr.bf16.mxu0 0
    %13303 = vmatpush1.bf16.msra.mxu0 0
    %13304 = vmatprep.subr.bf16.mxu0 0
    %13305 = vmatpush1.bf16.msra.mxu0 0
    %13306 = vmatprep.subr.bf16.mxu0 0
    %13307 = vmatpush1.bf16.msra.mxu0 0
    %13308 = vmatprep.subr.bf16.mxu0 0
    %13309 = vmatpush1.bf16.msra.mxu0 0
    %13310 = vmatprep.subr.bf16.mxu0 0
    %13311 = vmatpush1.bf16.msra.mxu0 0
    %13312 = vmatprep.subr.bf16.mxu0 0
    %13313 = vmatpush1.bf16.msra.mxu0 0
    %13314 = vmatprep.subr.bf16.mxu0 0
    %13315 = vmatpush1.bf16.msra.mxu0 0
    %13316 = vmatprep.subr.bf16.mxu0 0
    %13317 = vmatpush1.bf16.msra.mxu0 0
    %13318 = vmatprep.mubr.bf16.mxu0 0
    %13319 = vmatmul.mubr.bf16.gmra.mrb[0].mxu0 %v12299
    %v13320 = vpop.f32.mrb[0].mxu0
    %v13321 = vadd.f32 %v13224, %v13320
    %v13322 = vpop.f32.mrb[0].mxu0
    %v13323 = vpop.f32.mrb[0].mxu0
    %v13324 = vadd.f32 %v13227, %v13323
    %v13325 = vpop.f32.mrb[0].mxu0
    %13326 = vmatprep.mubr.bf16.mxu0 0
    %13327 = vmatmul.mubr.bf16.gmra.mrb[0].mxu0 %v12300
    %v13328 = vpop.f32.mrb[0].mxu0
    %v13329 = vadd.f32 %v13232, %v13328
    %v13330 = vpop.f32.mrb[0].mxu0
    %v13331 = vpop.f32.mrb[0].mxu0
    %v13332 = vadd.f32 %v13235, %v13331
    %v13333 = vpop.f32.mrb[0].mxu0
    %13334 = vmatprep.mubr.bf16.mxu0 0
    %13335 = vmatmul.mubr.bf16.gmra.mrb[0].mxu0 %v12301
    %v13336 = vpop.f32.mrb[0].mxu0
    %v13337 = vadd.f32 %v13240, %v13336
    %v13338 = vpop.f32.mrb[0].mxu0
    %v13339 = vpop.f32.mrb[0].mxu0
    %v13340 = vadd.f32 %v13243, %v13339
    %v13341 = vpop.f32.mrb[0].mxu0
    %13342 = vmatprep.mubr.bf16.mxu0 0
    %13343 = vmatmul.mubr.bf16.gmra.mrb[0].mxu0 %v12302
    %v13344 = vpop.f32.mrb[0].mxu0
    %v13345 = vadd.f32 %v13248, %v13344
    %v13346 = vpop.f32.mrb[0].mxu0
    %v13347 = vpop.f32.mrb[0].mxu0
    %v13348 = vadd.f32 %v13251, %v13347
    %v13349 = vpop.f32.mrb[0].mxu0
    %13350 = vmatprep.mubr.bf16.mxu0 0
    %13351 = vmatmul.mubr.bf16.gmra.mrb[0].mxu0 %v12303
    %v13352 = vpop.f32.mrb[0].mxu0
    %v13353 = vadd.f32 %v13256, %v13352
    %v13354 = vpop.f32.mrb[0].mxu0
    %v13355 = vpop.f32.mrb[0].mxu0
    %v13356 = vadd.f32 %v13259, %v13355
    %v13357 = vpop.f32.mrb[0].mxu0
    %13358 = vmatprep.mubr.bf16.mxu0 0
    %13359 = vmatmul.mubr.bf16.gmra.mrb[0].mxu0 %v12304
    %v13360 = vpop.f32.mrb[0].mxu0
    %v13361 = vadd.f32 %v13264, %v13360
    %v13362 = vpop.f32.mrb[0].mxu0
    %v13363 = vpop.f32.mrb[0].mxu0
    %v13364 = vadd.f32 %v13267, %v13363
    %v13365 = vpop.f32.mrb[0].mxu0
    %13366 = vmatprep.mubr.bf16.mxu0 0
    %13367 = vmatmul.mubr.bf16.gmra.mrb[0].mxu0 %v12305
    %v13368 = vpop.f32.mrb[0].mxu0
    %v13369 = vadd.f32 %v13272, %v13368
    %v13370 = vpop.f32.mrb[0].mxu0
    %v13371 = vpop.f32.mrb[0].mxu0
    %v13372 = vadd.f32 %v13275, %v13371
    %v13373 = vpop.f32.mrb[0].mxu0
    %13374 = vmatprep.mubr.bf16.mxu0 0
    %13375 = vmatmul.mubr.bf16.gmra.mrb[0].mxu0 %v12306
    %v13376 = vpop.f32.mrb[0].mxu0
    %v13377 = vadd.f32 %v13280, %v13376
    %v13378 = vpop.f32.mrb[0].mxu0
    %v13379 = vpop.f32.mrb[0].mxu0
    %v13380 = vadd.f32 %v13283, %v13379
    %v13381 = vpop.f32.mrb[0].mxu0
    %13382 = vdwg.mxu0
    %v13383 = vxor.u32 %v13321, 2147483648
    %v13384 = vxor.u32 %v13324, 2147483648
    %v13385 = vxor.u32 %v13329, 2147483648
    %v13386 = vxor.u32 %v13332, 2147483648
    %v13387 = vxor.u32 %v13337, 2147483648
    %v13388 = vxor.u32 %v13340, 2147483648
    %v13389 = vxor.u32 %v13345, 2147483648
    %v13390 = vxor.u32 %v13348, 2147483648
    %v13391 = vxor.u32 %v13353, 2147483648
    %v13392 = vxor.u32 %v13356, 2147483648
    %v13393 = vxor.u32 %v13361, 2147483648
    %v13394 = vxor.u32 %v13364, 2147483648
    %v13395 = vxor.u32 %v13369, 2147483648
    %v13396 = vxor.u32 %v13372, 2147483648
    %v13397 = vxor.u32 %v13377, 2147483648
    %v13398 = vxor.u32 %v13380, 2147483648
    %v13399 = vmul.f32 %v13383, 1.442695
    %v13400 = vpow.pop %v13399
    %v13401 = vmul.f32 %v13384, 1.442695
    %v13402 = vpow.pop %v13401
    %v13403 = vmul.f32 %v13385, 1.442695
    %v13404 = vpow.pop %v13403
    %v13405 = vmul.f32 %v13386, 1.442695
    %v13406 = vpow.pop %v13405
    %v13407 = vmul.f32 %v13387, 1.442695
    %v13408 = vpow.pop %v13407
    %v13409 = vmul.f32 %v13388, 1.442695
    %v13410 = vpow.pop %v13409
    %v13411 = vmul.f32 %v13389, 1.442695
    %v13412 = vpow.pop %v13411
    %v13413 = vmul.f32 %v13390, 1.442695
    %v13414 = vpow.pop %v13413
    %v13415 = vmul.f32 %v13391, 1.442695
    %v13416 = vpow.pop %v13415
    %v13417 = vmul.f32 %v13392, 1.442695
    %v13418 = vpow.pop %v13417
    %v13419 = vmul.f32 %v13393, 1.442695
    %v13420 = vpow.pop %v13419
    %v13421 = vmul.f32 %v13394, 1.442695
    %v13422 = vpow.pop %v13421
    %v13423 = vmul.f32 %v13395, 1.442695
    %v13424 = vpow.pop %v13423
    %v13425 = vmul.f32 %v13396, 1.442695
    %v13426 = vpow.pop %v13425
    %v13427 = vmul.f32 %v13397, 1.442695
    %v13428 = vpow.pop %v13427
    %v13429 = vmul.f32 %v13398, 1.442695
    %v13430 = vpow.pop %v13429
    %v13431 = vadd.f32 %v13400, 1.0
    %v13432 = vadd.f32 %v13402, 1.0
    %v13433 = vadd.f32 %v13404, 1.0
    %v13434 = vadd.f32 %v13406, 1.0
    %v13435 = vadd.f32 %v13408, 1.0
    %v13436 = vadd.f32 %v13410, 1.0
    %v13437 = vadd.f32 %v13412, 1.0
    %v13438 = vadd.f32 %v13414, 1.0
    %v13439 = vadd.f32 %v13416, 1.0
    %v13440 = vadd.f32 %v13418, 1.0
    %v13441 = vadd.f32 %v13420, 1.0
    %v13442 = vadd.f32 %v13422, 1.0
    %v13443 = vadd.f32 %v13424, 1.0
    %v13444 = vadd.f32 %v13426, 1.0
    %v13445 = vadd.f32 %v13428, 1.0
    %v13446 = vadd.f32 %v13430, 1.0
    %v13447 = vrcp.pop %v13431
    %v13448 = vmul.f32 1.0, %v13447
    %v13449 = vrcp.pop %v13432
    %v13450 = vmul.f32 1.0, %v13449
    %v13451 = vrcp.pop %v13433
    %v13452 = vmul.f32 1.0, %v13451
    %v13453 = vrcp.pop %v13434
    %v13454 = vmul.f32 1.0, %v13453
    %v13455 = vrcp.pop %v13435
    %v13456 = vmul.f32 1.0, %v13455
    %v13457 = vrcp.pop %v13436
    %v13458 = vmul.f32 1.0, %v13457
    %v13459 = vrcp.pop %v13437
    %v13460 = vmul.f32 1.0, %v13459
    %v13461 = vrcp.pop %v13438
    %v13462 = vmul.f32 1.0, %v13461
    %v13463 = vrcp.pop %v13439
    %v13464 = vmul.f32 1.0, %v13463
    %v13465 = vrcp.pop %v13440
    %v13466 = vmul.f32 1.0, %v13465
    %v13467 = vrcp.pop %v13441
    %v13468 = vmul.f32 1.0, %v13467
    %v13469 = vrcp.pop %v13442
    %v13470 = vmul.f32 1.0, %v13469
    %v13471 = vrcp.pop %v13443
    %v13472 = vmul.f32 1.0, %v13471
    %v13473 = vrcp.pop %v13444
    %v13474 = vmul.f32 1.0, %v13473
    %v13475 = vrcp.pop %v13445
    %v13476 = vmul.f32 1.0, %v13475
    %v13477 = vrcp.pop %v13446
    %v13478 = vmul.f32 1.0, %v13477
    %vm13479 = vcmask 130048
    %13480 = vst.msk [vmem:[#allocation4] sm:$0xff] %vm13479, %v13448
    %13481 = vst.msk [vmem:[#allocation4 + $0x8] sm:$0xff] %vm13479, %v13450
    %13482 = vst.msk [vmem:[#allocation4 + $0x10] sm:$0xff] %vm13479, %v13452
    %13483 = vst.msk [vmem:[#allocation4 + $0x18] sm:$0xff] %vm13479, %v13454
    %13484 = vst.msk [vmem:[#allocation4 + $0x20] sm:$0xff] %vm13479, %v13456
    %13485 = vst.msk [vmem:[#allocation4 + $0x28] sm:$0xff] %vm13479, %v13458
    %13486 = vst.msk [vmem:[#allocation4 + $0x30] sm:$0xff] %vm13479, %v13460
    %13487 = vst.msk [vmem:[#allocation4 + $0x38] sm:$0xff] %vm13479, %v13462
    %13488 = vst.msk [vmem:[#allocation4 + $0x40] sm:$0xff] %vm13479, %v13464
    %13489 = vst.msk [vmem:[#allocation4 + $0x48] sm:$0xff] %vm13479, %v13466
    %13490 = vst.msk [vmem:[#allocation4 + $0x50] sm:$0xff] %vm13479, %v13468
    %13491 = vst.msk [vmem:[#allocation4 + $0x58] sm:$0xff] %vm13479, %v13470
    %13492 = vst.msk [vmem:[#allocation4 + $0x60] sm:$0xff] %vm13479, %v13472
    %13493 = vst.msk [vmem:[#allocation4 + $0x68] sm:$0xff] %vm13479, %v13474
    %13494 = vst.msk [vmem:[#allocation4 + $0x70] sm:$0xff] %vm13479, %v13476
    %13495 = vst.msk [vmem:[#allocation4 + $0x78] sm:$0xff] %vm13479, %v13478
    %v13496 = vld [vmem:[#allocation4] sm:$0x1]
    %v13497 = vld [vmem:[#allocation4 + $0x8] sm:$0x1]
    %v13498 = vld [vmem:[#allocation4 + $0x10] sm:$0x1]
    %v13499 = vld [vmem:[#allocation4 + $0x18] sm:$0x1]
    %v13500 = vld [vmem:[#allocation4 + $0x20] sm:$0x1]
    %v13501 = vld [vmem:[#allocation4 + $0x28] sm:$0x1]
    %v13502 = vld [vmem:[#allocation4 + $0x30] sm:$0x1]
    %v13503 = vld [vmem:[#allocation4 + $0x38] sm:$0x1]
    %v13504 = vld [vmem:[#allocation4 + $0x40] sm:$0x1]
    %v13505 = vld [vmem:[#allocation4 + $0x48] sm:$0x1]
    %v13506 = vld [vmem:[#allocation4 + $0x50] sm:$0x1]
    %v13507 = vld [vmem:[#allocation4 + $0x58] sm:$0x1]
    %v13508 = vld [vmem:[#allocation4 + $0x60] sm:$0x1]
    %v13509 = vld [vmem:[#allocation4 + $0x68] sm:$0x1]
    %v13510 = vld [vmem:[#allocation4 + $0x70] sm:$0x1]
    %v13511 = vld [vmem:[#allocation4 + $0x78] sm:$0x1]
    %v13512 = vld [vmem:[#allocation4 + $0x1] sm:$0x1]
    %v13513 = vld [vmem:[#allocation4 + $0x9] sm:$0x1]
    %v13514 = vld [vmem:[#allocation4 + $0x11] sm:$0x1]
    %v13515 = vld [vmem:[#allocation4 + $0x19] sm:$0x1]
    %v13516 = vld [vmem:[#allocation4 + $0x21] sm:$0x1]
    %v13517 = vld [vmem:[#allocation4 + $0x29] sm:$0x1]
    %v13518 = vld [vmem:[#allocation4 + $0x31] sm:$0x1]
    %v13519 = vld [vmem:[#allocation4 + $0x39] sm:$0x1]
    %v13520 = vld [vmem:[#allocation4 + $0x41] sm:$0x1]
    %v13521 = vld [vmem:[#allocation4 + $0x49] sm:$0x1]
    %v13522 = vld [vmem:[#allocation4 + $0x51] sm:$0x1]
    %v13523 = vld [vmem:[#allocation4 + $0x59] sm:$0x1]
    %v13524 = vld [vmem:[#allocation4 + $0x61] sm:$0x1]
    %v13525 = vld [vmem:[#allocation4 + $0x69] sm:$0x1]
    %v13526 = vld [vmem:[#allocation4 + $0x71] sm:$0x1]
    %v13527 = vld [vmem:[#allocation4 + $0x79] sm:$0x1]
    %v13528 = vld [vmem:[#allocation4 + $0x2] sm:$0x1]
    %v13529 = vld [vmem:[#allocation4 + $0xa] sm:$0x1]
    %v13530 = vld [vmem:[#allocation4 + $0x12] sm:$0x1]
    %v13531 = vld [vmem:[#allocation4 + $0x1a] sm:$0x1]
    %v13532 = vld [vmem:[#allocation4 + $0x22] sm:$0x1]
    %v13533 = vld [vmem:[#allocation4 + $0x2a] sm:$0x1]
    %v13534 = vld [vmem:[#allocation4 + $0x32] sm:$0x1]
    %v13535 = vld [vmem:[#allocation4 + $0x3a] sm:$0x1]
    %v13536 = vld [vmem:[#allocation4 + $0x42] sm:$0x1]
    %v13537 = vld [vmem:[#allocation4 + $0x4a] sm:$0x1]
    %v13538 = vld [vmem:[#allocation4 + $0x52] sm:$0x1]
    %v13539 = vld [vmem:[#allocation4 + $0x5a] sm:$0x1]
    %v13540 = vld [vmem:[#allocation4 + $0x62] sm:$0x1]
    %v13541 = vld [vmem:[#allocation4 + $0x6a] sm:$0x1]
    %v13542 = vld [vmem:[#allocation4 + $0x72] sm:$0x1]
    %v13543 = vld [vmem:[#allocation4 + $0x7a] sm:$0x1]
    %v13544 = vld [vmem:[#allocation4 + $0x3] sm:$0x1]
    %v13545 = vld [vmem:[#allocation4 + $0xb] sm:$0x1]
    %v13546 = vld [vmem:[#allocation4 + $0x13] sm:$0x1]
    %v13547 = vld [vmem:[#allocation4 + $0x1b] sm:$0x1]
    %v13548 = vld [vmem:[#allocation4 + $0x23] sm:$0x1]
    %v13549 = vld [vmem:[#allocation4 + $0x2b] sm:$0x1]
    %v13550 = vld [vmem:[#allocation4 + $0x33] sm:$0x1]
    %v13551 = vld [vmem:[#allocation4 + $0x3b] sm:$0x1]
    %v13552 = vld [vmem:[#allocation4 + $0x43] sm:$0x1]
    %v13553 = vld [vmem:[#allocation4 + $0x4b] sm:$0x1]
    %v13554 = vld [vmem:[#allocation4 + $0x53] sm:$0x1]
    %v13555 = vld [vmem:[#allocation4 + $0x5b] sm:$0x1]
    %v13556 = vld [vmem:[#allocation4 + $0x63] sm:$0x1]
    %v13557 = vld [vmem:[#allocation4 + $0x6b] sm:$0x1]
    %v13558 = vld [vmem:[#allocation4 + $0x73] sm:$0x1]
    %v13559 = vld [vmem:[#allocation4 + $0x7b] sm:$0x1]
    %v13560 = vld [vmem:[#allocation4 + $0x4] sm:$0x1]
    %v13561 = vld [vmem:[#allocation4 + $0xc] sm:$0x1]
    %v13562 = vld [vmem:[#allocation4 + $0x14] sm:$0x1]
    %v13563 = vld [vmem:[#allocation4 + $0x1c] sm:$0x1]
    %v13564 = vld [vmem:[#allocation4 + $0x24] sm:$0x1]
    %v13565 = vld [vmem:[#allocation4 + $0x2c] sm:$0x1]
    %v13566 = vld [vmem:[#allocation4 + $0x34] sm:$0x1]
    %v13567 = vld [vmem:[#allocation4 + $0x3c] sm:$0x1]
    %v13568 = vld [vmem:[#allocation4 + $0x44] sm:$0x1]
    %v13569 = vld [vmem:[#allocation4 + $0x4c] sm:$0x1]
    %v13570 = vld [vmem:[#allocation4 + $0x54] sm:$0x1]
    %v13571 = vld [vmem:[#allocation4 + $0x5c] sm:$0x1]
    %v13572 = vld [vmem:[#allocation4 + $0x64] sm:$0x1]
    %v13573 = vld [vmem:[#allocation4 + $0x6c] sm:$0x1]
    %v13574 = vld [vmem:[#allocation4 + $0x74] sm:$0x1]
    %v13575 = vld [vmem:[#allocation4 + $0x7c] sm:$0x1]
    %v13576 = vld [vmem:[#allocation4 + $0x5] sm:$0x1]
    %v13577 = vld [vmem:[#allocation4 + $0xd] sm:$0x1]
    %v13578 = vld [vmem:[#allocation4 + $0x15] sm:$0x1]
    %v13579 = vld [vmem:[#allocation4 + $0x1d] sm:$0x1]
    %v13580 = vld [vmem:[#allocation4 + $0x25] sm:$0x1]
    %v13581 = vld [vmem:[#allocation4 + $0x2d] sm:$0x1]
    %v13582 = vld [vmem:[#allocation4 + $0x35] sm:$0x1]
    %v13583 = vld [vmem:[#allocation4 + $0x3d] sm:$0x1]
    %v13584 = vld [vmem:[#allocation4 + $0x45] sm:$0x1]
    %v13585 = vld [vmem:[#allocation4 + $0x4d] sm:$0x1]
    %v13586 = vld [vmem:[#allocation4 + $0x55] sm:$0x1]
    %v13587 = vld [vmem:[#allocation4 + $0x5d] sm:$0x1]
    %v13588 = vld [vmem:[#allocation4 + $0x65] sm:$0x1]
    %v13589 = vld [vmem:[#allocation4 + $0x6d] sm:$0x1]
    %v13590 = vld [vmem:[#allocation4 + $0x75] sm:$0x1]
    %v13591 = vld [vmem:[#allocation4 + $0x7d] sm:$0x1]
    %v13592 = vld [vmem:[#allocation4 + $0x6] sm:$0x1]
    %v13593 = vld [vmem:[#allocation4 + $0xe] sm:$0x1]
    %v13594 = vld [vmem:[#allocation4 + $0x16] sm:$0x1]
    %v13595 = vld [vmem:[#allocation4 + $0x1e] sm:$0x1]
    %v13596 = vld [vmem:[#allocation4 + $0x26] sm:$0x1]
    %v13597 = vld [vmem:[#allocation4 + $0x2e] sm:$0x1]
    %v13598 = vld [vmem:[#allocation4 + $0x36] sm:$0x1]
    %v13599 = vld [vmem:[#allocation4 + $0x3e] sm:$0x1]
    %v13600 = vld [vmem:[#allocation4 + $0x46] sm:$0x1]
    %v13601 = vld [vmem:[#allocation4 + $0x4e] sm:$0x1]
    %v13602 = vld [vmem:[#allocation4 + $0x56] sm:$0x1]
    %v13603 = vld [vmem:[#allocation4 + $0x5e] sm:$0x1]
    %v13604 = vld [vmem:[#allocation4 + $0x66] sm:$0x1]
    %v13605 = vld [vmem:[#allocation4 + $0x6e] sm:$0x1]
    %v13606 = vld [vmem:[#allocation4 + $0x76] sm:$0x1]
    %v13607 = vld [vmem:[#allocation4 + $0x7e] sm:$0x1]
    %v13608 = vld [vmem:[#allocation4 + $0x7] sm:$0x1]
    %v13609 = vld [vmem:[#allocation4 + $0xf] sm:$0x1]
    %v13610 = vld [vmem:[#allocation4 + $0x17] sm:$0x1]
    %v13611 = vld [vmem:[#allocation4 + $0x1f] sm:$0x1]
    %v13612 = vld [vmem:[#allocation4 + $0x27] sm:$0x1]
    %v13613 = vld [vmem:[#allocation4 + $0x2f] sm:$0x1]
    %v13614 = vld [vmem:[#allocation4 + $0x37] sm:$0x1]
    %v13615 = vld [vmem:[#allocation4 + $0x3f] sm:$0x1]
    %v13616 = vld [vmem:[#allocation4 + $0x47] sm:$0x1]
    %v13617 = vld [vmem:[#allocation4 + $0x4f] sm:$0x1]
    %v13618 = vld [vmem:[#allocation4 + $0x57] sm:$0x1]
    %v13619 = vld [vmem:[#allocation4 + $0x5f] sm:$0x1]
    %v13620 = vld [vmem:[#allocation4 + $0x67] sm:$0x1]
    %v13621 = vld [vmem:[#allocation4 + $0x6f] sm:$0x1]
    %v13622 = vld [vmem:[#allocation4 + $0x77] sm:$0x1]
    %v13623 = vld [vmem:[#allocation4 + $0x7f] sm:$0x1]
    %v13640 = vrot.slane %v13497, 7
    %vm13641 = vcmask 1041409
    %v13642 = vsel %vm13641, %v13640, %v13496
    %v13643 = vrot.slane %v13498, 6
    %vm13644 = vcmask 1042434
    %v13645 = vsel %vm13644, %v13643, %v13642
    %v13646 = vrot.slane %v13499, 5
    %vm13647 = vcmask 1043459
    %v13648 = vsel %vm13647, %v13646, %v13645
    %v13649 = vrot.slane %v13500, 4
    %vm13650 = vcmask 1044484
    %v13651 = vsel %vm13650, %v13649, %v13648
    %v13652 = vrot.slane %v13501, 3
    %vm13653 = vcmask 1045509
    %v13654 = vsel %vm13653, %v13652, %v13651
    %v13655 = vrot.slane %v13502, 2
    %vm13656 = vcmask 1046534
    %v13657 = vsel %vm13656, %v13655, %v13654
    %v13658 = vrot.slane %v13503, 1
    %vm13659 = vcmask 1047559
    %v13660 = vsel %vm13659, %v13658, %v13657
    %v13661 = vrot.slane %v13505, 7
    %v13662 = vsel %vm13641, %v13661, %v13504
    %v13663 = vrot.slane %v13506, 6
    %v13664 = vsel %vm13644, %v13663, %v13662
    %v13665 = vrot.slane %v13507, 5
    %v13666 = vsel %vm13647, %v13665, %v13664
    %v13667 = vrot.slane %v13508, 4
    %v13668 = vsel %vm13650, %v13667, %v13666
    %v13669 = vrot.slane %v13509, 3
    %v13670 = vsel %vm13653, %v13669, %v13668
    %v13671 = vrot.slane %v13510, 2
    %v13672 = vsel %vm13656, %v13671, %v13670
    %v13673 = vrot.slane %v13511, 1
    %v13674 = vsel %vm13659, %v13673, %v13672
    %v13693 = vrot.slane %v13513, 7
    %v13694 = vsel %vm13641, %v13693, %v13512
    %v13695 = vrot.slane %v13514, 6
    %v13696 = vsel %vm13644, %v13695, %v13694
    %v13697 = vrot.slane %v13515, 5
    %v13698 = vsel %vm13647, %v13697, %v13696
    %v13699 = vrot.slane %v13516, 4
    %v13700 = vsel %vm13650, %v13699, %v13698
    %v13701 = vrot.slane %v13517, 3
    %v13702 = vsel %vm13653, %v13701, %v13700
    %v13703 = vrot.slane %v13518, 2
    %v13704 = vsel %vm13656, %v13703, %v13702
    %v13705 = vrot.slane %v13519, 1
    %v13706 = vsel %vm13659, %v13705, %v13704
    %v13707 = vrot.slane %v13521, 7
    %v13708 = vsel %vm13641, %v13707, %v13520
    %v13709 = vrot.slane %v13522, 6
    %v13710 = vsel %vm13644, %v13709, %v13708
    %v13711 = vrot.slane %v13523, 5
    %v13712 = vsel %vm13647, %v13711, %v13710
    %v13713 = vrot.slane %v13524, 4
    %v13714 = vsel %vm13650, %v13713, %v13712
    %v13715 = vrot.slane %v13525, 3
    %v13716 = vsel %vm13653, %v13715, %v13714
    %v13717 = vrot.slane %v13526, 2
    %v13718 = vsel %vm13656, %v13717, %v13716
    %v13719 = vrot.slane %v13527, 1
    %v13720 = vsel %vm13659, %v13719, %v13718
    %13721 = vrot.lane.b32.xlu0 %v13706, 4
    %v13722 = vpop.permute.xlu0 %13721
    %13723 = vrot.lane.b32.xlu0 %v13720, 4
    %v13724 = vpop.permute.xlu0 %13723
    %v13743 = vrot.slane %v13529, 7
    %v13744 = vsel %vm13641, %v13743, %v13528
    %v13745 = vrot.slane %v13530, 6
    %v13746 = vsel %vm13644, %v13745, %v13744
    %v13747 = vrot.slane %v13531, 5
    %v13748 = vsel %vm13647, %v13747, %v13746
    %v13749 = vrot.slane %v13532, 4
    %v13750 = vsel %vm13650, %v13749, %v13748
    %v13751 = vrot.slane %v13533, 3
    %v13752 = vsel %vm13653, %v13751, %v13750
    %v13753 = vrot.slane %v13534, 2
    %v13754 = vsel %vm13656, %v13753, %v13752
    %v13755 = vrot.slane %v13535, 1
    %v13756 = vsel %vm13659, %v13755, %v13754
    %v13757 = vrot.slane %v13537, 7
    %v13758 = vsel %vm13641, %v13757, %v13536
    %v13759 = vrot.slane %v13538, 6
    %v13760 = vsel %vm13644, %v13759, %v13758
    %v13761 = vrot.slane %v13539, 5
    %v13762 = vsel %vm13647, %v13761, %v13760
    %v13763 = vrot.slane %v13540, 4
    %v13764 = vsel %vm13650, %v13763, %v13762
    %v13765 = vrot.slane %v13541, 3
    %v13766 = vsel %vm13653, %v13765, %v13764
    %v13767 = vrot.slane %v13542, 2
    %v13768 = vsel %vm13656, %v13767, %v13766
    %v13769 = vrot.slane %v13543, 1
    %v13770 = vsel %vm13659, %v13769, %v13768
    %13771 = vrot.lane.b32.xlu0 %v13756, 8
    %v13772 = vpop.permute.xlu0 %13771
    %13773 = vrot.lane.b32.xlu0 %v13770, 8
    %v13774 = vpop.permute.xlu0 %13773
    %v13793 = vrot.slane %v13545, 7
    %v13794 = vsel %vm13641, %v13793, %v13544
    %v13795 = vrot.slane %v13546, 6
    %v13796 = vsel %vm13644, %v13795, %v13794
    %v13797 = vrot.slane %v13547, 5
    %v13798 = vsel %vm13647, %v13797, %v13796
    %v13799 = vrot.slane %v13548, 4
    %v13800 = vsel %vm13650, %v13799, %v13798
    %v13801 = vrot.slane %v13549, 3
    %v13802 = vsel %vm13653, %v13801, %v13800
    %v13803 = vrot.slane %v13550, 2
    %v13804 = vsel %vm13656, %v13803, %v13802
    %v13805 = vrot.slane %v13551, 1
    %v13806 = vsel %vm13659, %v13805, %v13804
    %v13807 = vrot.slane %v13553, 7
    %v13808 = vsel %vm13641, %v13807, %v13552
    %v13809 = vrot.slane %v13554, 6
    %v13810 = vsel %vm13644, %v13809, %v13808
    %v13811 = vrot.slane %v13555, 5
    %v13812 = vsel %vm13647, %v13811, %v13810
    %v13813 = vrot.slane %v13556, 4
    %v13814 = vsel %vm13650, %v13813, %v13812
    %v13815 = vrot.slane %v13557, 3
    %v13816 = vsel %vm13653, %v13815, %v13814
    %v13817 = vrot.slane %v13558, 2
    %v13818 = vsel %vm13656, %v13817, %v13816
    %v13819 = vrot.slane %v13559, 1
    %v13820 = vsel %vm13659, %v13819, %v13818
    %13821 = vrot.lane.b32.xlu0 %v13806, 12
    %v13822 = vpop.permute.xlu0 %13821
    %13823 = vrot.lane.b32.xlu0 %v13820, 12
    %v13824 = vpop.permute.xlu0 %13823
    %v13843 = vrot.slane %v13561, 7
    %v13844 = vsel %vm13641, %v13843, %v13560
    %v13845 = vrot.slane %v13562, 6
    %v13846 = vsel %vm13644, %v13845, %v13844
    %v13847 = vrot.slane %v13563, 5
    %v13848 = vsel %vm13647, %v13847, %v13846
    %v13849 = vrot.slane %v13564, 4
    %v13850 = vsel %vm13650, %v13849, %v13848
    %v13851 = vrot.slane %v13565, 3
    %v13852 = vsel %vm13653, %v13851, %v13850
    %v13853 = vrot.slane %v13566, 2
    %v13854 = vsel %vm13656, %v13853, %v13852
    %v13855 = vrot.slane %v13567, 1
    %v13856 = vsel %vm13659, %v13855, %v13854
    %v13857 = vrot.slane %v13569, 7
    %v13858 = vsel %vm13641, %v13857, %v13568
    %v13859 = vrot.slane %v13570, 6
    %v13860 = vsel %vm13644, %v13859, %v13858
    %v13861 = vrot.slane %v13571, 5
    %v13862 = vsel %vm13647, %v13861, %v13860
    %v13863 = vrot.slane %v13572, 4
    %v13864 = vsel %vm13650, %v13863, %v13862
    %v13865 = vrot.slane %v13573, 3
    %v13866 = vsel %vm13653, %v13865, %v13864
    %v13867 = vrot.slane %v13574, 2
    %v13868 = vsel %vm13656, %v13867, %v13866
    %v13869 = vrot.slane %v13575, 1
    %v13870 = vsel %vm13659, %v13869, %v13868
    %13871 = vrot.lane.b32.xlu0 %v13856, 16
    %v13872 = vpop.permute.xlu0 %13871
    %13873 = vrot.lane.b32.xlu0 %v13870, 16
    %v13874 = vpop.permute.xlu0 %13873
    %v13893 = vrot.slane %v13577, 7
    %v13894 = vsel %vm13641, %v13893, %v13576
    %v13895 = vrot.slane %v13578, 6
    %v13896 = vsel %vm13644, %v13895, %v13894
    %v13897 = vrot.slane %v13579, 5
    %v13898 = vsel %vm13647, %v13897, %v13896
    %v13899 = vrot.slane %v13580, 4
    %v13900 = vsel %vm13650, %v13899, %v13898
    %v13901 = vrot.slane %v13581, 3
    %v13902 = vsel %vm13653, %v13901, %v13900
    %v13903 = vrot.slane %v13582, 2
    %v13904 = vsel %vm13656, %v13903, %v13902
    %v13905 = vrot.slane %v13583, 1
    %v13906 = vsel %vm13659, %v13905, %v13904
    %v13907 = vrot.slane %v13585, 7
    %v13908 = vsel %vm13641, %v13907, %v13584
    %v13909 = vrot.slane %v13586, 6
    %v13910 = vsel %vm13644, %v13909, %v13908
    %v13911 = vrot.slane %v13587, 5
    %v13912 = vsel %vm13647, %v13911, %v13910
    %v13913 = vrot.slane %v13588, 4
    %v13914 = vsel %vm13650, %v13913, %v13912
    %v13915 = vrot.slane %v13589, 3
    %v13916 = vsel %vm13653, %v13915, %v13914
    %v13917 = vrot.slane %v13590, 2
    %v13918 = vsel %vm13656, %v13917, %v13916
    %v13919 = vrot.slane %v13591, 1
    %v13920 = vsel %vm13659, %v13919, %v13918
    %13921 = vrot.lane.b32.xlu0 %v13906, 20
    %v13922 = vpop.permute.xlu0 %13921
    %13923 = vrot.lane.b32.xlu0 %v13920, 20
    %v13924 = vpop.permute.xlu0 %13923
    %v13943 = vrot.slane %v13593, 7
    %v13944 = vsel %vm13641, %v13943, %v13592
    %v13945 = vrot.slane %v13594, 6
    %v13946 = vsel %vm13644, %v13945, %v13944
    %v13947 = vrot.slane %v13595, 5
    %v13948 = vsel %vm13647, %v13947, %v13946
    %v13949 = vrot.slane %v13596, 4
    %v13950 = vsel %vm13650, %v13949, %v13948
    %v13951 = vrot.slane %v13597, 3
    %v13952 = vsel %vm13653, %v13951, %v13950
    %v13953 = vrot.slane %v13598, 2
    %v13954 = vsel %vm13656, %v13953, %v13952
    %v13955 = vrot.slane %v13599, 1
    %v13956 = vsel %vm13659, %v13955, %v13954
    %v13957 = vrot.slane %v13601, 7
    %v13958 = vsel %vm13641, %v13957, %v13600
    %v13959 = vrot.slane %v13602, 6
    %v13960 = vsel %vm13644, %v13959, %v13958
    %v13961 = vrot.slane %v13603, 5
    %v13962 = vsel %vm13647, %v13961, %v13960
    %v13963 = vrot.slane %v13604, 4
    %v13964 = vsel %vm13650, %v13963, %v13962
    %v13965 = vrot.slane %v13605, 3
    %v13966 = vsel %vm13653, %v13965, %v13964
    %v13967 = vrot.slane %v13606, 2
    %v13968 = vsel %vm13656, %v13967, %v13966
    %v13969 = vrot.slane %v13607, 1
    %v13970 = vsel %vm13659, %v13969, %v13968
    %13971 = vrot.lane.b32.xlu0 %v13956, 24
    %v13972 = vpop.permute.xlu0 %13971
    %13973 = vrot.lane.b32.xlu0 %v13970, 24
    %v13974 = vpop.permute.xlu0 %13973
    %v13993 = vrot.slane %v13609, 7
    %v13994 = vsel %vm13641, %v13993, %v13608
    %v13995 = vrot.slane %v13610, 6
    %v13996 = vsel %vm13644, %v13995, %v13994
    %v13997 = vrot.slane %v13611, 5
    %v13998 = vsel %vm13647, %v13997, %v13996
    %v13999 = vrot.slane %v13612, 4
    %v14000 = vsel %vm13650, %v13999, %v13998
    %v14001 = vrot.slane %v13613, 3
    %v14002 = vsel %vm13653, %v14001, %v14000
    %v14003 = vrot.slane %v13614, 2
    %v14004 = vsel %vm13656, %v14003, %v14002
    %v14005 = vrot.slane %v13615, 1
    %v14006 = vsel %vm13659, %v14005, %v14004
    %v14007 = vrot.slane %v13617, 7
    %v14008 = vsel %vm13641, %v14007, %v13616
    %v14009 = vrot.slane %v13618, 6
    %v14010 = vsel %vm13644, %v14009, %v14008
    %v14011 = vrot.slane %v13619, 5
    %v14012 = vsel %vm13647, %v14011, %v14010
    %v14013 = vrot.slane %v13620, 4
    %v14014 = vsel %vm13650, %v14013, %v14012
    %v14015 = vrot.slane %v13621, 3
    %v14016 = vsel %vm13653, %v14015, %v14014
    %v14017 = vrot.slane %v13622, 2
    %v14018 = vsel %vm13656, %v14017, %v14016
    %v14019 = vrot.slane %v13623, 1
    %v14020 = vsel %vm13659, %v14019, %v14018
    %14021 = vrot.lane.b32.xlu0 %v14006, 28
    %v14022 = vpop.permute.xlu0 %14021
    %14023 = vrot.lane.b32.xlu0 %v14020, 28
    %v14024 = vpop.permute.xlu0 %14023
    %14027 = vrot.lane.b32.xlu0 %v13660, 28
    %v14028 = vpop.permute.xlu0 %14027
    %14029 = vrot.lane.b32.xlu0 %v13674, 28
    %v14030 = vpop.permute.xlu0 %14029
    %14033 = vrot.lane.b32.xlu0 %v13706, 32
    %v14034 = vpop.permute.xlu0 %14033
    %14035 = vrot.lane.b32.xlu0 %v13720, 32
    %v14036 = vpop.permute.xlu0 %14035
    %14039 = vrot.lane.b32.xlu0 %v13756, 36
    %v14040 = vpop.permute.xlu0 %14039
    %14041 = vrot.lane.b32.xlu0 %v13770, 36
    %v14042 = vpop.permute.xlu0 %14041
    %14045 = vrot.lane.b32.xlu0 %v13806, 40
    %v14046 = vpop.permute.xlu0 %14045
    %14047 = vrot.lane.b32.xlu0 %v13820, 40
    %v14048 = vpop.permute.xlu0 %14047
    %14051 = vrot.lane.b32.xlu0 %v13856, 44
    %v14052 = vpop.permute.xlu0 %14051
    %14053 = vrot.lane.b32.xlu0 %v13870, 44
    %v14054 = vpop.permute.xlu0 %14053
    %14057 = vrot.lane.b32.xlu0 %v13906, 48
    %v14058 = vpop.permute.xlu0 %14057
    %14059 = vrot.lane.b32.xlu0 %v13920, 48
    %v14060 = vpop.permute.xlu0 %14059
    %14063 = vrot.lane.b32.xlu0 %v13956, 52
    %v14064 = vpop.permute.xlu0 %14063
    %14065 = vrot.lane.b32.xlu0 %v13970, 52
    %v14066 = vpop.permute.xlu0 %14065
    %14069 = vrot.lane.b32.xlu0 %v14006, 56
    %v14070 = vpop.permute.xlu0 %14069
    %14071 = vrot.lane.b32.xlu0 %v14020, 56
    %v14072 = vpop.permute.xlu0 %14071
    %vm14075 = vcmask 31744
    %v14076 = vsel %vm14075, %v13660, %v13722
    %v14077 = vsel %vm14075, %v13674, %v13724
    %vm14078 = vcmask 64512
    %v14079 = vsel %vm14078, %v14076, %v13772
    %v14080 = vsel %vm14078, %v14077, %v13774
    %vm14081 = vcmask 97280
    %v14082 = vsel %vm14081, %v14079, %v13822
    %v14083 = vsel %vm14081, %v14080, %v13824
    %v14084 = vsel %vm13479, %v14082, %v13872
    %v14085 = vsel %vm13479, %v14083, %v13874
    %vm14086 = vcmask 162816
    %v14087 = vsel %vm14086, %v14084, %v13922
    %v14088 = vsel %vm14086, %v14085, %v13924
    %vm14089 = vcmask 195584
    %v14090 = vsel %vm14089, %v14087, %v13972
    %v14091 = vsel %vm14089, %v14088, %v13974
    %vm14092 = vcmask 228352
    %v14093 = vsel %vm14092, %v14090, %v14022
    %v14094 = vsel %vm14092, %v14091, %v14024
    %vm14095 = vcmask 261120
    %v14096 = vsel %vm14095, %v14093, %v14028
    %v14097 = vsel %vm14095, %v14094, %v14030
    %vm14098 = vcmask 293888
    %v14099 = vsel %vm14098, %v14096, %v14034
    %v14100 = vsel %vm14098, %v14097, %v14036
    %vm14101 = vcmask 326656
    %v14102 = vsel %vm14101, %v14099, %v14040
    %v14103 = vsel %vm14101, %v14100, %v14042
    %vm14104 = vcmask 359424
    %v14105 = vsel %vm14104, %v14102, %v14046
    %v14106 = vsel %vm14104, %v14103, %v14048
    %vm14107 = vcmask 392192
    %v14108 = vsel %vm14107, %v14105, %v14052
    %v14109 = vsel %vm14107, %v14106, %v14054
    %vm14110 = vcmask 424960
    %v14111 = vsel %vm14110, %v14108, %v14058
    %v14112 = vsel %vm14110, %v14109, %v14060
    %vm14113 = vcmask 457728
    %v14114 = vsel %vm14113, %v14111, %v14064
    %v14115 = vsel %vm14113, %v14112, %v14066
    %vm14116 = vcmask 490496
    %v14117 = vsel %vm14116, %v14114, %v14070
    %v14118 = vsel %vm14116, %v14115, %v14072
    %14119 = vrot.lane.b32.xlu0 %v13660, 120
    %v14120 = vpop.permute.xlu0 %14119
    %14121 = vrot.lane.b32.xlu0 %v13674, 120
    %v14122 = vpop.permute.xlu0 %14121
    %14125 = vrot.lane.b32.xlu0 %v13706, 124
    %v14126 = vpop.permute.xlu0 %14125
    %14127 = vrot.lane.b32.xlu0 %v13720, 124
    %v14128 = vpop.permute.xlu0 %14127
    %14133 = vrot.lane.b32.xlu0 %v13806, 4
    %v14134 = vpop.permute.xlu0 %14133
    %14135 = vrot.lane.b32.xlu0 %v13820, 4
    %v14136 = vpop.permute.xlu0 %14135
    %14139 = vrot.lane.b32.xlu0 %v13856, 8
    %v14140 = vpop.permute.xlu0 %14139
    %14141 = vrot.lane.b32.xlu0 %v13870, 8
    %v14142 = vpop.permute.xlu0 %14141
    %14145 = vrot.lane.b32.xlu0 %v13906, 12
    %v14146 = vpop.permute.xlu0 %14145
    %14147 = vrot.lane.b32.xlu0 %v13920, 12
    %v14148 = vpop.permute.xlu0 %14147
    %14151 = vrot.lane.b32.xlu0 %v13956, 16
    %v14152 = vpop.permute.xlu0 %14151
    %14153 = vrot.lane.b32.xlu0 %v13970, 16
    %v14154 = vpop.permute.xlu0 %14153
    %14157 = vrot.lane.b32.xlu0 %v14006, 20
    %v14158 = vpop.permute.xlu0 %14157
    %14159 = vrot.lane.b32.xlu0 %v14020, 20
    %v14160 = vpop.permute.xlu0 %14159
    %14163 = vrot.lane.b32.xlu0 %v13660, 20
    %v14164 = vpop.permute.xlu0 %14163
    %14165 = vrot.lane.b32.xlu0 %v13674, 20
    %v14166 = vpop.permute.xlu0 %14165
    %14169 = vrot.lane.b32.xlu0 %v13706, 24
    %v14170 = vpop.permute.xlu0 %14169
    %14171 = vrot.lane.b32.xlu0 %v13720, 24
    %v14172 = vpop.permute.xlu0 %14171
    %14175 = vrot.lane.b32.xlu0 %v13756, 28
    %v14176 = vpop.permute.xlu0 %14175
    %14177 = vrot.lane.b32.xlu0 %v13770, 28
    %v14178 = vpop.permute.xlu0 %14177
    %14181 = vrot.lane.b32.xlu0 %v13806, 32
    %v14182 = vpop.permute.xlu0 %14181
    %14183 = vrot.lane.b32.xlu0 %v13820, 32
    %v14184 = vpop.permute.xlu0 %14183
    %14187 = vrot.lane.b32.xlu0 %v13856, 36
    %v14188 = vpop.permute.xlu0 %14187
    %14189 = vrot.lane.b32.xlu0 %v13870, 36
    %v14190 = vpop.permute.xlu0 %14189
    %14193 = vrot.lane.b32.xlu0 %v13906, 40
    %v14194 = vpop.permute.xlu0 %14193
    %14195 = vrot.lane.b32.xlu0 %v13920, 40
    %v14196 = vpop.permute.xlu0 %14195
    %14199 = vrot.lane.b32.xlu0 %v13956, 44
    %v14200 = vpop.permute.xlu0 %14199
    %14201 = vrot.lane.b32.xlu0 %v13970, 44
    %v14202 = vpop.permute.xlu0 %14201
    %14205 = vrot.lane.b32.xlu0 %v14006, 48
    %v14206 = vpop.permute.xlu0 %14205
    %14207 = vrot.lane.b32.xlu0 %v14020, 48
    %v14208 = vpop.permute.xlu0 %14207
    %v14211 = vsel %vm14075, %v14120, %v14126
    %v14212 = vsel %vm14075, %v14122, %v14128
    %v14213 = vsel %vm14078, %v14211, %v13756
    %v14214 = vsel %vm14078, %v14212, %v13770
    %v14215 = vsel %vm14081, %v14213, %v14134
    %v14216 = vsel %vm14081, %v14214, %v14136
    %v14217 = vsel %vm13479, %v14215, %v14140
    %v14218 = vsel %vm13479, %v14216, %v14142
    %v14219 = vsel %vm14086, %v14217, %v14146
    %v14220 = vsel %vm14086, %v14218, %v14148
    %v14221 = vsel %vm14089, %v14219, %v14152
    %v14222 = vsel %vm14089, %v14220, %v14154
    %v14223 = vsel %vm14092, %v14221, %v14158
    %v14224 = vsel %vm14092, %v14222, %v14160
    %v14225 = vsel %vm14095, %v14223, %v14164
    %v14226 = vsel %vm14095, %v14224, %v14166
    %v14227 = vsel %vm14098, %v14225, %v14170
    %v14228 = vsel %vm14098, %v14226, %v14172
    %v14229 = vsel %vm14101, %v14227, %v14176
    %v14230 = vsel %vm14101, %v14228, %v14178
    %v14231 = vsel %vm14104, %v14229, %v14182
    %v14232 = vsel %vm14104, %v14230, %v14184
    %v14233 = vsel %vm14107, %v14231, %v14188
    %v14234 = vsel %vm14107, %v14232, %v14190
    %v14235 = vsel %vm14110, %v14233, %v14194
    %v14236 = vsel %vm14110, %v14234, %v14196
    %v14237 = vsel %vm14113, %v14235, %v14200
    %v14238 = vsel %vm14113, %v14236, %v14202
    %v14239 = vsel %vm14116, %v14237, %v14206
    %v14240 = vsel %vm14116, %v14238, %v14208
    %14243 = vrot.lane.b32.xlu0 %v14239, 64
    %v14244 = vpop.permute.xlu0 %14243
    %14245 = vrot.lane.b32.xlu0 %v14240, 64
    %v14246 = vpop.permute.xlu0 %14245
    %v14249 = vsel %vm2003, %v14117, %v14244
    %v14250 = vsel %vm2003, %v14118, %v14246
    %14251 = vst [vmem:[%s11] sm:$0xff] %v14249
    %14252 = vst [vmem:[%s11 + $0x8] sm:$0xff] %v14250
    // Predicated region
    $region66: #{_lambda_.1} parent=1 // pred_check
      _
    $region67: #{_lambda_.1} parent=1 // pred_check_branch
      %14254 = sbr.rel (0) target = $region69
    $region68: #{_lambda_.1} parent=1 // pred_region
      _
    $region69: #{_lambda_.1} parent=1 // pred_fallthru
      _
    // Predicated region
    $region70: #{_lambda_.1} parent=1 // pred_check
      _
    $region71: #{_lambda_.1} parent=1 // pred_check_branch
      %14256 = sbr.rel (0) target = $region73
    $region72: #{_lambda_.1} parent=1 // pred_region
      _
    $region73: #{_lambda_.1} parent=1 // pred_fallthru
      _
    %14257 = vsyncpa [#allocation6], 1
    %14258 = vsyncpa [#allocation8], 1
    %14259 = vsyncpa [#allocation11], 1

</llo_original>
